<compile_context>
chip_gen: v7x
topology: tpu7x:2x2x1
jax: 0.10.0
libtpu: 0.0.40
codegen_flags: <defaults>
</compile_context>

<pallas_src>
import functools
import math

import jax
import jax.numpy as jnp
import numpy as np
from jax.experimental import pallas as pl
from jax.experimental.pallas import tpu as pltpu

NEG_SLOPE = 0.1      # nn.LeakyReLU(negative_slope=0.1) in DisBlock and in the classifier
BN_EPS = 1e-5
NB = 8               # batch dimension padded to a full sublane tile


# --------------------------- layer configuration ----------------------------

def build_cfgs(in_channels, num_features, dis_blocks):
    crop = 4 * (2 ** dis_blocks)
    chans = [in_channels, num_features]
    for i in range(dis_blocks - 1):
        chans.append(num_features * min(2 ** (i + 1), 8))
    cfgs = []
    h = crop
    for b in range(dis_blocks):
        cin, cout = chans[b], chans[b + 1]
        # DisBlock: conv 3x3 s1 p1 -> BN -> lrelu ; conv 4x4 s2 p1 -> BN -> lrelu
        cfgs.append(dict(k=3, s=1, cin=cin, cout=cout, hin=h, win=h, hout=h, wout=h))
        cfgs.append(dict(k=4, s=2, cin=cout, cout=cout, hin=h, win=h, hout=h // 2, wout=h // 2))
        h //= 2
    return cfgs


# ------------------------------ fused kernel --------------------------------

def make_kernel(cfgs, n_real):
    """Whole Discriminator forward, statically unrolled into one kernel body."""
    h_last = cfgs[-1]['hout']
    cw_last = cfgs[-1]['cout'] * cfgs[-1]['wout']

    def kernel(*refs):
        it = iter(refs)
        a_ref = next(it)
        layer_refs = [tuple(next(it) for _ in range(6)) for _ in cfgs]
        w1_ref, b1_ref, w2_ref, b2_ref = (next(it) for _ in range(4))
        o_ref = next(it)

        A = a_ref[...]                                   # (hin*8, cin*win)
        for cfg, (s_ref, m_ref, g_ref, gt_ref, ga_ref, be_ref) in zip(cfgs, layer_refs):
            k = cfg['k']
            rout = cfg['hout'] * NB
            lin = cfg['cin'] * cfg['win']

            # conv = sum over kernel rows of (row-gather matmul) @ (width/weight contraction)
            Y = None
            for kh in range(k):
                gathered = jnp.dot(s_ref[kh * rout:(kh + 1) * rout, :], A,
                                   preferred_element_type=jnp.float32)
                part = jnp.dot(gathered, m_ref[kh * lin:(kh + 1) * lin, :],
                               preferred_element_type=jnp.float32)
                Y = part if Y is None else Y + part      # (hout*8, cout*wout)

            # fused BatchNorm2d (training-mode batch statistics) + LeakyReLU(0.1).
            # Fake batch rows of Y are exactly zero (S only selects real images), so plain sums
            # divided by the real count give exact per-channel batch statistics.
            cnt = float(n_real * cfg['hout'] * cfg['wout'])
            colsum = jnp.sum(Y, axis=0, keepdims=True)           # XLU cross-sublane reduce
            colsq = jnp.sum(Y * Y, axis=0, keepdims=True)
            sums = jnp.dot(colsum, g_ref[...], preferred_element_type=jnp.float32)
            sqs = jnp.dot(colsq, g_ref[...], preferred_element_type=jnp.float32)
            mean_c = sums / cnt
            var_c = jnp.maximum(sqs / cnt - mean_c * mean_c, 0.0)   # biased variance
            scale_c = ga_ref[...] * jax.lax.rsqrt(var_c + BN_EPS)
            shift_c = be_ref[...] - mean_c * scale_c
            scale_l = jnp.dot(scale_c, gt_ref[...], preferred_element_type=jnp.float32)
            shift_l = jnp.dot(shift_c, gt_ref[...], preferred_element_type=jnp.float32)
            Z = Y * scale_l + shift_l
            A = jnp.maximum(Z, NEG_SLOPE * Z)            # LeakyReLU(0.1), single VPU max

        # classifier: NCHW flatten is folded into the blocked fc1 weights (one block per h row)
        h1 = None
        for h in range(h_last):
            part = jnp.dot(A[h * NB:(h + 1) * NB, :],
                           w1_ref[h * cw_last:(h + 1) * cw_last, :],
                           preferred_element_type=jnp.float32)
            h1 = part if h1 is None else h1 + part       # (8, 100)
        h1 = h1 + b1_ref[...]
        h1 = jnp.maximum(h1, NEG_SLOPE * h1)
        o_ref[...] = jnp.dot(h1, w2_ref[...], preferred_element_type=jnp.float32) + b2_ref[...]

    return kernel


# --------------------------- host-side weight prep ---------------------------

def pack_params(params, cfgs, n_real):
    """One-time numpy conversion of PyTorch-layout weights into the kernel's matrices."""
    E = np.zeros((NB, NB), np.float32)
    E[:n_real, :n_real] = np.eye(n_real, dtype=np.float32)

    layer_params = []
    for bp in params["blocks"]:
        layer_params.append((bp["w1"], bp["g1"], bp["be1"]))
        layer_params.append((bp["w2"], bp["g2"], bp["be2"]))

    arrs = []
    for cfg, (wgt, gamma, beta) in zip(cfgs, layer_params):
        W = np.asarray(wgt, dtype=np.float32)            # (Cout, Cin, k, k) PyTorch OIHW
        k, s = cfg['k'], cfg['s']
        hin, hout, win, wout = cfg['hin'], cfg['hout'], cfg['win'], cfg['wout']
        cin, cout = cfg['cin'], cfg['cout']

        # S_kh: gathers input row (s*ho - 1 + kh) for every output row; zero rows implement the
        # H zero-padding, and the E block keeps images separated / zeroes fake batch slots.
        s_blocks = []
        for kh in range(k):
            R = np.zeros((hout, hin), np.float32)
            for ho in range(hout):
                hi = s * ho - 1 + kh
                if 0 <= hi < hin:
                    R[ho, hi] = 1.0
            s_blocks.append(np.kron(R, E))

        # M_kh: joint (channel, width-tap) contraction; absent rows implement the W zero-padding.
        m_blocks = []
        for kh in range(k):
            M = np.zeros((cin * win, cout * wout), np.float32)
            for wo in range(wout):
                for kw in range(k):
                    wi = s * wo - 1 + kw
                    if 0 <= wi < win:
                        M[wi::win, wo::wout] += W[:, :, kh, kw].T
            m_blocks.append(M)

        G = np.kron(np.eye(cout, dtype=np.float32), np.ones((wout, 1), np.float32))
        arrs += [np.concatenate(s_blocks, axis=0),
                 np.concatenate(m_blocks, axis=0),
                 G, np.ascontiguousarray(G.T),
                 np.asarray(gamma, np.float32).reshape(1, cout),
                 np.asarray(beta, np.float32).reshape(1, cout)]
        # conv bias intentionally not applied: training-mode BatchNorm cancels it exactly.

    c3, h3, w3 = cfgs[-1]['cout'], cfgs[-1]['hout'], cfgs[-1]['wout']
    w1 = np.asarray(params["fc1"][0], np.float32)        # (100, c3*h3*w3)
    b1 = np.asarray(params["fc1"][1], np.float32)
    w1cat = np.transpose(w1.reshape(-1, c3, h3, w3), (2, 1, 3, 0)).reshape(h3 * c3 * w3, -1)
    w2 = np.asarray(params["fc2"][0], np.float32)        # (1, 100)
    b2 = np.asarray(params["fc2"][1], np.float32)
    w2p = np.zeros((w2.shape[1], 128), np.float32)       # pad out features 1 -> 128 (lane-dense)
    w2p[:, 0] = w2[0]
    b2p = np.zeros((1, 128), np.float32)
    b2p[0, 0] = b2[0]
    arrs += [np.ascontiguousarray(w1cat), b1.reshape(1, -1), w2p, b2p]
    return [jnp.asarray(a) for a in arrs]


# ---------------------------- Discriminator fwd ----------------------------

def discriminator_forward(x_nchw, packed, *, cfgs, n_real):
    crop = cfgs[0]['hin']
    n, c, h, w = x_nchw.shape
    top, left = (h - crop) // 2, (w - crop) // 2
    xc = x_nchw[:, :, top:top + crop, left:left + crop]     # center_crop
    # kernel activation layout: rows = h*8 + n (batch padded to 8), lanes = c*W
    xt = jnp.transpose(xc, (2, 0, 1, 3))                    # (H, N, C, W)
    xt = jnp.pad(xt, ((0, 0), (0, NB - n), (0, 0), (0, 0)))
    a0 = xt.reshape(crop * NB, c * crop).astype(jnp.float32)

    inputs = [a0] + list(packed)
    kernel = make_kernel(cfgs, n_real)
    out = pl.pallas_call(
        kernel,
        out_shape=jax.ShapeDtypeStruct((NB, 128), jnp.float32),
        grid=(1,),
        in_specs=[pl.BlockSpec(a.shape, lambda i: (0, 0)) for a in inputs],
        out_specs=pl.BlockSpec((NB, 128), lambda i: (0, 0)),
        compiler_params=pltpu.CompilerParams(dimension_semantics=("arbitrary",)),
    )(*inputs)
    return out[:n, :1]


# ------------------------------- parameters --------------------------------

def _kaiming(key, shape, fan_in, scale=1.0):
    std = math.sqrt(2.0 / fan_in)
    return jax.random.normal(key, shape, jnp.float32) * std * scale


def init_params(key, in_channels, num_features, dis_blocks):
    chans = [in_channels, num_features]
    for i in range(dis_blocks - 1):
        chans.append(num_features * min(2 ** (i + 1), 8))
    keys = jax.random.split(key, 2 * dis_blocks + 2)
    ki = 0
    params = {"blocks": []}
    for b in range(dis_blocks):
        cin, cout = chans[b], chans[b + 1]
        w1 = _kaiming(keys[ki], (cout, cin, 3, 3), cin * 9, scale=0.1); ki += 1
        w2 = _kaiming(keys[ki], (cout, cout, 4, 4), cout * 16, scale=0.1); ki += 1
        params["blocks"].append({
            "w1": w1, "b1": jnp.zeros((cout,), jnp.float32),
            "g1": jnp.ones((cout,), jnp.float32), "be1": jnp.zeros((cout,), jnp.float32),
            "w2": w2, "b2": jnp.zeros((cout,), jnp.float32),
            "g2": jnp.ones((cout,), jnp.float32), "be2": jnp.zeros((cout,), jnp.float32),
        })
    feat = chans[-1] * 4 * 4
    params["fc1"] = (_kaiming(keys[ki], (100, feat), feat), jnp.zeros((100,), jnp.float32)); ki += 1
    params["fc2"] = (_kaiming(keys[ki], (1, 100), 100), jnp.zeros((1,), jnp.float32)); ki += 1
    return params


# ----------------------------------- main -----------------------------------

if __name__ == "__main__":
    in_channels, num_features, dis_blocks = 3, 8, 2   # crop_size = 4 * 2**2 = 16
    key = jax.random.PRNGKey(0)
    k_in, k_par = jax.random.split(key)
    x = jax.random.normal(k_in, (2, in_channels, 20, 20), jnp.float32)

    cfgs = build_cfgs(in_channels, num_features, dis_blocks)
    params = init_params(k_par, in_channels, num_features, dis_blocks)
    packed = pack_params(params, cfgs, n_real=x.shape[0])   # host-side, one-time

    fwd = jax.jit(functools.partial(discriminator_forward, cfgs=cfgs, n_real=x.shape[0]))
    out = fwd(x, packed)
    jax.block_until_ready(out)
    assert out.shape == (2, 1) and out.dtype == jnp.float32
    assert bool(jnp.all(jnp.isfinite(out)))
    print("KERNEL_OK")
</pallas_src>

<mosaic_0001>
module attributes {stable_mosaic.version = 11 : i64} {
  func.func @kernel(%arg0: i32, %arg1: memref<128x48xf32, #tpu.memory_space<vmem>>, %arg2: memref<384x128xf32, #tpu.memory_space<vmem>>, %arg3: memref<144x128xf32, #tpu.memory_space<vmem>>, %arg4: memref<128x8xf32, #tpu.memory_space<vmem>>, %arg5: memref<8x128xf32, #tpu.memory_space<vmem>>, %arg6: memref<1x8xf32, #tpu.memory_space<vmem>>, %arg7: memref<1x8xf32, #tpu.memory_space<vmem>>, %arg8: memref<256x128xf32, #tpu.memory_space<vmem>>, %arg9: memref<512x64xf32, #tpu.memory_space<vmem>>, %arg10: memref<64x8xf32, #tpu.memory_space<vmem>>, %arg11: memref<8x64xf32, #tpu.memory_space<vmem>>, %arg12: memref<1x8xf32, #tpu.memory_space<vmem>>, %arg13: memref<1x8xf32, #tpu.memory_space<vmem>>, %arg14: memref<192x64xf32, #tpu.memory_space<vmem>>, %arg15: memref<192x128xf32, #tpu.memory_space<vmem>>, %arg16: memref<128x16xf32, #tpu.memory_space<vmem>>, %arg17: memref<16x128xf32, #tpu.memory_space<vmem>>, %arg18: memref<1x16xf32, #tpu.memory_space<vmem>>, %arg19: memref<1x16xf32, #tpu.memory_space<vmem>>, %arg20: memref<128x64xf32, #tpu.memory_space<vmem>>, %arg21: memref<512x64xf32, #tpu.memory_space<vmem>>, %arg22: memref<64x16xf32, #tpu.memory_space<vmem>>, %arg23: memref<16x64xf32, #tpu.memory_space<vmem>>, %arg24: memref<1x16xf32, #tpu.memory_space<vmem>>, %arg25: memref<1x16xf32, #tpu.memory_space<vmem>>, %arg26: memref<256x100xf32, #tpu.memory_space<vmem>>, %arg27: memref<1x100xf32, #tpu.memory_space<vmem>>, %arg28: memref<100x128xf32, #tpu.memory_space<vmem>>, %arg29: memref<1x128xf32, #tpu.memory_space<vmem>>, %arg30: memref<8x128xf32, #tpu.memory_space<vmem>>) attributes {dimension_semantics = [#tpu.dimension_semantics<arbitrary>], iteration_bounds = array<i64: 1>, scalar_prefetch = 0 : i64, scratch_operands = 0 : i64, tpu.core_type = #tpu.core_type<tc>, window_params = [{pipeline_mode = #tpu.pipeline_mode<synchronous>, transform_indices = @transform_0, window_bounds = array<i64: 128, 48>}, {pipeline_mode = #tpu.pipeline_mode<synchronous>, transform_indices = @transform_1, window_bounds = array<i64: 384, 128>}, {pipeline_mode = #tpu.pipeline_mode<synchronous>, transform_indices = @transform_2, window_bounds = array<i64: 144, 128>}, {pipeline_mode = #tpu.pipeline_mode<synchronous>, transform_indices = @transform_3, window_bounds = array<i64: 128, 8>}, {pipeline_mode = #tpu.pipeline_mode<synchronous>, transform_indices = @transform_4, window_bounds = array<i64: 8, 128>}, {pipeline_mode = #tpu.pipeline_mode<synchronous>, transform_indices = @transform_5, window_bounds = array<i64: 1, 8>}, {pipeline_mode = #tpu.pipeline_mode<synchronous>, transform_indices = @transform_6, window_bounds = array<i64: 1, 8>}, {pipeline_mode = #tpu.pipeline_mode<synchronous>, transform_indices = @transform_7, window_bounds = array<i64: 256, 128>}, {pipeline_mode = #tpu.pipeline_mode<synchronous>, transform_indices = @transform_8, window_bounds = array<i64: 512, 64>}, {pipeline_mode = #tpu.pipeline_mode<synchronous>, transform_indices = @transform_9, window_bounds = array<i64: 64, 8>}, {pipeline_mode = #tpu.pipeline_mode<synchronous>, transform_indices = @transform_10, window_bounds = array<i64: 8, 64>}, {pipeline_mode = #tpu.pipeline_mode<synchronous>, transform_indices = @transform_11, window_bounds = array<i64: 1, 8>}, {pipeline_mode = #tpu.pipeline_mode<synchronous>, transform_indices = @transform_12, window_bounds = array<i64: 1, 8>}, {pipeline_mode = #tpu.pipeline_mode<synchronous>, transform_indices = @transform_13, window_bounds = array<i64: 192, 64>}, {pipeline_mode = #tpu.pipeline_mode<synchronous>, transform_indices = @transform_14, window_bounds = array<i64: 192, 128>}, {pipeline_mode = #tpu.pipeline_mode<synchronous>, transform_indices = @transform_15, window_bounds = array<i64: 128, 16>}, {pipeline_mode = #tpu.pipeline_mode<synchronous>, transform_indices = @transform_16, window_bounds = array<i64: 16, 128>}, {pipeline_mode = #tpu.pipeline_mode<synchronous>, transform_indices = @transform_17, window_bounds = array<i64: 1, 16>}, {pipeline_mode = #tpu.pipeline_mode<synchronous>, transform_indices = @transform_18, window_bounds = array<i64: 1, 16>}, {pipeline_mode = #tpu.pipeline_mode<synchronous>, transform_indices = @transform_19, window_bounds = array<i64: 128, 64>}, {pipeline_mode = #tpu.pipeline_mode<synchronous>, transform_indices = @transform_20, window_bounds = array<i64: 512, 64>}, {pipeline_mode = #tpu.pipeline_mode<synchronous>, transform_indices = @transform_21, window_bounds = array<i64: 64, 16>}, {pipeline_mode = #tpu.pipeline_mode<synchronous>, transform_indices = @transform_22, window_bounds = array<i64: 16, 64>}, {pipeline_mode = #tpu.pipeline_mode<synchronous>, transform_indices = @transform_23, window_bounds = array<i64: 1, 16>}, {pipeline_mode = #tpu.pipeline_mode<synchronous>, transform_indices = @transform_24, window_bounds = array<i64: 1, 16>}, {pipeline_mode = #tpu.pipeline_mode<synchronous>, transform_indices = @transform_25, window_bounds = array<i64: 256, 100>}, {pipeline_mode = #tpu.pipeline_mode<synchronous>, transform_indices = @transform_26, window_bounds = array<i64: 1, 100>}, {pipeline_mode = #tpu.pipeline_mode<synchronous>, transform_indices = @transform_27, window_bounds = array<i64: 100, 128>}, {pipeline_mode = #tpu.pipeline_mode<synchronous>, transform_indices = @transform_28, window_bounds = array<i64: 1, 128>}, {pipeline_mode = #tpu.pipeline_mode<synchronous>, transform_indices = @transform_29, window_bounds = array<i64: 8, 128>}]} {
    %c0 = arith.constant 0 : index
    %c0_0 = arith.constant 0 : index
    %0 = vector.load %arg1[%c0, %c0_0] : memref<128x48xf32, #tpu.memory_space<vmem>>, vector<128x48xf32>
    %c0_1 = arith.constant 0 : index
    %c0_2 = arith.constant 0 : index
    %1 = vector.load %arg2[%c0_1, %c0_2] : memref<384x128xf32, #tpu.memory_space<vmem>>, vector<128x128xf32>
    %cst = arith.constant dense<0.000000e+00> : vector<128x48xf32>
    %2 = tpu.matmul %1, %0, %cst {dimension_numbers = #tpu.dot_dimension_numbers<[1], [0], [0], [1], [0, 0, 1, 1], [], []>} : vector<128x128xf32>, vector<128x48xf32>, vector<128x48xf32> -> vector<128x48xf32>
    %c0_3 = arith.constant 0 : index
    %c0_4 = arith.constant 0 : index
    %3 = vector.load %arg3[%c0_3, %c0_4] : memref<144x128xf32, #tpu.memory_space<vmem>>, vector<48x128xf32>
    %cst_5 = arith.constant dense<0.000000e+00> : vector<128x128xf32>
    %4 = tpu.matmul %2, %3, %cst_5 {dimension_numbers = #tpu.dot_dimension_numbers<[1], [0], [0], [1], [0, 0, 1, 1], [], []>} : vector<128x48xf32>, vector<48x128xf32>, vector<128x128xf32> -> vector<128x128xf32>
    %c128 = arith.constant 128 : index
    %c0_6 = arith.constant 0 : index
    %5 = vector.load %arg2[%c128, %c0_6] : memref<384x128xf32, #tpu.memory_space<vmem>>, vector<128x128xf32>
    %cst_7 = arith.constant dense<0.000000e+00> : vector<128x48xf32>
    %6 = tpu.matmul %5, %0, %cst_7 {dimension_numbers = #tpu.dot_dimension_numbers<[1], [0], [0], [1], [0, 0, 1, 1], [], []>} : vector<128x128xf32>, vector<128x48xf32>, vector<128x48xf32> -> vector<128x48xf32>
    %c48 = arith.constant 48 : index
    %c0_8 = arith.constant 0 : index
    %7 = vector.load %arg3[%c48, %c0_8] : memref<144x128xf32, #tpu.memory_space<vmem>>, vector<48x128xf32>
    %cst_9 = arith.constant dense<0.000000e+00> : vector<128x128xf32>
    %8 = tpu.matmul %6, %7, %cst_9 {dimension_numbers = #tpu.dot_dimension_numbers<[1], [0], [0], [1], [0, 0, 1, 1], [], []>} : vector<128x48xf32>, vector<48x128xf32>, vector<128x128xf32> -> vector<128x128xf32>
    %9 = arith.addf %4, %8 : vector<128x128xf32>
    %c256 = arith.constant 256 : index
    %c0_10 = arith.constant 0 : index
    %10 = vector.load %arg2[%c256, %c0_10] : memref<384x128xf32, #tpu.memory_space<vmem>>, vector<128x128xf32>
    %cst_11 = arith.constant dense<0.000000e+00> : vector<128x48xf32>
    %11 = tpu.matmul %10, %0, %cst_11 {dimension_numbers = #tpu.dot_dimension_numbers<[1], [0], [0], [1], [0, 0, 1, 1], [], []>} : vector<128x128xf32>, vector<128x48xf32>, vector<128x48xf32> -> vector<128x48xf32>
    %c96 = arith.constant 96 : index
    %c0_12 = arith.constant 0 : index
    %12 = vector.load %arg3[%c96, %c0_12] : memref<144x128xf32, #tpu.memory_space<vmem>>, vector<48x128xf32>
    %cst_13 = arith.constant dense<0.000000e+00> : vector<128x128xf32>
    %13 = tpu.matmul %11, %12, %cst_13 {dimension_numbers = #tpu.dot_dimension_numbers<[1], [0], [0], [1], [0, 0, 1, 1], [], []>} : vector<128x48xf32>, vector<48x128xf32>, vector<128x128xf32> -> vector<128x128xf32>
    %14 = arith.addf %9, %13 : vector<128x128xf32>
    %cst_14 = arith.constant dense<0.000000e+00> : vector<128xf32>
    %15 = vector.multi_reduction <add>, %14, %cst_14 [0] : vector<128x128xf32> to vector<128xf32>
    %16 = vector.shape_cast %15 : vector<128xf32> to vector<1x128xf32>
    %17 = arith.mulf %14, %14 : vector<128x128xf32>
    %cst_15 = arith.constant dense<0.000000e+00> : vector<128xf32>
    %18 = vector.multi_reduction <add>, %17, %cst_15 [0] : vector<128x128xf32> to vector<128xf32>
    %19 = vector.shape_cast %18 : vector<128xf32> to vector<1x128xf32>
    %c0_16 = arith.constant 0 : index
    %c0_17 = arith.constant 0 : index
    %20 = vector.load %arg4[%c0_16, %c0_17] : memref<128x8xf32, #tpu.memory_space<vmem>>, vector<128x8xf32>
    %cst_18 = arith.constant dense<0.000000e+00> : vector<1x8xf32>
    %21 = tpu.matmul %16, %20, %cst_18 {dimension_numbers = #tpu.dot_dimension_numbers<[1], [0], [0], [1], [0, 0, 1, 1], [], []>} : vector<1x128xf32>, vector<128x8xf32>, vector<1x8xf32> -> vector<1x8xf32>
    %c0_19 = arith.constant 0 : index
    %c0_20 = arith.constant 0 : index
    %22 = vector.load %arg4[%c0_19, %c0_20] : memref<128x8xf32, #tpu.memory_space<vmem>>, vector<128x8xf32>
    %cst_21 = arith.constant dense<0.000000e+00> : vector<1x8xf32>
    %23 = tpu.matmul %19, %22, %cst_21 {dimension_numbers = #tpu.dot_dimension_numbers<[1], [0], [0], [1], [0, 0, 1, 1], [], []>} : vector<1x128xf32>, vector<128x8xf32>, vector<1x8xf32> -> vector<1x8xf32>
    %cst_22 = arith.constant 5.120000e+02 : f32
    %24 = vector.broadcast %cst_22 : f32 to vector<1x8xf32>
    %25 = arith.divf %21, %24 : vector<1x8xf32>
    %cst_23 = arith.constant 5.120000e+02 : f32
    %26 = vector.broadcast %cst_23 : f32 to vector<1x8xf32>
    %27 = arith.divf %23, %26 : vector<1x8xf32>
    %28 = arith.mulf %25, %25 : vector<1x8xf32>
    %29 = arith.subf %27, %28 : vector<1x8xf32>
    %cst_24 = arith.constant 0.000000e+00 : f32
    %30 = vector.broadcast %cst_24 : f32 to vector<1x8xf32>
    %31 = arith.maximumf %29, %30 : vector<1x8xf32>
    %c0_25 = arith.constant 0 : index
    %c0_26 = arith.constant 0 : index
    %32 = vector.load %arg6[%c0_25, %c0_26] : memref<1x8xf32, #tpu.memory_space<vmem>>, vector<1x8xf32>
    %cst_27 = arith.constant 9.99999974E-6 : f32
    %33 = vector.broadcast %cst_27 : f32 to vector<1x8xf32>
    %34 = arith.addf %31, %33 : vector<1x8xf32>
    %35 = math.rsqrt %34 : vector<1x8xf32>
    %36 = arith.mulf %32, %35 : vector<1x8xf32>
    %c0_28 = arith.constant 0 : index
    %c0_29 = arith.constant 0 : index
    %37 = vector.load %arg7[%c0_28, %c0_29] : memref<1x8xf32, #tpu.memory_space<vmem>>, vector<1x8xf32>
    %38 = arith.mulf %25, %36 : vector<1x8xf32>
    %39 = arith.subf %37, %38 : vector<1x8xf32>
    %c0_30 = arith.constant 0 : index
    %c0_31 = arith.constant 0 : index
    %40 = vector.load %arg5[%c0_30, %c0_31] : memref<8x128xf32, #tpu.memory_space<vmem>>, vector<8x128xf32>
    %cst_32 = arith.constant dense<0.000000e+00> : vector<1x128xf32>
    %41 = tpu.matmul %36, %40, %cst_32 {dimension_numbers = #tpu.dot_dimension_numbers<[1], [0], [0], [1], [0, 0, 1, 1], [], []>} : vector<1x8xf32>, vector<8x128xf32>, vector<1x128xf32> -> vector<1x128xf32>
    %c0_33 = arith.constant 0 : index
    %c0_34 = arith.constant 0 : index
    %42 = vector.load %arg5[%c0_33, %c0_34] : memref<8x128xf32, #tpu.memory_space<vmem>>, vector<8x128xf32>
    %cst_35 = arith.constant dense<0.000000e+00> : vector<1x128xf32>
    %43 = tpu.matmul %39, %42, %cst_35 {dimension_numbers = #tpu.dot_dimension_numbers<[1], [0], [0], [1], [0, 0, 1, 1], [], []>} : vector<1x8xf32>, vector<8x128xf32>, vector<1x128xf32> -> vector<1x128xf32>
    %44 = vector.broadcast %41 : vector<1x128xf32> to vector<128x128xf32>
    %45 = arith.mulf %14, %44 : vector<128x128xf32>
    %46 = vector.broadcast %43 : vector<1x128xf32> to vector<128x128xf32>
    %47 = arith.addf %45, %46 : vector<128x128xf32>
    %cst_36 = arith.constant 1.000000e-01 : f32
    %48 = vector.broadcast %cst_36 : f32 to vector<128x128xf32>
    %49 = arith.mulf %48, %47 : vector<128x128xf32>
    %50 = arith.maximumf %47, %49 : vector<128x128xf32>
    %c0_37 = arith.constant 0 : index
    %c0_38 = arith.constant 0 : index
    %51 = vector.load %arg8[%c0_37, %c0_38] : memref<256x128xf32, #tpu.memory_space<vmem>>, vector<64x128xf32>
    %cst_39 = arith.constant dense<0.000000e+00> : vector<64x128xf32>
    %52 = tpu.matmul %51, %50, %cst_39 {dimension_numbers = #tpu.dot_dimension_numbers<[1], [0], [0], [1], [0, 0, 1, 1], [], []>} : vector<64x128xf32>, vector<128x128xf32>, vector<64x128xf32> -> vector<64x128xf32>
    %c0_40 = arith.constant 0 : index
    %c0_41 = arith.constant 0 : index
    %53 = vector.load %arg9[%c0_40, %c0_41] : memref<512x64xf32, #tpu.memory_space<vmem>>, vector<128x64xf32>
    %cst_42 = arith.constant dense<0.000000e+00> : vector<64x64xf32>
    %54 = tpu.matmul %52, %53, %cst_42 {dimension_numbers = #tpu.dot_dimension_numbers<[1], [0], [0], [1], [0, 0, 1, 1], [], []>} : vector<64x128xf32>, vector<128x64xf32>, vector<64x64xf32> -> vector<64x64xf32>
    %c64 = arith.constant 64 : index
    %c0_43 = arith.constant 0 : index
    %55 = vector.load %arg8[%c64, %c0_43] : memref<256x128xf32, #tpu.memory_space<vmem>>, vector<64x128xf32>
    %cst_44 = arith.constant dense<0.000000e+00> : vector<64x128xf32>
    %56 = tpu.matmul %55, %50, %cst_44 {dimension_numbers = #tpu.dot_dimension_numbers<[1], [0], [0], [1], [0, 0, 1, 1], [], []>} : vector<64x128xf32>, vector<128x128xf32>, vector<64x128xf32> -> vector<64x128xf32>
    %c128_45 = arith.constant 128 : index
    %c0_46 = arith.constant 0 : index
    %57 = vector.load %arg9[%c128_45, %c0_46] : memref<512x64xf32, #tpu.memory_space<vmem>>, vector<128x64xf32>
    %cst_47 = arith.constant dense<0.000000e+00> : vector<64x64xf32>
    %58 = tpu.matmul %56, %57, %cst_47 {dimension_numbers = #tpu.dot_dimension_numbers<[1], [0], [0], [1], [0, 0, 1, 1], [], []>} : vector<64x128xf32>, vector<128x64xf32>, vector<64x64xf32> -> vector<64x64xf32>
    %59 = arith.addf %54, %58 : vector<64x64xf32>
    %c128_48 = arith.constant 128 : index
    %c0_49 = arith.constant 0 : index
    %60 = vector.load %arg8[%c128_48, %c0_49] : memref<256x128xf32, #tpu.memory_space<vmem>>, vector<64x128xf32>
    %cst_50 = arith.constant dense<0.000000e+00> : vector<64x128xf32>
    %61 = tpu.matmul %60, %50, %cst_50 {dimension_numbers = #tpu.dot_dimension_numbers<[1], [0], [0], [1], [0, 0, 1, 1], [], []>} : vector<64x128xf32>, vector<128x128xf32>, vector<64x128xf32> -> vector<64x128xf32>
    %c256_51 = arith.constant 256 : index
    %c0_52 = arith.constant 0 : index
    %62 = vector.load %arg9[%c256_51, %c0_52] : memref<512x64xf32, #tpu.memory_space<vmem>>, vector<128x64xf32>
    %cst_53 = arith.constant dense<0.000000e+00> : vector<64x64xf32>
    %63 = tpu.matmul %61, %62, %cst_53 {dimension_numbers = #tpu.dot_dimension_numbers<[1], [0], [0], [1], [0, 0, 1, 1], [], []>} : vector<64x128xf32>, vector<128x64xf32>, vector<64x64xf32> -> vector<64x64xf32>
    %64 = arith.addf %59, %63 : vector<64x64xf32>
    %c192 = arith.constant 192 : index
    %c0_54 = arith.constant 0 : index
    %65 = vector.load %arg8[%c192, %c0_54] : memref<256x128xf32, #tpu.memory_space<vmem>>, vector<64x128xf32>
    %cst_55 = arith.constant dense<0.000000e+00> : vector<64x128xf32>
    %66 = tpu.matmul %65, %50, %cst_55 {dimension_numbers = #tpu.dot_dimension_numbers<[1], [0], [0], [1], [0, 0, 1, 1], [], []>} : vector<64x128xf32>, vector<128x128xf32>, vector<64x128xf32> -> vector<64x128xf32>
    %c384 = arith.constant 384 : index
    %c0_56 = arith.constant 0 : index
    %67 = vector.load %arg9[%c384, %c0_56] : memref<512x64xf32, #tpu.memory_space<vmem>>, vector<128x64xf32>
    %cst_57 = arith.constant dense<0.000000e+00> : vector<64x64xf32>
    %68 = tpu.matmul %66, %67, %cst_57 {dimension_numbers = #tpu.dot_dimension_numbers<[1], [0], [0], [1], [0, 0, 1, 1], [], []>} : vector<64x128xf32>, vector<128x64xf32>, vector<64x64xf32> -> vector<64x64xf32>
    %69 = arith.addf %64, %68 : vector<64x64xf32>
    %cst_58 = arith.constant dense<0.000000e+00> : vector<64xf32>
    %70 = vector.multi_reduction <add>, %69, %cst_58 [0] : vector<64x64xf32> to vector<64xf32>
    %71 = vector.shape_cast %70 : vector<64xf32> to vector<1x64xf32>
    %72 = arith.mulf %69, %69 : vector<64x64xf32>
    %cst_59 = arith.constant dense<0.000000e+00> : vector<64xf32>
    %73 = vector.multi_reduction <add>, %72, %cst_59 [0] : vector<64x64xf32> to vector<64xf32>
    %74 = vector.shape_cast %73 : vector<64xf32> to vector<1x64xf32>
    %c0_60 = arith.constant 0 : index
    %c0_61 = arith.constant 0 : index
    %75 = vector.load %arg10[%c0_60, %c0_61] : memref<64x8xf32, #tpu.memory_space<vmem>>, vector<64x8xf32>
    %cst_62 = arith.constant dense<0.000000e+00> : vector<1x8xf32>
    %76 = tpu.matmul %71, %75, %cst_62 {dimension_numbers = #tpu.dot_dimension_numbers<[1], [0], [0], [1], [0, 0, 1, 1], [], []>} : vector<1x64xf32>, vector<64x8xf32>, vector<1x8xf32> -> vector<1x8xf32>
    %c0_63 = arith.constant 0 : index
    %c0_64 = arith.constant 0 : index
    %77 = vector.load %arg10[%c0_63, %c0_64] : memref<64x8xf32, #tpu.memory_space<vmem>>, vector<64x8xf32>
    %cst_65 = arith.constant dense<0.000000e+00> : vector<1x8xf32>
    %78 = tpu.matmul %74, %77, %cst_65 {dimension_numbers = #tpu.dot_dimension_numbers<[1], [0], [0], [1], [0, 0, 1, 1], [], []>} : vector<1x64xf32>, vector<64x8xf32>, vector<1x8xf32> -> vector<1x8xf32>
    %cst_66 = arith.constant 1.280000e+02 : f32
    %79 = vector.broadcast %cst_66 : f32 to vector<1x8xf32>
    %80 = arith.divf %76, %79 : vector<1x8xf32>
    %cst_67 = arith.constant 1.280000e+02 : f32
    %81 = vector.broadcast %cst_67 : f32 to vector<1x8xf32>
    %82 = arith.divf %78, %81 : vector<1x8xf32>
    %83 = arith.mulf %80, %80 : vector<1x8xf32>
    %84 = arith.subf %82, %83 : vector<1x8xf32>
    %cst_68 = arith.constant 0.000000e+00 : f32
    %85 = vector.broadcast %cst_68 : f32 to vector<1x8xf32>
    %86 = arith.maximumf %84, %85 : vector<1x8xf32>
    %c0_69 = arith.constant 0 : index
    %c0_70 = arith.constant 0 : index
    %87 = vector.load %arg12[%c0_69, %c0_70] : memref<1x8xf32, #tpu.memory_space<vmem>>, vector<1x8xf32>
    %cst_71 = arith.constant 9.99999974E-6 : f32
    %88 = vector.broadcast %cst_71 : f32 to vector<1x8xf32>
    %89 = arith.addf %86, %88 : vector<1x8xf32>
    %90 = math.rsqrt %89 : vector<1x8xf32>
    %91 = arith.mulf %87, %90 : vector<1x8xf32>
    %c0_72 = arith.constant 0 : index
    %c0_73 = arith.constant 0 : index
    %92 = vector.load %arg13[%c0_72, %c0_73] : memref<1x8xf32, #tpu.memory_space<vmem>>, vector<1x8xf32>
    %93 = arith.mulf %80, %91 : vector<1x8xf32>
    %94 = arith.subf %92, %93 : vector<1x8xf32>
    %c0_74 = arith.constant 0 : index
    %c0_75 = arith.constant 0 : index
    %95 = vector.load %arg11[%c0_74, %c0_75] : memref<8x64xf32, #tpu.memory_space<vmem>>, vector<8x64xf32>
    %cst_76 = arith.constant dense<0.000000e+00> : vector<1x64xf32>
    %96 = tpu.matmul %91, %95, %cst_76 {dimension_numbers = #tpu.dot_dimension_numbers<[1], [0], [0], [1], [0, 0, 1, 1], [], []>} : vector<1x8xf32>, vector<8x64xf32>, vector<1x64xf32> -> vector<1x64xf32>
    %c0_77 = arith.constant 0 : index
    %c0_78 = arith.constant 0 : index
    %97 = vector.load %arg11[%c0_77, %c0_78] : memref<8x64xf32, #tpu.memory_space<vmem>>, vector<8x64xf32>
    %cst_79 = arith.constant dense<0.000000e+00> : vector<1x64xf32>
    %98 = tpu.matmul %94, %97, %cst_79 {dimension_numbers = #tpu.dot_dimension_numbers<[1], [0], [0], [1], [0, 0, 1, 1], [], []>} : vector<1x8xf32>, vector<8x64xf32>, vector<1x64xf32> -> vector<1x64xf32>
    %99 = vector.broadcast %96 : vector<1x64xf32> to vector<64x64xf32>
    %100 = arith.mulf %69, %99 : vector<64x64xf32>
    %101 = vector.broadcast %98 : vector<1x64xf32> to vector<64x64xf32>
    %102 = arith.addf %100, %101 : vector<64x64xf32>
    %cst_80 = arith.constant 1.000000e-01 : f32
    %103 = vector.broadcast %cst_80 : f32 to vector<64x64xf32>
    %104 = arith.mulf %103, %102 : vector<64x64xf32>
    %105 = arith.maximumf %102, %104 : vector<64x64xf32>
    %c0_81 = arith.constant 0 : index
    %c0_82 = arith.constant 0 : index
    %106 = vector.load %arg14[%c0_81, %c0_82] : memref<192x64xf32, #tpu.memory_space<vmem>>, vector<64x64xf32>
    %cst_83 = arith.constant dense<0.000000e+00> : vector<64x64xf32>
    %107 = tpu.matmul %106, %105, %cst_83 {dimension_numbers = #tpu.dot_dimension_numbers<[1], [0], [0], [1], [0, 0, 1, 1], [], []>} : vector<64x64xf32>, vector<64x64xf32>, vector<64x64xf32> -> vector<64x64xf32>
    %c0_84 = arith.constant 0 : index
    %c0_85 = arith.constant 0 : index
    %108 = vector.load %arg15[%c0_84, %c0_85] : memref<192x128xf32, #tpu.memory_space<vmem>>, vector<64x128xf32>
    %cst_86 = arith.constant dense<0.000000e+00> : vector<64x128xf32>
    %109 = tpu.matmul %107, %108, %cst_86 {dimension_numbers = #tpu.dot_dimension_numbers<[1], [0], [0], [1], [0, 0, 1, 1], [], []>} : vector<64x64xf32>, vector<64x128xf32>, vector<64x128xf32> -> vector<64x128xf32>
    %c64_87 = arith.constant 64 : index
    %c0_88 = arith.constant 0 : index
    %110 = vector.load %arg14[%c64_87, %c0_88] : memref<192x64xf32, #tpu.memory_space<vmem>>, vector<64x64xf32>
    %cst_89 = arith.constant dense<0.000000e+00> : vector<64x64xf32>
    %111 = tpu.matmul %110, %105, %cst_89 {dimension_numbers = #tpu.dot_dimension_numbers<[1], [0], [0], [1], [0, 0, 1, 1], [], []>} : vector<64x64xf32>, vector<64x64xf32>, vector<64x64xf32> -> vector<64x64xf32>
    %c64_90 = arith.constant 64 : index
    %c0_91 = arith.constant 0 : index
    %112 = vector.load %arg15[%c64_90, %c0_91] : memref<192x128xf32, #tpu.memory_space<vmem>>, vector<64x128xf32>
    %cst_92 = arith.constant dense<0.000000e+00> : vector<64x128xf32>
    %113 = tpu.matmul %111, %112, %cst_92 {dimension_numbers = #tpu.dot_dimension_numbers<[1], [0], [0], [1], [0, 0, 1, 1], [], []>} : vector<64x64xf32>, vector<64x128xf32>, vector<64x128xf32> -> vector<64x128xf32>
    %114 = arith.addf %109, %113 : vector<64x128xf32>
    %c128_93 = arith.constant 128 : index
    %c0_94 = arith.constant 0 : index
    %115 = vector.load %arg14[%c128_93, %c0_94] : memref<192x64xf32, #tpu.memory_space<vmem>>, vector<64x64xf32>
    %cst_95 = arith.constant dense<0.000000e+00> : vector<64x64xf32>
    %116 = tpu.matmul %115, %105, %cst_95 {dimension_numbers = #tpu.dot_dimension_numbers<[1], [0], [0], [1], [0, 0, 1, 1], [], []>} : vector<64x64xf32>, vector<64x64xf32>, vector<64x64xf32> -> vector<64x64xf32>
    %c128_96 = arith.constant 128 : index
    %c0_97 = arith.constant 0 : index
    %117 = vector.load %arg15[%c128_96, %c0_97] : memref<192x128xf32, #tpu.memory_space<vmem>>, vector<64x128xf32>
    %cst_98 = arith.constant dense<0.000000e+00> : vector<64x128xf32>
    %118 = tpu.matmul %116, %117, %cst_98 {dimension_numbers = #tpu.dot_dimension_numbers<[1], [0], [0], [1], [0, 0, 1, 1], [], []>} : vector<64x64xf32>, vector<64x128xf32>, vector<64x128xf32> -> vector<64x128xf32>
    %119 = arith.addf %114, %118 : vector<64x128xf32>
    %cst_99 = arith.constant dense<0.000000e+00> : vector<128xf32>
    %120 = vector.multi_reduction <add>, %119, %cst_99 [0] : vector<64x128xf32> to vector<128xf32>
    %121 = vector.shape_cast %120 : vector<128xf32> to vector<1x128xf32>
    %122 = arith.mulf %119, %119 : vector<64x128xf32>
    %cst_100 = arith.constant dense<0.000000e+00> : vector<128xf32>
    %123 = vector.multi_reduction <add>, %122, %cst_100 [0] : vector<64x128xf32> to vector<128xf32>
    %124 = vector.shape_cast %123 : vector<128xf32> to vector<1x128xf32>
    %c0_101 = arith.constant 0 : index
    %c0_102 = arith.constant 0 : index
    %125 = vector.load %arg16[%c0_101, %c0_102] : memref<128x16xf32, #tpu.memory_space<vmem>>, vector<128x16xf32>
    %cst_103 = arith.constant dense<0.000000e+00> : vector<1x16xf32>
    %126 = tpu.matmul %121, %125, %cst_103 {dimension_numbers = #tpu.dot_dimension_numbers<[1], [0], [0], [1], [0, 0, 1, 1], [], []>} : vector<1x128xf32>, vector<128x16xf32>, vector<1x16xf32> -> vector<1x16xf32>
    %c0_104 = arith.constant 0 : index
    %c0_105 = arith.constant 0 : index
    %127 = vector.load %arg16[%c0_104, %c0_105] : memref<128x16xf32, #tpu.memory_space<vmem>>, vector<128x16xf32>
    %cst_106 = arith.constant dense<0.000000e+00> : vector<1x16xf32>
    %128 = tpu.matmul %124, %127, %cst_106 {dimension_numbers = #tpu.dot_dimension_numbers<[1], [0], [0], [1], [0, 0, 1, 1], [], []>} : vector<1x128xf32>, vector<128x16xf32>, vector<1x16xf32> -> vector<1x16xf32>
    %cst_107 = arith.constant 1.280000e+02 : f32
    %129 = vector.broadcast %cst_107 : f32 to vector<1x16xf32>
    %130 = arith.divf %126, %129 : vector<1x16xf32>
    %cst_108 = arith.constant 1.280000e+02 : f32
    %131 = vector.broadcast %cst_108 : f32 to vector<1x16xf32>
    %132 = arith.divf %128, %131 : vector<1x16xf32>
    %133 = arith.mulf %130, %130 : vector<1x16xf32>
    %134 = arith.subf %132, %133 : vector<1x16xf32>
    %cst_109 = arith.constant 0.000000e+00 : f32
    %135 = vector.broadcast %cst_109 : f32 to vector<1x16xf32>
    %136 = arith.maximumf %134, %135 : vector<1x16xf32>
    %c0_110 = arith.constant 0 : index
    %c0_111 = arith.constant 0 : index
    %137 = vector.load %arg18[%c0_110, %c0_111] : memref<1x16xf32, #tpu.memory_space<vmem>>, vector<1x16xf32>
    %cst_112 = arith.constant 9.99999974E-6 : f32
    %138 = vector.broadcast %cst_112 : f32 to vector<1x16xf32>
    %139 = arith.addf %136, %138 : vector<1x16xf32>
    %140 = math.rsqrt %139 : vector<1x16xf32>
    %141 = arith.mulf %137, %140 : vector<1x16xf32>
    %c0_113 = arith.constant 0 : index
    %c0_114 = arith.constant 0 : index
    %142 = vector.load %arg19[%c0_113, %c0_114] : memref<1x16xf32, #tpu.memory_space<vmem>>, vector<1x16xf32>
    %143 = arith.mulf %130, %141 : vector<1x16xf32>
    %144 = arith.subf %142, %143 : vector<1x16xf32>
    %c0_115 = arith.constant 0 : index
    %c0_116 = arith.constant 0 : index
    %145 = vector.load %arg17[%c0_115, %c0_116] : memref<16x128xf32, #tpu.memory_space<vmem>>, vector<16x128xf32>
    %cst_117 = arith.constant dense<0.000000e+00> : vector<1x128xf32>
    %146 = tpu.matmul %141, %145, %cst_117 {dimension_numbers = #tpu.dot_dimension_numbers<[1], [0], [0], [1], [0, 0, 1, 1], [], []>} : vector<1x16xf32>, vector<16x128xf32>, vector<1x128xf32> -> vector<1x128xf32>
    %c0_118 = arith.constant 0 : index
    %c0_119 = arith.constant 0 : index
    %147 = vector.load %arg17[%c0_118, %c0_119] : memref<16x128xf32, #tpu.memory_space<vmem>>, vector<16x128xf32>
    %cst_120 = arith.constant dense<0.000000e+00> : vector<1x128xf32>
    %148 = tpu.matmul %144, %147, %cst_120 {dimension_numbers = #tpu.dot_dimension_numbers<[1], [0], [0], [1], [0, 0, 1, 1], [], []>} : vector<1x16xf32>, vector<16x128xf32>, vector<1x128xf32> -> vector<1x128xf32>
    %149 = vector.broadcast %146 : vector<1x128xf32> to vector<64x128xf32>
    %150 = arith.mulf %119, %149 : vector<64x128xf32>
    %151 = vector.broadcast %148 : vector<1x128xf32> to vector<64x128xf32>
    %152 = arith.addf %150, %151 : vector<64x128xf32>
    %cst_121 = arith.constant 1.000000e-01 : f32
    %153 = vector.broadcast %cst_121 : f32 to vector<64x128xf32>
    %154 = arith.mulf %153, %152 : vector<64x128xf32>
    %155 = arith.maximumf %152, %154 : vector<64x128xf32>
    %c0_122 = arith.constant 0 : index
    %c0_123 = arith.constant 0 : index
    %156 = vector.load %arg20[%c0_122, %c0_123] : memref<128x64xf32, #tpu.memory_space<vmem>>, vector<32x64xf32>
    %cst_124 = arith.constant dense<0.000000e+00> : vector<32x128xf32>
    %157 = tpu.matmul %156, %155, %cst_124 {dimension_numbers = #tpu.dot_dimension_numbers<[1], [0], [0], [1], [0, 0, 1, 1], [], []>} : vector<32x64xf32>, vector<64x128xf32>, vector<32x128xf32> -> vector<32x128xf32>
    %c0_125 = arith.constant 0 : index
    %c0_126 = arith.constant 0 : index
    %158 = vector.load %arg21[%c0_125, %c0_126] : memref<512x64xf32, #tpu.memory_space<vmem>>, vector<128x64xf32>
    %cst_127 = arith.constant dense<0.000000e+00> : vector<32x64xf32>
    %159 = tpu.matmul %157, %158, %cst_127 {dimension_numbers = #tpu.dot_dimension_numbers<[1], [0], [0], [1], [0, 0, 1, 1], [], []>} : vector<32x128xf32>, vector<128x64xf32>, vector<32x64xf32> -> vector<32x64xf32>
    %c32 = arith.constant 32 : index
    %c0_128 = arith.constant 0 : index
    %160 = vector.load %arg20[%c32, %c0_128] : memref<128x64xf32, #tpu.memory_space<vmem>>, vector<32x64xf32>
    %cst_129 = arith.constant dense<0.000000e+00> : vector<32x128xf32>
    %161 = tpu.matmul %160, %155, %cst_129 {dimension_numbers = #tpu.dot_dimension_numbers<[1], [0], [0], [1], [0, 0, 1, 1], [], []>} : vector<32x64xf32>, vector<64x128xf32>, vector<32x128xf32> -> vector<32x128xf32>
    %c128_130 = arith.constant 128 : index
    %c0_131 = arith.constant 0 : index
    %162 = vector.load %arg21[%c128_130, %c0_131] : memref<512x64xf32, #tpu.memory_space<vmem>>, vector<128x64xf32>
    %cst_132 = arith.constant dense<0.000000e+00> : vector<32x64xf32>
    %163 = tpu.matmul %161, %162, %cst_132 {dimension_numbers = #tpu.dot_dimension_numbers<[1], [0], [0], [1], [0, 0, 1, 1], [], []>} : vector<32x128xf32>, vector<128x64xf32>, vector<32x64xf32> -> vector<32x64xf32>
    %164 = arith.addf %159, %163 : vector<32x64xf32>
    %c64_133 = arith.constant 64 : index
    %c0_134 = arith.constant 0 : index
    %165 = vector.load %arg20[%c64_133, %c0_134] : memref<128x64xf32, #tpu.memory_space<vmem>>, vector<32x64xf32>
    %cst_135 = arith.constant dense<0.000000e+00> : vector<32x128xf32>
    %166 = tpu.matmul %165, %155, %cst_135 {dimension_numbers = #tpu.dot_dimension_numbers<[1], [0], [0], [1], [0, 0, 1, 1], [], []>} : vector<32x64xf32>, vector<64x128xf32>, vector<32x128xf32> -> vector<32x128xf32>
    %c256_136 = arith.constant 256 : index
    %c0_137 = arith.constant 0 : index
    %167 = vector.load %arg21[%c256_136, %c0_137] : memref<512x64xf32, #tpu.memory_space<vmem>>, vector<128x64xf32>
    %cst_138 = arith.constant dense<0.000000e+00> : vector<32x64xf32>
    %168 = tpu.matmul %166, %167, %cst_138 {dimension_numbers = #tpu.dot_dimension_numbers<[1], [0], [0], [1], [0, 0, 1, 1], [], []>} : vector<32x128xf32>, vector<128x64xf32>, vector<32x64xf32> -> vector<32x64xf32>
    %169 = arith.addf %164, %168 : vector<32x64xf32>
    %c96_139 = arith.constant 96 : index
    %c0_140 = arith.constant 0 : index
    %170 = vector.load %arg20[%c96_139, %c0_140] : memref<128x64xf32, #tpu.memory_space<vmem>>, vector<32x64xf32>
    %cst_141 = arith.constant dense<0.000000e+00> : vector<32x128xf32>
    %171 = tpu.matmul %170, %155, %cst_141 {dimension_numbers = #tpu.dot_dimension_numbers<[1], [0], [0], [1], [0, 0, 1, 1], [], []>} : vector<32x64xf32>, vector<64x128xf32>, vector<32x128xf32> -> vector<32x128xf32>
    %c384_142 = arith.constant 384 : index
    %c0_143 = arith.constant 0 : index
    %172 = vector.load %arg21[%c384_142, %c0_143] : memref<512x64xf32, #tpu.memory_space<vmem>>, vector<128x64xf32>
    %cst_144 = arith.constant dense<0.000000e+00> : vector<32x64xf32>
    %173 = tpu.matmul %171, %172, %cst_144 {dimension_numbers = #tpu.dot_dimension_numbers<[1], [0], [0], [1], [0, 0, 1, 1], [], []>} : vector<32x128xf32>, vector<128x64xf32>, vector<32x64xf32> -> vector<32x64xf32>
    %174 = arith.addf %169, %173 : vector<32x64xf32>
    %cst_145 = arith.constant dense<0.000000e+00> : vector<64xf32>
    %175 = vector.multi_reduction <add>, %174, %cst_145 [0] : vector<32x64xf32> to vector<64xf32>
    %176 = vector.shape_cast %175 : vector<64xf32> to vector<1x64xf32>
    %177 = arith.mulf %174, %174 : vector<32x64xf32>
    %cst_146 = arith.constant dense<0.000000e+00> : vector<64xf32>
    %178 = vector.multi_reduction <add>, %177, %cst_146 [0] : vector<32x64xf32> to vector<64xf32>
    %179 = vector.shape_cast %178 : vector<64xf32> to vector<1x64xf32>
    %c0_147 = arith.constant 0 : index
    %c0_148 = arith.constant 0 : index
    %180 = vector.load %arg22[%c0_147, %c0_148] : memref<64x16xf32, #tpu.memory_space<vmem>>, vector<64x16xf32>
    %cst_149 = arith.constant dense<0.000000e+00> : vector<1x16xf32>
    %181 = tpu.matmul %176, %180, %cst_149 {dimension_numbers = #tpu.dot_dimension_numbers<[1], [0], [0], [1], [0, 0, 1, 1], [], []>} : vector<1x64xf32>, vector<64x16xf32>, vector<1x16xf32> -> vector<1x16xf32>
    %c0_150 = arith.constant 0 : index
    %c0_151 = arith.constant 0 : index
    %182 = vector.load %arg22[%c0_150, %c0_151] : memref<64x16xf32, #tpu.memory_space<vmem>>, vector<64x16xf32>
    %cst_152 = arith.constant dense<0.000000e+00> : vector<1x16xf32>
    %183 = tpu.matmul %179, %182, %cst_152 {dimension_numbers = #tpu.dot_dimension_numbers<[1], [0], [0], [1], [0, 0, 1, 1], [], []>} : vector<1x64xf32>, vector<64x16xf32>, vector<1x16xf32> -> vector<1x16xf32>
    %cst_153 = arith.constant 3.200000e+01 : f32
    %184 = vector.broadcast %cst_153 : f32 to vector<1x16xf32>
    %185 = arith.divf %181, %184 : vector<1x16xf32>
    %cst_154 = arith.constant 3.200000e+01 : f32
    %186 = vector.broadcast %cst_154 : f32 to vector<1x16xf32>
    %187 = arith.divf %183, %186 : vector<1x16xf32>
    %188 = arith.mulf %185, %185 : vector<1x16xf32>
    %189 = arith.subf %187, %188 : vector<1x16xf32>
    %cst_155 = arith.constant 0.000000e+00 : f32
    %190 = vector.broadcast %cst_155 : f32 to vector<1x16xf32>
    %191 = arith.maximumf %189, %190 : vector<1x16xf32>
    %c0_156 = arith.constant 0 : index
    %c0_157 = arith.constant 0 : index
    %192 = vector.load %arg24[%c0_156, %c0_157] : memref<1x16xf32, #tpu.memory_space<vmem>>, vector<1x16xf32>
    %cst_158 = arith.constant 9.99999974E-6 : f32
    %193 = vector.broadcast %cst_158 : f32 to vector<1x16xf32>
    %194 = arith.addf %191, %193 : vector<1x16xf32>
    %195 = math.rsqrt %194 : vector<1x16xf32>
    %196 = arith.mulf %192, %195 : vector<1x16xf32>
    %c0_159 = arith.constant 0 : index
    %c0_160 = arith.constant 0 : index
    %197 = vector.load %arg25[%c0_159, %c0_160] : memref<1x16xf32, #tpu.memory_space<vmem>>, vector<1x16xf32>
    %198 = arith.mulf %185, %196 : vector<1x16xf32>
    %199 = arith.subf %197, %198 : vector<1x16xf32>
    %c0_161 = arith.constant 0 : index
    %c0_162 = arith.constant 0 : index
    %200 = vector.load %arg23[%c0_161, %c0_162] : memref<16x64xf32, #tpu.memory_space<vmem>>, vector<16x64xf32>
    %cst_163 = arith.constant dense<0.000000e+00> : vector<1x64xf32>
    %201 = tpu.matmul %196, %200, %cst_163 {dimension_numbers = #tpu.dot_dimension_numbers<[1], [0], [0], [1], [0, 0, 1, 1], [], []>} : vector<1x16xf32>, vector<16x64xf32>, vector<1x64xf32> -> vector<1x64xf32>
    %c0_164 = arith.constant 0 : index
    %c0_165 = arith.constant 0 : index
    %202 = vector.load %arg23[%c0_164, %c0_165] : memref<16x64xf32, #tpu.memory_space<vmem>>, vector<16x64xf32>
    %cst_166 = arith.constant dense<0.000000e+00> : vector<1x64xf32>
    %203 = tpu.matmul %199, %202, %cst_166 {dimension_numbers = #tpu.dot_dimension_numbers<[1], [0], [0], [1], [0, 0, 1, 1], [], []>} : vector<1x16xf32>, vector<16x64xf32>, vector<1x64xf32> -> vector<1x64xf32>
    %204 = vector.broadcast %201 : vector<1x64xf32> to vector<32x64xf32>
    %205 = arith.mulf %174, %204 : vector<32x64xf32>
    %206 = vector.broadcast %203 : vector<1x64xf32> to vector<32x64xf32>
    %207 = arith.addf %205, %206 : vector<32x64xf32>
    %cst_167 = arith.constant 1.000000e-01 : f32
    %208 = vector.broadcast %cst_167 : f32 to vector<32x64xf32>
    %209 = arith.mulf %208, %207 : vector<32x64xf32>
    %210 = arith.maximumf %207, %209 : vector<32x64xf32>
    %211 = vector.extract_strided_slice %210 {offsets = [0, 0], sizes = [8, 64], strides = [1, 1]} : vector<32x64xf32> to vector<8x64xf32>
    %c0_168 = arith.constant 0 : index
    %c0_169 = arith.constant 0 : index
    %212 = vector.load %arg26[%c0_168, %c0_169] : memref<256x100xf32, #tpu.memory_space<vmem>>, vector<64x100xf32>
    %cst_170 = arith.constant dense<0.000000e+00> : vector<8x100xf32>
    %213 = tpu.matmul %211, %212, %cst_170 {dimension_numbers = #tpu.dot_dimension_numbers<[1], [0], [0], [1], [0, 0, 1, 1], [], []>} : vector<8x64xf32>, vector<64x100xf32>, vector<8x100xf32> -> vector<8x100xf32>
    %214 = vector.extract_strided_slice %210 {offsets = [8, 0], sizes = [8, 64], strides = [1, 1]} : vector<32x64xf32> to vector<8x64xf32>
    %c64_171 = arith.constant 64 : index
    %c0_172 = arith.constant 0 : index
    %215 = vector.load %arg26[%c64_171, %c0_172] : memref<256x100xf32, #tpu.memory_space<vmem>>, vector<64x100xf32>
    %cst_173 = arith.constant dense<0.000000e+00> : vector<8x100xf32>
    %216 = tpu.matmul %214, %215, %cst_173 {dimension_numbers = #tpu.dot_dimension_numbers<[1], [0], [0], [1], [0, 0, 1, 1], [], []>} : vector<8x64xf32>, vector<64x100xf32>, vector<8x100xf32> -> vector<8x100xf32>
    %217 = arith.addf %213, %216 : vector<8x100xf32>
    %218 = vector.extract_strided_slice %210 {offsets = [16, 0], sizes = [8, 64], strides = [1, 1]} : vector<32x64xf32> to vector<8x64xf32>
    %c128_174 = arith.constant 128 : index
    %c0_175 = arith.constant 0 : index
    %219 = vector.load %arg26[%c128_174, %c0_175] : memref<256x100xf32, #tpu.memory_space<vmem>>, vector<64x100xf32>
    %cst_176 = arith.constant dense<0.000000e+00> : vector<8x100xf32>
    %220 = tpu.matmul %218, %219, %cst_176 {dimension_numbers = #tpu.dot_dimension_numbers<[1], [0], [0], [1], [0, 0, 1, 1], [], []>} : vector<8x64xf32>, vector<64x100xf32>, vector<8x100xf32> -> vector<8x100xf32>
    %221 = arith.addf %217, %220 : vector<8x100xf32>
    %222 = vector.extract_strided_slice %210 {offsets = [24, 0], sizes = [8, 64], strides = [1, 1]} : vector<32x64xf32> to vector<8x64xf32>
    %c192_177 = arith.constant 192 : index
    %c0_178 = arith.constant 0 : index
    %223 = vector.load %arg26[%c192_177, %c0_178] : memref<256x100xf32, #tpu.memory_space<vmem>>, vector<64x100xf32>
    %cst_179 = arith.constant dense<0.000000e+00> : vector<8x100xf32>
    %224 = tpu.matmul %222, %223, %cst_179 {dimension_numbers = #tpu.dot_dimension_numbers<[1], [0], [0], [1], [0, 0, 1, 1], [], []>} : vector<8x64xf32>, vector<64x100xf32>, vector<8x100xf32> -> vector<8x100xf32>
    %225 = arith.addf %221, %224 : vector<8x100xf32>
    %c0_180 = arith.constant 0 : index
    %c0_181 = arith.constant 0 : index
    %226 = vector.load %arg27[%c0_180, %c0_181] : memref<1x100xf32, #tpu.memory_space<vmem>>, vector<1x100xf32>
    %227 = vector.broadcast %226 : vector<1x100xf32> to vector<8x100xf32>
    %228 = arith.addf %225, %227 : vector<8x100xf32>
    %cst_182 = arith.constant 1.000000e-01 : f32
    %229 = vector.broadcast %cst_182 : f32 to vector<8x100xf32>
    %230 = arith.mulf %229, %228 : vector<8x100xf32>
    %231 = arith.maximumf %228, %230 : vector<8x100xf32>
    %c0_183 = arith.constant 0 : index
    %c0_184 = arith.constant 0 : index
    %232 = vector.load %arg28[%c0_183, %c0_184] : memref<100x128xf32, #tpu.memory_space<vmem>>, vector<100x128xf32>
    %cst_185 = arith.constant dense<0.000000e+00> : vector<8x128xf32>
    %233 = tpu.matmul %231, %232, %cst_185 {dimension_numbers = #tpu.dot_dimension_numbers<[1], [0], [0], [1], [0, 0, 1, 1], [], []>} : vector<8x100xf32>, vector<100x128xf32>, vector<8x128xf32> -> vector<8x128xf32>
    %c0_186 = arith.constant 0 : index
    %c0_187 = arith.constant 0 : index
    %234 = vector.load %arg29[%c0_186, %c0_187] : memref<1x128xf32, #tpu.memory_space<vmem>>, vector<1x128xf32>
    %235 = vector.broadcast %234 : vector<1x128xf32> to vector<8x128xf32>
    %236 = arith.addf %233, %235 : vector<8x128xf32>
    %c0_188 = arith.constant 0 : index
    %c0_189 = arith.constant 0 : index
    %237 = vector.load %arg30[%c0_188, %c0_189] : memref<8x128xf32, #tpu.memory_space<vmem>>, vector<8x128xf32>
    tpu.vector_store %arg30[%c0_188, %c0_189], %236 {strides = array<i32>} : memref<8x128xf32, #tpu.memory_space<vmem>>, vector<8x128xf32>,
    return
  }
  func.func @transform_0(%arg0: i32) -> (i32, i32) {
    %c0_i32 = arith.constant 0 : i32
    %c0_i32_0 = arith.constant 0 : i32
    %c0_i32_1 = arith.constant 0 : i32
    return %c0_i32, %c0_i32_0 : i32, i32
  }
  func.func @transform_1(%arg0: i32) -> (i32, i32) {
    %c0_i32 = arith.constant 0 : i32
    %c0_i32_0 = arith.constant 0 : i32
    %c0_i32_1 = arith.constant 0 : i32
    return %c0_i32, %c0_i32_0 : i32, i32
  }
  func.func @transform_2(%arg0: i32) -> (i32, i32) {
    %c0_i32 = arith.constant 0 : i32
    %c0_i32_0 = arith.constant 0 : i32
    %c0_i32_1 = arith.constant 0 : i32
    return %c0_i32, %c0_i32_0 : i32, i32
  }
  func.func @transform_3(%arg0: i32) -> (i32, i32) {
    %c0_i32 = arith.constant 0 : i32
    %c0_i32_0 = arith.constant 0 : i32
    %c0_i32_1 = arith.constant 0 : i32
    return %c0_i32, %c0_i32_0 : i32, i32
  }
  func.func @transform_4(%arg0: i32) -> (i32, i32) {
    %c0_i32 = arith.constant 0 : i32
    %c0_i32_0 = arith.constant 0 : i32
    %c0_i32_1 = arith.constant 0 : i32
    return %c0_i32, %c0_i32_0 : i32, i32
  }
  func.func @transform_5(%arg0: i32) -> (i32, i32) {
    %c0_i32 = arith.constant 0 : i32
    %c0_i32_0 = arith.constant 0 : i32
    %c0_i32_1 = arith.constant 0 : i32
    return %c0_i32, %c0_i32_0 : i32, i32
  }
  func.func @transform_6(%arg0: i32) -> (i32, i32) {
    %c0_i32 = arith.constant 0 : i32
    %c0_i32_0 = arith.constant 0 : i32
    %c0_i32_1 = arith.constant 0 : i32
    return %c0_i32, %c0_i32_0 : i32, i32
  }
  func.func @transform_7(%arg0: i32) -> (i32, i32) {
    %c0_i32 = arith.constant 0 : i32
    %c0_i32_0 = arith.constant 0 : i32
    %c0_i32_1 = arith.constant 0 : i32
    return %c0_i32, %c0_i32_0 : i32, i32
  }
  func.func @transform_8(%arg0: i32) -> (i32, i32) {
    %c0_i32 = arith.constant 0 : i32
    %c0_i32_0 = arith.constant 0 : i32
    %c0_i32_1 = arith.constant 0 : i32
    return %c0_i32, %c0_i32_0 : i32, i32
  }
  func.func @transform_9(%arg0: i32) -> (i32, i32) {
    %c0_i32 = arith.constant 0 : i32
    %c0_i32_0 = arith.constant 0 : i32
    %c0_i32_1 = arith.constant 0 : i32
    return %c0_i32, %c0_i32_0 : i32, i32
  }
  func.func @transform_10(%arg0: i32) -> (i32, i32) {
    %c0_i32 = arith.constant 0 : i32
    %c0_i32_0 = arith.constant 0 : i32
    %c0_i32_1 = arith.constant 0 : i32
    return %c0_i32, %c0_i32_0 : i32, i32
  }
  func.func @transform_11(%arg0: i32) -> (i32, i32) {
    %c0_i32 = arith.constant 0 : i32
    %c0_i32_0 = arith.constant 0 : i32
    %c0_i32_1 = arith.constant 0 : i32
    return %c0_i32, %c0_i32_0 : i32, i32
  }
  func.func @transform_12(%arg0: i32) -> (i32, i32) {
    %c0_i32 = arith.constant 0 : i32
    %c0_i32_0 = arith.constant 0 : i32
    %c0_i32_1 = arith.constant 0 : i32
    return %c0_i32, %c0_i32_0 : i32, i32
  }
  func.func @transform_13(%arg0: i32) -> (i32, i32) {
    %c0_i32 = arith.constant 0 : i32
    %c0_i32_0 = arith.constant 0 : i32
    %c0_i32_1 = arith.constant 0 : i32
    return %c0_i32, %c0_i32_0 : i32, i32
  }
  func.func @transform_14(%arg0: i32) -> (i32, i32) {
    %c0_i32 = arith.constant 0 : i32
    %c0_i32_0 = arith.constant 0 : i32
    %c0_i32_1 = arith.constant 0 : i32
    return %c0_i32, %c0_i32_0 : i32, i32
  }
  func.func @transform_15(%arg0: i32) -> (i32, i32) {
    %c0_i32 = arith.constant 0 : i32
    %c0_i32_0 = arith.constant 0 : i32
    %c0_i32_1 = arith.constant 0 : i32
    return %c0_i32, %c0_i32_0 : i32, i32
  }
  func.func @transform_16(%arg0: i32) -> (i32, i32) {
    %c0_i32 = arith.constant 0 : i32
    %c0_i32_0 = arith.constant 0 : i32
    %c0_i32_1 = arith.constant 0 : i32
    return %c0_i32, %c0_i32_0 : i32, i32
  }
  func.func @transform_17(%arg0: i32) -> (i32, i32) {
    %c0_i32 = arith.constant 0 : i32
    %c0_i32_0 = arith.constant 0 : i32
    %c0_i32_1 = arith.constant 0 : i32
    return %c0_i32, %c0_i32_0 : i32, i32
  }
  func.func @transform_18(%arg0: i32) -> (i32, i32) {
    %c0_i32 = arith.constant 0 : i32
    %c0_i32_0 = arith.constant 0 : i32
    %c0_i32_1 = arith.constant 0 : i32
    return %c0_i32, %c0_i32_0 : i32, i32
  }
  func.func @transform_19(%arg0: i32) -> (i32, i32) {
    %c0_i32 = arith.constant 0 : i32
    %c0_i32_0 = arith.constant 0 : i32
    %c0_i32_1 = arith.constant 0 : i32
    return %c0_i32, %c0_i32_0 : i32, i32
  }
  func.func @transform_20(%arg0: i32) -> (i32, i32) {
    %c0_i32 = arith.constant 0 : i32
    %c0_i32_0 = arith.constant 0 : i32
    %c0_i32_1 = arith.constant 0 : i32
    return %c0_i32, %c0_i32_0 : i32, i32
  }
  func.func @transform_21(%arg0: i32) -> (i32, i32) {
    %c0_i32 = arith.constant 0 : i32
    %c0_i32_0 = arith.constant 0 : i32
    %c0_i32_1 = arith.constant 0 : i32
    return %c0_i32, %c0_i32_0 : i32, i32
  }
  func.func @transform_22(%arg0: i32) -> (i32, i32) {
    %c0_i32 = arith.constant 0 : i32
    %c0_i32_0 = arith.constant 0 : i32
    %c0_i32_1 = arith.constant 0 : i32
    return %c0_i32, %c0_i32_0 : i32, i32
  }
  func.func @transform_23(%arg0: i32) -> (i32, i32) {
    %c0_i32 = arith.constant 0 : i32
    %c0_i32_0 = arith.constant 0 : i32
    %c0_i32_1 = arith.constant 0 : i32
    return %c0_i32, %c0_i32_0 : i32, i32
  }
  func.func @transform_24(%arg0: i32) -> (i32, i32) {
    %c0_i32 = arith.constant 0 : i32
    %c0_i32_0 = arith.constant 0 : i32
    %c0_i32_1 = arith.constant 0 : i32
    return %c0_i32, %c0_i32_0 : i32, i32
  }
  func.func @transform_25(%arg0: i32) -> (i32, i32) {
    %c0_i32 = arith.constant 0 : i32
    %c0_i32_0 = arith.constant 0 : i32
    %c0_i32_1 = arith.constant 0 : i32
    return %c0_i32, %c0_i32_0 : i32, i32
  }
  func.func @transform_26(%arg0: i32) -> (i32, i32) {
    %c0_i32 = arith.constant 0 : i32
    %c0_i32_0 = arith.constant 0 : i32
    %c0_i32_1 = arith.constant 0 : i32
    return %c0_i32, %c0_i32_0 : i32, i32
  }
  func.func @transform_27(%arg0: i32) -> (i32, i32) {
    %c0_i32 = arith.constant 0 : i32
    %c0_i32_0 = arith.constant 0 : i32
    %c0_i32_1 = arith.constant 0 : i32
    return %c0_i32, %c0_i32_0 : i32, i32
  }
  func.func @transform_28(%arg0: i32) -> (i32, i32) {
    %c0_i32 = arith.constant 0 : i32
    %c0_i32_0 = arith.constant 0 : i32
    %c0_i32_1 = arith.constant 0 : i32
    return %c0_i32, %c0_i32_0 : i32, i32
  }
  func.func @transform_29(%arg0: i32) -> (i32, i32) {
    %c0_i32 = arith.constant 0 : i32
    %c0_i32_0 = arith.constant 0 : i32
    %c0_i32_1 = arith.constant 0 : i32
    return %c0_i32, %c0_i32_0 : i32, i32
  }
}

</mosaic_0001>

<llo_original>
// kernel: discriminator_forward.1
$region0: #{discriminator_forward.1}
  #allocation0 [shape = 'u32[]', space=smem, size = 0x4, offset = 0x4, fixed_abs, tag = 'smem constant byte address 0x4 - core index']
  #allocation1 [shape = 'u32[144,128]{1,0:T(1,128)}', space=vmem, size = 0x12000, scoped, tag = 'internal scratch']
  %s0 = inlined_call_operand.smem [shape: u32[30], index: -1, kind: input, shape index: {}]
  %s1 = sld [smem:[%s0]]
  %s2 = scalar_lea.smem %s0, 1
  %s3 = sld [smem:[%s2]]
  %s4 = scalar_lea.smem %s0, 2
  %s5 = sld [smem:[%s4]]
  %s6 = scalar_lea.smem %s0, 3
  %s7 = sld [smem:[%s6]]
  %s8 = scalar_lea.smem %s0, 4
  %s9 = sld [smem:[%s8]]
  %s10 = scalar_lea.smem %s0, 5
  %s11 = sld [smem:[%s10]]
  %s12 = scalar_lea.smem %s0, 6
  %s13 = sld [smem:[%s12]]
  %s14 = scalar_lea.smem %s0, 7
  %s15 = sld [smem:[%s14]]
  %s16 = scalar_lea.smem %s0, 8
  %s17 = sld [smem:[%s16]]
  %s18 = scalar_lea.smem %s0, 9
  %s19 = sld [smem:[%s18]]
  %s20 = scalar_lea.smem %s0, 10
  %s21 = sld [smem:[%s20]]
  %s22 = scalar_lea.smem %s0, 11
  %s23 = sld [smem:[%s22]]
  %s24 = scalar_lea.smem %s0, 12
  %s25 = sld [smem:[%s24]]
  %s26 = scalar_lea.smem %s0, 13
  %s27 = sld [smem:[%s26]]
  %s28 = scalar_lea.smem %s0, 14
  %s29 = sld [smem:[%s28]]
  %s30 = scalar_lea.smem %s0, 15
  %s31 = sld [smem:[%s30]]
  %s32 = scalar_lea.smem %s0, 16
  %s33 = sld [smem:[%s32]]
  %s34 = scalar_lea.smem %s0, 17
  %s35 = sld [smem:[%s34]]
  %s36 = scalar_lea.smem %s0, 18
  %s37 = sld [smem:[%s36]]
  %s38 = scalar_lea.smem %s0, 19
  %s39 = sld [smem:[%s38]]
  %s40 = scalar_lea.smem %s0, 20
  %s41 = sld [smem:[%s40]]
  %s42 = scalar_lea.smem %s0, 21
  %s43 = sld [smem:[%s42]]
  %s44 = scalar_lea.smem %s0, 22
  %s45 = sld [smem:[%s44]]
  %s46 = scalar_lea.smem %s0, 23
  %s47 = sld [smem:[%s46]]
  %s48 = scalar_lea.smem %s0, 24
  %s49 = sld [smem:[%s48]]
  %s50 = scalar_lea.smem %s0, 25
  %s51 = sld [smem:[%s50]]
  %s52 = scalar_lea.smem %s0, 26
  %s53 = sld [smem:[%s52]]
  %s54 = scalar_lea.smem %s0, 27
  %s55 = sld [smem:[%s54]]
  %s56 = scalar_lea.smem %s0, 28
  %s57 = sld [smem:[%s56]]
  %s58 = scalar_lea.smem %s0, 29
  %s59 = sld [smem:[%s58]]
  %s60 = sld [smem:[#allocation0]]
  $region126: #{discriminator_forward.1} parent=0
    _
  %s62 = ssub.s32 1, %s60
  %s63 = scalar_select 0, %s62, %s60
  // Predicated region
  $region2: #{discriminator_forward.1} parent=0 // pred_check
    _
  $region3: #{discriminator_forward.1} parent=0 // pred_check_branch
    %65 = sbr.rel (0) target = $region5
  $region4: #{discriminator_forward.1} parent=0 // pred_region
    _
  $region5: #{discriminator_forward.1} parent=0 // pred_fallthru
    _
  // Predicated region
  $region6: #{discriminator_forward.1} parent=0 // pred_check
    _
  $region7: #{discriminator_forward.1} parent=0 // pred_check_branch
    %67 = sbr.rel (0) target = $region9
  $region8: #{discriminator_forward.1} parent=0 // pred_region
    _
  $region9: #{discriminator_forward.1} parent=0 // pred_fallthru
    _
  // Predicated region
  $region10: #{discriminator_forward.1} parent=0 // pred_check
    _
  $region11: #{discriminator_forward.1} parent=0 // pred_check_branch
    %69 = sbr.rel (0) target = $region13
  $region12: #{discriminator_forward.1} parent=0 // pred_region
    _
  $region13: #{discriminator_forward.1} parent=0 // pred_fallthru
    _
  // Predicated region
  $region14: #{discriminator_forward.1} parent=0 // pred_check
    _
  $region15: #{discriminator_forward.1} parent=0 // pred_check_branch
    %71 = sbr.rel (0) target = $region17
  $region16: #{discriminator_forward.1} parent=0 // pred_region
    _
  $region17: #{discriminator_forward.1} parent=0 // pred_fallthru
    _
  // Predicated region
  $region18: #{discriminator_forward.1} parent=0 // pred_check
    _
  $region19: #{discriminator_forward.1} parent=0 // pred_check_branch
    %73 = sbr.rel (0) target = $region21
  $region20: #{discriminator_forward.1} parent=0 // pred_region
    _
  $region21: #{discriminator_forward.1} parent=0 // pred_fallthru
    _
  // Predicated region
  $region22: #{discriminator_forward.1} parent=0 // pred_check
    _
  $region23: #{discriminator_forward.1} parent=0 // pred_check_branch
    %75 = sbr.rel (0) target = $region25
  $region24: #{discriminator_forward.1} parent=0 // pred_region
    _
  $region25: #{discriminator_forward.1} parent=0 // pred_fallthru
    _
  // Predicated region
  $region26: #{discriminator_forward.1} parent=0 // pred_check
    _
  $region27: #{discriminator_forward.1} parent=0 // pred_check_branch
    %77 = sbr.rel (0) target = $region29
  $region28: #{discriminator_forward.1} parent=0 // pred_region
    _
  $region29: #{discriminator_forward.1} parent=0 // pred_fallthru
    _
  // Predicated region
  $region30: #{discriminator_forward.1} parent=0 // pred_check
    _
  $region31: #{discriminator_forward.1} parent=0 // pred_check_branch
    %79 = sbr.rel (0) target = $region33
  $region32: #{discriminator_forward.1} parent=0 // pred_region
    _
  $region33: #{discriminator_forward.1} parent=0 // pred_fallthru
    _
  // Predicated region
  $region34: #{discriminator_forward.1} parent=0 // pred_check
    _
  $region35: #{discriminator_forward.1} parent=0 // pred_check_branch
    %81 = sbr.rel (0) target = $region37
  $region36: #{discriminator_forward.1} parent=0 // pred_region
    _
  $region37: #{discriminator_forward.1} parent=0 // pred_fallthru
    _
  // Predicated region
  $region38: #{discriminator_forward.1} parent=0 // pred_check
    _
  $region39: #{discriminator_forward.1} parent=0 // pred_check_branch
    %83 = sbr.rel (0) target = $region41
  $region40: #{discriminator_forward.1} parent=0 // pred_region
    _
  $region41: #{discriminator_forward.1} parent=0 // pred_fallthru
    _
  // Predicated region
  $region42: #{discriminator_forward.1} parent=0 // pred_check
    _
  $region43: #{discriminator_forward.1} parent=0 // pred_check_branch
    %85 = sbr.rel (0) target = $region45
  $region44: #{discriminator_forward.1} parent=0 // pred_region
    _
  $region45: #{discriminator_forward.1} parent=0 // pred_fallthru
    _
  // Predicated region
  $region46: #{discriminator_forward.1} parent=0 // pred_check
    _
  $region47: #{discriminator_forward.1} parent=0 // pred_check_branch
    %87 = sbr.rel (0) target = $region49
  $region48: #{discriminator_forward.1} parent=0 // pred_region
    _
  $region49: #{discriminator_forward.1} parent=0 // pred_fallthru
    _
  // Predicated region
  $region50: #{discriminator_forward.1} parent=0 // pred_check
    _
  $region51: #{discriminator_forward.1} parent=0 // pred_check_branch
    %89 = sbr.rel (0) target = $region53
  $region52: #{discriminator_forward.1} parent=0 // pred_region
    _
  $region53: #{discriminator_forward.1} parent=0 // pred_fallthru
    _
  // Predicated region
  $region54: #{discriminator_forward.1} parent=0 // pred_check
    _
  $region55: #{discriminator_forward.1} parent=0 // pred_check_branch
    %91 = sbr.rel (0) target = $region57
  $region56: #{discriminator_forward.1} parent=0 // pred_region
    _
  $region57: #{discriminator_forward.1} parent=0 // pred_fallthru
    _
  // Predicated region
  $region58: #{discriminator_forward.1} parent=0 // pred_check
    _
  $region59: #{discriminator_forward.1} parent=0 // pred_check_branch
    %93 = sbr.rel (0) target = $region61
  $region60: #{discriminator_forward.1} parent=0 // pred_region
    _
  $region61: #{discriminator_forward.1} parent=0 // pred_fallthru
    _
  // Predicated region
  $region62: #{discriminator_forward.1} parent=0 // pred_check
    _
  $region63: #{discriminator_forward.1} parent=0 // pred_check_branch
    %95 = sbr.rel (0) target = $region65
  $region64: #{discriminator_forward.1} parent=0 // pred_region
    _
  $region65: #{discriminator_forward.1} parent=0 // pred_fallthru
    _
  // Predicated region
  $region66: #{discriminator_forward.1} parent=0 // pred_check
    _
  $region67: #{discriminator_forward.1} parent=0 // pred_check_branch
    %97 = sbr.rel (0) target = $region69
  $region68: #{discriminator_forward.1} parent=0 // pred_region
    _
  $region69: #{discriminator_forward.1} parent=0 // pred_fallthru
    _
  // Predicated region
  $region70: #{discriminator_forward.1} parent=0 // pred_check
    _
  $region71: #{discriminator_forward.1} parent=0 // pred_check_branch
    %99 = sbr.rel (0) target = $region73
  $region72: #{discriminator_forward.1} parent=0 // pred_region
    _
  $region73: #{discriminator_forward.1} parent=0 // pred_fallthru
    _
  // Predicated region
  $region74: #{discriminator_forward.1} parent=0 // pred_check
    _
  $region75: #{discriminator_forward.1} parent=0 // pred_check_branch
    %101 = sbr.rel (0) target = $region77
  $region76: #{discriminator_forward.1} parent=0 // pred_region
    _
  $region77: #{discriminator_forward.1} parent=0 // pred_fallthru
    _
  // Predicated region
  $region78: #{discriminator_forward.1} parent=0 // pred_check
    _
  $region79: #{discriminator_forward.1} parent=0 // pred_check_branch
    %103 = sbr.rel (0) target = $region81
  $region80: #{discriminator_forward.1} parent=0 // pred_region
    _
  $region81: #{discriminator_forward.1} parent=0 // pred_fallthru
    _
  // Predicated region
  $region82: #{discriminator_forward.1} parent=0 // pred_check
    _
  $region83: #{discriminator_forward.1} parent=0 // pred_check_branch
    %105 = sbr.rel (0) target = $region85
  $region84: #{discriminator_forward.1} parent=0 // pred_region
    _
  $region85: #{discriminator_forward.1} parent=0 // pred_fallthru
    _
  // Predicated region
  $region86: #{discriminator_forward.1} parent=0 // pred_check
    _
  $region87: #{discriminator_forward.1} parent=0 // pred_check_branch
    %107 = sbr.rel (0) target = $region89
  $region88: #{discriminator_forward.1} parent=0 // pred_region
    _
  $region89: #{discriminator_forward.1} parent=0 // pred_fallthru
    _
  // Predicated region
  $region90: #{discriminator_forward.1} parent=0 // pred_check
    _
  $region91: #{discriminator_forward.1} parent=0 // pred_check_branch
    %109 = sbr.rel (0) target = $region93
  $region92: #{discriminator_forward.1} parent=0 // pred_region
    _
  $region93: #{discriminator_forward.1} parent=0 // pred_fallthru
    _
  // Predicated region
  $region94: #{discriminator_forward.1} parent=0 // pred_check
    _
  $region95: #{discriminator_forward.1} parent=0 // pred_check_branch
    %111 = sbr.rel (0) target = $region97
  $region96: #{discriminator_forward.1} parent=0 // pred_region
    _
  $region97: #{discriminator_forward.1} parent=0 // pred_fallthru
    _
  // Predicated region
  $region98: #{discriminator_forward.1} parent=0 // pred_check
    _
  $region99: #{discriminator_forward.1} parent=0 // pred_check_branch
    %113 = sbr.rel (0) target = $region101
  $region100: #{discriminator_forward.1} parent=0 // pred_region
    _
  $region101: #{discriminator_forward.1} parent=0 // pred_fallthru
    _
  // Predicated region
  $region102: #{discriminator_forward.1} parent=0 // pred_check
    _
  $region103: #{discriminator_forward.1} parent=0 // pred_check_branch
    %115 = sbr.rel (0) target = $region105
  $region104: #{discriminator_forward.1} parent=0 // pred_region
    _
  $region105: #{discriminator_forward.1} parent=0 // pred_fallthru
    _
  // Predicated region
  $region106: #{discriminator_forward.1} parent=0 // pred_check
    _
  $region107: #{discriminator_forward.1} parent=0 // pred_check_branch
    %117 = sbr.rel (0) target = $region109
  $region108: #{discriminator_forward.1} parent=0 // pred_region
    _
  $region109: #{discriminator_forward.1} parent=0 // pred_fallthru
    _
  // Predicated region
  $region110: #{discriminator_forward.1} parent=0 // pred_check
    _
  $region111: #{discriminator_forward.1} parent=0 // pred_check_branch
    %119 = sbr.rel (0) target = $region113
  $region112: #{discriminator_forward.1} parent=0 // pred_region
    _
  $region113: #{discriminator_forward.1} parent=0 // pred_fallthru
    _
  // Predicated region
  $region114: #{discriminator_forward.1} parent=0 // pred_check
    _
  $region115: #{discriminator_forward.1} parent=0 // pred_check_branch
    %121 = sbr.rel (0) target = $region117
  $region116: #{discriminator_forward.1} parent=0 // pred_region
    _
  $region117: #{discriminator_forward.1} parent=0 // pred_fallthru
    _
  %v122 = vld [vmem:[%s1] sm:$0xff]
  %v123 = vld [vmem:[%s1 + $0x8] sm:$0xff]
  %v124 = vld [vmem:[%s1 + $0x10] sm:$0xff]
  %v125 = vld [vmem:[%s1 + $0x18] sm:$0xff]
  %v126 = vld [vmem:[%s1 + $0x20] sm:$0xff]
  %v127 = vld [vmem:[%s1 + $0x28] sm:$0xff]
  %v128 = vld [vmem:[%s1 + $0x30] sm:$0xff]
  %v129 = vld [vmem:[%s1 + $0x38] sm:$0xff]
  %v130 = vld [vmem:[%s1 + $0x40] sm:$0xff]
  %v131 = vld [vmem:[%s1 + $0x48] sm:$0xff]
  %v132 = vld [vmem:[%s1 + $0x50] sm:$0xff]
  %v133 = vld [vmem:[%s1 + $0x58] sm:$0xff]
  %v134 = vld [vmem:[%s1 + $0x60] sm:$0xff]
  %v135 = vld [vmem:[%s1 + $0x68] sm:$0xff]
  %v136 = vld [vmem:[%s1 + $0x70] sm:$0xff]
  %v137 = vld [vmem:[%s1 + $0x78] sm:$0xff]
  %v138 = vld [vmem:[%s3] sm:$0xff]
  %v139 = vld [vmem:[%s3 + $0x8] sm:$0xff]
  %v140 = vld [vmem:[%s3 + $0x10] sm:$0xff]
  %v141 = vld [vmem:[%s3 + $0x18] sm:$0xff]
  %v142 = vld [vmem:[%s3 + $0x20] sm:$0xff]
  %v143 = vld [vmem:[%s3 + $0x28] sm:$0xff]
  %v144 = vld [vmem:[%s3 + $0x30] sm:$0xff]
  %v145 = vld [vmem:[%s3 + $0x38] sm:$0xff]
  %v146 = vld [vmem:[%s3 + $0x40] sm:$0xff]
  %v147 = vld [vmem:[%s3 + $0x48] sm:$0xff]
  %v148 = vld [vmem:[%s3 + $0x50] sm:$0xff]
  %v149 = vld [vmem:[%s3 + $0x58] sm:$0xff]
  %v150 = vld [vmem:[%s3 + $0x60] sm:$0xff]
  %v151 = vld [vmem:[%s3 + $0x68] sm:$0xff]
  %v152 = vld [vmem:[%s3 + $0x70] sm:$0xff]
  %v153 = vld [vmem:[%s3 + $0x78] sm:$0xff]
  %154 = vmatprep.subr.mxu0 0.0
  %155 = vmatpush1.msra.mxu0 %v122
  %156 = vmatprep.subr.mxu0 0.0
  %157 = vmatpush1.msra.mxu0 %v123
  %158 = vmatprep.subr.mxu0 0.0
  %159 = vmatpush1.msra.mxu0 %v124
  %160 = vmatprep.subr.mxu0 0.0
  %161 = vmatpush1.msra.mxu0 %v125
  %162 = vmatprep.subr.mxu0 0.0
  %163 = vmatpush1.msra.mxu0 %v126
  %164 = vmatprep.subr.mxu0 0.0
  %165 = vmatpush1.msra.mxu0 %v127
  %166 = vmatprep.subr.mxu0 0.0
  %167 = vmatpush1.msra.mxu0 %v128
  %168 = vmatprep.subr.mxu0 0.0
  %169 = vmatpush1.msra.mxu0 %v129
  %170 = vmatprep.subr.mxu0 0.0
  %171 = vmatpush1.msra.mxu0 %v130
  %172 = vmatprep.subr.mxu0 0.0
  %173 = vmatpush1.msra.mxu0 %v131
  %174 = vmatprep.subr.mxu0 0.0
  %175 = vmatpush1.msra.mxu0 %v132
  %176 = vmatprep.subr.mxu0 0.0
  %177 = vmatpush1.msra.mxu0 %v133
  %178 = vmatprep.subr.mxu0 0.0
  %179 = vmatpush1.msra.mxu0 %v134
  %180 = vmatprep.subr.mxu0 0.0
  %181 = vmatpush1.msra.mxu0 %v135
  %182 = vmatprep.subr.mxu0 0.0
  %183 = vmatpush1.msra.mxu0 %v136
  %184 = vmatprep.subr.mxu0 0.0
  %185 = vmatpush1.msra.mxu0 %v137
  %186 = vmatprep.subr.mxu0 0.0
  %187 = vmatpush1.msra.mxu0 0.0
  %188 = vmatprep.subr.mxu0 0.0
  %189 = vmatpush1.msra.mxu0 0.0
  %190 = vmatprep.subr.mxu0 0.0
  %191 = vmatpush1.msra.mxu0 0.0
  %192 = vmatprep.subr.mxu0 0.0
  %193 = vmatpush1.msra.mxu0 0.0
  %194 = vmatprep.subr.mxu0 0.0
  %195 = vmatpush1.msra.mxu0 0.0
  %196 = vmatprep.subr.mxu0 0.0
  %197 = vmatpush1.msra.mxu0 0.0
  %198 = vmatprep.subr.mxu0 0.0
  %199 = vmatpush1.msra.mxu0 0.0
  %200 = vmatprep.subr.mxu0 0.0
  %201 = vmatpush1.msra.mxu0 0.0
  %202 = vmatprep.subr.mxu0 0.0
  %203 = vmatpush1.msra.mxu0 0.0
  %204 = vmatprep.subr.mxu0 0.0
  %205 = vmatpush1.msra.mxu0 0.0
  %206 = vmatprep.subr.mxu0 0.0
  %207 = vmatpush1.msra.mxu0 0.0
  %208 = vmatprep.subr.mxu0 0.0
  %209 = vmatpush1.msra.mxu0 0.0
  %210 = vmatprep.subr.mxu0 0.0
  %211 = vmatpush1.msra.mxu0 0.0
  %212 = vmatprep.subr.mxu0 0.0
  %213 = vmatpush1.msra.mxu0 0.0
  %214 = vmatprep.subr.mxu0 0.0
  %215 = vmatpush1.msra.mxu0 0.0
  %216 = vmatprep.subr.mxu0 0.0
  %217 = vmatpush1.msra.mxu0 0.0
  %218 = vmatprep.mubr.f32.mxu0 0.0
  %219 = vmatmul.mubr.f32.gmra.mrb[0].mxu0 %v138
  %v220 = vpop.f32.mrb[0].mxu0
  %v221 = vadd.f32 0.0, %v220
  %v222 = vpop.f32.mrb[0].mxu0
  %223 = vmatprep.mubr.f32.mxu0 0.0
  %224 = vmatmul.mubr.f32.gmra.mrb[0].mxu0 %v139
  %v225 = vpop.f32.mrb[0].mxu0
  %v226 = vadd.f32 0.0, %v225
  %v227 = vpop.f32.mrb[0].mxu0
  %228 = vmatprep.mubr.f32.mxu0 0.0
  %229 = vmatmul.mubr.f32.gmra.mrb[0].mxu0 %v140
  %v230 = vpop.f32.mrb[0].mxu0
  %v231 = vadd.f32 0.0, %v230
  %v232 = vpop.f32.mrb[0].mxu0
  %233 = vmatprep.mubr.f32.mxu0 0.0
  %234 = vmatmul.mubr.f32.gmra.mrb[0].mxu0 %v141
  %v235 = vpop.f32.mrb[0].mxu0
  %v236 = vadd.f32 0.0, %v235
  %v237 = vpop.f32.mrb[0].mxu0
  %238 = vmatprep.mubr.f32.mxu0 0.0
  %239 = vmatmul.mubr.f32.gmra.mrb[0].mxu0 %v142
  %v240 = vpop.f32.mrb[0].mxu0
  %v241 = vadd.f32 0.0, %v240
  %v242 = vpop.f32.mrb[0].mxu0
  %243 = vmatprep.mubr.f32.mxu0 0.0
  %244 = vmatmul.mubr.f32.gmra.mrb[0].mxu0 %v143
  %v245 = vpop.f32.mrb[0].mxu0
  %v246 = vadd.f32 0.0, %v245
  %v247 = vpop.f32.mrb[0].mxu0
  %248 = vmatprep.mubr.f32.mxu0 0.0
  %249 = vmatmul.mubr.f32.gmra.mrb[0].mxu0 %v144
  %v250 = vpop.f32.mrb[0].mxu0
  %v251 = vadd.f32 0.0, %v250
  %v252 = vpop.f32.mrb[0].mxu0
  %253 = vmatprep.mubr.f32.mxu0 0.0
  %254 = vmatmul.mubr.f32.gmra.mrb[0].mxu0 %v145
  %v255 = vpop.f32.mrb[0].mxu0
  %v256 = vadd.f32 0.0, %v255
  %v257 = vpop.f32.mrb[0].mxu0
  %258 = vmatprep.mubr.f32.mxu0 0.0
  %259 = vmatmul.mubr.f32.gmra.mrb[0].mxu0 %v146
  %v260 = vpop.f32.mrb[0].mxu0
  %v261 = vadd.f32 0.0, %v260
  %v262 = vpop.f32.mrb[0].mxu0
  %263 = vmatprep.mubr.f32.mxu0 0.0
  %264 = vmatmul.mubr.f32.gmra.mrb[0].mxu0 %v147
  %v265 = vpop.f32.mrb[0].mxu0
  %v266 = vadd.f32 0.0, %v265
  %v267 = vpop.f32.mrb[0].mxu0
  %268 = vmatprep.mubr.f32.mxu0 0.0
  %269 = vmatmul.mubr.f32.gmra.mrb[0].mxu0 %v148
  %v270 = vpop.f32.mrb[0].mxu0
  %v271 = vadd.f32 0.0, %v270
  %v272 = vpop.f32.mrb[0].mxu0
  %273 = vmatprep.mubr.f32.mxu0 0.0
  %274 = vmatmul.mubr.f32.gmra.mrb[0].mxu0 %v149
  %v275 = vpop.f32.mrb[0].mxu0
  %v276 = vadd.f32 0.0, %v275
  %v277 = vpop.f32.mrb[0].mxu0
  %278 = vmatprep.mubr.f32.mxu0 0.0
  %279 = vmatmul.mubr.f32.gmra.mrb[0].mxu0 %v150
  %v280 = vpop.f32.mrb[0].mxu0
  %v281 = vadd.f32 0.0, %v280
  %v282 = vpop.f32.mrb[0].mxu0
  %283 = vmatprep.mubr.f32.mxu0 0.0
  %284 = vmatmul.mubr.f32.gmra.mrb[0].mxu0 %v151
  %v285 = vpop.f32.mrb[0].mxu0
  %v286 = vadd.f32 0.0, %v285
  %v287 = vpop.f32.mrb[0].mxu0
  %288 = vmatprep.mubr.f32.mxu0 0.0
  %289 = vmatmul.mubr.f32.gmra.mrb[0].mxu0 %v152
  %v290 = vpop.f32.mrb[0].mxu0
  %v291 = vadd.f32 0.0, %v290
  %v292 = vpop.f32.mrb[0].mxu0
  %293 = vmatprep.mubr.f32.mxu0 0.0
  %294 = vmatmul.mubr.f32.gmra.mrb[0].mxu0 %v153
  %v295 = vpop.f32.mrb[0].mxu0
  %v296 = vadd.f32 0.0, %v295
  %v297 = vpop.f32.mrb[0].mxu0
  %298 = vdwg.mxu0
  %v299 = vld [vmem:[%s5] sm:$0xff]
  %v300 = vld [vmem:[%s5 + $0x8] sm:$0xff]
  %v301 = vld [vmem:[%s5 + $0x10] sm:$0xff]
  %v302 = vld [vmem:[%s5 + $0x18] sm:$0xff]
  %v303 = vld [vmem:[%s5 + $0x20] sm:$0xff]
  %v304 = vld [vmem:[%s5 + $0x28] sm:$0xff]
  %v305 = vld [vmem:[%s3 + $0x80] sm:$0xff]
  %v306 = vld [vmem:[%s3 + $0x88] sm:$0xff]
  %v307 = vld [vmem:[%s3 + $0x90] sm:$0xff]
  %v308 = vld [vmem:[%s3 + $0x98] sm:$0xff]
  %v309 = vld [vmem:[%s3 + $0xa0] sm:$0xff]
  %v310 = vld [vmem:[%s3 + $0xa8] sm:$0xff]
  %v311 = vld [vmem:[%s3 + $0xb0] sm:$0xff]
  %v312 = vld [vmem:[%s3 + $0xb8] sm:$0xff]
  %v313 = vld [vmem:[%s3 + $0xc0] sm:$0xff]
  %v314 = vld [vmem:[%s3 + $0xc8] sm:$0xff]
  %v315 = vld [vmem:[%s3 + $0xd0] sm:$0xff]
  %v316 = vld [vmem:[%s3 + $0xd8] sm:$0xff]
  %v317 = vld [vmem:[%s3 + $0xe0] sm:$0xff]
  %v318 = vld [vmem:[%s3 + $0xe8] sm:$0xff]
  %v319 = vld [vmem:[%s3 + $0xf0] sm:$0xff]
  %v320 = vld [vmem:[%s3 + $0xf8] sm:$0xff]
  %321 = vmatprep.subr.mxu0 0.0
  %322 = vmatpush1.msra.mxu0 %v122
  %323 = vmatprep.subr.mxu0 0.0
  %324 = vmatpush1.msra.mxu0 %v123
  %325 = vmatprep.subr.mxu0 0.0
  %326 = vmatpush1.msra.mxu0 %v124
  %327 = vmatprep.subr.mxu0 0.0
  %328 = vmatpush1.msra.mxu0 %v125
  %329 = vmatprep.subr.mxu0 0.0
  %330 = vmatpush1.msra.mxu0 %v126
  %331 = vmatprep.subr.mxu0 0.0
  %332 = vmatpush1.msra.mxu0 %v127
  %333 = vmatprep.subr.mxu0 0.0
  %334 = vmatpush1.msra.mxu0 %v128
  %335 = vmatprep.subr.mxu0 0.0
  %336 = vmatpush1.msra.mxu0 %v129
  %337 = vmatprep.subr.mxu0 0.0
  %338 = vmatpush1.msra.mxu0 %v130
  %339 = vmatprep.subr.mxu0 0.0
  %340 = vmatpush1.msra.mxu0 %v131
  %341 = vmatprep.subr.mxu0 0.0
  %342 = vmatpush1.msra.mxu0 %v132
  %343 = vmatprep.subr.mxu0 0.0
  %344 = vmatpush1.msra.mxu0 %v133
  %345 = vmatprep.subr.mxu0 0.0
  %346 = vmatpush1.msra.mxu0 %v134
  %347 = vmatprep.subr.mxu0 0.0
  %348 = vmatpush1.msra.mxu0 %v135
  %349 = vmatprep.subr.mxu0 0.0
  %350 = vmatpush1.msra.mxu0 %v136
  %351 = vmatprep.subr.mxu0 0.0
  %352 = vmatpush1.msra.mxu0 %v137
  %353 = vmatprep.subr.mxu0 0.0
  %354 = vmatpush1.msra.mxu0 0.0
  %355 = vmatprep.subr.mxu0 0.0
  %356 = vmatpush1.msra.mxu0 0.0
  %357 = vmatprep.subr.mxu0 0.0
  %358 = vmatpush1.msra.mxu0 0.0
  %359 = vmatprep.subr.mxu0 0.0
  %360 = vmatpush1.msra.mxu0 0.0
  %361 = vmatprep.subr.mxu0 0.0
  %362 = vmatpush1.msra.mxu0 0.0
  %363 = vmatprep.subr.mxu0 0.0
  %364 = vmatpush1.msra.mxu0 0.0
  %365 = vmatprep.subr.mxu0 0.0
  %366 = vmatpush1.msra.mxu0 0.0
  %367 = vmatprep.subr.mxu0 0.0
  %368 = vmatpush1.msra.mxu0 0.0
  %369 = vmatprep.subr.mxu0 0.0
  %370 = vmatpush1.msra.mxu0 0.0
  %371 = vmatprep.subr.mxu0 0.0
  %372 = vmatpush1.msra.mxu0 0.0
  %373 = vmatprep.subr.mxu0 0.0
  %374 = vmatpush1.msra.mxu0 0.0
  %375 = vmatprep.subr.mxu0 0.0
  %376 = vmatpush1.msra.mxu0 0.0
  %377 = vmatprep.subr.mxu0 0.0
  %378 = vmatpush1.msra.mxu0 0.0
  %379 = vmatprep.subr.mxu0 0.0
  %380 = vmatpush1.msra.mxu0 0.0
  %381 = vmatprep.subr.mxu0 0.0
  %382 = vmatpush1.msra.mxu0 0.0
  %383 = vmatprep.subr.mxu0 0.0
  %384 = vmatpush1.msra.mxu0 0.0
  %385 = vmatprep.mubr.f32.mxu0 0.0
  %386 = vmatmul.mubr.f32.gmra.mrb[0].mxu0 %v305
  %v387 = vpop.f32.mrb[0].mxu0
  %v388 = vadd.f32 0.0, %v387
  %v389 = vpop.f32.mrb[0].mxu0
  %390 = vmatprep.mubr.f32.mxu0 0.0
  %391 = vmatmul.mubr.f32.gmra.mrb[0].mxu0 %v306
  %v392 = vpop.f32.mrb[0].mxu0
  %v393 = vadd.f32 0.0, %v392
  %v394 = vpop.f32.mrb[0].mxu0
  %395 = vmatprep.mubr.f32.mxu0 0.0
  %396 = vmatmul.mubr.f32.gmra.mrb[0].mxu0 %v307
  %v397 = vpop.f32.mrb[0].mxu0
  %v398 = vadd.f32 0.0, %v397
  %v399 = vpop.f32.mrb[0].mxu0
  %400 = vmatprep.mubr.f32.mxu0 0.0
  %401 = vmatmul.mubr.f32.gmra.mrb[0].mxu0 %v308
  %v402 = vpop.f32.mrb[0].mxu0
  %v403 = vadd.f32 0.0, %v402
  %v404 = vpop.f32.mrb[0].mxu0
  %405 = vmatprep.mubr.f32.mxu0 0.0
  %406 = vmatmul.mubr.f32.gmra.mrb[0].mxu0 %v309
  %v407 = vpop.f32.mrb[0].mxu0
  %v408 = vadd.f32 0.0, %v407
  %v409 = vpop.f32.mrb[0].mxu0
  %410 = vmatprep.mubr.f32.mxu0 0.0
  %411 = vmatmul.mubr.f32.gmra.mrb[0].mxu0 %v310
  %v412 = vpop.f32.mrb[0].mxu0
  %v413 = vadd.f32 0.0, %v412
  %v414 = vpop.f32.mrb[0].mxu0
  %415 = vmatprep.mubr.f32.mxu0 0.0
  %416 = vmatmul.mubr.f32.gmra.mrb[0].mxu0 %v311
  %v417 = vpop.f32.mrb[0].mxu0
  %v418 = vadd.f32 0.0, %v417
  %v419 = vpop.f32.mrb[0].mxu0
  %420 = vmatprep.mubr.f32.mxu0 0.0
  %421 = vmatmul.mubr.f32.gmra.mrb[0].mxu0 %v312
  %v422 = vpop.f32.mrb[0].mxu0
  %v423 = vadd.f32 0.0, %v422
  %v424 = vpop.f32.mrb[0].mxu0
  %425 = vmatprep.mubr.f32.mxu0 0.0
  %426 = vmatmul.mubr.f32.gmra.mrb[0].mxu0 %v313
  %v427 = vpop.f32.mrb[0].mxu0
  %v428 = vadd.f32 0.0, %v427
  %v429 = vpop.f32.mrb[0].mxu0
  %430 = vmatprep.mubr.f32.mxu0 0.0
  %431 = vmatmul.mubr.f32.gmra.mrb[0].mxu0 %v314
  %v432 = vpop.f32.mrb[0].mxu0
  %v433 = vadd.f32 0.0, %v432
  %v434 = vpop.f32.mrb[0].mxu0
  %435 = vmatprep.mubr.f32.mxu0 0.0
  %436 = vmatmul.mubr.f32.gmra.mrb[0].mxu0 %v315
  %v437 = vpop.f32.mrb[0].mxu0
  %v438 = vadd.f32 0.0, %v437
  %v439 = vpop.f32.mrb[0].mxu0
  %440 = vmatprep.mubr.f32.mxu0 0.0
  %441 = vmatmul.mubr.f32.gmra.mrb[0].mxu0 %v316
  %v442 = vpop.f32.mrb[0].mxu0
  %v443 = vadd.f32 0.0, %v442
  %v444 = vpop.f32.mrb[0].mxu0
  %445 = vmatprep.mubr.f32.mxu0 0.0
  %446 = vmatmul.mubr.f32.gmra.mrb[0].mxu0 %v317
  %v447 = vpop.f32.mrb[0].mxu0
  %v448 = vadd.f32 0.0, %v447
  %v449 = vpop.f32.mrb[0].mxu0
  %450 = vmatprep.mubr.f32.mxu0 0.0
  %451 = vmatmul.mubr.f32.gmra.mrb[0].mxu0 %v318
  %v452 = vpop.f32.mrb[0].mxu0
  %v453 = vadd.f32 0.0, %v452
  %v454 = vpop.f32.mrb[0].mxu0
  %455 = vmatprep.mubr.f32.mxu0 0.0
  %456 = vmatmul.mubr.f32.gmra.mrb[0].mxu0 %v319
  %v457 = vpop.f32.mrb[0].mxu0
  %v458 = vadd.f32 0.0, %v457
  %v459 = vpop.f32.mrb[0].mxu0
  %460 = vmatprep.mubr.f32.mxu0 0.0
  %461 = vmatmul.mubr.f32.gmra.mrb[0].mxu0 %v320
  %v462 = vpop.f32.mrb[0].mxu0
  %v463 = vadd.f32 0.0, %v462
  %v464 = vpop.f32.mrb[0].mxu0
  %465 = vdwg.mxu0
  %v466 = vld [vmem:[%s5 + $0x30] sm:$0xff]
  %v467 = vld [vmem:[%s5 + $0x38] sm:$0xff]
  %v468 = vld [vmem:[%s5 + $0x40] sm:$0xff]
  %v469 = vld [vmem:[%s5 + $0x48] sm:$0xff]
  %v470 = vld [vmem:[%s5 + $0x50] sm:$0xff]
  %v471 = vld [vmem:[%s5 + $0x58] sm:$0xff]
  %vm472 = vcmask 392192
  %v474 = vsel %vm472, %v388, 0
  %v477 = vsel %vm472, %v393, 0
  %v480 = vsel %vm472, %v398, 0
  %v483 = vsel %vm472, %v403, 0
  %v486 = vsel %vm472, %v408, 0
  %v489 = vsel %vm472, %v413, 0
  %v492 = vsel %vm472, %v418, 0
  %v495 = vsel %vm472, %v423, 0
  %v498 = vsel %vm472, %v428, 0
  %v501 = vsel %vm472, %v433, 0
  %v504 = vsel %vm472, %v438, 0
  %v507 = vsel %vm472, %v443, 0
  %v510 = vsel %vm472, %v448, 0
  %v513 = vsel %vm472, %v453, 0
  %v516 = vsel %vm472, %v458, 0
  %v519 = vsel %vm472, %v463, 0
  %521 = vmatprep.subr.mxu0 0.0
  %522 = vmatpush1.msra.mxu0 %v466
  %523 = vmatprep.subr.mxu0 0.0
  %524 = vmatpush1.msra.mxu0 %v467
  %525 = vmatprep.subr.mxu0 0.0
  %526 = vmatpush1.msra.mxu0 %v468
  %527 = vmatprep.subr.mxu0 0.0
  %528 = vmatpush1.msra.mxu0 %v469
  %529 = vmatprep.subr.mxu0 0.0
  %530 = vmatpush1.msra.mxu0 %v470
  %531 = vmatprep.subr.mxu0 0.0
  %532 = vmatpush1.msra.mxu0 %v471
  %533 = vmatprep.subr.mxu0 0.0
  %534 = vmatpush1.msra.mxu0 0.0
  %535 = vmatprep.subr.mxu0 0.0
  %536 = vmatpush1.msra.mxu0 0.0
  %537 = vmatprep.subr.mxu0 0.0
  %538 = vmatpush1.msra.mxu0 0.0
  %539 = vmatprep.subr.mxu0 0.0
  %540 = vmatpush1.msra.mxu0 0.0
  %541 = vmatprep.subr.mxu0 0.0
  %542 = vmatpush1.msra.mxu0 0.0
  %543 = vmatprep.subr.mxu0 0.0
  %544 = vmatpush1.msra.mxu0 0.0
  %545 = vmatprep.subr.mxu0 0.0
  %546 = vmatpush1.msra.mxu0 0.0
  %547 = vmatprep.subr.mxu0 0.0
  %548 = vmatpush1.msra.mxu0 0.0
  %549 = vmatprep.subr.mxu0 0.0
  %550 = vmatpush1.msra.mxu0 0.0
  %551 = vmatprep.subr.mxu0 0.0
  %552 = vmatpush1.msra.mxu0 0.0
  %553 = vmatprep.subr.mxu0 0.0
  %554 = vmatpush1.msra.mxu0 0.0
  %555 = vmatprep.subr.mxu0 0.0
  %556 = vmatpush1.msra.mxu0 0.0
  %557 = vmatprep.subr.mxu0 0.0
  %558 = vmatpush1.msra.mxu0 0.0
  %559 = vmatprep.subr.mxu0 0.0
  %560 = vmatpush1.msra.mxu0 0.0
  %561 = vmatprep.subr.mxu0 0.0
  %562 = vmatpush1.msra.mxu0 0.0
  %563 = vmatprep.subr.mxu0 0.0
  %564 = vmatpush1.msra.mxu0 0.0
  %565 = vmatprep.subr.mxu0 0.0
  %566 = vmatpush1.msra.mxu0 0.0
  %567 = vmatprep.subr.mxu0 0.0
  %568 = vmatpush1.msra.mxu0 0.0
  %569 = vmatprep.subr.mxu0 0.0
  %570 = vmatpush1.msra.mxu0 0.0
  %571 = vmatprep.subr.mxu0 0.0
  %572 = vmatpush1.msra.mxu0 0.0
  %573 = vmatprep.subr.mxu0 0.0
  %574 = vmatpush1.msra.mxu0 0.0
  %575 = vmatprep.subr.mxu0 0.0
  %576 = vmatpush1.msra.mxu0 0.0
  %577 = vmatprep.subr.mxu0 0.0
  %578 = vmatpush1.msra.mxu0 0.0
  %579 = vmatprep.subr.mxu0 0.0
  %580 = vmatpush1.msra.mxu0 0.0
  %581 = vmatprep.subr.mxu0 0.0
  %582 = vmatpush1.msra.mxu0 0.0
  %583 = vmatprep.subr.mxu0 0.0
  %584 = vmatpush1.msra.mxu0 0.0
  %585 = vmatprep.mubr.f32.mxu0 0.0
  %586 = vmatmul.mubr.f32.gmra.mrb[0].mxu0 %v474
  %v587 = vpop.f32.mrb[0].mxu0
  %v588 = vadd.f32 0.0, %v587
  %v589 = vpop.f32.mrb[0].mxu0
  %590 = vmatprep.mubr.f32.mxu0 0.0
  %591 = vmatmul.mubr.f32.gmra.mrb[0].mxu0 %v477
  %v592 = vpop.f32.mrb[0].mxu0
  %v593 = vadd.f32 0.0, %v592
  %v594 = vpop.f32.mrb[0].mxu0
  %595 = vmatprep.mubr.f32.mxu0 0.0
  %596 = vmatmul.mubr.f32.gmra.mrb[0].mxu0 %v480
  %v597 = vpop.f32.mrb[0].mxu0
  %v598 = vadd.f32 0.0, %v597
  %v599 = vpop.f32.mrb[0].mxu0
  %600 = vmatprep.mubr.f32.mxu0 0.0
  %601 = vmatmul.mubr.f32.gmra.mrb[0].mxu0 %v483
  %v602 = vpop.f32.mrb[0].mxu0
  %v603 = vadd.f32 0.0, %v602
  %v604 = vpop.f32.mrb[0].mxu0
  %605 = vmatprep.mubr.f32.mxu0 0.0
  %606 = vmatmul.mubr.f32.gmra.mrb[0].mxu0 %v486
  %v607 = vpop.f32.mrb[0].mxu0
  %v608 = vadd.f32 0.0, %v607
  %v609 = vpop.f32.mrb[0].mxu0
  %610 = vmatprep.mubr.f32.mxu0 0.0
  %611 = vmatmul.mubr.f32.gmra.mrb[0].mxu0 %v489
  %v612 = vpop.f32.mrb[0].mxu0
  %v613 = vadd.f32 0.0, %v612
  %v614 = vpop.f32.mrb[0].mxu0
  %615 = vmatprep.mubr.f32.mxu0 0.0
  %616 = vmatmul.mubr.f32.gmra.mrb[0].mxu0 %v492
  %v617 = vpop.f32.mrb[0].mxu0
  %v618 = vadd.f32 0.0, %v617
  %v619 = vpop.f32.mrb[0].mxu0
  %620 = vmatprep.mubr.f32.mxu0 0.0
  %621 = vmatmul.mubr.f32.gmra.mrb[0].mxu0 %v495
  %v622 = vpop.f32.mrb[0].mxu0
  %v623 = vadd.f32 0.0, %v622
  %v624 = vpop.f32.mrb[0].mxu0
  %625 = vmatprep.mubr.f32.mxu0 0.0
  %626 = vmatmul.mubr.f32.gmra.mrb[0].mxu0 %v498
  %v627 = vpop.f32.mrb[0].mxu0
  %v628 = vadd.f32 0.0, %v627
  %v629 = vpop.f32.mrb[0].mxu0
  %630 = vmatprep.mubr.f32.mxu0 0.0
  %631 = vmatmul.mubr.f32.gmra.mrb[0].mxu0 %v501
  %v632 = vpop.f32.mrb[0].mxu0
  %v633 = vadd.f32 0.0, %v632
  %v634 = vpop.f32.mrb[0].mxu0
  %635 = vmatprep.mubr.f32.mxu0 0.0
  %636 = vmatmul.mubr.f32.gmra.mrb[0].mxu0 %v504
  %v637 = vpop.f32.mrb[0].mxu0
  %v638 = vadd.f32 0.0, %v637
  %v639 = vpop.f32.mrb[0].mxu0
  %640 = vmatprep.mubr.f32.mxu0 0.0
  %641 = vmatmul.mubr.f32.gmra.mrb[0].mxu0 %v507
  %v642 = vpop.f32.mrb[0].mxu0
  %v643 = vadd.f32 0.0, %v642
  %v644 = vpop.f32.mrb[0].mxu0
  %645 = vmatprep.mubr.f32.mxu0 0.0
  %646 = vmatmul.mubr.f32.gmra.mrb[0].mxu0 %v510
  %v647 = vpop.f32.mrb[0].mxu0
  %v648 = vadd.f32 0.0, %v647
  %v649 = vpop.f32.mrb[0].mxu0
  %650 = vmatprep.mubr.f32.mxu0 0.0
  %651 = vmatmul.mubr.f32.gmra.mrb[0].mxu0 %v513
  %v652 = vpop.f32.mrb[0].mxu0
  %v653 = vadd.f32 0.0, %v652
  %v654 = vpop.f32.mrb[0].mxu0
  %655 = vmatprep.mubr.f32.mxu0 0.0
  %656 = vmatmul.mubr.f32.gmra.mrb[0].mxu0 %v516
  %v657 = vpop.f32.mrb[0].mxu0
  %v658 = vadd.f32 0.0, %v657
  %v659 = vpop.f32.mrb[0].mxu0
  %660 = vmatprep.mubr.f32.mxu0 0.0
  %661 = vmatmul.mubr.f32.gmra.mrb[0].mxu0 %v519
  %v662 = vpop.f32.mrb[0].mxu0
  %v663 = vadd.f32 0.0, %v662
  %v664 = vpop.f32.mrb[0].mxu0
  %665 = vdwg.mxu0
  %v667 = vsel %vm472, %v221, 0
  %v670 = vsel %vm472, %v226, 0
  %v673 = vsel %vm472, %v231, 0
  %v676 = vsel %vm472, %v236, 0
  %v679 = vsel %vm472, %v241, 0
  %v682 = vsel %vm472, %v246, 0
  %v685 = vsel %vm472, %v251, 0
  %v688 = vsel %vm472, %v256, 0
  %v691 = vsel %vm472, %v261, 0
  %v694 = vsel %vm472, %v266, 0
  %v697 = vsel %vm472, %v271, 0
  %v700 = vsel %vm472, %v276, 0
  %v703 = vsel %vm472, %v281, 0
  %v706 = vsel %vm472, %v286, 0
  %v709 = vsel %vm472, %v291, 0
  %v712 = vsel %vm472, %v296, 0
  %714 = vmatprep.subr.mxu0 0.0
  %715 = vmatpush1.msra.mxu0 %v299
  %716 = vmatprep.subr.mxu0 0.0
  %717 = vmatpush1.msra.mxu0 %v300
  %718 = vmatprep.subr.mxu0 0.0
  %719 = vmatpush1.msra.mxu0 %v301
  %720 = vmatprep.subr.mxu0 0.0
  %721 = vmatpush1.msra.mxu0 %v302
  %722 = vmatprep.subr.mxu0 0.0
  %723 = vmatpush1.msra.mxu0 %v303
  %724 = vmatprep.subr.mxu0 0.0
  %725 = vmatpush1.msra.mxu0 %v304
  %726 = vmatprep.subr.mxu0 0.0
  %727 = vmatpush1.msra.mxu0 0.0
  %728 = vmatprep.subr.mxu0 0.0
  %729 = vmatpush1.msra.mxu0 0.0
  %730 = vmatprep.subr.mxu0 0.0
  %731 = vmatpush1.msra.mxu0 0.0
  %732 = vmatprep.subr.mxu0 0.0
  %733 = vmatpush1.msra.mxu0 0.0
  %734 = vmatprep.subr.mxu0 0.0
  %735 = vmatpush1.msra.mxu0 0.0
  %736 = vmatprep.subr.mxu0 0.0
  %737 = vmatpush1.msra.mxu0 0.0
  %738 = vmatprep.subr.mxu0 0.0
  %739 = vmatpush1.msra.mxu0 0.0
  %740 = vmatprep.subr.mxu0 0.0
  %741 = vmatpush1.msra.mxu0 0.0
  %742 = vmatprep.subr.mxu0 0.0
  %743 = vmatpush1.msra.mxu0 0.0
  %744 = vmatprep.subr.mxu0 0.0
  %745 = vmatpush1.msra.mxu0 0.0
  %746 = vmatprep.subr.mxu0 0.0
  %747 = vmatpush1.msra.mxu0 0.0
  %748 = vmatprep.subr.mxu0 0.0
  %749 = vmatpush1.msra.mxu0 0.0
  %750 = vmatprep.subr.mxu0 0.0
  %751 = vmatpush1.msra.mxu0 0.0
  %752 = vmatprep.subr.mxu0 0.0
  %753 = vmatpush1.msra.mxu0 0.0
  %754 = vmatprep.subr.mxu0 0.0
  %755 = vmatpush1.msra.mxu0 0.0
  %756 = vmatprep.subr.mxu0 0.0
  %757 = vmatpush1.msra.mxu0 0.0
  %758 = vmatprep.subr.mxu0 0.0
  %759 = vmatpush1.msra.mxu0 0.0
  %760 = vmatprep.subr.mxu0 0.0
  %761 = vmatpush1.msra.mxu0 0.0
  %762 = vmatprep.subr.mxu0 0.0
  %763 = vmatpush1.msra.mxu0 0.0
  %764 = vmatprep.subr.mxu0 0.0
  %765 = vmatpush1.msra.mxu0 0.0
  %766 = vmatprep.subr.mxu0 0.0
  %767 = vmatpush1.msra.mxu0 0.0
  %768 = vmatprep.subr.mxu0 0.0
  %769 = vmatpush1.msra.mxu0 0.0
  %770 = vmatprep.subr.mxu0 0.0
  %771 = vmatpush1.msra.mxu0 0.0
  %772 = vmatprep.subr.mxu0 0.0
  %773 = vmatpush1.msra.mxu0 0.0
  %774 = vmatprep.subr.mxu0 0.0
  %775 = vmatpush1.msra.mxu0 0.0
  %776 = vmatprep.subr.mxu0 0.0
  %777 = vmatpush1.msra.mxu0 0.0
  %778 = vmatprep.mubr.f32.mxu0 0.0
  %779 = vmatmul.mubr.f32.gmra.mrb[0].mxu0 %v667
  %v780 = vpop.f32.mrb[0].mxu0
  %v781 = vadd.f32 %v588, %v780
  %v782 = vpop.f32.mrb[0].mxu0
  %783 = vmatprep.mubr.f32.mxu0 0.0
  %784 = vmatmul.mubr.f32.gmra.mrb[0].mxu0 %v670
  %v785 = vpop.f32.mrb[0].mxu0
  %v786 = vadd.f32 %v593, %v785
  %v787 = vpop.f32.mrb[0].mxu0
  %788 = vmatprep.mubr.f32.mxu0 0.0
  %789 = vmatmul.mubr.f32.gmra.mrb[0].mxu0 %v673
  %v790 = vpop.f32.mrb[0].mxu0
  %v791 = vadd.f32 %v598, %v790
  %v792 = vpop.f32.mrb[0].mxu0
  %793 = vmatprep.mubr.f32.mxu0 0.0
  %794 = vmatmul.mubr.f32.gmra.mrb[0].mxu0 %v676
  %v795 = vpop.f32.mrb[0].mxu0
  %v796 = vadd.f32 %v603, %v795
  %v797 = vpop.f32.mrb[0].mxu0
  %798 = vmatprep.mubr.f32.mxu0 0.0
  %799 = vmatmul.mubr.f32.gmra.mrb[0].mxu0 %v679
  %v800 = vpop.f32.mrb[0].mxu0
  %v801 = vadd.f32 %v608, %v800
  %v802 = vpop.f32.mrb[0].mxu0
  %803 = vmatprep.mubr.f32.mxu0 0.0
  %804 = vmatmul.mubr.f32.gmra.mrb[0].mxu0 %v682
  %v805 = vpop.f32.mrb[0].mxu0
  %v806 = vadd.f32 %v613, %v805
  %v807 = vpop.f32.mrb[0].mxu0
  %808 = vmatprep.mubr.f32.mxu0 0.0
  %809 = vmatmul.mubr.f32.gmra.mrb[0].mxu0 %v685
  %v810 = vpop.f32.mrb[0].mxu0
  %v811 = vadd.f32 %v618, %v810
  %v812 = vpop.f32.mrb[0].mxu0
  %813 = vmatprep.mubr.f32.mxu0 0.0
  %814 = vmatmul.mubr.f32.gmra.mrb[0].mxu0 %v688
  %v815 = vpop.f32.mrb[0].mxu0
  %v816 = vadd.f32 %v623, %v815
  %v817 = vpop.f32.mrb[0].mxu0
  %818 = vmatprep.mubr.f32.mxu0 0.0
  %819 = vmatmul.mubr.f32.gmra.mrb[0].mxu0 %v691
  %v820 = vpop.f32.mrb[0].mxu0
  %v821 = vadd.f32 %v628, %v820
  %v822 = vpop.f32.mrb[0].mxu0
  %823 = vmatprep.mubr.f32.mxu0 0.0
  %824 = vmatmul.mubr.f32.gmra.mrb[0].mxu0 %v694
  %v825 = vpop.f32.mrb[0].mxu0
  %v826 = vadd.f32 %v633, %v825
  %v827 = vpop.f32.mrb[0].mxu0
  %828 = vmatprep.mubr.f32.mxu0 0.0
  %829 = vmatmul.mubr.f32.gmra.mrb[0].mxu0 %v697
  %v830 = vpop.f32.mrb[0].mxu0
  %v831 = vadd.f32 %v638, %v830
  %v832 = vpop.f32.mrb[0].mxu0
  %833 = vmatprep.mubr.f32.mxu0 0.0
  %834 = vmatmul.mubr.f32.gmra.mrb[0].mxu0 %v700
  %v835 = vpop.f32.mrb[0].mxu0
  %v836 = vadd.f32 %v643, %v835
  %v837 = vpop.f32.mrb[0].mxu0
  %838 = vmatprep.mubr.f32.mxu0 0.0
  %839 = vmatmul.mubr.f32.gmra.mrb[0].mxu0 %v703
  %v840 = vpop.f32.mrb[0].mxu0
  %v841 = vadd.f32 %v648, %v840
  %v842 = vpop.f32.mrb[0].mxu0
  %843 = vmatprep.mubr.f32.mxu0 0.0
  %844 = vmatmul.mubr.f32.gmra.mrb[0].mxu0 %v706
  %v845 = vpop.f32.mrb[0].mxu0
  %v846 = vadd.f32 %v653, %v845
  %v847 = vpop.f32.mrb[0].mxu0
  %848 = vmatprep.mubr.f32.mxu0 0.0
  %849 = vmatmul.mubr.f32.gmra.mrb[0].mxu0 %v709
  %v850 = vpop.f32.mrb[0].mxu0
  %v851 = vadd.f32 %v658, %v850
  %v852 = vpop.f32.mrb[0].mxu0
  %853 = vmatprep.mubr.f32.mxu0 0.0
  %854 = vmatmul.mubr.f32.gmra.mrb[0].mxu0 %v712
  %v855 = vpop.f32.mrb[0].mxu0
  %v856 = vadd.f32 %v663, %v855
  %v857 = vpop.f32.mrb[0].mxu0
  %858 = vdwg.mxu0
  %v859 = vld [vmem:[%s3 + $0x100] sm:$0xff]
  %v860 = vld [vmem:[%s3 + $0x108] sm:$0xff]
  %v861 = vld [vmem:[%s3 + $0x110] sm:$0xff]
  %v862 = vld [vmem:[%s3 + $0x118] sm:$0xff]
  %v863 = vld [vmem:[%s3 + $0x120] sm:$0xff]
  %v864 = vld [vmem:[%s3 + $0x128] sm:$0xff]
  %v865 = vld [vmem:[%s3 + $0x130] sm:$0xff]
  %v866 = vld [vmem:[%s3 + $0x138] sm:$0xff]
  %v867 = vld [vmem:[%s3 + $0x140] sm:$0xff]
  %v868 = vld [vmem:[%s3 + $0x148] sm:$0xff]
  %v869 = vld [vmem:[%s3 + $0x150] sm:$0xff]
  %v870 = vld [vmem:[%s3 + $0x158] sm:$0xff]
  %v871 = vld [vmem:[%s3 + $0x160] sm:$0xff]
  %v872 = vld [vmem:[%s3 + $0x168] sm:$0xff]
  %v873 = vld [vmem:[%s3 + $0x170] sm:$0xff]
  %v874 = vld [vmem:[%s3 + $0x178] sm:$0xff]
  %875 = vmatprep.subr.mxu0 0.0
  %876 = vmatpush1.msra.mxu0 %v122
  %877 = vmatprep.subr.mxu0 0.0
  %878 = vmatpush1.msra.mxu0 %v123
  %879 = vmatprep.subr.mxu0 0.0
  %880 = vmatpush1.msra.mxu0 %v124
  %881 = vmatprep.subr.mxu0 0.0
  %882 = vmatpush1.msra.mxu0 %v125
  %883 = vmatprep.subr.mxu0 0.0
  %884 = vmatpush1.msra.mxu0 %v126
  %885 = vmatprep.subr.mxu0 0.0
  %886 = vmatpush1.msra.mxu0 %v127
  %887 = vmatprep.subr.mxu0 0.0
  %888 = vmatpush1.msra.mxu0 %v128
  %889 = vmatprep.subr.mxu0 0.0
  %890 = vmatpush1.msra.mxu0 %v129
  %891 = vmatprep.subr.mxu0 0.0
  %892 = vmatpush1.msra.mxu0 %v130
  %893 = vmatprep.subr.mxu0 0.0
  %894 = vmatpush1.msra.mxu0 %v131
  %895 = vmatprep.subr.mxu0 0.0
  %896 = vmatpush1.msra.mxu0 %v132
  %897 = vmatprep.subr.mxu0 0.0
  %898 = vmatpush1.msra.mxu0 %v133
  %899 = vmatprep.subr.mxu0 0.0
  %900 = vmatpush1.msra.mxu0 %v134
  %901 = vmatprep.subr.mxu0 0.0
  %902 = vmatpush1.msra.mxu0 %v135
  %903 = vmatprep.subr.mxu0 0.0
  %904 = vmatpush1.msra.mxu0 %v136
  %905 = vmatprep.subr.mxu0 0.0
  %906 = vmatpush1.msra.mxu0 %v137
  %907 = vmatprep.subr.mxu0 0.0
  %908 = vmatpush1.msra.mxu0 0.0
  %909 = vmatprep.subr.mxu0 0.0
  %910 = vmatpush1.msra.mxu0 0.0
  %911 = vmatprep.subr.mxu0 0.0
  %912 = vmatpush1.msra.mxu0 0.0
  %913 = vmatprep.subr.mxu0 0.0
  %914 = vmatpush1.msra.mxu0 0.0
  %915 = vmatprep.subr.mxu0 0.0
  %916 = vmatpush1.msra.mxu0 0.0
  %917 = vmatprep.subr.mxu0 0.0
  %918 = vmatpush1.msra.mxu0 0.0
  %919 = vmatprep.subr.mxu0 0.0
  %920 = vmatpush1.msra.mxu0 0.0
  %921 = vmatprep.subr.mxu0 0.0
  %922 = vmatpush1.msra.mxu0 0.0
  %923 = vmatprep.subr.mxu0 0.0
  %924 = vmatpush1.msra.mxu0 0.0
  %925 = vmatprep.subr.mxu0 0.0
  %926 = vmatpush1.msra.mxu0 0.0
  %927 = vmatprep.subr.mxu0 0.0
  %928 = vmatpush1.msra.mxu0 0.0
  %929 = vmatprep.subr.mxu0 0.0
  %930 = vmatpush1.msra.mxu0 0.0
  %931 = vmatprep.subr.mxu0 0.0
  %932 = vmatpush1.msra.mxu0 0.0
  %933 = vmatprep.subr.mxu0 0.0
  %934 = vmatpush1.msra.mxu0 0.0
  %935 = vmatprep.subr.mxu0 0.0
  %936 = vmatpush1.msra.mxu0 0.0
  %937 = vmatprep.subr.mxu0 0.0
  %938 = vmatpush1.msra.mxu0 0.0
  %939 = vmatprep.mubr.f32.mxu0 0.0
  %940 = vmatmul.mubr.f32.gmra.mrb[0].mxu0 %v859
  %v941 = vpop.f32.mrb[0].mxu0
  %v942 = vadd.f32 0.0, %v941
  %v943 = vpop.f32.mrb[0].mxu0
  %944 = vmatprep.mubr.f32.mxu0 0.0
  %945 = vmatmul.mubr.f32.gmra.mrb[0].mxu0 %v860
  %v946 = vpop.f32.mrb[0].mxu0
  %v947 = vadd.f32 0.0, %v946
  %v948 = vpop.f32.mrb[0].mxu0
  %949 = vmatprep.mubr.f32.mxu0 0.0
  %950 = vmatmul.mubr.f32.gmra.mrb[0].mxu0 %v861
  %v951 = vpop.f32.mrb[0].mxu0
  %v952 = vadd.f32 0.0, %v951
  %v953 = vpop.f32.mrb[0].mxu0
  %954 = vmatprep.mubr.f32.mxu0 0.0
  %955 = vmatmul.mubr.f32.gmra.mrb[0].mxu0 %v862
  %v956 = vpop.f32.mrb[0].mxu0
  %v957 = vadd.f32 0.0, %v956
  %v958 = vpop.f32.mrb[0].mxu0
  %959 = vmatprep.mubr.f32.mxu0 0.0
  %960 = vmatmul.mubr.f32.gmra.mrb[0].mxu0 %v863
  %v961 = vpop.f32.mrb[0].mxu0
  %v962 = vadd.f32 0.0, %v961
  %v963 = vpop.f32.mrb[0].mxu0
  %964 = vmatprep.mubr.f32.mxu0 0.0
  %965 = vmatmul.mubr.f32.gmra.mrb[0].mxu0 %v864
  %v966 = vpop.f32.mrb[0].mxu0
  %v967 = vadd.f32 0.0, %v966
  %v968 = vpop.f32.mrb[0].mxu0
  %969 = vmatprep.mubr.f32.mxu0 0.0
  %970 = vmatmul.mubr.f32.gmra.mrb[0].mxu0 %v865
  %v971 = vpop.f32.mrb[0].mxu0
  %v972 = vadd.f32 0.0, %v971
  %v973 = vpop.f32.mrb[0].mxu0
  %974 = vmatprep.mubr.f32.mxu0 0.0
  %975 = vmatmul.mubr.f32.gmra.mrb[0].mxu0 %v866
  %v976 = vpop.f32.mrb[0].mxu0
  %v977 = vadd.f32 0.0, %v976
  %v978 = vpop.f32.mrb[0].mxu0
  %979 = vmatprep.mubr.f32.mxu0 0.0
  %980 = vmatmul.mubr.f32.gmra.mrb[0].mxu0 %v867
  %v981 = vpop.f32.mrb[0].mxu0
  %v982 = vadd.f32 0.0, %v981
  %v983 = vpop.f32.mrb[0].mxu0
  %984 = vmatprep.mubr.f32.mxu0 0.0
  %985 = vmatmul.mubr.f32.gmra.mrb[0].mxu0 %v868
  %v986 = vpop.f32.mrb[0].mxu0
  %v987 = vadd.f32 0.0, %v986
  %v988 = vpop.f32.mrb[0].mxu0
  %989 = vmatprep.mubr.f32.mxu0 0.0
  %990 = vmatmul.mubr.f32.gmra.mrb[0].mxu0 %v869
  %v991 = vpop.f32.mrb[0].mxu0
  %v992 = vadd.f32 0.0, %v991
  %v993 = vpop.f32.mrb[0].mxu0
  %994 = vmatprep.mubr.f32.mxu0 0.0
  %995 = vmatmul.mubr.f32.gmra.mrb[0].mxu0 %v870
  %v996 = vpop.f32.mrb[0].mxu0
  %v997 = vadd.f32 0.0, %v996
  %v998 = vpop.f32.mrb[0].mxu0
  %999 = vmatprep.mubr.f32.mxu0 0.0
  %1000 = vmatmul.mubr.f32.gmra.mrb[0].mxu0 %v871
  %v1001 = vpop.f32.mrb[0].mxu0
  %v1002 = vadd.f32 0.0, %v1001
  %v1003 = vpop.f32.mrb[0].mxu0
  %1004 = vmatprep.mubr.f32.mxu0 0.0
  %1005 = vmatmul.mubr.f32.gmra.mrb[0].mxu0 %v872
  %v1006 = vpop.f32.mrb[0].mxu0
  %v1007 = vadd.f32 0.0, %v1006
  %v1008 = vpop.f32.mrb[0].mxu0
  %1009 = vmatprep.mubr.f32.mxu0 0.0
  %1010 = vmatmul.mubr.f32.gmra.mrb[0].mxu0 %v873
  %v1011 = vpop.f32.mrb[0].mxu0
  %v1012 = vadd.f32 0.0, %v1011
  %v1013 = vpop.f32.mrb[0].mxu0
  %1014 = vmatprep.mubr.f32.mxu0 0.0
  %1015 = vmatmul.mubr.f32.gmra.mrb[0].mxu0 %v874
  %v1016 = vpop.f32.mrb[0].mxu0
  %v1017 = vadd.f32 0.0, %v1016
  %v1018 = vpop.f32.mrb[0].mxu0
  %1019 = vdwg.mxu0
  %v1020 = vld [vmem:[%s5 + $0x60] sm:$0xff]
  %v1021 = vld [vmem:[%s5 + $0x68] sm:$0xff]
  %v1022 = vld [vmem:[%s5 + $0x70] sm:$0xff]
  %v1023 = vld [vmem:[%s5 + $0x78] sm:$0xff]
  %v1024 = vld [vmem:[%s5 + $0x80] sm:$0xff]
  %v1025 = vld [vmem:[%s5 + $0x88] sm:$0xff]
  %v1027 = vsel %vm472, %v942, 0
  %v1030 = vsel %vm472, %v947, 0
  %v1033 = vsel %vm472, %v952, 0
  %v1036 = vsel %vm472, %v957, 0
  %v1039 = vsel %vm472, %v962, 0
  %v1042 = vsel %vm472, %v967, 0
  %v1045 = vsel %vm472, %v972, 0
  %v1048 = vsel %vm472, %v977, 0
  %v1051 = vsel %vm472, %v982, 0
  %v1054 = vsel %vm472, %v987, 0
  %v1057 = vsel %vm472, %v992, 0
  %v1060 = vsel %vm472, %v997, 0
  %v1063 = vsel %vm472, %v1002, 0
  %v1066 = vsel %vm472, %v1007, 0
  %v1069 = vsel %vm472, %v1012, 0
  %v1072 = vsel %vm472, %v1017, 0
  %1074 = vmatprep.subr.mxu0 0.0
  %1075 = vmatpush1.msra.mxu0 %v1020
  %1076 = vmatprep.subr.mxu0 0.0
  %1077 = vmatpush1.msra.mxu0 %v1021
  %1078 = vmatprep.subr.mxu0 0.0
  %1079 = vmatpush1.msra.mxu0 %v1022
  %1080 = vmatprep.subr.mxu0 0.0
  %1081 = vmatpush1.msra.mxu0 %v1023
  %1082 = vmatprep.subr.mxu0 0.0
  %1083 = vmatpush1.msra.mxu0 %v1024
  %1084 = vmatprep.subr.mxu0 0.0
  %1085 = vmatpush1.msra.mxu0 %v1025
  %1086 = vmatprep.subr.mxu0 0.0
  %1087 = vmatpush1.msra.mxu0 0.0
  %1088 = vmatprep.subr.mxu0 0.0
  %1089 = vmatpush1.msra.mxu0 0.0
  %1090 = vmatprep.subr.mxu0 0.0
  %1091 = vmatpush1.msra.mxu0 0.0
  %1092 = vmatprep.subr.mxu0 0.0
  %1093 = vmatpush1.msra.mxu0 0.0
  %1094 = vmatprep.subr.mxu0 0.0
  %1095 = vmatpush1.msra.mxu0 0.0
  %1096 = vmatprep.subr.mxu0 0.0
  %1097 = vmatpush1.msra.mxu0 0.0
  %1098 = vmatprep.subr.mxu0 0.0
  %1099 = vmatpush1.msra.mxu0 0.0
  %1100 = vmatprep.subr.mxu0 0.0
  %1101 = vmatpush1.msra.mxu0 0.0
  %1102 = vmatprep.subr.mxu0 0.0
  %1103 = vmatpush1.msra.mxu0 0.0
  %1104 = vmatprep.subr.mxu0 0.0
  %1105 = vmatpush1.msra.mxu0 0.0
  %1106 = vmatprep.subr.mxu0 0.0
  %1107 = vmatpush1.msra.mxu0 0.0
  %1108 = vmatprep.subr.mxu0 0.0
  %1109 = vmatpush1.msra.mxu0 0.0
  %1110 = vmatprep.subr.mxu0 0.0
  %1111 = vmatpush1.msra.mxu0 0.0
  %1112 = vmatprep.subr.mxu0 0.0
  %1113 = vmatpush1.msra.mxu0 0.0
  %1114 = vmatprep.subr.mxu0 0.0
  %1115 = vmatpush1.msra.mxu0 0.0
  %1116 = vmatprep.subr.mxu0 0.0
  %1117 = vmatpush1.msra.mxu0 0.0
  %1118 = vmatprep.subr.mxu0 0.0
  %1119 = vmatpush1.msra.mxu0 0.0
  %1120 = vmatprep.subr.mxu0 0.0
  %1121 = vmatpush1.msra.mxu0 0.0
  %1122 = vmatprep.subr.mxu0 0.0
  %1123 = vmatpush1.msra.mxu0 0.0
  %1124 = vmatprep.subr.mxu0 0.0
  %1125 = vmatpush1.msra.mxu0 0.0
  %1126 = vmatprep.subr.mxu0 0.0
  %1127 = vmatpush1.msra.mxu0 0.0
  %1128 = vmatprep.subr.mxu0 0.0
  %1129 = vmatpush1.msra.mxu0 0.0
  %1130 = vmatprep.subr.mxu0 0.0
  %1131 = vmatpush1.msra.mxu0 0.0
  %1132 = vmatprep.subr.mxu0 0.0
  %1133 = vmatpush1.msra.mxu0 0.0
  %1134 = vmatprep.subr.mxu0 0.0
  %1135 = vmatpush1.msra.mxu0 0.0
  %1136 = vmatprep.subr.mxu0 0.0
  %1137 = vmatpush1.msra.mxu0 0.0
  %1138 = vmatprep.mubr.f32.mxu0 0.0
  %1139 = vmatmul.mubr.f32.gmra.mrb[0].mxu0 %v1027
  %v1140 = vpop.f32.mrb[0].mxu0
  %v1141 = vadd.f32 0.0, %v1140
  %v1142 = vpop.f32.mrb[0].mxu0
  %1143 = vmatprep.mubr.f32.mxu0 0.0
  %1144 = vmatmul.mubr.f32.gmra.mrb[0].mxu0 %v1030
  %v1145 = vpop.f32.mrb[0].mxu0
  %v1146 = vadd.f32 0.0, %v1145
  %v1147 = vpop.f32.mrb[0].mxu0
  %1148 = vmatprep.mubr.f32.mxu0 0.0
  %1149 = vmatmul.mubr.f32.gmra.mrb[0].mxu0 %v1033
  %v1150 = vpop.f32.mrb[0].mxu0
  %v1151 = vadd.f32 0.0, %v1150
  %v1152 = vpop.f32.mrb[0].mxu0
  %1153 = vmatprep.mubr.f32.mxu0 0.0
  %1154 = vmatmul.mubr.f32.gmra.mrb[0].mxu0 %v1036
  %v1155 = vpop.f32.mrb[0].mxu0
  %v1156 = vadd.f32 0.0, %v1155
  %v1157 = vpop.f32.mrb[0].mxu0
  %1158 = vmatprep.mubr.f32.mxu0 0.0
  %1159 = vmatmul.mubr.f32.gmra.mrb[0].mxu0 %v1039
  %v1160 = vpop.f32.mrb[0].mxu0
  %v1161 = vadd.f32 0.0, %v1160
  %v1162 = vpop.f32.mrb[0].mxu0
  %1163 = vmatprep.mubr.f32.mxu0 0.0
  %1164 = vmatmul.mubr.f32.gmra.mrb[0].mxu0 %v1042
  %v1165 = vpop.f32.mrb[0].mxu0
  %v1166 = vadd.f32 0.0, %v1165
  %v1167 = vpop.f32.mrb[0].mxu0
  %1168 = vmatprep.mubr.f32.mxu0 0.0
  %1169 = vmatmul.mubr.f32.gmra.mrb[0].mxu0 %v1045
  %v1170 = vpop.f32.mrb[0].mxu0
  %v1171 = vadd.f32 0.0, %v1170
  %v1172 = vpop.f32.mrb[0].mxu0
  %1173 = vmatprep.mubr.f32.mxu0 0.0
  %1174 = vmatmul.mubr.f32.gmra.mrb[0].mxu0 %v1048
  %v1175 = vpop.f32.mrb[0].mxu0
  %v1176 = vadd.f32 0.0, %v1175
  %v1177 = vpop.f32.mrb[0].mxu0
  %1178 = vmatprep.mubr.f32.mxu0 0.0
  %1179 = vmatmul.mubr.f32.gmra.mrb[0].mxu0 %v1051
  %v1180 = vpop.f32.mrb[0].mxu0
  %v1181 = vadd.f32 0.0, %v1180
  %v1182 = vpop.f32.mrb[0].mxu0
  %1183 = vmatprep.mubr.f32.mxu0 0.0
  %1184 = vmatmul.mubr.f32.gmra.mrb[0].mxu0 %v1054
  %v1185 = vpop.f32.mrb[0].mxu0
  %v1186 = vadd.f32 0.0, %v1185
  %v1187 = vpop.f32.mrb[0].mxu0
  %1188 = vmatprep.mubr.f32.mxu0 0.0
  %1189 = vmatmul.mubr.f32.gmra.mrb[0].mxu0 %v1057
  %v1190 = vpop.f32.mrb[0].mxu0
  %v1191 = vadd.f32 0.0, %v1190
  %v1192 = vpop.f32.mrb[0].mxu0
  %1193 = vmatprep.mubr.f32.mxu0 0.0
  %1194 = vmatmul.mubr.f32.gmra.mrb[0].mxu0 %v1060
  %v1195 = vpop.f32.mrb[0].mxu0
  %v1196 = vadd.f32 0.0, %v1195
  %v1197 = vpop.f32.mrb[0].mxu0
  %1198 = vmatprep.mubr.f32.mxu0 0.0
  %1199 = vmatmul.mubr.f32.gmra.mrb[0].mxu0 %v1063
  %v1200 = vpop.f32.mrb[0].mxu0
  %v1201 = vadd.f32 0.0, %v1200
  %v1202 = vpop.f32.mrb[0].mxu0
  %1203 = vmatprep.mubr.f32.mxu0 0.0
  %1204 = vmatmul.mubr.f32.gmra.mrb[0].mxu0 %v1066
  %v1205 = vpop.f32.mrb[0].mxu0
  %v1206 = vadd.f32 0.0, %v1205
  %v1207 = vpop.f32.mrb[0].mxu0
  %1208 = vmatprep.mubr.f32.mxu0 0.0
  %1209 = vmatmul.mubr.f32.gmra.mrb[0].mxu0 %v1069
  %v1210 = vpop.f32.mrb[0].mxu0
  %v1211 = vadd.f32 0.0, %v1210
  %v1212 = vpop.f32.mrb[0].mxu0
  %1213 = vmatprep.mubr.f32.mxu0 0.0
  %1214 = vmatmul.mubr.f32.gmra.mrb[0].mxu0 %v1072
  %v1215 = vpop.f32.mrb[0].mxu0
  %v1216 = vadd.f32 0.0, %v1215
  %v1217 = vpop.f32.mrb[0].mxu0
  %1218 = vdwg.mxu0
  %v1219 = vadd.f32 %v781, %v1141
  %v1220 = vadd.f32 %v786, %v1146
  %v1221 = vadd.f32 %v791, %v1151
  %v1222 = vadd.f32 %v796, %v1156
  %v1223 = vadd.f32 %v801, %v1161
  %v1224 = vadd.f32 %v806, %v1166
  %v1225 = vadd.f32 %v811, %v1171
  %v1226 = vadd.f32 %v816, %v1176
  %v1227 = vadd.f32 %v821, %v1181
  %v1228 = vadd.f32 %v826, %v1186
  %v1229 = vadd.f32 %v831, %v1191
  %v1230 = vadd.f32 %v836, %v1196
  %v1231 = vadd.f32 %v841, %v1201
  %v1232 = vadd.f32 %v846, %v1206
  %v1233 = vadd.f32 %v851, %v1211
  %v1234 = vadd.f32 %v856, %v1216
  %v1235 = vadd.f32 %v1219, %v1220
  %v1236 = vadd.f32 %v1235, %v1221
  %v1237 = vadd.f32 %v1236, %v1222
  %v1238 = vadd.f32 %v1237, %v1223
  %v1239 = vadd.f32 %v1238, %v1224
  %v1240 = vadd.f32 %v1239, %v1225
  %v1241 = vadd.f32 %v1240, %v1226
  %v1242 = vadd.f32 %v1241, %v1227
  %v1243 = vadd.f32 %v1242, %v1228
  %v1244 = vadd.f32 %v1243, %v1229
  %v1245 = vadd.f32 %v1244, %v1230
  %v1246 = vadd.f32 %v1245, %v1231
  %v1247 = vadd.f32 %v1246, %v1232
  %v1248 = vadd.f32 %v1247, %v1233
  %v1249 = vadd.f32 %v1248, %v1234
  %v1250 = vrot.slane %v1249, 4
  %v1251 = vadd.f32 %v1249, %v1250
  %v1252 = vrot.slane %v1251, 2
  %v1253 = vadd.f32 %v1251, %v1252
  %v1254 = vrot.slane %v1253, 1
  %v1255 = vadd.f32 %v1253, %v1254
  %v1256 = vmul.f32 %v1219, %v1219
  %v1257 = vmul.f32 %v1220, %v1220
  %v1258 = vmul.f32 %v1221, %v1221
  %v1259 = vmul.f32 %v1222, %v1222
  %v1260 = vmul.f32 %v1223, %v1223
  %v1261 = vmul.f32 %v1224, %v1224
  %v1262 = vmul.f32 %v1225, %v1225
  %v1263 = vmul.f32 %v1226, %v1226
  %v1264 = vmul.f32 %v1227, %v1227
  %v1265 = vmul.f32 %v1228, %v1228
  %v1266 = vmul.f32 %v1229, %v1229
  %v1267 = vmul.f32 %v1230, %v1230
  %v1268 = vmul.f32 %v1231, %v1231
  %v1269 = vmul.f32 %v1232, %v1232
  %v1270 = vmul.f32 %v1233, %v1233
  %v1271 = vmul.f32 %v1234, %v1234
  %v1272 = vadd.f32 %v1256, %v1257
  %v1273 = vadd.f32 %v1272, %v1258
  %v1274 = vadd.f32 %v1273, %v1259
  %v1275 = vadd.f32 %v1274, %v1260
  %v1276 = vadd.f32 %v1275, %v1261
  %v1277 = vadd.f32 %v1276, %v1262
  %v1278 = vadd.f32 %v1277, %v1263
  %v1279 = vadd.f32 %v1278, %v1264
  %v1280 = vadd.f32 %v1279, %v1265
  %v1281 = vadd.f32 %v1280, %v1266
  %v1282 = vadd.f32 %v1281, %v1267
  %v1283 = vadd.f32 %v1282, %v1268
  %v1284 = vadd.f32 %v1283, %v1269
  %v1285 = vadd.f32 %v1284, %v1270
  %v1286 = vadd.f32 %v1285, %v1271
  %v1287 = vrot.slane %v1286, 4
  %v1288 = vadd.f32 %v1286, %v1287
  %v1289 = vrot.slane %v1288, 2
  %v1290 = vadd.f32 %v1288, %v1289
  %v1291 = vrot.slane %v1290, 1
  %v1292 = vadd.f32 %v1290, %v1291
  %v1293 = vld [vmem:[%s7] sm:$0xff]
  %v1294 = vld [vmem:[%s7 + $0x8] sm:$0xff]
  %v1295 = vld [vmem:[%s7 + $0x10] sm:$0xff]
  %v1296 = vld [vmem:[%s7 + $0x18] sm:$0xff]
  %v1297 = vld [vmem:[%s7 + $0x20] sm:$0xff]
  %v1298 = vld [vmem:[%s7 + $0x28] sm:$0xff]
  %v1299 = vld [vmem:[%s7 + $0x30] sm:$0xff]
  %v1300 = vld [vmem:[%s7 + $0x38] sm:$0xff]
  %v1301 = vld [vmem:[%s7 + $0x40] sm:$0xff]
  %v1302 = vld [vmem:[%s7 + $0x48] sm:$0xff]
  %v1303 = vld [vmem:[%s7 + $0x50] sm:$0xff]
  %v1304 = vld [vmem:[%s7 + $0x58] sm:$0xff]
  %v1305 = vld [vmem:[%s7 + $0x60] sm:$0xff]
  %v1306 = vld [vmem:[%s7 + $0x68] sm:$0xff]
  %v1307 = vld [vmem:[%s7 + $0x70] sm:$0xff]
  %v1308 = vld [vmem:[%s7 + $0x78] sm:$0xff]
  %1309 = vmatprep.subr.mxu0 0.0
  %1310 = vmatpush1.msra.mxu0 %v1293
  %1311 = vmatprep.subr.mxu0 0.0
  %1312 = vmatpush1.msra.mxu0 %v1294
  %1313 = vmatprep.subr.mxu0 0.0
  %1314 = vmatpush1.msra.mxu0 %v1295
  %1315 = vmatprep.subr.mxu0 0.0
  %1316 = vmatpush1.msra.mxu0 %v1296
  %1317 = vmatprep.subr.mxu0 0.0
  %1318 = vmatpush1.msra.mxu0 %v1297
  %1319 = vmatprep.subr.mxu0 0.0
  %1320 = vmatpush1.msra.mxu0 %v1298
  %1321 = vmatprep.subr.mxu0 0.0
  %1322 = vmatpush1.msra.mxu0 %v1299
  %1323 = vmatprep.subr.mxu0 0.0
  %1324 = vmatpush1.msra.mxu0 %v1300
  %1325 = vmatprep.subr.mxu0 0.0
  %1326 = vmatpush1.msra.mxu0 %v1301
  %1327 = vmatprep.subr.mxu0 0.0
  %1328 = vmatpush1.msra.mxu0 %v1302
  %1329 = vmatprep.subr.mxu0 0.0
  %1330 = vmatpush1.msra.mxu0 %v1303
  %1331 = vmatprep.subr.mxu0 0.0
  %1332 = vmatpush1.msra.mxu0 %v1304
  %1333 = vmatprep.subr.mxu0 0.0
  %1334 = vmatpush1.msra.mxu0 %v1305
  %1335 = vmatprep.subr.mxu0 0.0
  %1336 = vmatpush1.msra.mxu0 %v1306
  %1337 = vmatprep.subr.mxu0 0.0
  %1338 = vmatpush1.msra.mxu0 %v1307
  %1339 = vmatprep.subr.mxu0 0.0
  %1340 = vmatpush1.msra.mxu0 %v1308
  %1341 = vmatprep.subr.mxu0 0.0
  %1342 = vmatpush1.msra.mxu0 0.0
  %1343 = vmatprep.subr.mxu0 0.0
  %1344 = vmatpush1.msra.mxu0 0.0
  %1345 = vmatprep.subr.mxu0 0.0
  %1346 = vmatpush1.msra.mxu0 0.0
  %1347 = vmatprep.subr.mxu0 0.0
  %1348 = vmatpush1.msra.mxu0 0.0
  %1349 = vmatprep.subr.mxu0 0.0
  %1350 = vmatpush1.msra.mxu0 0.0
  %1351 = vmatprep.subr.mxu0 0.0
  %1352 = vmatpush1.msra.mxu0 0.0
  %1353 = vmatprep.subr.mxu0 0.0
  %1354 = vmatpush1.msra.mxu0 0.0
  %1355 = vmatprep.subr.mxu0 0.0
  %1356 = vmatpush1.msra.mxu0 0.0
  %1357 = vmatprep.subr.mxu0 0.0
  %1358 = vmatpush1.msra.mxu0 0.0
  %1359 = vmatprep.subr.mxu0 0.0
  %1360 = vmatpush1.msra.mxu0 0.0
  %1361 = vmatprep.subr.mxu0 0.0
  %1362 = vmatpush1.msra.mxu0 0.0
  %1363 = vmatprep.subr.mxu0 0.0
  %1364 = vmatpush1.msra.mxu0 0.0
  %1365 = vmatprep.subr.mxu0 0.0
  %1366 = vmatpush1.msra.mxu0 0.0
  %1367 = vmatprep.subr.mxu0 0.0
  %1368 = vmatpush1.msra.mxu0 0.0
  %1369 = vmatprep.subr.mxu0 0.0
  %1370 = vmatpush1.msra.mxu0 0.0
  %1371 = vmatprep.subr.mxu0 0.0
  %1372 = vmatpush1.msra.mxu0 0.0
  %1373 = vmatprep.mubr.f32.mxu0 0.0
  %1374 = vmatmul.mubr.f32.gmra.mrb[0].mxu0 %v1255
  %v1375 = vpop.f32.mrb[0].mxu0
  %v1376 = vadd.f32 0.0, %v1375
  %v1377 = vpop.f32.mrb[0].mxu0
  %1378 = vdwg.mxu0
  %1379 = vmatprep.subr.mxu0 0.0
  %1380 = vmatpush1.msra.mxu0 %v1293
  %1381 = vmatprep.subr.mxu0 0.0
  %1382 = vmatpush1.msra.mxu0 %v1294
  %1383 = vmatprep.subr.mxu0 0.0
  %1384 = vmatpush1.msra.mxu0 %v1295
  %1385 = vmatprep.subr.mxu0 0.0
  %1386 = vmatpush1.msra.mxu0 %v1296
  %1387 = vmatprep.subr.mxu0 0.0
  %1388 = vmatpush1.msra.mxu0 %v1297
  %1389 = vmatprep.subr.mxu0 0.0
  %1390 = vmatpush1.msra.mxu0 %v1298
  %1391 = vmatprep.subr.mxu0 0.0
  %1392 = vmatpush1.msra.mxu0 %v1299
  %1393 = vmatprep.subr.mxu0 0.0
  %1394 = vmatpush1.msra.mxu0 %v1300
  %1395 = vmatprep.subr.mxu0 0.0
  %1396 = vmatpush1.msra.mxu0 %v1301
  %1397 = vmatprep.subr.mxu0 0.0
  %1398 = vmatpush1.msra.mxu0 %v1302
  %1399 = vmatprep.subr.mxu0 0.0
  %1400 = vmatpush1.msra.mxu0 %v1303
  %1401 = vmatprep.subr.mxu0 0.0
  %1402 = vmatpush1.msra.mxu0 %v1304
  %1403 = vmatprep.subr.mxu0 0.0
  %1404 = vmatpush1.msra.mxu0 %v1305
  %1405 = vmatprep.subr.mxu0 0.0
  %1406 = vmatpush1.msra.mxu0 %v1306
  %1407 = vmatprep.subr.mxu0 0.0
  %1408 = vmatpush1.msra.mxu0 %v1307
  %1409 = vmatprep.subr.mxu0 0.0
  %1410 = vmatpush1.msra.mxu0 %v1308
  %1411 = vmatprep.subr.mxu0 0.0
  %1412 = vmatpush1.msra.mxu0 0.0
  %1413 = vmatprep.subr.mxu0 0.0
  %1414 = vmatpush1.msra.mxu0 0.0
  %1415 = vmatprep.subr.mxu0 0.0
  %1416 = vmatpush1.msra.mxu0 0.0
  %1417 = vmatprep.subr.mxu0 0.0
  %1418 = vmatpush1.msra.mxu0 0.0
  %1419 = vmatprep.subr.mxu0 0.0
  %1420 = vmatpush1.msra.mxu0 0.0
  %1421 = vmatprep.subr.mxu0 0.0
  %1422 = vmatpush1.msra.mxu0 0.0
  %1423 = vmatprep.subr.mxu0 0.0
  %1424 = vmatpush1.msra.mxu0 0.0
  %1425 = vmatprep.subr.mxu0 0.0
  %1426 = vmatpush1.msra.mxu0 0.0
  %1427 = vmatprep.subr.mxu0 0.0
  %1428 = vmatpush1.msra.mxu0 0.0
  %1429 = vmatprep.subr.mxu0 0.0
  %1430 = vmatpush1.msra.mxu0 0.0
  %1431 = vmatprep.subr.mxu0 0.0
  %1432 = vmatpush1.msra.mxu0 0.0
  %1433 = vmatprep.subr.mxu0 0.0
  %1434 = vmatpush1.msra.mxu0 0.0
  %1435 = vmatprep.subr.mxu0 0.0
  %1436 = vmatpush1.msra.mxu0 0.0
  %1437 = vmatprep.subr.mxu0 0.0
  %1438 = vmatpush1.msra.mxu0 0.0
  %1439 = vmatprep.subr.mxu0 0.0
  %1440 = vmatpush1.msra.mxu0 0.0
  %1441 = vmatprep.subr.mxu0 0.0
  %1442 = vmatpush1.msra.mxu0 0.0
  %1443 = vmatprep.mubr.f32.mxu0 0.0
  %1444 = vmatmul.mubr.f32.gmra.mrb[0].mxu0 %v1292
  %v1445 = vpop.f32.mrb[0].mxu0
  %v1446 = vadd.f32 0.0, %v1445
  %v1447 = vpop.f32.mrb[0].mxu0
  %1448 = vdwg.mxu0
  %v1449 = vrcp.pop 512.0
  %v1450 = vmul.f32 %v1376, %v1449
  %v1451 = vmul.f32 %v1446, %v1449
  %v1452 = vmul.f32 %v1450, %v1450
  %v1453 = vsub.f32 %v1451, %v1452
  %v1454 = vmax.f32 %v1453, 0.0
  %v1455 = vld [vmem:[%s11] sm:$0x1]
  %v1456 = vadd.f32 %v1454, 1e-05
  %v1457 = vrsqrt.pop %v1456
  %v1458 = vmul.f32 %v1455, %v1457
  %v1459 = vld [vmem:[%s13] sm:$0x1]
  %v1460 = vmul.f32 %v1450, %v1458
  %v1461 = vsub.f32 %v1459, %v1460
  %v1462 = vld [vmem:[%s9] sm:$0xff]
  %vm1463 = vcmask 64512
  %v1465 = vsel %vm1463, %v1458, 0
  %1467 = vmatprep.subr.mxu0 0.0
  %1468 = vmatpush1.msra.mxu0 %v1462
  %1469 = vmatprep.subr.mxu0 0.0
  %1470 = vmatpush1.msra.mxu0 0.0
  %1471 = vmatprep.subr.mxu0 0.0
  %1472 = vmatpush1.msra.mxu0 0.0
  %1473 = vmatprep.subr.mxu0 0.0
  %1474 = vmatpush1.msra.mxu0 0.0
  %1475 = vmatprep.subr.mxu0 0.0
  %1476 = vmatpush1.msra.mxu0 0.0
  %1477 = vmatprep.subr.mxu0 0.0
  %1478 = vmatpush1.msra.mxu0 0.0
  %1479 = vmatprep.subr.mxu0 0.0
  %1480 = vmatpush1.msra.mxu0 0.0
  %1481 = vmatprep.subr.mxu0 0.0
  %1482 = vmatpush1.msra.mxu0 0.0
  %1483 = vmatprep.subr.mxu0 0.0
  %1484 = vmatpush1.msra.mxu0 0.0
  %1485 = vmatprep.subr.mxu0 0.0
  %1486 = vmatpush1.msra.mxu0 0.0
  %1487 = vmatprep.subr.mxu0 0.0
  %1488 = vmatpush1.msra.mxu0 0.0
  %1489 = vmatprep.subr.mxu0 0.0
  %1490 = vmatpush1.msra.mxu0 0.0
  %1491 = vmatprep.subr.mxu0 0.0
  %1492 = vmatpush1.msra.mxu0 0.0
  %1493 = vmatprep.subr.mxu0 0.0
  %1494 = vmatpush1.msra.mxu0 0.0
  %1495 = vmatprep.subr.mxu0 0.0
  %1496 = vmatpush1.msra.mxu0 0.0
  %1497 = vmatprep.subr.mxu0 0.0
  %1498 = vmatpush1.msra.mxu0 0.0
  %1499 = vmatprep.subr.mxu0 0.0
  %1500 = vmatpush1.msra.mxu0 0.0
  %1501 = vmatprep.subr.mxu0 0.0
  %1502 = vmatpush1.msra.mxu0 0.0
  %1503 = vmatprep.subr.mxu0 0.0
  %1504 = vmatpush1.msra.mxu0 0.0
  %1505 = vmatprep.subr.mxu0 0.0
  %1506 = vmatpush1.msra.mxu0 0.0
  %1507 = vmatprep.subr.mxu0 0.0
  %1508 = vmatpush1.msra.mxu0 0.0
  %1509 = vmatprep.subr.mxu0 0.0
  %1510 = vmatpush1.msra.mxu0 0.0
  %1511 = vmatprep.subr.mxu0 0.0
  %1512 = vmatpush1.msra.mxu0 0.0
  %1513 = vmatprep.subr.mxu0 0.0
  %1514 = vmatpush1.msra.mxu0 0.0
  %1515 = vmatprep.subr.mxu0 0.0
  %1516 = vmatpush1.msra.mxu0 0.0
  %1517 = vmatprep.subr.mxu0 0.0
  %1518 = vmatpush1.msra.mxu0 0.0
  %1519 = vmatprep.subr.mxu0 0.0
  %1520 = vmatpush1.msra.mxu0 0.0
  %1521 = vmatprep.subr.mxu0 0.0
  %1522 = vmatpush1.msra.mxu0 0.0
  %1523 = vmatprep.subr.mxu0 0.0
  %1524 = vmatpush1.msra.mxu0 0.0
  %1525 = vmatprep.subr.mxu0 0.0
  %1526 = vmatpush1.msra.mxu0 0.0
  %1527 = vmatprep.subr.mxu0 0.0
  %1528 = vmatpush1.msra.mxu0 0.0
  %1529 = vmatprep.subr.mxu0 0.0
  %1530 = vmatpush1.msra.mxu0 0.0
  %1531 = vmatprep.mubr.f32.mxu0 0.0
  %1532 = vmatmul.mubr.f32.gmra.mrb[0].mxu0 %v1465
  %v1533 = vpop.f32.mrb[0].mxu0
  %v1534 = vadd.f32 0.0, %v1533
  %v1535 = vpop.f32.mrb[0].mxu0
  %1536 = vdwg.mxu0
  %v1538 = vsel %vm1463, %v1461, 0
  %1540 = vmatprep.subr.mxu0 0.0
  %1541 = vmatpush1.msra.mxu0 %v1462
  %1542 = vmatprep.subr.mxu0 0.0
  %1543 = vmatpush1.msra.mxu0 0.0
  %1544 = vmatprep.subr.mxu0 0.0
  %1545 = vmatpush1.msra.mxu0 0.0
  %1546 = vmatprep.subr.mxu0 0.0
  %1547 = vmatpush1.msra.mxu0 0.0
  %1548 = vmatprep.subr.mxu0 0.0
  %1549 = vmatpush1.msra.mxu0 0.0
  %1550 = vmatprep.subr.mxu0 0.0
  %1551 = vmatpush1.msra.mxu0 0.0
  %1552 = vmatprep.subr.mxu0 0.0
  %1553 = vmatpush1.msra.mxu0 0.0
  %1554 = vmatprep.subr.mxu0 0.0
  %1555 = vmatpush1.msra.mxu0 0.0
  %1556 = vmatprep.subr.mxu0 0.0
  %1557 = vmatpush1.msra.mxu0 0.0
  %1558 = vmatprep.subr.mxu0 0.0
  %1559 = vmatpush1.msra.mxu0 0.0
  %1560 = vmatprep.subr.mxu0 0.0
  %1561 = vmatpush1.msra.mxu0 0.0
  %1562 = vmatprep.subr.mxu0 0.0
  %1563 = vmatpush1.msra.mxu0 0.0
  %1564 = vmatprep.subr.mxu0 0.0
  %1565 = vmatpush1.msra.mxu0 0.0
  %1566 = vmatprep.subr.mxu0 0.0
  %1567 = vmatpush1.msra.mxu0 0.0
  %1568 = vmatprep.subr.mxu0 0.0
  %1569 = vmatpush1.msra.mxu0 0.0
  %1570 = vmatprep.subr.mxu0 0.0
  %1571 = vmatpush1.msra.mxu0 0.0
  %1572 = vmatprep.subr.mxu0 0.0
  %1573 = vmatpush1.msra.mxu0 0.0
  %1574 = vmatprep.subr.mxu0 0.0
  %1575 = vmatpush1.msra.mxu0 0.0
  %1576 = vmatprep.subr.mxu0 0.0
  %1577 = vmatpush1.msra.mxu0 0.0
  %1578 = vmatprep.subr.mxu0 0.0
  %1579 = vmatpush1.msra.mxu0 0.0
  %1580 = vmatprep.subr.mxu0 0.0
  %1581 = vmatpush1.msra.mxu0 0.0
  %1582 = vmatprep.subr.mxu0 0.0
  %1583 = vmatpush1.msra.mxu0 0.0
  %1584 = vmatprep.subr.mxu0 0.0
  %1585 = vmatpush1.msra.mxu0 0.0
  %1586 = vmatprep.subr.mxu0 0.0
  %1587 = vmatpush1.msra.mxu0 0.0
  %1588 = vmatprep.subr.mxu0 0.0
  %1589 = vmatpush1.msra.mxu0 0.0
  %1590 = vmatprep.subr.mxu0 0.0
  %1591 = vmatpush1.msra.mxu0 0.0
  %1592 = vmatprep.subr.mxu0 0.0
  %1593 = vmatpush1.msra.mxu0 0.0
  %1594 = vmatprep.subr.mxu0 0.0
  %1595 = vmatpush1.msra.mxu0 0.0
  %1596 = vmatprep.subr.mxu0 0.0
  %1597 = vmatpush1.msra.mxu0 0.0
  %1598 = vmatprep.subr.mxu0 0.0
  %1599 = vmatpush1.msra.mxu0 0.0
  %1600 = vmatprep.subr.mxu0 0.0
  %1601 = vmatpush1.msra.mxu0 0.0
  %1602 = vmatprep.subr.mxu0 0.0
  %1603 = vmatpush1.msra.mxu0 0.0
  %1604 = vmatprep.mubr.f32.mxu0 0.0
  %1605 = vmatmul.mubr.f32.gmra.mrb[0].mxu0 %v1538
  %v1606 = vpop.f32.mrb[0].mxu0
  %v1607 = vadd.f32 0.0, %v1606
  %v1608 = vpop.f32.mrb[0].mxu0
  %1609 = vdwg.mxu0
  %v1610 = vlaneseq
  %v1611 = vshrl.u32 %v1610, 7
  %v1612 = vsub.s32 0, %v1611
  %v1613 = vrot.slane %v1534, %v1612
  %v1614 = vmul.f32 %v1219, %v1613
  %v1615 = vmul.f32 %v1220, %v1613
  %v1616 = vmul.f32 %v1221, %v1613
  %v1617 = vmul.f32 %v1222, %v1613
  %v1618 = vmul.f32 %v1223, %v1613
  %v1619 = vmul.f32 %v1224, %v1613
  %v1620 = vmul.f32 %v1225, %v1613
  %v1621 = vmul.f32 %v1226, %v1613
  %v1622 = vmul.f32 %v1227, %v1613
  %v1623 = vmul.f32 %v1228, %v1613
  %v1624 = vmul.f32 %v1229, %v1613
  %v1625 = vmul.f32 %v1230, %v1613
  %v1626 = vmul.f32 %v1231, %v1613
  %v1627 = vmul.f32 %v1232, %v1613
  %v1628 = vmul.f32 %v1233, %v1613
  %v1629 = vmul.f32 %v1234, %v1613
  %v1630 = vlaneseq
  %v1631 = vshrl.u32 %v1630, 7
  %v1632 = vsub.s32 0, %v1631
  %v1633 = vrot.slane %v1607, %v1632
  %v1634 = vadd.f32 %v1614, %v1633
  %v1635 = vadd.f32 %v1615, %v1633
  %v1636 = vadd.f32 %v1616, %v1633
  %v1637 = vadd.f32 %v1617, %v1633
  %v1638 = vadd.f32 %v1618, %v1633
  %v1639 = vadd.f32 %v1619, %v1633
  %v1640 = vadd.f32 %v1620, %v1633
  %v1641 = vadd.f32 %v1621, %v1633
  %v1642 = vadd.f32 %v1622, %v1633
  %v1643 = vadd.f32 %v1623, %v1633
  %v1644 = vadd.f32 %v1624, %v1633
  %v1645 = vadd.f32 %v1625, %v1633
  %v1646 = vadd.f32 %v1626, %v1633
  %v1647 = vadd.f32 %v1627, %v1633
  %v1648 = vadd.f32 %v1628, %v1633
  %v1649 = vadd.f32 %v1629, %v1633
  %v1650 = vmul.f32 %v1634, 0.1
  %v1651 = vmul.f32 %v1635, 0.1
  %v1652 = vmul.f32 %v1636, 0.1
  %v1653 = vmul.f32 %v1637, 0.1
  %v1654 = vmul.f32 %v1638, 0.1
  %v1655 = vmul.f32 %v1639, 0.1
  %v1656 = vmul.f32 %v1640, 0.1
  %v1657 = vmul.f32 %v1641, 0.1
  %v1658 = vmul.f32 %v1642, 0.1
  %v1659 = vmul.f32 %v1643, 0.1
  %v1660 = vmul.f32 %v1644, 0.1
  %v1661 = vmul.f32 %v1645, 0.1
  %v1662 = vmul.f32 %v1646, 0.1
  %v1663 = vmul.f32 %v1647, 0.1
  %v1664 = vmul.f32 %v1648, 0.1
  %v1665 = vmul.f32 %v1649, 0.1
  %v1666 = vmax.f32 %v1634, %v1650
  %v1667 = vmax.f32 %v1635, %v1651
  %v1668 = vmax.f32 %v1636, %v1652
  %v1669 = vmax.f32 %v1637, %v1653
  %v1670 = vmax.f32 %v1638, %v1654
  %v1671 = vmax.f32 %v1639, %v1655
  %v1672 = vmax.f32 %v1640, %v1656
  %v1673 = vmax.f32 %v1641, %v1657
  %v1674 = vmax.f32 %v1642, %v1658
  %v1675 = vmax.f32 %v1643, %v1659
  %v1676 = vmax.f32 %v1644, %v1660
  %v1677 = vmax.f32 %v1645, %v1661
  %v1678 = vmax.f32 %v1646, %v1662
  %v1679 = vmax.f32 %v1647, %v1663
  %v1680 = vmax.f32 %v1648, %v1664
  %v1681 = vmax.f32 %v1649, %v1665
  %v1682 = vld [vmem:[%s15] sm:$0xff]
  %v1683 = vld [vmem:[%s15 + $0x8] sm:$0xff]
  %v1684 = vld [vmem:[%s15 + $0x10] sm:$0xff]
  %v1685 = vld [vmem:[%s15 + $0x18] sm:$0xff]
  %v1686 = vld [vmem:[%s15 + $0x20] sm:$0xff]
  %v1687 = vld [vmem:[%s15 + $0x28] sm:$0xff]
  %v1688 = vld [vmem:[%s15 + $0x30] sm:$0xff]
  %v1689 = vld [vmem:[%s15 + $0x38] sm:$0xff]
  %1690 = vmatprep.subr.mxu0 0.0
  %1691 = vmatpush1.msra.mxu0 %v1666
  %1692 = vmatprep.subr.mxu0 0.0
  %1693 = vmatpush1.msra.mxu0 %v1667
  %1694 = vmatprep.subr.mxu0 0.0
  %1695 = vmatpush1.msra.mxu0 %v1668
  %1696 = vmatprep.subr.mxu0 0.0
  %1697 = vmatpush1.msra.mxu0 %v1669
  %1698 = vmatprep.subr.mxu0 0.0
  %1699 = vmatpush1.msra.mxu0 %v1670
  %1700 = vmatprep.subr.mxu0 0.0
  %1701 = vmatpush1.msra.mxu0 %v1671
  %1702 = vmatprep.subr.mxu0 0.0
  %1703 = vmatpush1.msra.mxu0 %v1672
  %1704 = vmatprep.subr.mxu0 0.0
  %1705 = vmatpush1.msra.mxu0 %v1673
  %1706 = vmatprep.subr.mxu0 0.0
  %1707 = vmatpush1.msra.mxu0 %v1674
  %1708 = vmatprep.subr.mxu0 0.0
  %1709 = vmatpush1.msra.mxu0 %v1675
  %1710 = vmatprep.subr.mxu0 0.0
  %1711 = vmatpush1.msra.mxu0 %v1676
  %1712 = vmatprep.subr.mxu0 0.0
  %1713 = vmatpush1.msra.mxu0 %v1677
  %1714 = vmatprep.subr.mxu0 0.0
  %1715 = vmatpush1.msra.mxu0 %v1678
  %1716 = vmatprep.subr.mxu0 0.0
  %1717 = vmatpush1.msra.mxu0 %v1679
  %1718 = vmatprep.subr.mxu0 0.0
  %1719 = vmatpush1.msra.mxu0 %v1680
  %1720 = vmatprep.subr.mxu0 0.0
  %1721 = vmatpush1.msra.mxu0 %v1681
  %1722 = vmatprep.subr.mxu0 0.0
  %1723 = vmatpush1.msra.mxu0 0.0
  %1724 = vmatprep.subr.mxu0 0.0
  %1725 = vmatpush1.msra.mxu0 0.0
  %1726 = vmatprep.subr.mxu0 0.0
  %1727 = vmatpush1.msra.mxu0 0.0
  %1728 = vmatprep.subr.mxu0 0.0
  %1729 = vmatpush1.msra.mxu0 0.0
  %1730 = vmatprep.subr.mxu0 0.0
  %1731 = vmatpush1.msra.mxu0 0.0
  %1732 = vmatprep.subr.mxu0 0.0
  %1733 = vmatpush1.msra.mxu0 0.0
  %1734 = vmatprep.subr.mxu0 0.0
  %1735 = vmatpush1.msra.mxu0 0.0
  %1736 = vmatprep.subr.mxu0 0.0
  %1737 = vmatpush1.msra.mxu0 0.0
  %1738 = vmatprep.subr.mxu0 0.0
  %1739 = vmatpush1.msra.mxu0 0.0
  %1740 = vmatprep.subr.mxu0 0.0
  %1741 = vmatpush1.msra.mxu0 0.0
  %1742 = vmatprep.subr.mxu0 0.0
  %1743 = vmatpush1.msra.mxu0 0.0
  %1744 = vmatprep.subr.mxu0 0.0
  %1745 = vmatpush1.msra.mxu0 0.0
  %1746 = vmatprep.subr.mxu0 0.0
  %1747 = vmatpush1.msra.mxu0 0.0
  %1748 = vmatprep.subr.mxu0 0.0
  %1749 = vmatpush1.msra.mxu0 0.0
  %1750 = vmatprep.subr.mxu0 0.0
  %1751 = vmatpush1.msra.mxu0 0.0
  %1752 = vmatprep.subr.mxu0 0.0
  %1753 = vmatpush1.msra.mxu0 0.0
  %1754 = vmatprep.mubr.f32.mxu0 0.0
  %1755 = vmatmul.mubr.f32.gmra.mrb[0].mxu0 %v1682
  %v1756 = vpop.f32.mrb[0].mxu0
  %v1757 = vadd.f32 0.0, %v1756
  %v1758 = vpop.f32.mrb[0].mxu0
  %1759 = vmatprep.mubr.f32.mxu0 0.0
  %1760 = vmatmul.mubr.f32.gmra.mrb[0].mxu0 %v1683
  %v1761 = vpop.f32.mrb[0].mxu0
  %v1762 = vadd.f32 0.0, %v1761
  %v1763 = vpop.f32.mrb[0].mxu0
  %1764 = vmatprep.mubr.f32.mxu0 0.0
  %1765 = vmatmul.mubr.f32.gmra.mrb[0].mxu0 %v1684
  %v1766 = vpop.f32.mrb[0].mxu0
  %v1767 = vadd.f32 0.0, %v1766
  %v1768 = vpop.f32.mrb[0].mxu0
  %1769 = vmatprep.mubr.f32.mxu0 0.0
  %1770 = vmatmul.mubr.f32.gmra.mrb[0].mxu0 %v1685
  %v1771 = vpop.f32.mrb[0].mxu0
  %v1772 = vadd.f32 0.0, %v1771
  %v1773 = vpop.f32.mrb[0].mxu0
  %1774 = vmatprep.mubr.f32.mxu0 0.0
  %1775 = vmatmul.mubr.f32.gmra.mrb[0].mxu0 %v1686
  %v1776 = vpop.f32.mrb[0].mxu0
  %v1777 = vadd.f32 0.0, %v1776
  %v1778 = vpop.f32.mrb[0].mxu0
  %1779 = vmatprep.mubr.f32.mxu0 0.0
  %1780 = vmatmul.mubr.f32.gmra.mrb[0].mxu0 %v1687
  %v1781 = vpop.f32.mrb[0].mxu0
  %v1782 = vadd.f32 0.0, %v1781
  %v1783 = vpop.f32.mrb[0].mxu0
  %1784 = vmatprep.mubr.f32.mxu0 0.0
  %1785 = vmatmul.mubr.f32.gmra.mrb[0].mxu0 %v1688
  %v1786 = vpop.f32.mrb[0].mxu0
  %v1787 = vadd.f32 0.0, %v1786
  %v1788 = vpop.f32.mrb[0].mxu0
  %1789 = vmatprep.mubr.f32.mxu0 0.0
  %1790 = vmatmul.mubr.f32.gmra.mrb[0].mxu0 %v1689
  %v1791 = vpop.f32.mrb[0].mxu0
  %v1792 = vadd.f32 0.0, %v1791
  %v1793 = vpop.f32.mrb[0].mxu0
  %1794 = vdwg.mxu0
  %v1795 = vld [vmem:[%s17] sm:$0xff]
  %v1796 = vld [vmem:[%s17 + $0x8] sm:$0xff]
  %v1797 = vld [vmem:[%s17 + $0x10] sm:$0xff]
  %v1798 = vld [vmem:[%s17 + $0x18] sm:$0xff]
  %v1799 = vld [vmem:[%s17 + $0x20] sm:$0xff]
  %v1800 = vld [vmem:[%s17 + $0x28] sm:$0xff]
  %v1801 = vld [vmem:[%s17 + $0x30] sm:$0xff]
  %v1802 = vld [vmem:[%s17 + $0x38] sm:$0xff]
  %v1803 = vld [vmem:[%s17 + $0x40] sm:$0xff]
  %v1804 = vld [vmem:[%s17 + $0x48] sm:$0xff]
  %v1805 = vld [vmem:[%s17 + $0x50] sm:$0xff]
  %v1806 = vld [vmem:[%s17 + $0x58] sm:$0xff]
  %v1807 = vld [vmem:[%s17 + $0x60] sm:$0xff]
  %v1808 = vld [vmem:[%s17 + $0x68] sm:$0xff]
  %v1809 = vld [vmem:[%s17 + $0x70] sm:$0xff]
  %v1810 = vld [vmem:[%s17 + $0x78] sm:$0xff]
  %v1811 = vld [vmem:[%s15 + $0x40] sm:$0xff]
  %v1812 = vld [vmem:[%s15 + $0x48] sm:$0xff]
  %v1813 = vld [vmem:[%s15 + $0x50] sm:$0xff]
  %v1814 = vld [vmem:[%s15 + $0x58] sm:$0xff]
  %v1815 = vld [vmem:[%s15 + $0x60] sm:$0xff]
  %v1816 = vld [vmem:[%s15 + $0x68] sm:$0xff]
  %v1817 = vld [vmem:[%s15 + $0x70] sm:$0xff]
  %v1818 = vld [vmem:[%s15 + $0x78] sm:$0xff]
  %1819 = vmatprep.subr.mxu0 0.0
  %1820 = vmatpush1.msra.mxu0 %v1666
  %1821 = vmatprep.subr.mxu0 0.0
  %1822 = vmatpush1.msra.mxu0 %v1667
  %1823 = vmatprep.subr.mxu0 0.0
  %1824 = vmatpush1.msra.mxu0 %v1668
  %1825 = vmatprep.subr.mxu0 0.0
  %1826 = vmatpush1.msra.mxu0 %v1669
  %1827 = vmatprep.subr.mxu0 0.0
  %1828 = vmatpush1.msra.mxu0 %v1670
  %1829 = vmatprep.subr.mxu0 0.0
  %1830 = vmatpush1.msra.mxu0 %v1671
  %1831 = vmatprep.subr.mxu0 0.0
  %1832 = vmatpush1.msra.mxu0 %v1672
  %1833 = vmatprep.subr.mxu0 0.0
  %1834 = vmatpush1.msra.mxu0 %v1673
  %1835 = vmatprep.subr.mxu0 0.0
  %1836 = vmatpush1.msra.mxu0 %v1674
  %1837 = vmatprep.subr.mxu0 0.0
  %1838 = vmatpush1.msra.mxu0 %v1675
  %1839 = vmatprep.subr.mxu0 0.0
  %1840 = vmatpush1.msra.mxu0 %v1676
  %1841 = vmatprep.subr.mxu0 0.0
  %1842 = vmatpush1.msra.mxu0 %v1677
  %1843 = vmatprep.subr.mxu0 0.0
  %1844 = vmatpush1.msra.mxu0 %v1678
  %1845 = vmatprep.subr.mxu0 0.0
  %1846 = vmatpush1.msra.mxu0 %v1679
  %1847 = vmatprep.subr.mxu0 0.0
  %1848 = vmatpush1.msra.mxu0 %v1680
  %1849 = vmatprep.subr.mxu0 0.0
  %1850 = vmatpush1.msra.mxu0 %v1681
  %1851 = vmatprep.subr.mxu0 0.0
  %1852 = vmatpush1.msra.mxu0 0.0
  %1853 = vmatprep.subr.mxu0 0.0
  %1854 = vmatpush1.msra.mxu0 0.0
  %1855 = vmatprep.subr.mxu0 0.0
  %1856 = vmatpush1.msra.mxu0 0.0
  %1857 = vmatprep.subr.mxu0 0.0
  %1858 = vmatpush1.msra.mxu0 0.0
  %1859 = vmatprep.subr.mxu0 0.0
  %1860 = vmatpush1.msra.mxu0 0.0
  %1861 = vmatprep.subr.mxu0 0.0
  %1862 = vmatpush1.msra.mxu0 0.0
  %1863 = vmatprep.subr.mxu0 0.0
  %1864 = vmatpush1.msra.mxu0 0.0
  %1865 = vmatprep.subr.mxu0 0.0
  %1866 = vmatpush1.msra.mxu0 0.0
  %1867 = vmatprep.subr.mxu0 0.0
  %1868 = vmatpush1.msra.mxu0 0.0
  %1869 = vmatprep.subr.mxu0 0.0
  %1870 = vmatpush1.msra.mxu0 0.0
  %1871 = vmatprep.subr.mxu0 0.0
  %1872 = vmatpush1.msra.mxu0 0.0
  %1873 = vmatprep.subr.mxu0 0.0
  %1874 = vmatpush1.msra.mxu0 0.0
  %1875 = vmatprep.subr.mxu0 0.0
  %1876 = vmatpush1.msra.mxu0 0.0
  %1877 = vmatprep.subr.mxu0 0.0
  %1878 = vmatpush1.msra.mxu0 0.0
  %1879 = vmatprep.subr.mxu0 0.0
  %1880 = vmatpush1.msra.mxu0 0.0
  %1881 = vmatprep.subr.mxu0 0.0
  %1882 = vmatpush1.msra.mxu0 0.0
  %1883 = vmatprep.mubr.f32.mxu0 0.0
  %1884 = vmatmul.mubr.f32.gmra.mrb[0].mxu0 %v1811
  %v1885 = vpop.f32.mrb[0].mxu0
  %v1886 = vadd.f32 0.0, %v1885
  %v1887 = vpop.f32.mrb[0].mxu0
  %1888 = vmatprep.mubr.f32.mxu0 0.0
  %1889 = vmatmul.mubr.f32.gmra.mrb[0].mxu0 %v1812
  %v1890 = vpop.f32.mrb[0].mxu0
  %v1891 = vadd.f32 0.0, %v1890
  %v1892 = vpop.f32.mrb[0].mxu0
  %1893 = vmatprep.mubr.f32.mxu0 0.0
  %1894 = vmatmul.mubr.f32.gmra.mrb[0].mxu0 %v1813
  %v1895 = vpop.f32.mrb[0].mxu0
  %v1896 = vadd.f32 0.0, %v1895
  %v1897 = vpop.f32.mrb[0].mxu0
  %1898 = vmatprep.mubr.f32.mxu0 0.0
  %1899 = vmatmul.mubr.f32.gmra.mrb[0].mxu0 %v1814
  %v1900 = vpop.f32.mrb[0].mxu0
  %v1901 = vadd.f32 0.0, %v1900
  %v1902 = vpop.f32.mrb[0].mxu0
  %1903 = vmatprep.mubr.f32.mxu0 0.0
  %1904 = vmatmul.mubr.f32.gmra.mrb[0].mxu0 %v1815
  %v1905 = vpop.f32.mrb[0].mxu0
  %v1906 = vadd.f32 0.0, %v1905
  %v1907 = vpop.f32.mrb[0].mxu0
  %1908 = vmatprep.mubr.f32.mxu0 0.0
  %1909 = vmatmul.mubr.f32.gmra.mrb[0].mxu0 %v1816
  %v1910 = vpop.f32.mrb[0].mxu0
  %v1911 = vadd.f32 0.0, %v1910
  %v1912 = vpop.f32.mrb[0].mxu0
  %1913 = vmatprep.mubr.f32.mxu0 0.0
  %1914 = vmatmul.mubr.f32.gmra.mrb[0].mxu0 %v1817
  %v1915 = vpop.f32.mrb[0].mxu0
  %v1916 = vadd.f32 0.0, %v1915
  %v1917 = vpop.f32.mrb[0].mxu0
  %1918 = vmatprep.mubr.f32.mxu0 0.0
  %1919 = vmatmul.mubr.f32.gmra.mrb[0].mxu0 %v1818
  %v1920 = vpop.f32.mrb[0].mxu0
  %v1921 = vadd.f32 0.0, %v1920
  %v1922 = vpop.f32.mrb[0].mxu0
  %1923 = vdwg.mxu0
  %v1924 = vld [vmem:[%s17 + $0x80] sm:$0xff]
  %v1925 = vld [vmem:[%s17 + $0x88] sm:$0xff]
  %v1926 = vld [vmem:[%s17 + $0x90] sm:$0xff]
  %v1927 = vld [vmem:[%s17 + $0x98] sm:$0xff]
  %v1928 = vld [vmem:[%s17 + $0xa0] sm:$0xff]
  %v1929 = vld [vmem:[%s17 + $0xa8] sm:$0xff]
  %v1930 = vld [vmem:[%s17 + $0xb0] sm:$0xff]
  %v1931 = vld [vmem:[%s17 + $0xb8] sm:$0xff]
  %v1932 = vld [vmem:[%s17 + $0xc0] sm:$0xff]
  %v1933 = vld [vmem:[%s17 + $0xc8] sm:$0xff]
  %v1934 = vld [vmem:[%s17 + $0xd0] sm:$0xff]
  %v1935 = vld [vmem:[%s17 + $0xd8] sm:$0xff]
  %v1936 = vld [vmem:[%s17 + $0xe0] sm:$0xff]
  %v1937 = vld [vmem:[%s17 + $0xe8] sm:$0xff]
  %v1938 = vld [vmem:[%s17 + $0xf0] sm:$0xff]
  %v1939 = vld [vmem:[%s17 + $0xf8] sm:$0xff]
  %1940 = vmatprep.subr.mxu0 0.0
  %1941 = vmatpush1.msra.mxu0 %v1924
  %1942 = vmatprep.subr.mxu0 0.0
  %1943 = vmatpush1.msra.mxu0 %v1925
  %1944 = vmatprep.subr.mxu0 0.0
  %1945 = vmatpush1.msra.mxu0 %v1926
  %1946 = vmatprep.subr.mxu0 0.0
  %1947 = vmatpush1.msra.mxu0 %v1927
  %1948 = vmatprep.subr.mxu0 0.0
  %1949 = vmatpush1.msra.mxu0 %v1928
  %1950 = vmatprep.subr.mxu0 0.0
  %1951 = vmatpush1.msra.mxu0 %v1929
  %1952 = vmatprep.subr.mxu0 0.0
  %1953 = vmatpush1.msra.mxu0 %v1930
  %1954 = vmatprep.subr.mxu0 0.0
  %1955 = vmatpush1.msra.mxu0 %v1931
  %1956 = vmatprep.subr.mxu0 0.0
  %1957 = vmatpush1.msra.mxu0 %v1932
  %1958 = vmatprep.subr.mxu0 0.0
  %1959 = vmatpush1.msra.mxu0 %v1933
  %1960 = vmatprep.subr.mxu0 0.0
  %1961 = vmatpush1.msra.mxu0 %v1934
  %1962 = vmatprep.subr.mxu0 0.0
  %1963 = vmatpush1.msra.mxu0 %v1935
  %1964 = vmatprep.subr.mxu0 0.0
  %1965 = vmatpush1.msra.mxu0 %v1936
  %1966 = vmatprep.subr.mxu0 0.0
  %1967 = vmatpush1.msra.mxu0 %v1937
  %1968 = vmatprep.subr.mxu0 0.0
  %1969 = vmatpush1.msra.mxu0 %v1938
  %1970 = vmatprep.subr.mxu0 0.0
  %1971 = vmatpush1.msra.mxu0 %v1939
  %1972 = vmatprep.subr.mxu0 0.0
  %1973 = vmatpush1.msra.mxu0 0.0
  %1974 = vmatprep.subr.mxu0 0.0
  %1975 = vmatpush1.msra.mxu0 0.0
  %1976 = vmatprep.subr.mxu0 0.0
  %1977 = vmatpush1.msra.mxu0 0.0
  %1978 = vmatprep.subr.mxu0 0.0
  %1979 = vmatpush1.msra.mxu0 0.0
  %1980 = vmatprep.subr.mxu0 0.0
  %1981 = vmatpush1.msra.mxu0 0.0
  %1982 = vmatprep.subr.mxu0 0.0
  %1983 = vmatpush1.msra.mxu0 0.0
  %1984 = vmatprep.subr.mxu0 0.0
  %1985 = vmatpush1.msra.mxu0 0.0
  %1986 = vmatprep.subr.mxu0 0.0
  %1987 = vmatpush1.msra.mxu0 0.0
  %1988 = vmatprep.subr.mxu0 0.0
  %1989 = vmatpush1.msra.mxu0 0.0
  %1990 = vmatprep.subr.mxu0 0.0
  %1991 = vmatpush1.msra.mxu0 0.0
  %1992 = vmatprep.subr.mxu0 0.0
  %1993 = vmatpush1.msra.mxu0 0.0
  %1994 = vmatprep.subr.mxu0 0.0
  %1995 = vmatpush1.msra.mxu0 0.0
  %1996 = vmatprep.subr.mxu0 0.0
  %1997 = vmatpush1.msra.mxu0 0.0
  %1998 = vmatprep.subr.mxu0 0.0
  %1999 = vmatpush1.msra.mxu0 0.0
  %2000 = vmatprep.subr.mxu0 0.0
  %2001 = vmatpush1.msra.mxu0 0.0
  %2002 = vmatprep.subr.mxu0 0.0
  %2003 = vmatpush1.msra.mxu0 0.0
  %2004 = vmatprep.mubr.f32.mxu0 0.0
  %2005 = vmatmul.mubr.f32.gmra.mrb[0].mxu0 %v1886
  %v2006 = vpop.f32.mrb[0].mxu0
  %v2007 = vadd.f32 0.0, %v2006
  %v2008 = vpop.f32.mrb[0].mxu0
  %2009 = vmatprep.mubr.f32.mxu0 0.0
  %2010 = vmatmul.mubr.f32.gmra.mrb[0].mxu0 %v1891
  %v2011 = vpop.f32.mrb[0].mxu0
  %v2012 = vadd.f32 0.0, %v2011
  %v2013 = vpop.f32.mrb[0].mxu0
  %2014 = vmatprep.mubr.f32.mxu0 0.0
  %2015 = vmatmul.mubr.f32.gmra.mrb[0].mxu0 %v1896
  %v2016 = vpop.f32.mrb[0].mxu0
  %v2017 = vadd.f32 0.0, %v2016
  %v2018 = vpop.f32.mrb[0].mxu0
  %2019 = vmatprep.mubr.f32.mxu0 0.0
  %2020 = vmatmul.mubr.f32.gmra.mrb[0].mxu0 %v1901
  %v2021 = vpop.f32.mrb[0].mxu0
  %v2022 = vadd.f32 0.0, %v2021
  %v2023 = vpop.f32.mrb[0].mxu0
  %2024 = vmatprep.mubr.f32.mxu0 0.0
  %2025 = vmatmul.mubr.f32.gmra.mrb[0].mxu0 %v1906
  %v2026 = vpop.f32.mrb[0].mxu0
  %v2027 = vadd.f32 0.0, %v2026
  %v2028 = vpop.f32.mrb[0].mxu0
  %2029 = vmatprep.mubr.f32.mxu0 0.0
  %2030 = vmatmul.mubr.f32.gmra.mrb[0].mxu0 %v1911
  %v2031 = vpop.f32.mrb[0].mxu0
  %v2032 = vadd.f32 0.0, %v2031
  %v2033 = vpop.f32.mrb[0].mxu0
  %2034 = vmatprep.mubr.f32.mxu0 0.0
  %2035 = vmatmul.mubr.f32.gmra.mrb[0].mxu0 %v1916
  %v2036 = vpop.f32.mrb[0].mxu0
  %v2037 = vadd.f32 0.0, %v2036
  %v2038 = vpop.f32.mrb[0].mxu0
  %2039 = vmatprep.mubr.f32.mxu0 0.0
  %2040 = vmatmul.mubr.f32.gmra.mrb[0].mxu0 %v1921
  %v2041 = vpop.f32.mrb[0].mxu0
  %v2042 = vadd.f32 0.0, %v2041
  %v2043 = vpop.f32.mrb[0].mxu0
  %2044 = vdwg.mxu0
  %2045 = vmatprep.subr.mxu0 0.0
  %2046 = vmatpush1.msra.mxu0 %v1795
  %2047 = vmatprep.subr.mxu0 0.0
  %2048 = vmatpush1.msra.mxu0 %v1796
  %2049 = vmatprep.subr.mxu0 0.0
  %2050 = vmatpush1.msra.mxu0 %v1797
  %2051 = vmatprep.subr.mxu0 0.0
  %2052 = vmatpush1.msra.mxu0 %v1798
  %2053 = vmatprep.subr.mxu0 0.0
  %2054 = vmatpush1.msra.mxu0 %v1799
  %2055 = vmatprep.subr.mxu0 0.0
  %2056 = vmatpush1.msra.mxu0 %v1800
  %2057 = vmatprep.subr.mxu0 0.0
  %2058 = vmatpush1.msra.mxu0 %v1801
  %2059 = vmatprep.subr.mxu0 0.0
  %2060 = vmatpush1.msra.mxu0 %v1802
  %2061 = vmatprep.subr.mxu0 0.0
  %2062 = vmatpush1.msra.mxu0 %v1803
  %2063 = vmatprep.subr.mxu0 0.0
  %2064 = vmatpush1.msra.mxu0 %v1804
  %2065 = vmatprep.subr.mxu0 0.0
  %2066 = vmatpush1.msra.mxu0 %v1805
  %2067 = vmatprep.subr.mxu0 0.0
  %2068 = vmatpush1.msra.mxu0 %v1806
  %2069 = vmatprep.subr.mxu0 0.0
  %2070 = vmatpush1.msra.mxu0 %v1807
  %2071 = vmatprep.subr.mxu0 0.0
  %2072 = vmatpush1.msra.mxu0 %v1808
  %2073 = vmatprep.subr.mxu0 0.0
  %2074 = vmatpush1.msra.mxu0 %v1809
  %2075 = vmatprep.subr.mxu0 0.0
  %2076 = vmatpush1.msra.mxu0 %v1810
  %2077 = vmatprep.subr.mxu0 0.0
  %2078 = vmatpush1.msra.mxu0 0.0
  %2079 = vmatprep.subr.mxu0 0.0
  %2080 = vmatpush1.msra.mxu0 0.0
  %2081 = vmatprep.subr.mxu0 0.0
  %2082 = vmatpush1.msra.mxu0 0.0
  %2083 = vmatprep.subr.mxu0 0.0
  %2084 = vmatpush1.msra.mxu0 0.0
  %2085 = vmatprep.subr.mxu0 0.0
  %2086 = vmatpush1.msra.mxu0 0.0
  %2087 = vmatprep.subr.mxu0 0.0
  %2088 = vmatpush1.msra.mxu0 0.0
  %2089 = vmatprep.subr.mxu0 0.0
  %2090 = vmatpush1.msra.mxu0 0.0
  %2091 = vmatprep.subr.mxu0 0.0
  %2092 = vmatpush1.msra.mxu0 0.0
  %2093 = vmatprep.subr.mxu0 0.0
  %2094 = vmatpush1.msra.mxu0 0.0
  %2095 = vmatprep.subr.mxu0 0.0
  %2096 = vmatpush1.msra.mxu0 0.0
  %2097 = vmatprep.subr.mxu0 0.0
  %2098 = vmatpush1.msra.mxu0 0.0
  %2099 = vmatprep.subr.mxu0 0.0
  %2100 = vmatpush1.msra.mxu0 0.0
  %2101 = vmatprep.subr.mxu0 0.0
  %2102 = vmatpush1.msra.mxu0 0.0
  %2103 = vmatprep.subr.mxu0 0.0
  %2104 = vmatpush1.msra.mxu0 0.0
  %2105 = vmatprep.subr.mxu0 0.0
  %2106 = vmatpush1.msra.mxu0 0.0
  %2107 = vmatprep.subr.mxu0 0.0
  %2108 = vmatpush1.msra.mxu0 0.0
  %2109 = vmatprep.mubr.f32.mxu0 0.0
  %2110 = vmatmul.mubr.f32.gmra.mrb[0].mxu0 %v1757
  %v2111 = vpop.f32.mrb[0].mxu0
  %v2112 = vadd.f32 %v2007, %v2111
  %v2113 = vpop.f32.mrb[0].mxu0
  %2114 = vmatprep.mubr.f32.mxu0 0.0
  %2115 = vmatmul.mubr.f32.gmra.mrb[0].mxu0 %v1762
  %v2116 = vpop.f32.mrb[0].mxu0
  %v2117 = vadd.f32 %v2012, %v2116
  %v2118 = vpop.f32.mrb[0].mxu0
  %2119 = vmatprep.mubr.f32.mxu0 0.0
  %2120 = vmatmul.mubr.f32.gmra.mrb[0].mxu0 %v1767
  %v2121 = vpop.f32.mrb[0].mxu0
  %v2122 = vadd.f32 %v2017, %v2121
  %v2123 = vpop.f32.mrb[0].mxu0
  %2124 = vmatprep.mubr.f32.mxu0 0.0
  %2125 = vmatmul.mubr.f32.gmra.mrb[0].mxu0 %v1772
  %v2126 = vpop.f32.mrb[0].mxu0
  %v2127 = vadd.f32 %v2022, %v2126
  %v2128 = vpop.f32.mrb[0].mxu0
  %2129 = vmatprep.mubr.f32.mxu0 0.0
  %2130 = vmatmul.mubr.f32.gmra.mrb[0].mxu0 %v1777
  %v2131 = vpop.f32.mrb[0].mxu0
  %v2132 = vadd.f32 %v2027, %v2131
  %v2133 = vpop.f32.mrb[0].mxu0
  %2134 = vmatprep.mubr.f32.mxu0 0.0
  %2135 = vmatmul.mubr.f32.gmra.mrb[0].mxu0 %v1782
  %v2136 = vpop.f32.mrb[0].mxu0
  %v2137 = vadd.f32 %v2032, %v2136
  %v2138 = vpop.f32.mrb[0].mxu0
  %2139 = vmatprep.mubr.f32.mxu0 0.0
  %2140 = vmatmul.mubr.f32.gmra.mrb[0].mxu0 %v1787
  %v2141 = vpop.f32.mrb[0].mxu0
  %v2142 = vadd.f32 %v2037, %v2141
  %v2143 = vpop.f32.mrb[0].mxu0
  %2144 = vmatprep.mubr.f32.mxu0 0.0
  %2145 = vmatmul.mubr.f32.gmra.mrb[0].mxu0 %v1792
  %v2146 = vpop.f32.mrb[0].mxu0
  %v2147 = vadd.f32 %v2042, %v2146
  %v2148 = vpop.f32.mrb[0].mxu0
  %2149 = vdwg.mxu0
  %v2150 = vld [vmem:[%s15 + $0x80] sm:$0xff]
  %v2151 = vld [vmem:[%s15 + $0x88] sm:$0xff]
  %v2152 = vld [vmem:[%s15 + $0x90] sm:$0xff]
  %v2153 = vld [vmem:[%s15 + $0x98] sm:$0xff]
  %v2154 = vld [vmem:[%s15 + $0xa0] sm:$0xff]
  %v2155 = vld [vmem:[%s15 + $0xa8] sm:$0xff]
  %v2156 = vld [vmem:[%s15 + $0xb0] sm:$0xff]
  %v2157 = vld [vmem:[%s15 + $0xb8] sm:$0xff]
  %2158 = vmatprep.subr.mxu0 0.0
  %2159 = vmatpush1.msra.mxu0 %v1666
  %2160 = vmatprep.subr.mxu0 0.0
  %2161 = vmatpush1.msra.mxu0 %v1667
  %2162 = vmatprep.subr.mxu0 0.0
  %2163 = vmatpush1.msra.mxu0 %v1668
  %2164 = vmatprep.subr.mxu0 0.0
  %2165 = vmatpush1.msra.mxu0 %v1669
  %2166 = vmatprep.subr.mxu0 0.0
  %2167 = vmatpush1.msra.mxu0 %v1670
  %2168 = vmatprep.subr.mxu0 0.0
  %2169 = vmatpush1.msra.mxu0 %v1671
  %2170 = vmatprep.subr.mxu0 0.0
  %2171 = vmatpush1.msra.mxu0 %v1672
  %2172 = vmatprep.subr.mxu0 0.0
  %2173 = vmatpush1.msra.mxu0 %v1673
  %2174 = vmatprep.subr.mxu0 0.0
  %2175 = vmatpush1.msra.mxu0 %v1674
  %2176 = vmatprep.subr.mxu0 0.0
  %2177 = vmatpush1.msra.mxu0 %v1675
  %2178 = vmatprep.subr.mxu0 0.0
  %2179 = vmatpush1.msra.mxu0 %v1676
  %2180 = vmatprep.subr.mxu0 0.0
  %2181 = vmatpush1.msra.mxu0 %v1677
  %2182 = vmatprep.subr.mxu0 0.0
  %2183 = vmatpush1.msra.mxu0 %v1678
  %2184 = vmatprep.subr.mxu0 0.0
  %2185 = vmatpush1.msra.mxu0 %v1679
  %2186 = vmatprep.subr.mxu0 0.0
  %2187 = vmatpush1.msra.mxu0 %v1680
  %2188 = vmatprep.subr.mxu0 0.0
  %2189 = vmatpush1.msra.mxu0 %v1681
  %2190 = vmatprep.subr.mxu0 0.0
  %2191 = vmatpush1.msra.mxu0 0.0
  %2192 = vmatprep.subr.mxu0 0.0
  %2193 = vmatpush1.msra.mxu0 0.0
  %2194 = vmatprep.subr.mxu0 0.0
  %2195 = vmatpush1.msra.mxu0 0.0
  %2196 = vmatprep.subr.mxu0 0.0
  %2197 = vmatpush1.msra.mxu0 0.0
  %2198 = vmatprep.subr.mxu0 0.0
  %2199 = vmatpush1.msra.mxu0 0.0
  %2200 = vmatprep.subr.mxu0 0.0
  %2201 = vmatpush1.msra.mxu0 0.0
  %2202 = vmatprep.subr.mxu0 0.0
  %2203 = vmatpush1.msra.mxu0 0.0
  %2204 = vmatprep.subr.mxu0 0.0
  %2205 = vmatpush1.msra.mxu0 0.0
  %2206 = vmatprep.subr.mxu0 0.0
  %2207 = vmatpush1.msra.mxu0 0.0
  %2208 = vmatprep.subr.mxu0 0.0
  %2209 = vmatpush1.msra.mxu0 0.0
  %2210 = vmatprep.subr.mxu0 0.0
  %2211 = vmatpush1.msra.mxu0 0.0
  %2212 = vmatprep.subr.mxu0 0.0
  %2213 = vmatpush1.msra.mxu0 0.0
  %2214 = vmatprep.subr.mxu0 0.0
  %2215 = vmatpush1.msra.mxu0 0.0
  %2216 = vmatprep.subr.mxu0 0.0
  %2217 = vmatpush1.msra.mxu0 0.0
  %2218 = vmatprep.subr.mxu0 0.0
  %2219 = vmatpush1.msra.mxu0 0.0
  %2220 = vmatprep.subr.mxu0 0.0
  %2221 = vmatpush1.msra.mxu0 0.0
  %2222 = vmatprep.mubr.f32.mxu0 0.0
  %2223 = vmatmul.mubr.f32.gmra.mrb[0].mxu0 %v2150
  %v2224 = vpop.f32.mrb[0].mxu0
  %v2225 = vadd.f32 0.0, %v2224
  %v2226 = vpop.f32.mrb[0].mxu0
  %2227 = vmatprep.mubr.f32.mxu0 0.0
  %2228 = vmatmul.mubr.f32.gmra.mrb[0].mxu0 %v2151
  %v2229 = vpop.f32.mrb[0].mxu0
  %v2230 = vadd.f32 0.0, %v2229
  %v2231 = vpop.f32.mrb[0].mxu0
  %2232 = vmatprep.mubr.f32.mxu0 0.0
  %2233 = vmatmul.mubr.f32.gmra.mrb[0].mxu0 %v2152
  %v2234 = vpop.f32.mrb[0].mxu0
  %v2235 = vadd.f32 0.0, %v2234
  %v2236 = vpop.f32.mrb[0].mxu0
  %2237 = vmatprep.mubr.f32.mxu0 0.0
  %2238 = vmatmul.mubr.f32.gmra.mrb[0].mxu0 %v2153
  %v2239 = vpop.f32.mrb[0].mxu0
  %v2240 = vadd.f32 0.0, %v2239
  %v2241 = vpop.f32.mrb[0].mxu0
  %2242 = vmatprep.mubr.f32.mxu0 0.0
  %2243 = vmatmul.mubr.f32.gmra.mrb[0].mxu0 %v2154
  %v2244 = vpop.f32.mrb[0].mxu0
  %v2245 = vadd.f32 0.0, %v2244
  %v2246 = vpop.f32.mrb[0].mxu0
  %2247 = vmatprep.mubr.f32.mxu0 0.0
  %2248 = vmatmul.mubr.f32.gmra.mrb[0].mxu0 %v2155
  %v2249 = vpop.f32.mrb[0].mxu0
  %v2250 = vadd.f32 0.0, %v2249
  %v2251 = vpop.f32.mrb[0].mxu0
  %2252 = vmatprep.mubr.f32.mxu0 0.0
  %2253 = vmatmul.mubr.f32.gmra.mrb[0].mxu0 %v2156
  %v2254 = vpop.f32.mrb[0].mxu0
  %v2255 = vadd.f32 0.0, %v2254
  %v2256 = vpop.f32.mrb[0].mxu0
  %2257 = vmatprep.mubr.f32.mxu0 0.0
  %2258 = vmatmul.mubr.f32.gmra.mrb[0].mxu0 %v2157
  %v2259 = vpop.f32.mrb[0].mxu0
  %v2260 = vadd.f32 0.0, %v2259
  %v2261 = vpop.f32.mrb[0].mxu0
  %2262 = vdwg.mxu0
  %v2263 = vld [vmem:[%s17 + $0x100] sm:$0xff]
  %v2264 = vld [vmem:[%s17 + $0x108] sm:$0xff]
  %v2265 = vld [vmem:[%s17 + $0x110] sm:$0xff]
  %v2266 = vld [vmem:[%s17 + $0x118] sm:$0xff]
  %v2267 = vld [vmem:[%s17 + $0x120] sm:$0xff]
  %v2268 = vld [vmem:[%s17 + $0x128] sm:$0xff]
  %v2269 = vld [vmem:[%s17 + $0x130] sm:$0xff]
  %v2270 = vld [vmem:[%s17 + $0x138] sm:$0xff]
  %v2271 = vld [vmem:[%s17 + $0x140] sm:$0xff]
  %v2272 = vld [vmem:[%s17 + $0x148] sm:$0xff]
  %v2273 = vld [vmem:[%s17 + $0x150] sm:$0xff]
  %v2274 = vld [vmem:[%s17 + $0x158] sm:$0xff]
  %v2275 = vld [vmem:[%s17 + $0x160] sm:$0xff]
  %v2276 = vld [vmem:[%s17 + $0x168] sm:$0xff]
  %v2277 = vld [vmem:[%s17 + $0x170] sm:$0xff]
  %v2278 = vld [vmem:[%s17 + $0x178] sm:$0xff]
  %2279 = vmatprep.subr.mxu0 0.0
  %2280 = vmatpush1.msra.mxu0 %v2263
  %2281 = vmatprep.subr.mxu0 0.0
  %2282 = vmatpush1.msra.mxu0 %v2264
  %2283 = vmatprep.subr.mxu0 0.0
  %2284 = vmatpush1.msra.mxu0 %v2265
  %2285 = vmatprep.subr.mxu0 0.0
  %2286 = vmatpush1.msra.mxu0 %v2266
  %2287 = vmatprep.subr.mxu0 0.0
  %2288 = vmatpush1.msra.mxu0 %v2267
  %2289 = vmatprep.subr.mxu0 0.0
  %2290 = vmatpush1.msra.mxu0 %v2268
  %2291 = vmatprep.subr.mxu0 0.0
  %2292 = vmatpush1.msra.mxu0 %v2269
  %2293 = vmatprep.subr.mxu0 0.0
  %2294 = vmatpush1.msra.mxu0 %v2270
  %2295 = vmatprep.subr.mxu0 0.0
  %2296 = vmatpush1.msra.mxu0 %v2271
  %2297 = vmatprep.subr.mxu0 0.0
  %2298 = vmatpush1.msra.mxu0 %v2272
  %2299 = vmatprep.subr.mxu0 0.0
  %2300 = vmatpush1.msra.mxu0 %v2273
  %2301 = vmatprep.subr.mxu0 0.0
  %2302 = vmatpush1.msra.mxu0 %v2274
  %2303 = vmatprep.subr.mxu0 0.0
  %2304 = vmatpush1.msra.mxu0 %v2275
  %2305 = vmatprep.subr.mxu0 0.0
  %2306 = vmatpush1.msra.mxu0 %v2276
  %2307 = vmatprep.subr.mxu0 0.0
  %2308 = vmatpush1.msra.mxu0 %v2277
  %2309 = vmatprep.subr.mxu0 0.0
  %2310 = vmatpush1.msra.mxu0 %v2278
  %2311 = vmatprep.subr.mxu0 0.0
  %2312 = vmatpush1.msra.mxu0 0.0
  %2313 = vmatprep.subr.mxu0 0.0
  %2314 = vmatpush1.msra.mxu0 0.0
  %2315 = vmatprep.subr.mxu0 0.0
  %2316 = vmatpush1.msra.mxu0 0.0
  %2317 = vmatprep.subr.mxu0 0.0
  %2318 = vmatpush1.msra.mxu0 0.0
  %2319 = vmatprep.subr.mxu0 0.0
  %2320 = vmatpush1.msra.mxu0 0.0
  %2321 = vmatprep.subr.mxu0 0.0
  %2322 = vmatpush1.msra.mxu0 0.0
  %2323 = vmatprep.subr.mxu0 0.0
  %2324 = vmatpush1.msra.mxu0 0.0
  %2325 = vmatprep.subr.mxu0 0.0
  %2326 = vmatpush1.msra.mxu0 0.0
  %2327 = vmatprep.subr.mxu0 0.0
  %2328 = vmatpush1.msra.mxu0 0.0
  %2329 = vmatprep.subr.mxu0 0.0
  %2330 = vmatpush1.msra.mxu0 0.0
  %2331 = vmatprep.subr.mxu0 0.0
  %2332 = vmatpush1.msra.mxu0 0.0
  %2333 = vmatprep.subr.mxu0 0.0
  %2334 = vmatpush1.msra.mxu0 0.0
  %2335 = vmatprep.subr.mxu0 0.0
  %2336 = vmatpush1.msra.mxu0 0.0
  %2337 = vmatprep.subr.mxu0 0.0
  %2338 = vmatpush1.msra.mxu0 0.0
  %2339 = vmatprep.subr.mxu0 0.0
  %2340 = vmatpush1.msra.mxu0 0.0
  %2341 = vmatprep.subr.mxu0 0.0
  %2342 = vmatpush1.msra.mxu0 0.0
  %2343 = vmatprep.mubr.f32.mxu0 0.0
  %2344 = vmatmul.mubr.f32.gmra.mrb[0].mxu0 %v2225
  %v2345 = vpop.f32.mrb[0].mxu0
  %v2346 = vadd.f32 0.0, %v2345
  %v2347 = vpop.f32.mrb[0].mxu0
  %2348 = vmatprep.mubr.f32.mxu0 0.0
  %2349 = vmatmul.mubr.f32.gmra.mrb[0].mxu0 %v2230
  %v2350 = vpop.f32.mrb[0].mxu0
  %v2351 = vadd.f32 0.0, %v2350
  %v2352 = vpop.f32.mrb[0].mxu0
  %2353 = vmatprep.mubr.f32.mxu0 0.0
  %2354 = vmatmul.mubr.f32.gmra.mrb[0].mxu0 %v2235
  %v2355 = vpop.f32.mrb[0].mxu0
  %v2356 = vadd.f32 0.0, %v2355
  %v2357 = vpop.f32.mrb[0].mxu0
  %2358 = vmatprep.mubr.f32.mxu0 0.0
  %2359 = vmatmul.mubr.f32.gmra.mrb[0].mxu0 %v2240
  %v2360 = vpop.f32.mrb[0].mxu0
  %v2361 = vadd.f32 0.0, %v2360
  %v2362 = vpop.f32.mrb[0].mxu0
  %2363 = vmatprep.mubr.f32.mxu0 0.0
  %2364 = vmatmul.mubr.f32.gmra.mrb[0].mxu0 %v2245
  %v2365 = vpop.f32.mrb[0].mxu0
  %v2366 = vadd.f32 0.0, %v2365
  %v2367 = vpop.f32.mrb[0].mxu0
  %2368 = vmatprep.mubr.f32.mxu0 0.0
  %2369 = vmatmul.mubr.f32.gmra.mrb[0].mxu0 %v2250
  %v2370 = vpop.f32.mrb[0].mxu0
  %v2371 = vadd.f32 0.0, %v2370
  %v2372 = vpop.f32.mrb[0].mxu0
  %2373 = vmatprep.mubr.f32.mxu0 0.0
  %2374 = vmatmul.mubr.f32.gmra.mrb[0].mxu0 %v2255
  %v2375 = vpop.f32.mrb[0].mxu0
  %v2376 = vadd.f32 0.0, %v2375
  %v2377 = vpop.f32.mrb[0].mxu0
  %2378 = vmatprep.mubr.f32.mxu0 0.0
  %2379 = vmatmul.mubr.f32.gmra.mrb[0].mxu0 %v2260
  %v2380 = vpop.f32.mrb[0].mxu0
  %v2381 = vadd.f32 0.0, %v2380
  %v2382 = vpop.f32.mrb[0].mxu0
  %2383 = vdwg.mxu0
  %v2384 = vadd.f32 %v2112, %v2346
  %v2385 = vadd.f32 %v2117, %v2351
  %v2386 = vadd.f32 %v2122, %v2356
  %v2387 = vadd.f32 %v2127, %v2361
  %v2388 = vadd.f32 %v2132, %v2366
  %v2389 = vadd.f32 %v2137, %v2371
  %v2390 = vadd.f32 %v2142, %v2376
  %v2391 = vadd.f32 %v2147, %v2381
  %v2392 = vld [vmem:[%s15 + $0xc0] sm:$0xff]
  %v2393 = vld [vmem:[%s15 + $0xc8] sm:$0xff]
  %v2394 = vld [vmem:[%s15 + $0xd0] sm:$0xff]
  %v2395 = vld [vmem:[%s15 + $0xd8] sm:$0xff]
  %v2396 = vld [vmem:[%s15 + $0xe0] sm:$0xff]
  %v2397 = vld [vmem:[%s15 + $0xe8] sm:$0xff]
  %v2398 = vld [vmem:[%s15 + $0xf0] sm:$0xff]
  %v2399 = vld [vmem:[%s15 + $0xf8] sm:$0xff]
  %2400 = vmatprep.subr.mxu0 0.0
  %2401 = vmatpush1.msra.mxu0 %v1666
  %2402 = vmatprep.subr.mxu0 0.0
  %2403 = vmatpush1.msra.mxu0 %v1667
  %2404 = vmatprep.subr.mxu0 0.0
  %2405 = vmatpush1.msra.mxu0 %v1668
  %2406 = vmatprep.subr.mxu0 0.0
  %2407 = vmatpush1.msra.mxu0 %v1669
  %2408 = vmatprep.subr.mxu0 0.0
  %2409 = vmatpush1.msra.mxu0 %v1670
  %2410 = vmatprep.subr.mxu0 0.0
  %2411 = vmatpush1.msra.mxu0 %v1671
  %2412 = vmatprep.subr.mxu0 0.0
  %2413 = vmatpush1.msra.mxu0 %v1672
  %2414 = vmatprep.subr.mxu0 0.0
  %2415 = vmatpush1.msra.mxu0 %v1673
  %2416 = vmatprep.subr.mxu0 0.0
  %2417 = vmatpush1.msra.mxu0 %v1674
  %2418 = vmatprep.subr.mxu0 0.0
  %2419 = vmatpush1.msra.mxu0 %v1675
  %2420 = vmatprep.subr.mxu0 0.0
  %2421 = vmatpush1.msra.mxu0 %v1676
  %2422 = vmatprep.subr.mxu0 0.0
  %2423 = vmatpush1.msra.mxu0 %v1677
  %2424 = vmatprep.subr.mxu0 0.0
  %2425 = vmatpush1.msra.mxu0 %v1678
  %2426 = vmatprep.subr.mxu0 0.0
  %2427 = vmatpush1.msra.mxu0 %v1679
  %2428 = vmatprep.subr.mxu0 0.0
  %2429 = vmatpush1.msra.mxu0 %v1680
  %2430 = vmatprep.subr.mxu0 0.0
  %2431 = vmatpush1.msra.mxu0 %v1681
  %2432 = vmatprep.subr.mxu0 0.0
  %2433 = vmatpush1.msra.mxu0 0.0
  %2434 = vmatprep.subr.mxu0 0.0
  %2435 = vmatpush1.msra.mxu0 0.0
  %2436 = vmatprep.subr.mxu0 0.0
  %2437 = vmatpush1.msra.mxu0 0.0
  %2438 = vmatprep.subr.mxu0 0.0
  %2439 = vmatpush1.msra.mxu0 0.0
  %2440 = vmatprep.subr.mxu0 0.0
  %2441 = vmatpush1.msra.mxu0 0.0
  %2442 = vmatprep.subr.mxu0 0.0
  %2443 = vmatpush1.msra.mxu0 0.0
  %2444 = vmatprep.subr.mxu0 0.0
  %2445 = vmatpush1.msra.mxu0 0.0
  %2446 = vmatprep.subr.mxu0 0.0
  %2447 = vmatpush1.msra.mxu0 0.0
  %2448 = vmatprep.subr.mxu0 0.0
  %2449 = vmatpush1.msra.mxu0 0.0
  %2450 = vmatprep.subr.mxu0 0.0
  %2451 = vmatpush1.msra.mxu0 0.0
  %2452 = vmatprep.subr.mxu0 0.0
  %2453 = vmatpush1.msra.mxu0 0.0
  %2454 = vmatprep.subr.mxu0 0.0
  %2455 = vmatpush1.msra.mxu0 0.0
  %2456 = vmatprep.subr.mxu0 0.0
  %2457 = vmatpush1.msra.mxu0 0.0
  %2458 = vmatprep.subr.mxu0 0.0
  %2459 = vmatpush1.msra.mxu0 0.0
  %2460 = vmatprep.subr.mxu0 0.0
  %2461 = vmatpush1.msra.mxu0 0.0
  %2462 = vmatprep.subr.mxu0 0.0
  %2463 = vmatpush1.msra.mxu0 0.0
  %2464 = vmatprep.mubr.f32.mxu0 0.0
  %2465 = vmatmul.mubr.f32.gmra.mrb[0].mxu0 %v2392
  %v2466 = vpop.f32.mrb[0].mxu0
  %v2467 = vadd.f32 0.0, %v2466
  %v2468 = vpop.f32.mrb[0].mxu0
  %2469 = vmatprep.mubr.f32.mxu0 0.0
  %2470 = vmatmul.mubr.f32.gmra.mrb[0].mxu0 %v2393
  %v2471 = vpop.f32.mrb[0].mxu0
  %v2472 = vadd.f32 0.0, %v2471
  %v2473 = vpop.f32.mrb[0].mxu0
  %2474 = vmatprep.mubr.f32.mxu0 0.0
  %2475 = vmatmul.mubr.f32.gmra.mrb[0].mxu0 %v2394
  %v2476 = vpop.f32.mrb[0].mxu0
  %v2477 = vadd.f32 0.0, %v2476
  %v2478 = vpop.f32.mrb[0].mxu0
  %2479 = vmatprep.mubr.f32.mxu0 0.0
  %2480 = vmatmul.mubr.f32.gmra.mrb[0].mxu0 %v2395
  %v2481 = vpop.f32.mrb[0].mxu0
  %v2482 = vadd.f32 0.0, %v2481
  %v2483 = vpop.f32.mrb[0].mxu0
  %2484 = vmatprep.mubr.f32.mxu0 0.0
  %2485 = vmatmul.mubr.f32.gmra.mrb[0].mxu0 %v2396
  %v2486 = vpop.f32.mrb[0].mxu0
  %v2487 = vadd.f32 0.0, %v2486
  %v2488 = vpop.f32.mrb[0].mxu0
  %2489 = vmatprep.mubr.f32.mxu0 0.0
  %2490 = vmatmul.mubr.f32.gmra.mrb[0].mxu0 %v2397
  %v2491 = vpop.f32.mrb[0].mxu0
  %v2492 = vadd.f32 0.0, %v2491
  %v2493 = vpop.f32.mrb[0].mxu0
  %2494 = vmatprep.mubr.f32.mxu0 0.0
  %2495 = vmatmul.mubr.f32.gmra.mrb[0].mxu0 %v2398
  %v2496 = vpop.f32.mrb[0].mxu0
  %v2497 = vadd.f32 0.0, %v2496
  %v2498 = vpop.f32.mrb[0].mxu0
  %2499 = vmatprep.mubr.f32.mxu0 0.0
  %2500 = vmatmul.mubr.f32.gmra.mrb[0].mxu0 %v2399
  %v2501 = vpop.f32.mrb[0].mxu0
  %v2502 = vadd.f32 0.0, %v2501
  %v2503 = vpop.f32.mrb[0].mxu0
  %2504 = vdwg.mxu0
  %v2505 = vld [vmem:[%s17 + $0x180] sm:$0xff]
  %v2506 = vld [vmem:[%s17 + $0x188] sm:$0xff]
  %v2507 = vld [vmem:[%s17 + $0x190] sm:$0xff]
  %v2508 = vld [vmem:[%s17 + $0x198] sm:$0xff]
  %v2509 = vld [vmem:[%s17 + $0x1a0] sm:$0xff]
  %v2510 = vld [vmem:[%s17 + $0x1a8] sm:$0xff]
  %v2511 = vld [vmem:[%s17 + $0x1b0] sm:$0xff]
  %v2512 = vld [vmem:[%s17 + $0x1b8] sm:$0xff]
  %v2513 = vld [vmem:[%s17 + $0x1c0] sm:$0xff]
  %v2514 = vld [vmem:[%s17 + $0x1c8] sm:$0xff]
  %v2515 = vld [vmem:[%s17 + $0x1d0] sm:$0xff]
  %v2516 = vld [vmem:[%s17 + $0x1d8] sm:$0xff]
  %v2517 = vld [vmem:[%s17 + $0x1e0] sm:$0xff]
  %v2518 = vld [vmem:[%s17 + $0x1e8] sm:$0xff]
  %v2519 = vld [vmem:[%s17 + $0x1f0] sm:$0xff]
  %v2520 = vld [vmem:[%s17 + $0x1f8] sm:$0xff]
  %2521 = vmatprep.subr.mxu0 0.0
  %2522 = vmatpush1.msra.mxu0 %v2505
  %2523 = vmatprep.subr.mxu0 0.0
  %2524 = vmatpush1.msra.mxu0 %v2506
  %2525 = vmatprep.subr.mxu0 0.0
  %2526 = vmatpush1.msra.mxu0 %v2507
  %2527 = vmatprep.subr.mxu0 0.0
  %2528 = vmatpush1.msra.mxu0 %v2508
  %2529 = vmatprep.subr.mxu0 0.0
  %2530 = vmatpush1.msra.mxu0 %v2509
  %2531 = vmatprep.subr.mxu0 0.0
  %2532 = vmatpush1.msra.mxu0 %v2510
  %2533 = vmatprep.subr.mxu0 0.0
  %2534 = vmatpush1.msra.mxu0 %v2511
  %2535 = vmatprep.subr.mxu0 0.0
  %2536 = vmatpush1.msra.mxu0 %v2512
  %2537 = vmatprep.subr.mxu0 0.0
  %2538 = vmatpush1.msra.mxu0 %v2513
  %2539 = vmatprep.subr.mxu0 0.0
  %2540 = vmatpush1.msra.mxu0 %v2514
  %2541 = vmatprep.subr.mxu0 0.0
  %2542 = vmatpush1.msra.mxu0 %v2515
  %2543 = vmatprep.subr.mxu0 0.0
  %2544 = vmatpush1.msra.mxu0 %v2516
  %2545 = vmatprep.subr.mxu0 0.0
  %2546 = vmatpush1.msra.mxu0 %v2517
  %2547 = vmatprep.subr.mxu0 0.0
  %2548 = vmatpush1.msra.mxu0 %v2518
  %2549 = vmatprep.subr.mxu0 0.0
  %2550 = vmatpush1.msra.mxu0 %v2519
  %2551 = vmatprep.subr.mxu0 0.0
  %2552 = vmatpush1.msra.mxu0 %v2520
  %2553 = vmatprep.subr.mxu0 0.0
  %2554 = vmatpush1.msra.mxu0 0.0
  %2555 = vmatprep.subr.mxu0 0.0
  %2556 = vmatpush1.msra.mxu0 0.0
  %2557 = vmatprep.subr.mxu0 0.0
  %2558 = vmatpush1.msra.mxu0 0.0
  %2559 = vmatprep.subr.mxu0 0.0
  %2560 = vmatpush1.msra.mxu0 0.0
  %2561 = vmatprep.subr.mxu0 0.0
  %2562 = vmatpush1.msra.mxu0 0.0
  %2563 = vmatprep.subr.mxu0 0.0
  %2564 = vmatpush1.msra.mxu0 0.0
  %2565 = vmatprep.subr.mxu0 0.0
  %2566 = vmatpush1.msra.mxu0 0.0
  %2567 = vmatprep.subr.mxu0 0.0
  %2568 = vmatpush1.msra.mxu0 0.0
  %2569 = vmatprep.subr.mxu0 0.0
  %2570 = vmatpush1.msra.mxu0 0.0
  %2571 = vmatprep.subr.mxu0 0.0
  %2572 = vmatpush1.msra.mxu0 0.0
  %2573 = vmatprep.subr.mxu0 0.0
  %2574 = vmatpush1.msra.mxu0 0.0
  %2575 = vmatprep.subr.mxu0 0.0
  %2576 = vmatpush1.msra.mxu0 0.0
  %2577 = vmatprep.subr.mxu0 0.0
  %2578 = vmatpush1.msra.mxu0 0.0
  %2579 = vmatprep.subr.mxu0 0.0
  %2580 = vmatpush1.msra.mxu0 0.0
  %2581 = vmatprep.subr.mxu0 0.0
  %2582 = vmatpush1.msra.mxu0 0.0
  %2583 = vmatprep.subr.mxu0 0.0
  %2584 = vmatpush1.msra.mxu0 0.0
  %2585 = vmatprep.mubr.f32.mxu0 0.0
  %2586 = vmatmul.mubr.f32.gmra.mrb[0].mxu0 %v2467
  %v2587 = vpop.f32.mrb[0].mxu0
  %v2588 = vadd.f32 0.0, %v2587
  %v2589 = vpop.f32.mrb[0].mxu0
  %2590 = vmatprep.mubr.f32.mxu0 0.0
  %2591 = vmatmul.mubr.f32.gmra.mrb[0].mxu0 %v2472
  %v2592 = vpop.f32.mrb[0].mxu0
  %v2593 = vadd.f32 0.0, %v2592
  %v2594 = vpop.f32.mrb[0].mxu0
  %2595 = vmatprep.mubr.f32.mxu0 0.0
  %2596 = vmatmul.mubr.f32.gmra.mrb[0].mxu0 %v2477
  %v2597 = vpop.f32.mrb[0].mxu0
  %v2598 = vadd.f32 0.0, %v2597
  %v2599 = vpop.f32.mrb[0].mxu0
  %2600 = vmatprep.mubr.f32.mxu0 0.0
  %2601 = vmatmul.mubr.f32.gmra.mrb[0].mxu0 %v2482
  %v2602 = vpop.f32.mrb[0].mxu0
  %v2603 = vadd.f32 0.0, %v2602
  %v2604 = vpop.f32.mrb[0].mxu0
  %2605 = vmatprep.mubr.f32.mxu0 0.0
  %2606 = vmatmul.mubr.f32.gmra.mrb[0].mxu0 %v2487
  %v2607 = vpop.f32.mrb[0].mxu0
  %v2608 = vadd.f32 0.0, %v2607
  %v2609 = vpop.f32.mrb[0].mxu0
  %2610 = vmatprep.mubr.f32.mxu0 0.0
  %2611 = vmatmul.mubr.f32.gmra.mrb[0].mxu0 %v2492
  %v2612 = vpop.f32.mrb[0].mxu0
  %v2613 = vadd.f32 0.0, %v2612
  %v2614 = vpop.f32.mrb[0].mxu0
  %2615 = vmatprep.mubr.f32.mxu0 0.0
  %2616 = vmatmul.mubr.f32.gmra.mrb[0].mxu0 %v2497
  %v2617 = vpop.f32.mrb[0].mxu0
  %v2618 = vadd.f32 0.0, %v2617
  %v2619 = vpop.f32.mrb[0].mxu0
  %2620 = vmatprep.mubr.f32.mxu0 0.0
  %2621 = vmatmul.mubr.f32.gmra.mrb[0].mxu0 %v2502
  %v2622 = vpop.f32.mrb[0].mxu0
  %v2623 = vadd.f32 0.0, %v2622
  %v2624 = vpop.f32.mrb[0].mxu0
  %2625 = vdwg.mxu0
  %v2626 = vadd.f32 %v2384, %v2588
  %v2627 = vadd.f32 %v2385, %v2593
  %v2628 = vadd.f32 %v2386, %v2598
  %v2629 = vadd.f32 %v2387, %v2603
  %v2630 = vadd.f32 %v2388, %v2608
  %v2631 = vadd.f32 %v2389, %v2613
  %v2632 = vadd.f32 %v2390, %v2618
  %v2633 = vadd.f32 %v2391, %v2623
  %vm2634 = vcmask 523264
  %v2635 = vsel %vm2634, %v2626, 0.0
  %v2636 = vsel %vm2634, %v2627, 0.0
  %v2637 = vadd.f32 %v2635, %v2636
  %v2638 = vsel %vm2634, %v2628, 0.0
  %v2639 = vadd.f32 %v2637, %v2638
  %v2640 = vsel %vm2634, %v2629, 0.0
  %v2641 = vadd.f32 %v2639, %v2640
  %v2642 = vsel %vm2634, %v2630, 0.0
  %v2643 = vadd.f32 %v2641, %v2642
  %v2644 = vsel %vm2634, %v2631, 0.0
  %v2645 = vadd.f32 %v2643, %v2644
  %v2646 = vsel %vm2634, %v2632, 0.0
  %v2647 = vadd.f32 %v2645, %v2646
  %v2648 = vsel %vm2634, %v2633, 0.0
  %v2649 = vadd.f32 %v2647, %v2648
  %v2650 = vrot.slane %v2649, 4
  %v2651 = vadd.f32 %v2649, %v2650
  %v2652 = vrot.slane %v2651, 2
  %v2653 = vadd.f32 %v2651, %v2652
  %v2654 = vrot.slane %v2653, 1
  %v2655 = vadd.f32 %v2653, %v2654
  %v2656 = vmul.f32 %v2626, %v2626
  %v2657 = vmul.f32 %v2627, %v2627
  %v2658 = vmul.f32 %v2628, %v2628
  %v2659 = vmul.f32 %v2629, %v2629
  %v2660 = vmul.f32 %v2630, %v2630
  %v2661 = vmul.f32 %v2631, %v2631
  %v2662 = vmul.f32 %v2632, %v2632
  %v2663 = vmul.f32 %v2633, %v2633
  %v2664 = vsel %vm2634, %v2656, 0.0
  %v2665 = vsel %vm2634, %v2657, 0.0
  %v2666 = vadd.f32 %v2664, %v2665
  %v2667 = vsel %vm2634, %v2658, 0.0
  %v2668 = vadd.f32 %v2666, %v2667
  %v2669 = vsel %vm2634, %v2659, 0.0
  %v2670 = vadd.f32 %v2668, %v2669
  %v2671 = vsel %vm2634, %v2660, 0.0
  %v2672 = vadd.f32 %v2670, %v2671
  %v2673 = vsel %vm2634, %v2661, 0.0
  %v2674 = vadd.f32 %v2672, %v2673
  %v2675 = vsel %vm2634, %v2662, 0.0
  %v2676 = vadd.f32 %v2674, %v2675
  %v2677 = vsel %vm2634, %v2663, 0.0
  %v2678 = vadd.f32 %v2676, %v2677
  %v2679 = vrot.slane %v2678, 4
  %v2680 = vadd.f32 %v2678, %v2679
  %v2681 = vrot.slane %v2680, 2
  %v2682 = vadd.f32 %v2680, %v2681
  %v2683 = vrot.slane %v2682, 1
  %v2684 = vadd.f32 %v2682, %v2683
  %v2685 = vld [vmem:[%s19] sm:$0xff]
  %v2686 = vld [vmem:[%s19 + $0x8] sm:$0xff]
  %v2687 = vld [vmem:[%s19 + $0x10] sm:$0xff]
  %v2688 = vld [vmem:[%s19 + $0x18] sm:$0xff]
  %v2689 = vld [vmem:[%s19 + $0x20] sm:$0xff]
  %v2690 = vld [vmem:[%s19 + $0x28] sm:$0xff]
  %v2691 = vld [vmem:[%s19 + $0x30] sm:$0xff]
  %v2692 = vld [vmem:[%s19 + $0x38] sm:$0xff]
  %v2694 = vsel %vm2634, %v2655, 0
  %2696 = vmatprep.subr.mxu0 0.0
  %2697 = vmatpush1.msra.mxu0 %v2685
  %2698 = vmatprep.subr.mxu0 0.0
  %2699 = vmatpush1.msra.mxu0 %v2686
  %2700 = vmatprep.subr.mxu0 0.0
  %2701 = vmatpush1.msra.mxu0 %v2687
  %2702 = vmatprep.subr.mxu0 0.0
  %2703 = vmatpush1.msra.mxu0 %v2688
  %2704 = vmatprep.subr.mxu0 0.0
  %2705 = vmatpush1.msra.mxu0 %v2689
  %2706 = vmatprep.subr.mxu0 0.0
  %2707 = vmatpush1.msra.mxu0 %v2690
  %2708 = vmatprep.subr.mxu0 0.0
  %2709 = vmatpush1.msra.mxu0 %v2691
  %2710 = vmatprep.subr.mxu0 0.0
  %2711 = vmatpush1.msra.mxu0 %v2692
  %2712 = vmatprep.subr.mxu0 0.0
  %2713 = vmatpush1.msra.mxu0 0.0
  %2714 = vmatprep.subr.mxu0 0.0
  %2715 = vmatpush1.msra.mxu0 0.0
  %2716 = vmatprep.subr.mxu0 0.0
  %2717 = vmatpush1.msra.mxu0 0.0
  %2718 = vmatprep.subr.mxu0 0.0
  %2719 = vmatpush1.msra.mxu0 0.0
  %2720 = vmatprep.subr.mxu0 0.0
  %2721 = vmatpush1.msra.mxu0 0.0
  %2722 = vmatprep.subr.mxu0 0.0
  %2723 = vmatpush1.msra.mxu0 0.0
  %2724 = vmatprep.subr.mxu0 0.0
  %2725 = vmatpush1.msra.mxu0 0.0
  %2726 = vmatprep.subr.mxu0 0.0
  %2727 = vmatpush1.msra.mxu0 0.0
  %2728 = vmatprep.subr.mxu0 0.0
  %2729 = vmatpush1.msra.mxu0 0.0
  %2730 = vmatprep.subr.mxu0 0.0
  %2731 = vmatpush1.msra.mxu0 0.0
  %2732 = vmatprep.subr.mxu0 0.0
  %2733 = vmatpush1.msra.mxu0 0.0
  %2734 = vmatprep.subr.mxu0 0.0
  %2735 = vmatpush1.msra.mxu0 0.0
  %2736 = vmatprep.subr.mxu0 0.0
  %2737 = vmatpush1.msra.mxu0 0.0
  %2738 = vmatprep.subr.mxu0 0.0
  %2739 = vmatpush1.msra.mxu0 0.0
  %2740 = vmatprep.subr.mxu0 0.0
  %2741 = vmatpush1.msra.mxu0 0.0
  %2742 = vmatprep.subr.mxu0 0.0
  %2743 = vmatpush1.msra.mxu0 0.0
  %2744 = vmatprep.subr.mxu0 0.0
  %2745 = vmatpush1.msra.mxu0 0.0
  %2746 = vmatprep.subr.mxu0 0.0
  %2747 = vmatpush1.msra.mxu0 0.0
  %2748 = vmatprep.subr.mxu0 0.0
  %2749 = vmatpush1.msra.mxu0 0.0
  %2750 = vmatprep.subr.mxu0 0.0
  %2751 = vmatpush1.msra.mxu0 0.0
  %2752 = vmatprep.subr.mxu0 0.0
  %2753 = vmatpush1.msra.mxu0 0.0
  %2754 = vmatprep.subr.mxu0 0.0
  %2755 = vmatpush1.msra.mxu0 0.0
  %2756 = vmatprep.subr.mxu0 0.0
  %2757 = vmatpush1.msra.mxu0 0.0
  %2758 = vmatprep.subr.mxu0 0.0
  %2759 = vmatpush1.msra.mxu0 0.0
  %2760 = vmatprep.mubr.f32.mxu0 0.0
  %2761 = vmatmul.mubr.f32.gmra.mrb[0].mxu0 %v2694
  %v2762 = vpop.f32.mrb[0].mxu0
  %v2763 = vadd.f32 0.0, %v2762
  %v2764 = vpop.f32.mrb[0].mxu0
  %2765 = vdwg.mxu0
  %v2767 = vsel %vm2634, %v2684, 0
  %2769 = vmatprep.subr.mxu0 0.0
  %2770 = vmatpush1.msra.mxu0 %v2685
  %2771 = vmatprep.subr.mxu0 0.0
  %2772 = vmatpush1.msra.mxu0 %v2686
  %2773 = vmatprep.subr.mxu0 0.0
  %2774 = vmatpush1.msra.mxu0 %v2687
  %2775 = vmatprep.subr.mxu0 0.0
  %2776 = vmatpush1.msra.mxu0 %v2688
  %2777 = vmatprep.subr.mxu0 0.0
  %2778 = vmatpush1.msra.mxu0 %v2689
  %2779 = vmatprep.subr.mxu0 0.0
  %2780 = vmatpush1.msra.mxu0 %v2690
  %2781 = vmatprep.subr.mxu0 0.0
  %2782 = vmatpush1.msra.mxu0 %v2691
  %2783 = vmatprep.subr.mxu0 0.0
  %2784 = vmatpush1.msra.mxu0 %v2692
  %2785 = vmatprep.subr.mxu0 0.0
  %2786 = vmatpush1.msra.mxu0 0.0
  %2787 = vmatprep.subr.mxu0 0.0
  %2788 = vmatpush1.msra.mxu0 0.0
  %2789 = vmatprep.subr.mxu0 0.0
  %2790 = vmatpush1.msra.mxu0 0.0
  %2791 = vmatprep.subr.mxu0 0.0
  %2792 = vmatpush1.msra.mxu0 0.0
  %2793 = vmatprep.subr.mxu0 0.0
  %2794 = vmatpush1.msra.mxu0 0.0
  %2795 = vmatprep.subr.mxu0 0.0
  %2796 = vmatpush1.msra.mxu0 0.0
  %2797 = vmatprep.subr.mxu0 0.0
  %2798 = vmatpush1.msra.mxu0 0.0
  %2799 = vmatprep.subr.mxu0 0.0
  %2800 = vmatpush1.msra.mxu0 0.0
  %2801 = vmatprep.subr.mxu0 0.0
  %2802 = vmatpush1.msra.mxu0 0.0
  %2803 = vmatprep.subr.mxu0 0.0
  %2804 = vmatpush1.msra.mxu0 0.0
  %2805 = vmatprep.subr.mxu0 0.0
  %2806 = vmatpush1.msra.mxu0 0.0
  %2807 = vmatprep.subr.mxu0 0.0
  %2808 = vmatpush1.msra.mxu0 0.0
  %2809 = vmatprep.subr.mxu0 0.0
  %2810 = vmatpush1.msra.mxu0 0.0
  %2811 = vmatprep.subr.mxu0 0.0
  %2812 = vmatpush1.msra.mxu0 0.0
  %2813 = vmatprep.subr.mxu0 0.0
  %2814 = vmatpush1.msra.mxu0 0.0
  %2815 = vmatprep.subr.mxu0 0.0
  %2816 = vmatpush1.msra.mxu0 0.0
  %2817 = vmatprep.subr.mxu0 0.0
  %2818 = vmatpush1.msra.mxu0 0.0
  %2819 = vmatprep.subr.mxu0 0.0
  %2820 = vmatpush1.msra.mxu0 0.0
  %2821 = vmatprep.subr.mxu0 0.0
  %2822 = vmatpush1.msra.mxu0 0.0
  %2823 = vmatprep.subr.mxu0 0.0
  %2824 = vmatpush1.msra.mxu0 0.0
  %2825 = vmatprep.subr.mxu0 0.0
  %2826 = vmatpush1.msra.mxu0 0.0
  %2827 = vmatprep.subr.mxu0 0.0
  %2828 = vmatpush1.msra.mxu0 0.0
  %2829 = vmatprep.subr.mxu0 0.0
  %2830 = vmatpush1.msra.mxu0 0.0
  %2831 = vmatprep.subr.mxu0 0.0
  %2832 = vmatpush1.msra.mxu0 0.0
  %2833 = vmatprep.mubr.f32.mxu0 0.0
  %2834 = vmatmul.mubr.f32.gmra.mrb[0].mxu0 %v2767
  %v2835 = vpop.f32.mrb[0].mxu0
  %v2836 = vadd.f32 0.0, %v2835
  %v2837 = vpop.f32.mrb[0].mxu0
  %2838 = vdwg.mxu0
  %v2839 = vrcp.pop 128.0
  %v2840 = vmul.f32 %v2763, %v2839
  %v2841 = vmul.f32 %v2836, %v2839
  %v2842 = vmul.f32 %v2840, %v2840
  %v2843 = vsub.f32 %v2841, %v2842
  %v2844 = vmax.f32 %v2843, 0.0
  %v2845 = vld [vmem:[%s23] sm:$0x1]
  %v2846 = vadd.f32 %v2844, 1e-05
  %v2847 = vrsqrt.pop %v2846
  %v2848 = vmul.f32 %v2845, %v2847
  %v2849 = vld [vmem:[%s25] sm:$0x1]
  %v2850 = vmul.f32 %v2840, %v2848
  %v2851 = vsub.f32 %v2849, %v2850
  %v2852 = vld [vmem:[%s21] sm:$0xff]
  %v2854 = vsel %vm1463, %v2848, 0
  %2856 = vmatprep.subr.mxu0 0.0
  %2857 = vmatpush1.msra.mxu0 %v2852
  %2858 = vmatprep.subr.mxu0 0.0
  %2859 = vmatpush1.msra.mxu0 0.0
  %2860 = vmatprep.subr.mxu0 0.0
  %2861 = vmatpush1.msra.mxu0 0.0
  %2862 = vmatprep.subr.mxu0 0.0
  %2863 = vmatpush1.msra.mxu0 0.0
  %2864 = vmatprep.subr.mxu0 0.0
  %2865 = vmatpush1.msra.mxu0 0.0
  %2866 = vmatprep.subr.mxu0 0.0
  %2867 = vmatpush1.msra.mxu0 0.0
  %2868 = vmatprep.subr.mxu0 0.0
  %2869 = vmatpush1.msra.mxu0 0.0
  %2870 = vmatprep.subr.mxu0 0.0
  %2871 = vmatpush1.msra.mxu0 0.0
  %2872 = vmatprep.subr.mxu0 0.0
  %2873 = vmatpush1.msra.mxu0 0.0
  %2874 = vmatprep.subr.mxu0 0.0
  %2875 = vmatpush1.msra.mxu0 0.0
  %2876 = vmatprep.subr.mxu0 0.0
  %2877 = vmatpush1.msra.mxu0 0.0
  %2878 = vmatprep.subr.mxu0 0.0
  %2879 = vmatpush1.msra.mxu0 0.0
  %2880 = vmatprep.subr.mxu0 0.0
  %2881 = vmatpush1.msra.mxu0 0.0
  %2882 = vmatprep.subr.mxu0 0.0
  %2883 = vmatpush1.msra.mxu0 0.0
  %2884 = vmatprep.subr.mxu0 0.0
  %2885 = vmatpush1.msra.mxu0 0.0
  %2886 = vmatprep.subr.mxu0 0.0
  %2887 = vmatpush1.msra.mxu0 0.0
  %2888 = vmatprep.subr.mxu0 0.0
  %2889 = vmatpush1.msra.mxu0 0.0
  %2890 = vmatprep.subr.mxu0 0.0
  %2891 = vmatpush1.msra.mxu0 0.0
  %2892 = vmatprep.subr.mxu0 0.0
  %2893 = vmatpush1.msra.mxu0 0.0
  %2894 = vmatprep.subr.mxu0 0.0
  %2895 = vmatpush1.msra.mxu0 0.0
  %2896 = vmatprep.subr.mxu0 0.0
  %2897 = vmatpush1.msra.mxu0 0.0
  %2898 = vmatprep.subr.mxu0 0.0
  %2899 = vmatpush1.msra.mxu0 0.0
  %2900 = vmatprep.subr.mxu0 0.0
  %2901 = vmatpush1.msra.mxu0 0.0
  %2902 = vmatprep.subr.mxu0 0.0
  %2903 = vmatpush1.msra.mxu0 0.0
  %2904 = vmatprep.subr.mxu0 0.0
  %2905 = vmatpush1.msra.mxu0 0.0
  %2906 = vmatprep.subr.mxu0 0.0
  %2907 = vmatpush1.msra.mxu0 0.0
  %2908 = vmatprep.subr.mxu0 0.0
  %2909 = vmatpush1.msra.mxu0 0.0
  %2910 = vmatprep.subr.mxu0 0.0
  %2911 = vmatpush1.msra.mxu0 0.0
  %2912 = vmatprep.subr.mxu0 0.0
  %2913 = vmatpush1.msra.mxu0 0.0
  %2914 = vmatprep.subr.mxu0 0.0
  %2915 = vmatpush1.msra.mxu0 0.0
  %2916 = vmatprep.subr.mxu0 0.0
  %2917 = vmatpush1.msra.mxu0 0.0
  %2918 = vmatprep.subr.mxu0 0.0
  %2919 = vmatpush1.msra.mxu0 0.0
  %2920 = vmatprep.mubr.f32.mxu0 0.0
  %2921 = vmatmul.mubr.f32.gmra.mrb[0].mxu0 %v2854
  %v2922 = vpop.f32.mrb[0].mxu0
  %v2923 = vadd.f32 0.0, %v2922
  %v2924 = vpop.f32.mrb[0].mxu0
  %2925 = vdwg.mxu0
  %v2927 = vsel %vm1463, %v2851, 0
  %2929 = vmatprep.subr.mxu0 0.0
  %2930 = vmatpush1.msra.mxu0 %v2852
  %2931 = vmatprep.subr.mxu0 0.0
  %2932 = vmatpush1.msra.mxu0 0.0
  %2933 = vmatprep.subr.mxu0 0.0
  %2934 = vmatpush1.msra.mxu0 0.0
  %2935 = vmatprep.subr.mxu0 0.0
  %2936 = vmatpush1.msra.mxu0 0.0
  %2937 = vmatprep.subr.mxu0 0.0
  %2938 = vmatpush1.msra.mxu0 0.0
  %2939 = vmatprep.subr.mxu0 0.0
  %2940 = vmatpush1.msra.mxu0 0.0
  %2941 = vmatprep.subr.mxu0 0.0
  %2942 = vmatpush1.msra.mxu0 0.0
  %2943 = vmatprep.subr.mxu0 0.0
  %2944 = vmatpush1.msra.mxu0 0.0
  %2945 = vmatprep.subr.mxu0 0.0
  %2946 = vmatpush1.msra.mxu0 0.0
  %2947 = vmatprep.subr.mxu0 0.0
  %2948 = vmatpush1.msra.mxu0 0.0
  %2949 = vmatprep.subr.mxu0 0.0
  %2950 = vmatpush1.msra.mxu0 0.0
  %2951 = vmatprep.subr.mxu0 0.0
  %2952 = vmatpush1.msra.mxu0 0.0
  %2953 = vmatprep.subr.mxu0 0.0
  %2954 = vmatpush1.msra.mxu0 0.0
  %2955 = vmatprep.subr.mxu0 0.0
  %2956 = vmatpush1.msra.mxu0 0.0
  %2957 = vmatprep.subr.mxu0 0.0
  %2958 = vmatpush1.msra.mxu0 0.0
  %2959 = vmatprep.subr.mxu0 0.0
  %2960 = vmatpush1.msra.mxu0 0.0
  %2961 = vmatprep.subr.mxu0 0.0
  %2962 = vmatpush1.msra.mxu0 0.0
  %2963 = vmatprep.subr.mxu0 0.0
  %2964 = vmatpush1.msra.mxu0 0.0
  %2965 = vmatprep.subr.mxu0 0.0
  %2966 = vmatpush1.msra.mxu0 0.0
  %2967 = vmatprep.subr.mxu0 0.0
  %2968 = vmatpush1.msra.mxu0 0.0
  %2969 = vmatprep.subr.mxu0 0.0
  %2970 = vmatpush1.msra.mxu0 0.0
  %2971 = vmatprep.subr.mxu0 0.0
  %2972 = vmatpush1.msra.mxu0 0.0
  %2973 = vmatprep.subr.mxu0 0.0
  %2974 = vmatpush1.msra.mxu0 0.0
  %2975 = vmatprep.subr.mxu0 0.0
  %2976 = vmatpush1.msra.mxu0 0.0
  %2977 = vmatprep.subr.mxu0 0.0
  %2978 = vmatpush1.msra.mxu0 0.0
  %2979 = vmatprep.subr.mxu0 0.0
  %2980 = vmatpush1.msra.mxu0 0.0
  %2981 = vmatprep.subr.mxu0 0.0
  %2982 = vmatpush1.msra.mxu0 0.0
  %2983 = vmatprep.subr.mxu0 0.0
  %2984 = vmatpush1.msra.mxu0 0.0
  %2985 = vmatprep.subr.mxu0 0.0
  %2986 = vmatpush1.msra.mxu0 0.0
  %2987 = vmatprep.subr.mxu0 0.0
  %2988 = vmatpush1.msra.mxu0 0.0
  %2989 = vmatprep.subr.mxu0 0.0
  %2990 = vmatpush1.msra.mxu0 0.0
  %2991 = vmatprep.subr.mxu0 0.0
  %2992 = vmatpush1.msra.mxu0 0.0
  %2993 = vmatprep.mubr.f32.mxu0 0.0
  %2994 = vmatmul.mubr.f32.gmra.mrb[0].mxu0 %v2927
  %v2995 = vpop.f32.mrb[0].mxu0
  %v2996 = vadd.f32 0.0, %v2995
  %v2997 = vpop.f32.mrb[0].mxu0
  %2998 = vdwg.mxu0
  %v2999 = vlaneseq
  %v3000 = vshrl.u32 %v2999, 7
  %v3001 = vsub.s32 0, %v3000
  %v3002 = vrot.slane %v2923, %v3001
  %v3003 = vmul.f32 %v2626, %v3002
  %v3004 = vmul.f32 %v2627, %v3002
  %v3005 = vmul.f32 %v2628, %v3002
  %v3006 = vmul.f32 %v2629, %v3002
  %v3007 = vmul.f32 %v2630, %v3002
  %v3008 = vmul.f32 %v2631, %v3002
  %v3009 = vmul.f32 %v2632, %v3002
  %v3010 = vmul.f32 %v2633, %v3002
  %v3011 = vlaneseq
  %v3012 = vshrl.u32 %v3011, 7
  %v3013 = vsub.s32 0, %v3012
  %v3014 = vrot.slane %v2996, %v3013
  %v3015 = vadd.f32 %v3003, %v3014
  %v3016 = vadd.f32 %v3004, %v3014
  %v3017 = vadd.f32 %v3005, %v3014
  %v3018 = vadd.f32 %v3006, %v3014
  %v3019 = vadd.f32 %v3007, %v3014
  %v3020 = vadd.f32 %v3008, %v3014
  %v3021 = vadd.f32 %v3009, %v3014
  %v3022 = vadd.f32 %v3010, %v3014
  %v3023 = vmul.f32 %v3015, 0.1
  %v3024 = vmul.f32 %v3016, 0.1
  %v3025 = vmul.f32 %v3017, 0.1
  %v3026 = vmul.f32 %v3018, 0.1
  %v3027 = vmul.f32 %v3019, 0.1
  %v3028 = vmul.f32 %v3020, 0.1
  %v3029 = vmul.f32 %v3021, 0.1
  %v3030 = vmul.f32 %v3022, 0.1
  %v3031 = vmax.f32 %v3015, %v3023
  %v3032 = vmax.f32 %v3016, %v3024
  %v3033 = vmax.f32 %v3017, %v3025
  %v3034 = vmax.f32 %v3018, %v3026
  %v3035 = vmax.f32 %v3019, %v3027
  %v3036 = vmax.f32 %v3020, %v3028
  %v3037 = vmax.f32 %v3021, %v3029
  %v3038 = vmax.f32 %v3022, %v3030
  %v3039 = vld [vmem:[%s27] sm:$0xff]
  %v3040 = vld [vmem:[%s27 + $0x8] sm:$0xff]
  %v3041 = vld [vmem:[%s27 + $0x10] sm:$0xff]
  %v3042 = vld [vmem:[%s27 + $0x18] sm:$0xff]
  %v3043 = vld [vmem:[%s27 + $0x20] sm:$0xff]
  %v3044 = vld [vmem:[%s27 + $0x28] sm:$0xff]
  %v3045 = vld [vmem:[%s27 + $0x30] sm:$0xff]
  %v3046 = vld [vmem:[%s27 + $0x38] sm:$0xff]
  %v3048 = vsel %vm2634, %v3039, 0
  %v3051 = vsel %vm2634, %v3040, 0
  %v3054 = vsel %vm2634, %v3041, 0
  %v3057 = vsel %vm2634, %v3042, 0
  %v3060 = vsel %vm2634, %v3043, 0
  %v3063 = vsel %vm2634, %v3044, 0
  %v3066 = vsel %vm2634, %v3045, 0
  %v3069 = vsel %vm2634, %v3046, 0
  %3071 = vmatprep.subr.mxu0 0.0
  %3072 = vmatpush1.msra.mxu0 %v3031
  %3073 = vmatprep.subr.mxu0 0.0
  %3074 = vmatpush1.msra.mxu0 %v3032
  %3075 = vmatprep.subr.mxu0 0.0
  %3076 = vmatpush1.msra.mxu0 %v3033
  %3077 = vmatprep.subr.mxu0 0.0
  %3078 = vmatpush1.msra.mxu0 %v3034
  %3079 = vmatprep.subr.mxu0 0.0
  %3080 = vmatpush1.msra.mxu0 %v3035
  %3081 = vmatprep.subr.mxu0 0.0
  %3082 = vmatpush1.msra.mxu0 %v3036
  %3083 = vmatprep.subr.mxu0 0.0
  %3084 = vmatpush1.msra.mxu0 %v3037
  %3085 = vmatprep.subr.mxu0 0.0
  %3086 = vmatpush1.msra.mxu0 %v3038
  %3087 = vmatprep.subr.mxu0 0.0
  %3088 = vmatpush1.msra.mxu0 0.0
  %3089 = vmatprep.subr.mxu0 0.0
  %3090 = vmatpush1.msra.mxu0 0.0
  %3091 = vmatprep.subr.mxu0 0.0
  %3092 = vmatpush1.msra.mxu0 0.0
  %3093 = vmatprep.subr.mxu0 0.0
  %3094 = vmatpush1.msra.mxu0 0.0
  %3095 = vmatprep.subr.mxu0 0.0
  %3096 = vmatpush1.msra.mxu0 0.0
  %3097 = vmatprep.subr.mxu0 0.0
  %3098 = vmatpush1.msra.mxu0 0.0
  %3099 = vmatprep.subr.mxu0 0.0
  %3100 = vmatpush1.msra.mxu0 0.0
  %3101 = vmatprep.subr.mxu0 0.0
  %3102 = vmatpush1.msra.mxu0 0.0
  %3103 = vmatprep.subr.mxu0 0.0
  %3104 = vmatpush1.msra.mxu0 0.0
  %3105 = vmatprep.subr.mxu0 0.0
  %3106 = vmatpush1.msra.mxu0 0.0
  %3107 = vmatprep.subr.mxu0 0.0
  %3108 = vmatpush1.msra.mxu0 0.0
  %3109 = vmatprep.subr.mxu0 0.0
  %3110 = vmatpush1.msra.mxu0 0.0
  %3111 = vmatprep.subr.mxu0 0.0
  %3112 = vmatpush1.msra.mxu0 0.0
  %3113 = vmatprep.subr.mxu0 0.0
  %3114 = vmatpush1.msra.mxu0 0.0
  %3115 = vmatprep.subr.mxu0 0.0
  %3116 = vmatpush1.msra.mxu0 0.0
  %3117 = vmatprep.subr.mxu0 0.0
  %3118 = vmatpush1.msra.mxu0 0.0
  %3119 = vmatprep.subr.mxu0 0.0
  %3120 = vmatpush1.msra.mxu0 0.0
  %3121 = vmatprep.subr.mxu0 0.0
  %3122 = vmatpush1.msra.mxu0 0.0
  %3123 = vmatprep.subr.mxu0 0.0
  %3124 = vmatpush1.msra.mxu0 0.0
  %3125 = vmatprep.subr.mxu0 0.0
  %3126 = vmatpush1.msra.mxu0 0.0
  %3127 = vmatprep.subr.mxu0 0.0
  %3128 = vmatpush1.msra.mxu0 0.0
  %3129 = vmatprep.subr.mxu0 0.0
  %3130 = vmatpush1.msra.mxu0 0.0
  %3131 = vmatprep.subr.mxu0 0.0
  %3132 = vmatpush1.msra.mxu0 0.0
  %3133 = vmatprep.subr.mxu0 0.0
  %3134 = vmatpush1.msra.mxu0 0.0
  %3135 = vmatprep.mubr.f32.mxu0 0.0
  %3136 = vmatmul.mubr.f32.gmra.mrb[0].mxu0 %v3048
  %v3137 = vpop.f32.mrb[0].mxu0
  %v3138 = vadd.f32 0.0, %v3137
  %v3139 = vpop.f32.mrb[0].mxu0
  %3140 = vmatprep.mubr.f32.mxu0 0.0
  %3141 = vmatmul.mubr.f32.gmra.mrb[0].mxu0 %v3051
  %v3142 = vpop.f32.mrb[0].mxu0
  %v3143 = vadd.f32 0.0, %v3142
  %v3144 = vpop.f32.mrb[0].mxu0
  %3145 = vmatprep.mubr.f32.mxu0 0.0
  %3146 = vmatmul.mubr.f32.gmra.mrb[0].mxu0 %v3054
  %v3147 = vpop.f32.mrb[0].mxu0
  %v3148 = vadd.f32 0.0, %v3147
  %v3149 = vpop.f32.mrb[0].mxu0
  %3150 = vmatprep.mubr.f32.mxu0 0.0
  %3151 = vmatmul.mubr.f32.gmra.mrb[0].mxu0 %v3057
  %v3152 = vpop.f32.mrb[0].mxu0
  %v3153 = vadd.f32 0.0, %v3152
  %v3154 = vpop.f32.mrb[0].mxu0
  %3155 = vmatprep.mubr.f32.mxu0 0.0
  %3156 = vmatmul.mubr.f32.gmra.mrb[0].mxu0 %v3060
  %v3157 = vpop.f32.mrb[0].mxu0
  %v3158 = vadd.f32 0.0, %v3157
  %v3159 = vpop.f32.mrb[0].mxu0
  %3160 = vmatprep.mubr.f32.mxu0 0.0
  %3161 = vmatmul.mubr.f32.gmra.mrb[0].mxu0 %v3063
  %v3162 = vpop.f32.mrb[0].mxu0
  %v3163 = vadd.f32 0.0, %v3162
  %v3164 = vpop.f32.mrb[0].mxu0
  %3165 = vmatprep.mubr.f32.mxu0 0.0
  %3166 = vmatmul.mubr.f32.gmra.mrb[0].mxu0 %v3066
  %v3167 = vpop.f32.mrb[0].mxu0
  %v3168 = vadd.f32 0.0, %v3167
  %v3169 = vpop.f32.mrb[0].mxu0
  %3170 = vmatprep.mubr.f32.mxu0 0.0
  %3171 = vmatmul.mubr.f32.gmra.mrb[0].mxu0 %v3069
  %v3172 = vpop.f32.mrb[0].mxu0
  %v3173 = vadd.f32 0.0, %v3172
  %v3174 = vpop.f32.mrb[0].mxu0
  %3175 = vdwg.mxu0
  %v3176 = vld [vmem:[%s29] sm:$0xff]
  %v3177 = vld [vmem:[%s29 + $0x8] sm:$0xff]
  %v3178 = vld [vmem:[%s29 + $0x10] sm:$0xff]
  %v3179 = vld [vmem:[%s29 + $0x18] sm:$0xff]
  %v3180 = vld [vmem:[%s29 + $0x20] sm:$0xff]
  %v3181 = vld [vmem:[%s29 + $0x28] sm:$0xff]
  %v3182 = vld [vmem:[%s29 + $0x30] sm:$0xff]
  %v3183 = vld [vmem:[%s29 + $0x38] sm:$0xff]
  %v3184 = vld [vmem:[%s27 + $0x40] sm:$0xff]
  %v3185 = vld [vmem:[%s27 + $0x48] sm:$0xff]
  %v3186 = vld [vmem:[%s27 + $0x50] sm:$0xff]
  %v3187 = vld [vmem:[%s27 + $0x58] sm:$0xff]
  %v3188 = vld [vmem:[%s27 + $0x60] sm:$0xff]
  %v3189 = vld [vmem:[%s27 + $0x68] sm:$0xff]
  %v3190 = vld [vmem:[%s27 + $0x70] sm:$0xff]
  %v3191 = vld [vmem:[%s27 + $0x78] sm:$0xff]
  %v3193 = vsel %vm2634, %v3184, 0
  %v3196 = vsel %vm2634, %v3185, 0
  %v3199 = vsel %vm2634, %v3186, 0
  %v3202 = vsel %vm2634, %v3187, 0
  %v3205 = vsel %vm2634, %v3188, 0
  %v3208 = vsel %vm2634, %v3189, 0
  %v3211 = vsel %vm2634, %v3190, 0
  %v3214 = vsel %vm2634, %v3191, 0
  %3216 = vmatprep.subr.mxu0 0.0
  %3217 = vmatpush1.msra.mxu0 %v3031
  %3218 = vmatprep.subr.mxu0 0.0
  %3219 = vmatpush1.msra.mxu0 %v3032
  %3220 = vmatprep.subr.mxu0 0.0
  %3221 = vmatpush1.msra.mxu0 %v3033
  %3222 = vmatprep.subr.mxu0 0.0
  %3223 = vmatpush1.msra.mxu0 %v3034
  %3224 = vmatprep.subr.mxu0 0.0
  %3225 = vmatpush1.msra.mxu0 %v3035
  %3226 = vmatprep.subr.mxu0 0.0
  %3227 = vmatpush1.msra.mxu0 %v3036
  %3228 = vmatprep.subr.mxu0 0.0
  %3229 = vmatpush1.msra.mxu0 %v3037
  %3230 = vmatprep.subr.mxu0 0.0
  %3231 = vmatpush1.msra.mxu0 %v3038
  %3232 = vmatprep.subr.mxu0 0.0
  %3233 = vmatpush1.msra.mxu0 0.0
  %3234 = vmatprep.subr.mxu0 0.0
  %3235 = vmatpush1.msra.mxu0 0.0
  %3236 = vmatprep.subr.mxu0 0.0
  %3237 = vmatpush1.msra.mxu0 0.0
  %3238 = vmatprep.subr.mxu0 0.0
  %3239 = vmatpush1.msra.mxu0 0.0
  %3240 = vmatprep.subr.mxu0 0.0
  %3241 = vmatpush1.msra.mxu0 0.0
  %3242 = vmatprep.subr.mxu0 0.0
  %3243 = vmatpush1.msra.mxu0 0.0
  %3244 = vmatprep.subr.mxu0 0.0
  %3245 = vmatpush1.msra.mxu0 0.0
  %3246 = vmatprep.subr.mxu0 0.0
  %3247 = vmatpush1.msra.mxu0 0.0
  %3248 = vmatprep.subr.mxu0 0.0
  %3249 = vmatpush1.msra.mxu0 0.0
  %3250 = vmatprep.subr.mxu0 0.0
  %3251 = vmatpush1.msra.mxu0 0.0
  %3252 = vmatprep.subr.mxu0 0.0
  %3253 = vmatpush1.msra.mxu0 0.0
  %3254 = vmatprep.subr.mxu0 0.0
  %3255 = vmatpush1.msra.mxu0 0.0
  %3256 = vmatprep.subr.mxu0 0.0
  %3257 = vmatpush1.msra.mxu0 0.0
  %3258 = vmatprep.subr.mxu0 0.0
  %3259 = vmatpush1.msra.mxu0 0.0
  %3260 = vmatprep.subr.mxu0 0.0
  %3261 = vmatpush1.msra.mxu0 0.0
  %3262 = vmatprep.subr.mxu0 0.0
  %3263 = vmatpush1.msra.mxu0 0.0
  %3264 = vmatprep.subr.mxu0 0.0
  %3265 = vmatpush1.msra.mxu0 0.0
  %3266 = vmatprep.subr.mxu0 0.0
  %3267 = vmatpush1.msra.mxu0 0.0
  %3268 = vmatprep.subr.mxu0 0.0
  %3269 = vmatpush1.msra.mxu0 0.0
  %3270 = vmatprep.subr.mxu0 0.0
  %3271 = vmatpush1.msra.mxu0 0.0
  %3272 = vmatprep.subr.mxu0 0.0
  %3273 = vmatpush1.msra.mxu0 0.0
  %3274 = vmatprep.subr.mxu0 0.0
  %3275 = vmatpush1.msra.mxu0 0.0
  %3276 = vmatprep.subr.mxu0 0.0
  %3277 = vmatpush1.msra.mxu0 0.0
  %3278 = vmatprep.subr.mxu0 0.0
  %3279 = vmatpush1.msra.mxu0 0.0
  %3280 = vmatprep.mubr.f32.mxu0 0.0
  %3281 = vmatmul.mubr.f32.gmra.mrb[0].mxu0 %v3193
  %v3282 = vpop.f32.mrb[0].mxu0
  %v3283 = vadd.f32 0.0, %v3282
  %v3284 = vpop.f32.mrb[0].mxu0
  %3285 = vmatprep.mubr.f32.mxu0 0.0
  %3286 = vmatmul.mubr.f32.gmra.mrb[0].mxu0 %v3196
  %v3287 = vpop.f32.mrb[0].mxu0
  %v3288 = vadd.f32 0.0, %v3287
  %v3289 = vpop.f32.mrb[0].mxu0
  %3290 = vmatprep.mubr.f32.mxu0 0.0
  %3291 = vmatmul.mubr.f32.gmra.mrb[0].mxu0 %v3199
  %v3292 = vpop.f32.mrb[0].mxu0
  %v3293 = vadd.f32 0.0, %v3292
  %v3294 = vpop.f32.mrb[0].mxu0
  %3295 = vmatprep.mubr.f32.mxu0 0.0
  %3296 = vmatmul.mubr.f32.gmra.mrb[0].mxu0 %v3202
  %v3297 = vpop.f32.mrb[0].mxu0
  %v3298 = vadd.f32 0.0, %v3297
  %v3299 = vpop.f32.mrb[0].mxu0
  %3300 = vmatprep.mubr.f32.mxu0 0.0
  %3301 = vmatmul.mubr.f32.gmra.mrb[0].mxu0 %v3205
  %v3302 = vpop.f32.mrb[0].mxu0
  %v3303 = vadd.f32 0.0, %v3302
  %v3304 = vpop.f32.mrb[0].mxu0
  %3305 = vmatprep.mubr.f32.mxu0 0.0
  %3306 = vmatmul.mubr.f32.gmra.mrb[0].mxu0 %v3208
  %v3307 = vpop.f32.mrb[0].mxu0
  %v3308 = vadd.f32 0.0, %v3307
  %v3309 = vpop.f32.mrb[0].mxu0
  %3310 = vmatprep.mubr.f32.mxu0 0.0
  %3311 = vmatmul.mubr.f32.gmra.mrb[0].mxu0 %v3211
  %v3312 = vpop.f32.mrb[0].mxu0
  %v3313 = vadd.f32 0.0, %v3312
  %v3314 = vpop.f32.mrb[0].mxu0
  %3315 = vmatprep.mubr.f32.mxu0 0.0
  %3316 = vmatmul.mubr.f32.gmra.mrb[0].mxu0 %v3214
  %v3317 = vpop.f32.mrb[0].mxu0
  %v3318 = vadd.f32 0.0, %v3317
  %v3319 = vpop.f32.mrb[0].mxu0
  %3320 = vdwg.mxu0
  %v3321 = vld [vmem:[%s29 + $0x40] sm:$0xff]
  %v3322 = vld [vmem:[%s29 + $0x48] sm:$0xff]
  %v3323 = vld [vmem:[%s29 + $0x50] sm:$0xff]
  %v3324 = vld [vmem:[%s29 + $0x58] sm:$0xff]
  %v3325 = vld [vmem:[%s29 + $0x60] sm:$0xff]
  %v3326 = vld [vmem:[%s29 + $0x68] sm:$0xff]
  %v3327 = vld [vmem:[%s29 + $0x70] sm:$0xff]
  %v3328 = vld [vmem:[%s29 + $0x78] sm:$0xff]
  %v3330 = vsel %vm2634, %v3283, 0
  %v3333 = vsel %vm2634, %v3288, 0
  %v3336 = vsel %vm2634, %v3293, 0
  %v3339 = vsel %vm2634, %v3298, 0
  %v3342 = vsel %vm2634, %v3303, 0
  %v3345 = vsel %vm2634, %v3308, 0
  %v3348 = vsel %vm2634, %v3313, 0
  %v3351 = vsel %vm2634, %v3318, 0
  %3353 = vmatprep.subr.mxu0 0.0
  %3354 = vmatpush1.msra.mxu0 %v3321
  %3355 = vmatprep.subr.mxu0 0.0
  %3356 = vmatpush1.msra.mxu0 %v3322
  %3357 = vmatprep.subr.mxu0 0.0
  %3358 = vmatpush1.msra.mxu0 %v3323
  %3359 = vmatprep.subr.mxu0 0.0
  %3360 = vmatpush1.msra.mxu0 %v3324
  %3361 = vmatprep.subr.mxu0 0.0
  %3362 = vmatpush1.msra.mxu0 %v3325
  %3363 = vmatprep.subr.mxu0 0.0
  %3364 = vmatpush1.msra.mxu0 %v3326
  %3365 = vmatprep.subr.mxu0 0.0
  %3366 = vmatpush1.msra.mxu0 %v3327
  %3367 = vmatprep.subr.mxu0 0.0
  %3368 = vmatpush1.msra.mxu0 %v3328
  %3369 = vmatprep.subr.mxu0 0.0
  %3370 = vmatpush1.msra.mxu0 0.0
  %3371 = vmatprep.subr.mxu0 0.0
  %3372 = vmatpush1.msra.mxu0 0.0
  %3373 = vmatprep.subr.mxu0 0.0
  %3374 = vmatpush1.msra.mxu0 0.0
  %3375 = vmatprep.subr.mxu0 0.0
  %3376 = vmatpush1.msra.mxu0 0.0
  %3377 = vmatprep.subr.mxu0 0.0
  %3378 = vmatpush1.msra.mxu0 0.0
  %3379 = vmatprep.subr.mxu0 0.0
  %3380 = vmatpush1.msra.mxu0 0.0
  %3381 = vmatprep.subr.mxu0 0.0
  %3382 = vmatpush1.msra.mxu0 0.0
  %3383 = vmatprep.subr.mxu0 0.0
  %3384 = vmatpush1.msra.mxu0 0.0
  %3385 = vmatprep.subr.mxu0 0.0
  %3386 = vmatpush1.msra.mxu0 0.0
  %3387 = vmatprep.subr.mxu0 0.0
  %3388 = vmatpush1.msra.mxu0 0.0
  %3389 = vmatprep.subr.mxu0 0.0
  %3390 = vmatpush1.msra.mxu0 0.0
  %3391 = vmatprep.subr.mxu0 0.0
  %3392 = vmatpush1.msra.mxu0 0.0
  %3393 = vmatprep.subr.mxu0 0.0
  %3394 = vmatpush1.msra.mxu0 0.0
  %3395 = vmatprep.subr.mxu0 0.0
  %3396 = vmatpush1.msra.mxu0 0.0
  %3397 = vmatprep.subr.mxu0 0.0
  %3398 = vmatpush1.msra.mxu0 0.0
  %3399 = vmatprep.subr.mxu0 0.0
  %3400 = vmatpush1.msra.mxu0 0.0
  %3401 = vmatprep.subr.mxu0 0.0
  %3402 = vmatpush1.msra.mxu0 0.0
  %3403 = vmatprep.subr.mxu0 0.0
  %3404 = vmatpush1.msra.mxu0 0.0
  %3405 = vmatprep.subr.mxu0 0.0
  %3406 = vmatpush1.msra.mxu0 0.0
  %3407 = vmatprep.subr.mxu0 0.0
  %3408 = vmatpush1.msra.mxu0 0.0
  %3409 = vmatprep.subr.mxu0 0.0
  %3410 = vmatpush1.msra.mxu0 0.0
  %3411 = vmatprep.subr.mxu0 0.0
  %3412 = vmatpush1.msra.mxu0 0.0
  %3413 = vmatprep.subr.mxu0 0.0
  %3414 = vmatpush1.msra.mxu0 0.0
  %3415 = vmatprep.subr.mxu0 0.0
  %3416 = vmatpush1.msra.mxu0 0.0
  %3417 = vmatprep.mubr.f32.mxu0 0.0
  %3418 = vmatmul.mubr.f32.gmra.mrb[0].mxu0 %v3330
  %v3419 = vpop.f32.mrb[0].mxu0
  %v3420 = vadd.f32 0.0, %v3419
  %v3421 = vpop.f32.mrb[0].mxu0
  %3422 = vmatprep.mubr.f32.mxu0 0.0
  %3423 = vmatmul.mubr.f32.gmra.mrb[0].mxu0 %v3333
  %v3424 = vpop.f32.mrb[0].mxu0
  %v3425 = vadd.f32 0.0, %v3424
  %v3426 = vpop.f32.mrb[0].mxu0
  %3427 = vmatprep.mubr.f32.mxu0 0.0
  %3428 = vmatmul.mubr.f32.gmra.mrb[0].mxu0 %v3336
  %v3429 = vpop.f32.mrb[0].mxu0
  %v3430 = vadd.f32 0.0, %v3429
  %v3431 = vpop.f32.mrb[0].mxu0
  %3432 = vmatprep.mubr.f32.mxu0 0.0
  %3433 = vmatmul.mubr.f32.gmra.mrb[0].mxu0 %v3339
  %v3434 = vpop.f32.mrb[0].mxu0
  %v3435 = vadd.f32 0.0, %v3434
  %v3436 = vpop.f32.mrb[0].mxu0
  %3437 = vmatprep.mubr.f32.mxu0 0.0
  %3438 = vmatmul.mubr.f32.gmra.mrb[0].mxu0 %v3342
  %v3439 = vpop.f32.mrb[0].mxu0
  %v3440 = vadd.f32 0.0, %v3439
  %v3441 = vpop.f32.mrb[0].mxu0
  %3442 = vmatprep.mubr.f32.mxu0 0.0
  %3443 = vmatmul.mubr.f32.gmra.mrb[0].mxu0 %v3345
  %v3444 = vpop.f32.mrb[0].mxu0
  %v3445 = vadd.f32 0.0, %v3444
  %v3446 = vpop.f32.mrb[0].mxu0
  %3447 = vmatprep.mubr.f32.mxu0 0.0
  %3448 = vmatmul.mubr.f32.gmra.mrb[0].mxu0 %v3348
  %v3449 = vpop.f32.mrb[0].mxu0
  %v3450 = vadd.f32 0.0, %v3449
  %v3451 = vpop.f32.mrb[0].mxu0
  %3452 = vmatprep.mubr.f32.mxu0 0.0
  %3453 = vmatmul.mubr.f32.gmra.mrb[0].mxu0 %v3351
  %v3454 = vpop.f32.mrb[0].mxu0
  %v3455 = vadd.f32 0.0, %v3454
  %v3456 = vpop.f32.mrb[0].mxu0
  %3457 = vdwg.mxu0
  %v3459 = vsel %vm2634, %v3138, 0
  %v3462 = vsel %vm2634, %v3143, 0
  %v3465 = vsel %vm2634, %v3148, 0
  %v3468 = vsel %vm2634, %v3153, 0
  %v3471 = vsel %vm2634, %v3158, 0
  %v3474 = vsel %vm2634, %v3163, 0
  %v3477 = vsel %vm2634, %v3168, 0
  %v3480 = vsel %vm2634, %v3173, 0
  %3482 = vmatprep.subr.mxu0 0.0
  %3483 = vmatpush1.msra.mxu0 %v3176
  %3484 = vmatprep.subr.mxu0 0.0
  %3485 = vmatpush1.msra.mxu0 %v3177
  %3486 = vmatprep.subr.mxu0 0.0
  %3487 = vmatpush1.msra.mxu0 %v3178
  %3488 = vmatprep.subr.mxu0 0.0
  %3489 = vmatpush1.msra.mxu0 %v3179
  %3490 = vmatprep.subr.mxu0 0.0
  %3491 = vmatpush1.msra.mxu0 %v3180
  %3492 = vmatprep.subr.mxu0 0.0
  %3493 = vmatpush1.msra.mxu0 %v3181
  %3494 = vmatprep.subr.mxu0 0.0
  %3495 = vmatpush1.msra.mxu0 %v3182
  %3496 = vmatprep.subr.mxu0 0.0
  %3497 = vmatpush1.msra.mxu0 %v3183
  %3498 = vmatprep.subr.mxu0 0.0
  %3499 = vmatpush1.msra.mxu0 0.0
  %3500 = vmatprep.subr.mxu0 0.0
  %3501 = vmatpush1.msra.mxu0 0.0
  %3502 = vmatprep.subr.mxu0 0.0
  %3503 = vmatpush1.msra.mxu0 0.0
  %3504 = vmatprep.subr.mxu0 0.0
  %3505 = vmatpush1.msra.mxu0 0.0
  %3506 = vmatprep.subr.mxu0 0.0
  %3507 = vmatpush1.msra.mxu0 0.0
  %3508 = vmatprep.subr.mxu0 0.0
  %3509 = vmatpush1.msra.mxu0 0.0
  %3510 = vmatprep.subr.mxu0 0.0
  %3511 = vmatpush1.msra.mxu0 0.0
  %3512 = vmatprep.subr.mxu0 0.0
  %3513 = vmatpush1.msra.mxu0 0.0
  %3514 = vmatprep.subr.mxu0 0.0
  %3515 = vmatpush1.msra.mxu0 0.0
  %3516 = vmatprep.subr.mxu0 0.0
  %3517 = vmatpush1.msra.mxu0 0.0
  %3518 = vmatprep.subr.mxu0 0.0
  %3519 = vmatpush1.msra.mxu0 0.0
  %3520 = vmatprep.subr.mxu0 0.0
  %3521 = vmatpush1.msra.mxu0 0.0
  %3522 = vmatprep.subr.mxu0 0.0
  %3523 = vmatpush1.msra.mxu0 0.0
  %3524 = vmatprep.subr.mxu0 0.0
  %3525 = vmatpush1.msra.mxu0 0.0
  %3526 = vmatprep.subr.mxu0 0.0
  %3527 = vmatpush1.msra.mxu0 0.0
  %3528 = vmatprep.subr.mxu0 0.0
  %3529 = vmatpush1.msra.mxu0 0.0
  %3530 = vmatprep.subr.mxu0 0.0
  %3531 = vmatpush1.msra.mxu0 0.0
  %3532 = vmatprep.subr.mxu0 0.0
  %3533 = vmatpush1.msra.mxu0 0.0
  %3534 = vmatprep.subr.mxu0 0.0
  %3535 = vmatpush1.msra.mxu0 0.0
  %3536 = vmatprep.subr.mxu0 0.0
  %3537 = vmatpush1.msra.mxu0 0.0
  %3538 = vmatprep.subr.mxu0 0.0
  %3539 = vmatpush1.msra.mxu0 0.0
  %3540 = vmatprep.subr.mxu0 0.0
  %3541 = vmatpush1.msra.mxu0 0.0
  %3542 = vmatprep.subr.mxu0 0.0
  %3543 = vmatpush1.msra.mxu0 0.0
  %3544 = vmatprep.subr.mxu0 0.0
  %3545 = vmatpush1.msra.mxu0 0.0
  %3546 = vmatprep.mubr.f32.mxu0 0.0
  %3547 = vmatmul.mubr.f32.gmra.mrb[0].mxu0 %v3459
  %v3548 = vpop.f32.mrb[0].mxu0
  %v3549 = vadd.f32 %v3420, %v3548
  %v3550 = vpop.f32.mrb[0].mxu0
  %3551 = vmatprep.mubr.f32.mxu0 0.0
  %3552 = vmatmul.mubr.f32.gmra.mrb[0].mxu0 %v3462
  %v3553 = vpop.f32.mrb[0].mxu0
  %v3554 = vadd.f32 %v3425, %v3553
  %v3555 = vpop.f32.mrb[0].mxu0
  %3556 = vmatprep.mubr.f32.mxu0 0.0
  %3557 = vmatmul.mubr.f32.gmra.mrb[0].mxu0 %v3465
  %v3558 = vpop.f32.mrb[0].mxu0
  %v3559 = vadd.f32 %v3430, %v3558
  %v3560 = vpop.f32.mrb[0].mxu0
  %3561 = vmatprep.mubr.f32.mxu0 0.0
  %3562 = vmatmul.mubr.f32.gmra.mrb[0].mxu0 %v3468
  %v3563 = vpop.f32.mrb[0].mxu0
  %v3564 = vadd.f32 %v3435, %v3563
  %v3565 = vpop.f32.mrb[0].mxu0
  %3566 = vmatprep.mubr.f32.mxu0 0.0
  %3567 = vmatmul.mubr.f32.gmra.mrb[0].mxu0 %v3471
  %v3568 = vpop.f32.mrb[0].mxu0
  %v3569 = vadd.f32 %v3440, %v3568
  %v3570 = vpop.f32.mrb[0].mxu0
  %3571 = vmatprep.mubr.f32.mxu0 0.0
  %3572 = vmatmul.mubr.f32.gmra.mrb[0].mxu0 %v3474
  %v3573 = vpop.f32.mrb[0].mxu0
  %v3574 = vadd.f32 %v3445, %v3573
  %v3575 = vpop.f32.mrb[0].mxu0
  %3576 = vmatprep.mubr.f32.mxu0 0.0
  %3577 = vmatmul.mubr.f32.gmra.mrb[0].mxu0 %v3477
  %v3578 = vpop.f32.mrb[0].mxu0
  %v3579 = vadd.f32 %v3450, %v3578
  %v3580 = vpop.f32.mrb[0].mxu0
  %3581 = vmatprep.mubr.f32.mxu0 0.0
  %3582 = vmatmul.mubr.f32.gmra.mrb[0].mxu0 %v3480
  %v3583 = vpop.f32.mrb[0].mxu0
  %v3584 = vadd.f32 %v3455, %v3583
  %v3585 = vpop.f32.mrb[0].mxu0
  %3586 = vdwg.mxu0
  %v3587 = vld [vmem:[%s27 + $0x80] sm:$0xff]
  %v3588 = vld [vmem:[%s27 + $0x88] sm:$0xff]
  %v3589 = vld [vmem:[%s27 + $0x90] sm:$0xff]
  %v3590 = vld [vmem:[%s27 + $0x98] sm:$0xff]
  %v3591 = vld [vmem:[%s27 + $0xa0] sm:$0xff]
  %v3592 = vld [vmem:[%s27 + $0xa8] sm:$0xff]
  %v3593 = vld [vmem:[%s27 + $0xb0] sm:$0xff]
  %v3594 = vld [vmem:[%s27 + $0xb8] sm:$0xff]
  %v3596 = vsel %vm2634, %v3587, 0
  %v3599 = vsel %vm2634, %v3588, 0
  %v3602 = vsel %vm2634, %v3589, 0
  %v3605 = vsel %vm2634, %v3590, 0
  %v3608 = vsel %vm2634, %v3591, 0
  %v3611 = vsel %vm2634, %v3592, 0
  %v3614 = vsel %vm2634, %v3593, 0
  %v3617 = vsel %vm2634, %v3594, 0
  %3619 = vmatprep.subr.mxu0 0.0
  %3620 = vmatpush1.msra.mxu0 %v3031
  %3621 = vmatprep.subr.mxu0 0.0
  %3622 = vmatpush1.msra.mxu0 %v3032
  %3623 = vmatprep.subr.mxu0 0.0
  %3624 = vmatpush1.msra.mxu0 %v3033
  %3625 = vmatprep.subr.mxu0 0.0
  %3626 = vmatpush1.msra.mxu0 %v3034
  %3627 = vmatprep.subr.mxu0 0.0
  %3628 = vmatpush1.msra.mxu0 %v3035
  %3629 = vmatprep.subr.mxu0 0.0
  %3630 = vmatpush1.msra.mxu0 %v3036
  %3631 = vmatprep.subr.mxu0 0.0
  %3632 = vmatpush1.msra.mxu0 %v3037
  %3633 = vmatprep.subr.mxu0 0.0
  %3634 = vmatpush1.msra.mxu0 %v3038
  %3635 = vmatprep.subr.mxu0 0.0
  %3636 = vmatpush1.msra.mxu0 0.0
  %3637 = vmatprep.subr.mxu0 0.0
  %3638 = vmatpush1.msra.mxu0 0.0
  %3639 = vmatprep.subr.mxu0 0.0
  %3640 = vmatpush1.msra.mxu0 0.0
  %3641 = vmatprep.subr.mxu0 0.0
  %3642 = vmatpush1.msra.mxu0 0.0
  %3643 = vmatprep.subr.mxu0 0.0
  %3644 = vmatpush1.msra.mxu0 0.0
  %3645 = vmatprep.subr.mxu0 0.0
  %3646 = vmatpush1.msra.mxu0 0.0
  %3647 = vmatprep.subr.mxu0 0.0
  %3648 = vmatpush1.msra.mxu0 0.0
  %3649 = vmatprep.subr.mxu0 0.0
  %3650 = vmatpush1.msra.mxu0 0.0
  %3651 = vmatprep.subr.mxu0 0.0
  %3652 = vmatpush1.msra.mxu0 0.0
  %3653 = vmatprep.subr.mxu0 0.0
  %3654 = vmatpush1.msra.mxu0 0.0
  %3655 = vmatprep.subr.mxu0 0.0
  %3656 = vmatpush1.msra.mxu0 0.0
  %3657 = vmatprep.subr.mxu0 0.0
  %3658 = vmatpush1.msra.mxu0 0.0
  %3659 = vmatprep.subr.mxu0 0.0
  %3660 = vmatpush1.msra.mxu0 0.0
  %3661 = vmatprep.subr.mxu0 0.0
  %3662 = vmatpush1.msra.mxu0 0.0
  %3663 = vmatprep.subr.mxu0 0.0
  %3664 = vmatpush1.msra.mxu0 0.0
  %3665 = vmatprep.subr.mxu0 0.0
  %3666 = vmatpush1.msra.mxu0 0.0
  %3667 = vmatprep.subr.mxu0 0.0
  %3668 = vmatpush1.msra.mxu0 0.0
  %3669 = vmatprep.subr.mxu0 0.0
  %3670 = vmatpush1.msra.mxu0 0.0
  %3671 = vmatprep.subr.mxu0 0.0
  %3672 = vmatpush1.msra.mxu0 0.0
  %3673 = vmatprep.subr.mxu0 0.0
  %3674 = vmatpush1.msra.mxu0 0.0
  %3675 = vmatprep.subr.mxu0 0.0
  %3676 = vmatpush1.msra.mxu0 0.0
  %3677 = vmatprep.subr.mxu0 0.0
  %3678 = vmatpush1.msra.mxu0 0.0
  %3679 = vmatprep.subr.mxu0 0.0
  %3680 = vmatpush1.msra.mxu0 0.0
  %3681 = vmatprep.subr.mxu0 0.0
  %3682 = vmatpush1.msra.mxu0 0.0
  %3683 = vmatprep.mubr.f32.mxu0 0.0
  %3684 = vmatmul.mubr.f32.gmra.mrb[0].mxu0 %v3596
  %v3685 = vpop.f32.mrb[0].mxu0
  %v3686 = vadd.f32 0.0, %v3685
  %v3687 = vpop.f32.mrb[0].mxu0
  %3688 = vmatprep.mubr.f32.mxu0 0.0
  %3689 = vmatmul.mubr.f32.gmra.mrb[0].mxu0 %v3599
  %v3690 = vpop.f32.mrb[0].mxu0
  %v3691 = vadd.f32 0.0, %v3690
  %v3692 = vpop.f32.mrb[0].mxu0
  %3693 = vmatprep.mubr.f32.mxu0 0.0
  %3694 = vmatmul.mubr.f32.gmra.mrb[0].mxu0 %v3602
  %v3695 = vpop.f32.mrb[0].mxu0
  %v3696 = vadd.f32 0.0, %v3695
  %v3697 = vpop.f32.mrb[0].mxu0
  %3698 = vmatprep.mubr.f32.mxu0 0.0
  %3699 = vmatmul.mubr.f32.gmra.mrb[0].mxu0 %v3605
  %v3700 = vpop.f32.mrb[0].mxu0
  %v3701 = vadd.f32 0.0, %v3700
  %v3702 = vpop.f32.mrb[0].mxu0
  %3703 = vmatprep.mubr.f32.mxu0 0.0
  %3704 = vmatmul.mubr.f32.gmra.mrb[0].mxu0 %v3608
  %v3705 = vpop.f32.mrb[0].mxu0
  %v3706 = vadd.f32 0.0, %v3705
  %v3707 = vpop.f32.mrb[0].mxu0
  %3708 = vmatprep.mubr.f32.mxu0 0.0
  %3709 = vmatmul.mubr.f32.gmra.mrb[0].mxu0 %v3611
  %v3710 = vpop.f32.mrb[0].mxu0
  %v3711 = vadd.f32 0.0, %v3710
  %v3712 = vpop.f32.mrb[0].mxu0
  %3713 = vmatprep.mubr.f32.mxu0 0.0
  %3714 = vmatmul.mubr.f32.gmra.mrb[0].mxu0 %v3614
  %v3715 = vpop.f32.mrb[0].mxu0
  %v3716 = vadd.f32 0.0, %v3715
  %v3717 = vpop.f32.mrb[0].mxu0
  %3718 = vmatprep.mubr.f32.mxu0 0.0
  %3719 = vmatmul.mubr.f32.gmra.mrb[0].mxu0 %v3617
  %v3720 = vpop.f32.mrb[0].mxu0
  %v3721 = vadd.f32 0.0, %v3720
  %v3722 = vpop.f32.mrb[0].mxu0
  %3723 = vdwg.mxu0
  %v3724 = vld [vmem:[%s29 + $0x80] sm:$0xff]
  %v3725 = vld [vmem:[%s29 + $0x88] sm:$0xff]
  %v3726 = vld [vmem:[%s29 + $0x90] sm:$0xff]
  %v3727 = vld [vmem:[%s29 + $0x98] sm:$0xff]
  %v3728 = vld [vmem:[%s29 + $0xa0] sm:$0xff]
  %v3729 = vld [vmem:[%s29 + $0xa8] sm:$0xff]
  %v3730 = vld [vmem:[%s29 + $0xb0] sm:$0xff]
  %v3731 = vld [vmem:[%s29 + $0xb8] sm:$0xff]
  %v3733 = vsel %vm2634, %v3686, 0
  %v3736 = vsel %vm2634, %v3691, 0
  %v3739 = vsel %vm2634, %v3696, 0
  %v3742 = vsel %vm2634, %v3701, 0
  %v3745 = vsel %vm2634, %v3706, 0
  %v3748 = vsel %vm2634, %v3711, 0
  %v3751 = vsel %vm2634, %v3716, 0
  %v3754 = vsel %vm2634, %v3721, 0
  %3756 = vmatprep.subr.mxu0 0.0
  %3757 = vmatpush1.msra.mxu0 %v3724
  %3758 = vmatprep.subr.mxu0 0.0
  %3759 = vmatpush1.msra.mxu0 %v3725
  %3760 = vmatprep.subr.mxu0 0.0
  %3761 = vmatpush1.msra.mxu0 %v3726
  %3762 = vmatprep.subr.mxu0 0.0
  %3763 = vmatpush1.msra.mxu0 %v3727
  %3764 = vmatprep.subr.mxu0 0.0
  %3765 = vmatpush1.msra.mxu0 %v3728
  %3766 = vmatprep.subr.mxu0 0.0
  %3767 = vmatpush1.msra.mxu0 %v3729
  %3768 = vmatprep.subr.mxu0 0.0
  %3769 = vmatpush1.msra.mxu0 %v3730
  %3770 = vmatprep.subr.mxu0 0.0
  %3771 = vmatpush1.msra.mxu0 %v3731
  %3772 = vmatprep.subr.mxu0 0.0
  %3773 = vmatpush1.msra.mxu0 0.0
  %3774 = vmatprep.subr.mxu0 0.0
  %3775 = vmatpush1.msra.mxu0 0.0
  %3776 = vmatprep.subr.mxu0 0.0
  %3777 = vmatpush1.msra.mxu0 0.0
  %3778 = vmatprep.subr.mxu0 0.0
  %3779 = vmatpush1.msra.mxu0 0.0
  %3780 = vmatprep.subr.mxu0 0.0
  %3781 = vmatpush1.msra.mxu0 0.0
  %3782 = vmatprep.subr.mxu0 0.0
  %3783 = vmatpush1.msra.mxu0 0.0
  %3784 = vmatprep.subr.mxu0 0.0
  %3785 = vmatpush1.msra.mxu0 0.0
  %3786 = vmatprep.subr.mxu0 0.0
  %3787 = vmatpush1.msra.mxu0 0.0
  %3788 = vmatprep.subr.mxu0 0.0
  %3789 = vmatpush1.msra.mxu0 0.0
  %3790 = vmatprep.subr.mxu0 0.0
  %3791 = vmatpush1.msra.mxu0 0.0
  %3792 = vmatprep.subr.mxu0 0.0
  %3793 = vmatpush1.msra.mxu0 0.0
  %3794 = vmatprep.subr.mxu0 0.0
  %3795 = vmatpush1.msra.mxu0 0.0
  %3796 = vmatprep.subr.mxu0 0.0
  %3797 = vmatpush1.msra.mxu0 0.0
  %3798 = vmatprep.subr.mxu0 0.0
  %3799 = vmatpush1.msra.mxu0 0.0
  %3800 = vmatprep.subr.mxu0 0.0
  %3801 = vmatpush1.msra.mxu0 0.0
  %3802 = vmatprep.subr.mxu0 0.0
  %3803 = vmatpush1.msra.mxu0 0.0
  %3804 = vmatprep.subr.mxu0 0.0
  %3805 = vmatpush1.msra.mxu0 0.0
  %3806 = vmatprep.subr.mxu0 0.0
  %3807 = vmatpush1.msra.mxu0 0.0
  %3808 = vmatprep.subr.mxu0 0.0
  %3809 = vmatpush1.msra.mxu0 0.0
  %3810 = vmatprep.subr.mxu0 0.0
  %3811 = vmatpush1.msra.mxu0 0.0
  %3812 = vmatprep.subr.mxu0 0.0
  %3813 = vmatpush1.msra.mxu0 0.0
  %3814 = vmatprep.subr.mxu0 0.0
  %3815 = vmatpush1.msra.mxu0 0.0
  %3816 = vmatprep.subr.mxu0 0.0
  %3817 = vmatpush1.msra.mxu0 0.0
  %3818 = vmatprep.subr.mxu0 0.0
  %3819 = vmatpush1.msra.mxu0 0.0
  %3820 = vmatprep.mubr.f32.mxu0 0.0
  %3821 = vmatmul.mubr.f32.gmra.mrb[0].mxu0 %v3733
  %v3822 = vpop.f32.mrb[0].mxu0
  %v3823 = vadd.f32 0.0, %v3822
  %v3824 = vpop.f32.mrb[0].mxu0
  %3825 = vmatprep.mubr.f32.mxu0 0.0
  %3826 = vmatmul.mubr.f32.gmra.mrb[0].mxu0 %v3736
  %v3827 = vpop.f32.mrb[0].mxu0
  %v3828 = vadd.f32 0.0, %v3827
  %v3829 = vpop.f32.mrb[0].mxu0
  %3830 = vmatprep.mubr.f32.mxu0 0.0
  %3831 = vmatmul.mubr.f32.gmra.mrb[0].mxu0 %v3739
  %v3832 = vpop.f32.mrb[0].mxu0
  %v3833 = vadd.f32 0.0, %v3832
  %v3834 = vpop.f32.mrb[0].mxu0
  %3835 = vmatprep.mubr.f32.mxu0 0.0
  %3836 = vmatmul.mubr.f32.gmra.mrb[0].mxu0 %v3742
  %v3837 = vpop.f32.mrb[0].mxu0
  %v3838 = vadd.f32 0.0, %v3837
  %v3839 = vpop.f32.mrb[0].mxu0
  %3840 = vmatprep.mubr.f32.mxu0 0.0
  %3841 = vmatmul.mubr.f32.gmra.mrb[0].mxu0 %v3745
  %v3842 = vpop.f32.mrb[0].mxu0
  %v3843 = vadd.f32 0.0, %v3842
  %v3844 = vpop.f32.mrb[0].mxu0
  %3845 = vmatprep.mubr.f32.mxu0 0.0
  %3846 = vmatmul.mubr.f32.gmra.mrb[0].mxu0 %v3748
  %v3847 = vpop.f32.mrb[0].mxu0
  %v3848 = vadd.f32 0.0, %v3847
  %v3849 = vpop.f32.mrb[0].mxu0
  %3850 = vmatprep.mubr.f32.mxu0 0.0
  %3851 = vmatmul.mubr.f32.gmra.mrb[0].mxu0 %v3751
  %v3852 = vpop.f32.mrb[0].mxu0
  %v3853 = vadd.f32 0.0, %v3852
  %v3854 = vpop.f32.mrb[0].mxu0
  %3855 = vmatprep.mubr.f32.mxu0 0.0
  %3856 = vmatmul.mubr.f32.gmra.mrb[0].mxu0 %v3754
  %v3857 = vpop.f32.mrb[0].mxu0
  %v3858 = vadd.f32 0.0, %v3857
  %v3859 = vpop.f32.mrb[0].mxu0
  %3860 = vdwg.mxu0
  %v3861 = vadd.f32 %v3549, %v3823
  %v3862 = vadd.f32 %v3554, %v3828
  %v3863 = vadd.f32 %v3559, %v3833
  %v3864 = vadd.f32 %v3564, %v3838
  %v3865 = vadd.f32 %v3569, %v3843
  %v3866 = vadd.f32 %v3574, %v3848
  %v3867 = vadd.f32 %v3579, %v3853
  %v3868 = vadd.f32 %v3584, %v3858
  %v3869 = vadd.f32 %v3861, %v3862
  %v3870 = vadd.f32 %v3869, %v3863
  %v3871 = vadd.f32 %v3870, %v3864
  %v3872 = vadd.f32 %v3871, %v3865
  %v3873 = vadd.f32 %v3872, %v3866
  %v3874 = vadd.f32 %v3873, %v3867
  %v3875 = vadd.f32 %v3874, %v3868
  %v3876 = vrot.slane %v3875, 4
  %v3877 = vadd.f32 %v3875, %v3876
  %v3878 = vrot.slane %v3877, 2
  %v3879 = vadd.f32 %v3877, %v3878
  %v3880 = vrot.slane %v3879, 1
  %v3881 = vadd.f32 %v3879, %v3880
  %v3882 = vmul.f32 %v3861, %v3861
  %v3883 = vmul.f32 %v3862, %v3862
  %v3884 = vmul.f32 %v3863, %v3863
  %v3885 = vmul.f32 %v3864, %v3864
  %v3886 = vmul.f32 %v3865, %v3865
  %v3887 = vmul.f32 %v3866, %v3866
  %v3888 = vmul.f32 %v3867, %v3867
  %v3889 = vmul.f32 %v3868, %v3868
  %v3890 = vadd.f32 %v3882, %v3883
  %v3891 = vadd.f32 %v3890, %v3884
  %v3892 = vadd.f32 %v3891, %v3885
  %v3893 = vadd.f32 %v3892, %v3886
  %v3894 = vadd.f32 %v3893, %v3887
  %v3895 = vadd.f32 %v3894, %v3888
  %v3896 = vadd.f32 %v3895, %v3889
  %v3897 = vrot.slane %v3896, 4
  %v3898 = vadd.f32 %v3896, %v3897
  %v3899 = vrot.slane %v3898, 2
  %v3900 = vadd.f32 %v3898, %v3899
  %v3901 = vrot.slane %v3900, 1
  %v3902 = vadd.f32 %v3900, %v3901
  %v3903 = vld [vmem:[%s31] sm:$0xff]
  %v3904 = vld [vmem:[%s31 + $0x8] sm:$0xff]
  %v3905 = vld [vmem:[%s31 + $0x10] sm:$0xff]
  %v3906 = vld [vmem:[%s31 + $0x18] sm:$0xff]
  %v3907 = vld [vmem:[%s31 + $0x20] sm:$0xff]
  %v3908 = vld [vmem:[%s31 + $0x28] sm:$0xff]
  %v3909 = vld [vmem:[%s31 + $0x30] sm:$0xff]
  %v3910 = vld [vmem:[%s31 + $0x38] sm:$0xff]
  %v3911 = vld [vmem:[%s31 + $0x40] sm:$0xff]
  %v3912 = vld [vmem:[%s31 + $0x48] sm:$0xff]
  %v3913 = vld [vmem:[%s31 + $0x50] sm:$0xff]
  %v3914 = vld [vmem:[%s31 + $0x58] sm:$0xff]
  %v3915 = vld [vmem:[%s31 + $0x60] sm:$0xff]
  %v3916 = vld [vmem:[%s31 + $0x68] sm:$0xff]
  %v3917 = vld [vmem:[%s31 + $0x70] sm:$0xff]
  %v3918 = vld [vmem:[%s31 + $0x78] sm:$0xff]
  %3919 = vmatprep.subr.mxu0 0.0
  %3920 = vmatpush1.msra.mxu0 %v3903
  %3921 = vmatprep.subr.mxu0 0.0
  %3922 = vmatpush1.msra.mxu0 %v3904
  %3923 = vmatprep.subr.mxu0 0.0
  %3924 = vmatpush1.msra.mxu0 %v3905
  %3925 = vmatprep.subr.mxu0 0.0
  %3926 = vmatpush1.msra.mxu0 %v3906
  %3927 = vmatprep.subr.mxu0 0.0
  %3928 = vmatpush1.msra.mxu0 %v3907
  %3929 = vmatprep.subr.mxu0 0.0
  %3930 = vmatpush1.msra.mxu0 %v3908
  %3931 = vmatprep.subr.mxu0 0.0
  %3932 = vmatpush1.msra.mxu0 %v3909
  %3933 = vmatprep.subr.mxu0 0.0
  %3934 = vmatpush1.msra.mxu0 %v3910
  %3935 = vmatprep.subr.mxu0 0.0
  %3936 = vmatpush1.msra.mxu0 %v3911
  %3937 = vmatprep.subr.mxu0 0.0
  %3938 = vmatpush1.msra.mxu0 %v3912
  %3939 = vmatprep.subr.mxu0 0.0
  %3940 = vmatpush1.msra.mxu0 %v3913
  %3941 = vmatprep.subr.mxu0 0.0
  %3942 = vmatpush1.msra.mxu0 %v3914
  %3943 = vmatprep.subr.mxu0 0.0
  %3944 = vmatpush1.msra.mxu0 %v3915
  %3945 = vmatprep.subr.mxu0 0.0
  %3946 = vmatpush1.msra.mxu0 %v3916
  %3947 = vmatprep.subr.mxu0 0.0
  %3948 = vmatpush1.msra.mxu0 %v3917
  %3949 = vmatprep.subr.mxu0 0.0
  %3950 = vmatpush1.msra.mxu0 %v3918
  %3951 = vmatprep.subr.mxu0 0.0
  %3952 = vmatpush1.msra.mxu0 0.0
  %3953 = vmatprep.subr.mxu0 0.0
  %3954 = vmatpush1.msra.mxu0 0.0
  %3955 = vmatprep.subr.mxu0 0.0
  %3956 = vmatpush1.msra.mxu0 0.0
  %3957 = vmatprep.subr.mxu0 0.0
  %3958 = vmatpush1.msra.mxu0 0.0
  %3959 = vmatprep.subr.mxu0 0.0
  %3960 = vmatpush1.msra.mxu0 0.0
  %3961 = vmatprep.subr.mxu0 0.0
  %3962 = vmatpush1.msra.mxu0 0.0
  %3963 = vmatprep.subr.mxu0 0.0
  %3964 = vmatpush1.msra.mxu0 0.0
  %3965 = vmatprep.subr.mxu0 0.0
  %3966 = vmatpush1.msra.mxu0 0.0
  %3967 = vmatprep.subr.mxu0 0.0
  %3968 = vmatpush1.msra.mxu0 0.0
  %3969 = vmatprep.subr.mxu0 0.0
  %3970 = vmatpush1.msra.mxu0 0.0
  %3971 = vmatprep.subr.mxu0 0.0
  %3972 = vmatpush1.msra.mxu0 0.0
  %3973 = vmatprep.subr.mxu0 0.0
  %3974 = vmatpush1.msra.mxu0 0.0
  %3975 = vmatprep.subr.mxu0 0.0
  %3976 = vmatpush1.msra.mxu0 0.0
  %3977 = vmatprep.subr.mxu0 0.0
  %3978 = vmatpush1.msra.mxu0 0.0
  %3979 = vmatprep.subr.mxu0 0.0
  %3980 = vmatpush1.msra.mxu0 0.0
  %3981 = vmatprep.subr.mxu0 0.0
  %3982 = vmatpush1.msra.mxu0 0.0
  %3983 = vmatprep.mubr.f32.mxu0 0.0
  %3984 = vmatmul.mubr.f32.gmra.mrb[0].mxu0 %v3881
  %v3985 = vpop.f32.mrb[0].mxu0
  %v3986 = vadd.f32 0.0, %v3985
  %v3987 = vpop.f32.mrb[0].mxu0
  %3988 = vdwg.mxu0
  %3989 = vmatprep.subr.mxu0 0.0
  %3990 = vmatpush1.msra.mxu0 %v3903
  %3991 = vmatprep.subr.mxu0 0.0
  %3992 = vmatpush1.msra.mxu0 %v3904
  %3993 = vmatprep.subr.mxu0 0.0
  %3994 = vmatpush1.msra.mxu0 %v3905
  %3995 = vmatprep.subr.mxu0 0.0
  %3996 = vmatpush1.msra.mxu0 %v3906
  %3997 = vmatprep.subr.mxu0 0.0
  %3998 = vmatpush1.msra.mxu0 %v3907
  %3999 = vmatprep.subr.mxu0 0.0
  %4000 = vmatpush1.msra.mxu0 %v3908
  %4001 = vmatprep.subr.mxu0 0.0
  %4002 = vmatpush1.msra.mxu0 %v3909
  %4003 = vmatprep.subr.mxu0 0.0
  %4004 = vmatpush1.msra.mxu0 %v3910
  %4005 = vmatprep.subr.mxu0 0.0
  %4006 = vmatpush1.msra.mxu0 %v3911
  %4007 = vmatprep.subr.mxu0 0.0
  %4008 = vmatpush1.msra.mxu0 %v3912
  %4009 = vmatprep.subr.mxu0 0.0
  %4010 = vmatpush1.msra.mxu0 %v3913
  %4011 = vmatprep.subr.mxu0 0.0
  %4012 = vmatpush1.msra.mxu0 %v3914
  %4013 = vmatprep.subr.mxu0 0.0
  %4014 = vmatpush1.msra.mxu0 %v3915
  %4015 = vmatprep.subr.mxu0 0.0
  %4016 = vmatpush1.msra.mxu0 %v3916
  %4017 = vmatprep.subr.mxu0 0.0
  %4018 = vmatpush1.msra.mxu0 %v3917
  %4019 = vmatprep.subr.mxu0 0.0
  %4020 = vmatpush1.msra.mxu0 %v3918
  %4021 = vmatprep.subr.mxu0 0.0
  %4022 = vmatpush1.msra.mxu0 0.0
  %4023 = vmatprep.subr.mxu0 0.0
  %4024 = vmatpush1.msra.mxu0 0.0
  %4025 = vmatprep.subr.mxu0 0.0
  %4026 = vmatpush1.msra.mxu0 0.0
  %4027 = vmatprep.subr.mxu0 0.0
  %4028 = vmatpush1.msra.mxu0 0.0
  %4029 = vmatprep.subr.mxu0 0.0
  %4030 = vmatpush1.msra.mxu0 0.0
  %4031 = vmatprep.subr.mxu0 0.0
  %4032 = vmatpush1.msra.mxu0 0.0
  %4033 = vmatprep.subr.mxu0 0.0
  %4034 = vmatpush1.msra.mxu0 0.0
  %4035 = vmatprep.subr.mxu0 0.0
  %4036 = vmatpush1.msra.mxu0 0.0
  %4037 = vmatprep.subr.mxu0 0.0
  %4038 = vmatpush1.msra.mxu0 0.0
  %4039 = vmatprep.subr.mxu0 0.0
  %4040 = vmatpush1.msra.mxu0 0.0
  %4041 = vmatprep.subr.mxu0 0.0
  %4042 = vmatpush1.msra.mxu0 0.0
  %4043 = vmatprep.subr.mxu0 0.0
  %4044 = vmatpush1.msra.mxu0 0.0
  %4045 = vmatprep.subr.mxu0 0.0
  %4046 = vmatpush1.msra.mxu0 0.0
  %4047 = vmatprep.subr.mxu0 0.0
  %4048 = vmatpush1.msra.mxu0 0.0
  %4049 = vmatprep.subr.mxu0 0.0
  %4050 = vmatpush1.msra.mxu0 0.0
  %4051 = vmatprep.subr.mxu0 0.0
  %4052 = vmatpush1.msra.mxu0 0.0
  %4053 = vmatprep.mubr.f32.mxu0 0.0
  %4054 = vmatmul.mubr.f32.gmra.mrb[0].mxu0 %v3902
  %v4055 = vpop.f32.mrb[0].mxu0
  %v4056 = vadd.f32 0.0, %v4055
  %v4057 = vpop.f32.mrb[0].mxu0
  %4058 = vdwg.mxu0
  %v4059 = vmul.f32 %v3986, %v2839
  %v4060 = vmul.f32 %v4056, %v2839
  %v4061 = vmul.f32 %v4059, %v4059
  %v4062 = vsub.f32 %v4060, %v4061
  %v4063 = vmax.f32 %v4062, 0.0
  %v4064 = vld [vmem:[%s35] sm:$0x1]
  %v4065 = vadd.f32 %v4063, 1e-05
  %v4066 = vrsqrt.pop %v4065
  %v4067 = vmul.f32 %v4064, %v4066
  %v4068 = vld [vmem:[%s37] sm:$0x1]
  %v4069 = vmul.f32 %v4059, %v4067
  %v4070 = vsub.f32 %v4068, %v4069
  %v4071 = vld [vmem:[%s33] sm:$0xff]
  %v4072 = vld [vmem:[%s33 + $0x8] sm:$0xff]
  %vm4073 = vcmask 130048
  %v4075 = vsel %vm4073, %v4067, 0
  %4077 = vmatprep.subr.mxu0 0.0
  %4078 = vmatpush1.msra.mxu0 %v4071
  %4079 = vmatprep.subr.mxu0 0.0
  %4080 = vmatpush1.msra.mxu0 %v4072
  %4081 = vmatprep.subr.mxu0 0.0
  %4082 = vmatpush1.msra.mxu0 0.0
  %4083 = vmatprep.subr.mxu0 0.0
  %4084 = vmatpush1.msra.mxu0 0.0
  %4085 = vmatprep.subr.mxu0 0.0
  %4086 = vmatpush1.msra.mxu0 0.0
  %4087 = vmatprep.subr.mxu0 0.0
  %4088 = vmatpush1.msra.mxu0 0.0
  %4089 = vmatprep.subr.mxu0 0.0
  %4090 = vmatpush1.msra.mxu0 0.0
  %4091 = vmatprep.subr.mxu0 0.0
  %4092 = vmatpush1.msra.mxu0 0.0
  %4093 = vmatprep.subr.mxu0 0.0
  %4094 = vmatpush1.msra.mxu0 0.0
  %4095 = vmatprep.subr.mxu0 0.0
  %4096 = vmatpush1.msra.mxu0 0.0
  %4097 = vmatprep.subr.mxu0 0.0
  %4098 = vmatpush1.msra.mxu0 0.0
  %4099 = vmatprep.subr.mxu0 0.0
  %4100 = vmatpush1.msra.mxu0 0.0
  %4101 = vmatprep.subr.mxu0 0.0
  %4102 = vmatpush1.msra.mxu0 0.0
  %4103 = vmatprep.subr.mxu0 0.0
  %4104 = vmatpush1.msra.mxu0 0.0
  %4105 = vmatprep.subr.mxu0 0.0
  %4106 = vmatpush1.msra.mxu0 0.0
  %4107 = vmatprep.subr.mxu0 0.0
  %4108 = vmatpush1.msra.mxu0 0.0
  %4109 = vmatprep.subr.mxu0 0.0
  %4110 = vmatpush1.msra.mxu0 0.0
  %4111 = vmatprep.subr.mxu0 0.0
  %4112 = vmatpush1.msra.mxu0 0.0
  %4113 = vmatprep.subr.mxu0 0.0
  %4114 = vmatpush1.msra.mxu0 0.0
  %4115 = vmatprep.subr.mxu0 0.0
  %4116 = vmatpush1.msra.mxu0 0.0
  %4117 = vmatprep.subr.mxu0 0.0
  %4118 = vmatpush1.msra.mxu0 0.0
  %4119 = vmatprep.subr.mxu0 0.0
  %4120 = vmatpush1.msra.mxu0 0.0
  %4121 = vmatprep.subr.mxu0 0.0
  %4122 = vmatpush1.msra.mxu0 0.0
  %4123 = vmatprep.subr.mxu0 0.0
  %4124 = vmatpush1.msra.mxu0 0.0
  %4125 = vmatprep.subr.mxu0 0.0
  %4126 = vmatpush1.msra.mxu0 0.0
  %4127 = vmatprep.subr.mxu0 0.0
  %4128 = vmatpush1.msra.mxu0 0.0
  %4129 = vmatprep.subr.mxu0 0.0
  %4130 = vmatpush1.msra.mxu0 0.0
  %4131 = vmatprep.subr.mxu0 0.0
  %4132 = vmatpush1.msra.mxu0 0.0
  %4133 = vmatprep.subr.mxu0 0.0
  %4134 = vmatpush1.msra.mxu0 0.0
  %4135 = vmatprep.subr.mxu0 0.0
  %4136 = vmatpush1.msra.mxu0 0.0
  %4137 = vmatprep.subr.mxu0 0.0
  %4138 = vmatpush1.msra.mxu0 0.0
  %4139 = vmatprep.subr.mxu0 0.0
  %4140 = vmatpush1.msra.mxu0 0.0
  %4141 = vmatprep.mubr.f32.mxu0 0.0
  %4142 = vmatmul.mubr.f32.gmra.mrb[0].mxu0 %v4075
  %v4143 = vpop.f32.mrb[0].mxu0
  %v4144 = vadd.f32 0.0, %v4143
  %v4145 = vpop.f32.mrb[0].mxu0
  %4146 = vdwg.mxu0
  %v4148 = vsel %vm4073, %v4070, 0
  %4150 = vmatprep.subr.mxu0 0.0
  %4151 = vmatpush1.msra.mxu0 %v4071
  %4152 = vmatprep.subr.mxu0 0.0
  %4153 = vmatpush1.msra.mxu0 %v4072
  %4154 = vmatprep.subr.mxu0 0.0
  %4155 = vmatpush1.msra.mxu0 0.0
  %4156 = vmatprep.subr.mxu0 0.0
  %4157 = vmatpush1.msra.mxu0 0.0
  %4158 = vmatprep.subr.mxu0 0.0
  %4159 = vmatpush1.msra.mxu0 0.0
  %4160 = vmatprep.subr.mxu0 0.0
  %4161 = vmatpush1.msra.mxu0 0.0
  %4162 = vmatprep.subr.mxu0 0.0
  %4163 = vmatpush1.msra.mxu0 0.0
  %4164 = vmatprep.subr.mxu0 0.0
  %4165 = vmatpush1.msra.mxu0 0.0
  %4166 = vmatprep.subr.mxu0 0.0
  %4167 = vmatpush1.msra.mxu0 0.0
  %4168 = vmatprep.subr.mxu0 0.0
  %4169 = vmatpush1.msra.mxu0 0.0
  %4170 = vmatprep.subr.mxu0 0.0
  %4171 = vmatpush1.msra.mxu0 0.0
  %4172 = vmatprep.subr.mxu0 0.0
  %4173 = vmatpush1.msra.mxu0 0.0
  %4174 = vmatprep.subr.mxu0 0.0
  %4175 = vmatpush1.msra.mxu0 0.0
  %4176 = vmatprep.subr.mxu0 0.0
  %4177 = vmatpush1.msra.mxu0 0.0
  %4178 = vmatprep.subr.mxu0 0.0
  %4179 = vmatpush1.msra.mxu0 0.0
  %4180 = vmatprep.subr.mxu0 0.0
  %4181 = vmatpush1.msra.mxu0 0.0
  %4182 = vmatprep.subr.mxu0 0.0
  %4183 = vmatpush1.msra.mxu0 0.0
  %4184 = vmatprep.subr.mxu0 0.0
  %4185 = vmatpush1.msra.mxu0 0.0
  %4186 = vmatprep.subr.mxu0 0.0
  %4187 = vmatpush1.msra.mxu0 0.0
  %4188 = vmatprep.subr.mxu0 0.0
  %4189 = vmatpush1.msra.mxu0 0.0
  %4190 = vmatprep.subr.mxu0 0.0
  %4191 = vmatpush1.msra.mxu0 0.0
  %4192 = vmatprep.subr.mxu0 0.0
  %4193 = vmatpush1.msra.mxu0 0.0
  %4194 = vmatprep.subr.mxu0 0.0
  %4195 = vmatpush1.msra.mxu0 0.0
  %4196 = vmatprep.subr.mxu0 0.0
  %4197 = vmatpush1.msra.mxu0 0.0
  %4198 = vmatprep.subr.mxu0 0.0
  %4199 = vmatpush1.msra.mxu0 0.0
  %4200 = vmatprep.subr.mxu0 0.0
  %4201 = vmatpush1.msra.mxu0 0.0
  %4202 = vmatprep.subr.mxu0 0.0
  %4203 = vmatpush1.msra.mxu0 0.0
  %4204 = vmatprep.subr.mxu0 0.0
  %4205 = vmatpush1.msra.mxu0 0.0
  %4206 = vmatprep.subr.mxu0 0.0
  %4207 = vmatpush1.msra.mxu0 0.0
  %4208 = vmatprep.subr.mxu0 0.0
  %4209 = vmatpush1.msra.mxu0 0.0
  %4210 = vmatprep.subr.mxu0 0.0
  %4211 = vmatpush1.msra.mxu0 0.0
  %4212 = vmatprep.subr.mxu0 0.0
  %4213 = vmatpush1.msra.mxu0 0.0
  %4214 = vmatprep.mubr.f32.mxu0 0.0
  %4215 = vmatmul.mubr.f32.gmra.mrb[0].mxu0 %v4148
  %v4216 = vpop.f32.mrb[0].mxu0
  %v4217 = vadd.f32 0.0, %v4216
  %v4218 = vpop.f32.mrb[0].mxu0
  %4219 = vdwg.mxu0
  %v4220 = vlaneseq
  %v4221 = vshrl.u32 %v4220, 7
  %v4222 = vsub.s32 0, %v4221
  %v4223 = vrot.slane %v4144, %v4222
  %v4224 = vmul.f32 %v3861, %v4223
  %v4225 = vmul.f32 %v3862, %v4223
  %v4226 = vmul.f32 %v3863, %v4223
  %v4227 = vmul.f32 %v3864, %v4223
  %v4228 = vmul.f32 %v3865, %v4223
  %v4229 = vmul.f32 %v3866, %v4223
  %v4230 = vmul.f32 %v3867, %v4223
  %v4231 = vmul.f32 %v3868, %v4223
  %v4232 = vlaneseq
  %v4233 = vshrl.u32 %v4232, 7
  %v4234 = vsub.s32 0, %v4233
  %v4235 = vrot.slane %v4217, %v4234
  %v4236 = vadd.f32 %v4224, %v4235
  %v4237 = vadd.f32 %v4225, %v4235
  %v4238 = vadd.f32 %v4226, %v4235
  %v4239 = vadd.f32 %v4227, %v4235
  %v4240 = vadd.f32 %v4228, %v4235
  %v4241 = vadd.f32 %v4229, %v4235
  %v4242 = vadd.f32 %v4230, %v4235
  %v4243 = vadd.f32 %v4231, %v4235
  %v4244 = vmul.f32 %v4236, 0.1
  %v4245 = vmul.f32 %v4237, 0.1
  %v4246 = vmul.f32 %v4238, 0.1
  %v4247 = vmul.f32 %v4239, 0.1
  %v4248 = vmul.f32 %v4240, 0.1
  %v4249 = vmul.f32 %v4241, 0.1
  %v4250 = vmul.f32 %v4242, 0.1
  %v4251 = vmul.f32 %v4243, 0.1
  %v4252 = vmax.f32 %v4236, %v4244
  %v4253 = vmax.f32 %v4237, %v4245
  %v4254 = vmax.f32 %v4238, %v4246
  %v4255 = vmax.f32 %v4239, %v4247
  %v4256 = vmax.f32 %v4240, %v4248
  %v4257 = vmax.f32 %v4241, %v4249
  %v4258 = vmax.f32 %v4242, %v4250
  %v4259 = vmax.f32 %v4243, %v4251
  %v4260 = vld [vmem:[%s39] sm:$0xff]
  %v4261 = vld [vmem:[%s39 + $0x8] sm:$0xff]
  %v4262 = vld [vmem:[%s39 + $0x10] sm:$0xff]
  %v4263 = vld [vmem:[%s39 + $0x18] sm:$0xff]
  %v4265 = vsel %vm2634, %v4260, 0
  %v4268 = vsel %vm2634, %v4261, 0
  %v4271 = vsel %vm2634, %v4262, 0
  %v4274 = vsel %vm2634, %v4263, 0
  %4276 = vmatprep.subr.mxu0 0.0
  %4277 = vmatpush1.msra.mxu0 %v4252
  %4278 = vmatprep.subr.mxu0 0.0
  %4279 = vmatpush1.msra.mxu0 %v4253
  %4280 = vmatprep.subr.mxu0 0.0
  %4281 = vmatpush1.msra.mxu0 %v4254
  %4282 = vmatprep.subr.mxu0 0.0
  %4283 = vmatpush1.msra.mxu0 %v4255
  %4284 = vmatprep.subr.mxu0 0.0
  %4285 = vmatpush1.msra.mxu0 %v4256
  %4286 = vmatprep.subr.mxu0 0.0
  %4287 = vmatpush1.msra.mxu0 %v4257
  %4288 = vmatprep.subr.mxu0 0.0
  %4289 = vmatpush1.msra.mxu0 %v4258
  %4290 = vmatprep.subr.mxu0 0.0
  %4291 = vmatpush1.msra.mxu0 %v4259
  %4292 = vmatprep.subr.mxu0 0.0
  %4293 = vmatpush1.msra.mxu0 0.0
  %4294 = vmatprep.subr.mxu0 0.0
  %4295 = vmatpush1.msra.mxu0 0.0
  %4296 = vmatprep.subr.mxu0 0.0
  %4297 = vmatpush1.msra.mxu0 0.0
  %4298 = vmatprep.subr.mxu0 0.0
  %4299 = vmatpush1.msra.mxu0 0.0
  %4300 = vmatprep.subr.mxu0 0.0
  %4301 = vmatpush1.msra.mxu0 0.0
  %4302 = vmatprep.subr.mxu0 0.0
  %4303 = vmatpush1.msra.mxu0 0.0
  %4304 = vmatprep.subr.mxu0 0.0
  %4305 = vmatpush1.msra.mxu0 0.0
  %4306 = vmatprep.subr.mxu0 0.0
  %4307 = vmatpush1.msra.mxu0 0.0
  %4308 = vmatprep.subr.mxu0 0.0
  %4309 = vmatpush1.msra.mxu0 0.0
  %4310 = vmatprep.subr.mxu0 0.0
  %4311 = vmatpush1.msra.mxu0 0.0
  %4312 = vmatprep.subr.mxu0 0.0
  %4313 = vmatpush1.msra.mxu0 0.0
  %4314 = vmatprep.subr.mxu0 0.0
  %4315 = vmatpush1.msra.mxu0 0.0
  %4316 = vmatprep.subr.mxu0 0.0
  %4317 = vmatpush1.msra.mxu0 0.0
  %4318 = vmatprep.subr.mxu0 0.0
  %4319 = vmatpush1.msra.mxu0 0.0
  %4320 = vmatprep.subr.mxu0 0.0
  %4321 = vmatpush1.msra.mxu0 0.0
  %4322 = vmatprep.subr.mxu0 0.0
  %4323 = vmatpush1.msra.mxu0 0.0
  %4324 = vmatprep.subr.mxu0 0.0
  %4325 = vmatpush1.msra.mxu0 0.0
  %4326 = vmatprep.subr.mxu0 0.0
  %4327 = vmatpush1.msra.mxu0 0.0
  %4328 = vmatprep.subr.mxu0 0.0
  %4329 = vmatpush1.msra.mxu0 0.0
  %4330 = vmatprep.subr.mxu0 0.0
  %4331 = vmatpush1.msra.mxu0 0.0
  %4332 = vmatprep.subr.mxu0 0.0
  %4333 = vmatpush1.msra.mxu0 0.0
  %4334 = vmatprep.subr.mxu0 0.0
  %4335 = vmatpush1.msra.mxu0 0.0
  %4336 = vmatprep.subr.mxu0 0.0
  %4337 = vmatpush1.msra.mxu0 0.0
  %4338 = vmatprep.subr.mxu0 0.0
  %4339 = vmatpush1.msra.mxu0 0.0
  %4340 = vmatprep.mubr.f32.mxu0 0.0
  %4341 = vmatmul.mubr.f32.gmra.mrb[0].mxu0 %v4265
  %v4342 = vpop.f32.mrb[0].mxu0
  %v4343 = vadd.f32 0.0, %v4342
  %v4344 = vpop.f32.mrb[0].mxu0
  %4345 = vmatprep.mubr.f32.mxu0 0.0
  %4346 = vmatmul.mubr.f32.gmra.mrb[0].mxu0 %v4268
  %v4347 = vpop.f32.mrb[0].mxu0
  %v4348 = vadd.f32 0.0, %v4347
  %v4349 = vpop.f32.mrb[0].mxu0
  %4350 = vmatprep.mubr.f32.mxu0 0.0
  %4351 = vmatmul.mubr.f32.gmra.mrb[0].mxu0 %v4271
  %v4352 = vpop.f32.mrb[0].mxu0
  %v4353 = vadd.f32 0.0, %v4352
  %v4354 = vpop.f32.mrb[0].mxu0
  %4355 = vmatprep.mubr.f32.mxu0 0.0
  %4356 = vmatmul.mubr.f32.gmra.mrb[0].mxu0 %v4274
  %v4357 = vpop.f32.mrb[0].mxu0
  %v4358 = vadd.f32 0.0, %v4357
  %v4359 = vpop.f32.mrb[0].mxu0
  %4360 = vdwg.mxu0
  %v4361 = vld [vmem:[%s41] sm:$0xff]
  %v4362 = vld [vmem:[%s41 + $0x8] sm:$0xff]
  %v4363 = vld [vmem:[%s41 + $0x10] sm:$0xff]
  %v4364 = vld [vmem:[%s41 + $0x18] sm:$0xff]
  %v4365 = vld [vmem:[%s41 + $0x20] sm:$0xff]
  %v4366 = vld [vmem:[%s41 + $0x28] sm:$0xff]
  %v4367 = vld [vmem:[%s41 + $0x30] sm:$0xff]
  %v4368 = vld [vmem:[%s41 + $0x38] sm:$0xff]
  %v4369 = vld [vmem:[%s41 + $0x40] sm:$0xff]
  %v4370 = vld [vmem:[%s41 + $0x48] sm:$0xff]
  %v4371 = vld [vmem:[%s41 + $0x50] sm:$0xff]
  %v4372 = vld [vmem:[%s41 + $0x58] sm:$0xff]
  %v4373 = vld [vmem:[%s41 + $0x60] sm:$0xff]
  %v4374 = vld [vmem:[%s41 + $0x68] sm:$0xff]
  %v4375 = vld [vmem:[%s41 + $0x70] sm:$0xff]
  %v4376 = vld [vmem:[%s41 + $0x78] sm:$0xff]
  %v4377 = vld [vmem:[%s39 + $0x20] sm:$0xff]
  %v4378 = vld [vmem:[%s39 + $0x28] sm:$0xff]
  %v4379 = vld [vmem:[%s39 + $0x30] sm:$0xff]
  %v4380 = vld [vmem:[%s39 + $0x38] sm:$0xff]
  %v4382 = vsel %vm2634, %v4377, 0
  %v4385 = vsel %vm2634, %v4378, 0
  %v4388 = vsel %vm2634, %v4379, 0
  %v4391 = vsel %vm2634, %v4380, 0
  %4393 = vmatprep.subr.mxu0 0.0
  %4394 = vmatpush1.msra.mxu0 %v4252
  %4395 = vmatprep.subr.mxu0 0.0
  %4396 = vmatpush1.msra.mxu0 %v4253
  %4397 = vmatprep.subr.mxu0 0.0
  %4398 = vmatpush1.msra.mxu0 %v4254
  %4399 = vmatprep.subr.mxu0 0.0
  %4400 = vmatpush1.msra.mxu0 %v4255
  %4401 = vmatprep.subr.mxu0 0.0
  %4402 = vmatpush1.msra.mxu0 %v4256
  %4403 = vmatprep.subr.mxu0 0.0
  %4404 = vmatpush1.msra.mxu0 %v4257
  %4405 = vmatprep.subr.mxu0 0.0
  %4406 = vmatpush1.msra.mxu0 %v4258
  %4407 = vmatprep.subr.mxu0 0.0
  %4408 = vmatpush1.msra.mxu0 %v4259
  %4409 = vmatprep.subr.mxu0 0.0
  %4410 = vmatpush1.msra.mxu0 0.0
  %4411 = vmatprep.subr.mxu0 0.0
  %4412 = vmatpush1.msra.mxu0 0.0
  %4413 = vmatprep.subr.mxu0 0.0
  %4414 = vmatpush1.msra.mxu0 0.0
  %4415 = vmatprep.subr.mxu0 0.0
  %4416 = vmatpush1.msra.mxu0 0.0
  %4417 = vmatprep.subr.mxu0 0.0
  %4418 = vmatpush1.msra.mxu0 0.0
  %4419 = vmatprep.subr.mxu0 0.0
  %4420 = vmatpush1.msra.mxu0 0.0
  %4421 = vmatprep.subr.mxu0 0.0
  %4422 = vmatpush1.msra.mxu0 0.0
  %4423 = vmatprep.subr.mxu0 0.0
  %4424 = vmatpush1.msra.mxu0 0.0
  %4425 = vmatprep.subr.mxu0 0.0
  %4426 = vmatpush1.msra.mxu0 0.0
  %4427 = vmatprep.subr.mxu0 0.0
  %4428 = vmatpush1.msra.mxu0 0.0
  %4429 = vmatprep.subr.mxu0 0.0
  %4430 = vmatpush1.msra.mxu0 0.0
  %4431 = vmatprep.subr.mxu0 0.0
  %4432 = vmatpush1.msra.mxu0 0.0
  %4433 = vmatprep.subr.mxu0 0.0
  %4434 = vmatpush1.msra.mxu0 0.0
  %4435 = vmatprep.subr.mxu0 0.0
  %4436 = vmatpush1.msra.mxu0 0.0
  %4437 = vmatprep.subr.mxu0 0.0
  %4438 = vmatpush1.msra.mxu0 0.0
  %4439 = vmatprep.subr.mxu0 0.0
  %4440 = vmatpush1.msra.mxu0 0.0
  %4441 = vmatprep.subr.mxu0 0.0
  %4442 = vmatpush1.msra.mxu0 0.0
  %4443 = vmatprep.subr.mxu0 0.0
  %4444 = vmatpush1.msra.mxu0 0.0
  %4445 = vmatprep.subr.mxu0 0.0
  %4446 = vmatpush1.msra.mxu0 0.0
  %4447 = vmatprep.subr.mxu0 0.0
  %4448 = vmatpush1.msra.mxu0 0.0
  %4449 = vmatprep.subr.mxu0 0.0
  %4450 = vmatpush1.msra.mxu0 0.0
  %4451 = vmatprep.subr.mxu0 0.0
  %4452 = vmatpush1.msra.mxu0 0.0
  %4453 = vmatprep.subr.mxu0 0.0
  %4454 = vmatpush1.msra.mxu0 0.0
  %4455 = vmatprep.subr.mxu0 0.0
  %4456 = vmatpush1.msra.mxu0 0.0
  %4457 = vmatprep.mubr.f32.mxu0 0.0
  %4458 = vmatmul.mubr.f32.gmra.mrb[0].mxu0 %v4382
  %v4459 = vpop.f32.mrb[0].mxu0
  %v4460 = vadd.f32 0.0, %v4459
  %v4461 = vpop.f32.mrb[0].mxu0
  %4462 = vmatprep.mubr.f32.mxu0 0.0
  %4463 = vmatmul.mubr.f32.gmra.mrb[0].mxu0 %v4385
  %v4464 = vpop.f32.mrb[0].mxu0
  %v4465 = vadd.f32 0.0, %v4464
  %v4466 = vpop.f32.mrb[0].mxu0
  %4467 = vmatprep.mubr.f32.mxu0 0.0
  %4468 = vmatmul.mubr.f32.gmra.mrb[0].mxu0 %v4388
  %v4469 = vpop.f32.mrb[0].mxu0
  %v4470 = vadd.f32 0.0, %v4469
  %v4471 = vpop.f32.mrb[0].mxu0
  %4472 = vmatprep.mubr.f32.mxu0 0.0
  %4473 = vmatmul.mubr.f32.gmra.mrb[0].mxu0 %v4391
  %v4474 = vpop.f32.mrb[0].mxu0
  %v4475 = vadd.f32 0.0, %v4474
  %v4476 = vpop.f32.mrb[0].mxu0
  %4477 = vdwg.mxu0
  %v4478 = vld [vmem:[%s41 + $0x80] sm:$0xff]
  %v4479 = vld [vmem:[%s41 + $0x88] sm:$0xff]
  %v4480 = vld [vmem:[%s41 + $0x90] sm:$0xff]
  %v4481 = vld [vmem:[%s41 + $0x98] sm:$0xff]
  %v4482 = vld [vmem:[%s41 + $0xa0] sm:$0xff]
  %v4483 = vld [vmem:[%s41 + $0xa8] sm:$0xff]
  %v4484 = vld [vmem:[%s41 + $0xb0] sm:$0xff]
  %v4485 = vld [vmem:[%s41 + $0xb8] sm:$0xff]
  %v4486 = vld [vmem:[%s41 + $0xc0] sm:$0xff]
  %v4487 = vld [vmem:[%s41 + $0xc8] sm:$0xff]
  %v4488 = vld [vmem:[%s41 + $0xd0] sm:$0xff]
  %v4489 = vld [vmem:[%s41 + $0xd8] sm:$0xff]
  %v4490 = vld [vmem:[%s41 + $0xe0] sm:$0xff]
  %v4491 = vld [vmem:[%s41 + $0xe8] sm:$0xff]
  %v4492 = vld [vmem:[%s41 + $0xf0] sm:$0xff]
  %v4493 = vld [vmem:[%s41 + $0xf8] sm:$0xff]
  %4494 = vmatprep.subr.mxu0 0.0
  %4495 = vmatpush1.msra.mxu0 %v4478
  %4496 = vmatprep.subr.mxu0 0.0
  %4497 = vmatpush1.msra.mxu0 %v4479
  %4498 = vmatprep.subr.mxu0 0.0
  %4499 = vmatpush1.msra.mxu0 %v4480
  %4500 = vmatprep.subr.mxu0 0.0
  %4501 = vmatpush1.msra.mxu0 %v4481
  %4502 = vmatprep.subr.mxu0 0.0
  %4503 = vmatpush1.msra.mxu0 %v4482
  %4504 = vmatprep.subr.mxu0 0.0
  %4505 = vmatpush1.msra.mxu0 %v4483
  %4506 = vmatprep.subr.mxu0 0.0
  %4507 = vmatpush1.msra.mxu0 %v4484
  %4508 = vmatprep.subr.mxu0 0.0
  %4509 = vmatpush1.msra.mxu0 %v4485
  %4510 = vmatprep.subr.mxu0 0.0
  %4511 = vmatpush1.msra.mxu0 %v4486
  %4512 = vmatprep.subr.mxu0 0.0
  %4513 = vmatpush1.msra.mxu0 %v4487
  %4514 = vmatprep.subr.mxu0 0.0
  %4515 = vmatpush1.msra.mxu0 %v4488
  %4516 = vmatprep.subr.mxu0 0.0
  %4517 = vmatpush1.msra.mxu0 %v4489
  %4518 = vmatprep.subr.mxu0 0.0
  %4519 = vmatpush1.msra.mxu0 %v4490
  %4520 = vmatprep.subr.mxu0 0.0
  %4521 = vmatpush1.msra.mxu0 %v4491
  %4522 = vmatprep.subr.mxu0 0.0
  %4523 = vmatpush1.msra.mxu0 %v4492
  %4524 = vmatprep.subr.mxu0 0.0
  %4525 = vmatpush1.msra.mxu0 %v4493
  %4526 = vmatprep.subr.mxu0 0.0
  %4527 = vmatpush1.msra.mxu0 0.0
  %4528 = vmatprep.subr.mxu0 0.0
  %4529 = vmatpush1.msra.mxu0 0.0
  %4530 = vmatprep.subr.mxu0 0.0
  %4531 = vmatpush1.msra.mxu0 0.0
  %4532 = vmatprep.subr.mxu0 0.0
  %4533 = vmatpush1.msra.mxu0 0.0
  %4534 = vmatprep.subr.mxu0 0.0
  %4535 = vmatpush1.msra.mxu0 0.0
  %4536 = vmatprep.subr.mxu0 0.0
  %4537 = vmatpush1.msra.mxu0 0.0
  %4538 = vmatprep.subr.mxu0 0.0
  %4539 = vmatpush1.msra.mxu0 0.0
  %4540 = vmatprep.subr.mxu0 0.0
  %4541 = vmatpush1.msra.mxu0 0.0
  %4542 = vmatprep.subr.mxu0 0.0
  %4543 = vmatpush1.msra.mxu0 0.0
  %4544 = vmatprep.subr.mxu0 0.0
  %4545 = vmatpush1.msra.mxu0 0.0
  %4546 = vmatprep.subr.mxu0 0.0
  %4547 = vmatpush1.msra.mxu0 0.0
  %4548 = vmatprep.subr.mxu0 0.0
  %4549 = vmatpush1.msra.mxu0 0.0
  %4550 = vmatprep.subr.mxu0 0.0
  %4551 = vmatpush1.msra.mxu0 0.0
  %4552 = vmatprep.subr.mxu0 0.0
  %4553 = vmatpush1.msra.mxu0 0.0
  %4554 = vmatprep.subr.mxu0 0.0
  %4555 = vmatpush1.msra.mxu0 0.0
  %4556 = vmatprep.subr.mxu0 0.0
  %4557 = vmatpush1.msra.mxu0 0.0
  %4558 = vmatprep.mubr.f32.mxu0 0.0
  %4559 = vmatmul.mubr.f32.gmra.mrb[0].mxu0 %v4460
  %v4560 = vpop.f32.mrb[0].mxu0
  %v4561 = vadd.f32 0.0, %v4560
  %v4562 = vpop.f32.mrb[0].mxu0
  %4563 = vmatprep.mubr.f32.mxu0 0.0
  %4564 = vmatmul.mubr.f32.gmra.mrb[0].mxu0 %v4465
  %v4565 = vpop.f32.mrb[0].mxu0
  %v4566 = vadd.f32 0.0, %v4565
  %v4567 = vpop.f32.mrb[0].mxu0
  %4568 = vmatprep.mubr.f32.mxu0 0.0
  %4569 = vmatmul.mubr.f32.gmra.mrb[0].mxu0 %v4470
  %v4570 = vpop.f32.mrb[0].mxu0
  %v4571 = vadd.f32 0.0, %v4570
  %v4572 = vpop.f32.mrb[0].mxu0
  %4573 = vmatprep.mubr.f32.mxu0 0.0
  %4574 = vmatmul.mubr.f32.gmra.mrb[0].mxu0 %v4475
  %v4575 = vpop.f32.mrb[0].mxu0
  %v4576 = vadd.f32 0.0, %v4575
  %v4577 = vpop.f32.mrb[0].mxu0
  %4578 = vdwg.mxu0
  %4579 = vmatprep.subr.mxu0 0.0
  %4580 = vmatpush1.msra.mxu0 %v4361
  %4581 = vmatprep.subr.mxu0 0.0
  %4582 = vmatpush1.msra.mxu0 %v4362
  %4583 = vmatprep.subr.mxu0 0.0
  %4584 = vmatpush1.msra.mxu0 %v4363
  %4585 = vmatprep.subr.mxu0 0.0
  %4586 = vmatpush1.msra.mxu0 %v4364
  %4587 = vmatprep.subr.mxu0 0.0
  %4588 = vmatpush1.msra.mxu0 %v4365
  %4589 = vmatprep.subr.mxu0 0.0
  %4590 = vmatpush1.msra.mxu0 %v4366
  %4591 = vmatprep.subr.mxu0 0.0
  %4592 = vmatpush1.msra.mxu0 %v4367
  %4593 = vmatprep.subr.mxu0 0.0
  %4594 = vmatpush1.msra.mxu0 %v4368
  %4595 = vmatprep.subr.mxu0 0.0
  %4596 = vmatpush1.msra.mxu0 %v4369
  %4597 = vmatprep.subr.mxu0 0.0
  %4598 = vmatpush1.msra.mxu0 %v4370
  %4599 = vmatprep.subr.mxu0 0.0
  %4600 = vmatpush1.msra.mxu0 %v4371
  %4601 = vmatprep.subr.mxu0 0.0
  %4602 = vmatpush1.msra.mxu0 %v4372
  %4603 = vmatprep.subr.mxu0 0.0
  %4604 = vmatpush1.msra.mxu0 %v4373
  %4605 = vmatprep.subr.mxu0 0.0
  %4606 = vmatpush1.msra.mxu0 %v4374
  %4607 = vmatprep.subr.mxu0 0.0
  %4608 = vmatpush1.msra.mxu0 %v4375
  %4609 = vmatprep.subr.mxu0 0.0
  %4610 = vmatpush1.msra.mxu0 %v4376
  %4611 = vmatprep.subr.mxu0 0.0
  %4612 = vmatpush1.msra.mxu0 0.0
  %4613 = vmatprep.subr.mxu0 0.0
  %4614 = vmatpush1.msra.mxu0 0.0
  %4615 = vmatprep.subr.mxu0 0.0
  %4616 = vmatpush1.msra.mxu0 0.0
  %4617 = vmatprep.subr.mxu0 0.0
  %4618 = vmatpush1.msra.mxu0 0.0
  %4619 = vmatprep.subr.mxu0 0.0
  %4620 = vmatpush1.msra.mxu0 0.0
  %4621 = vmatprep.subr.mxu0 0.0
  %4622 = vmatpush1.msra.mxu0 0.0
  %4623 = vmatprep.subr.mxu0 0.0
  %4624 = vmatpush1.msra.mxu0 0.0
  %4625 = vmatprep.subr.mxu0 0.0
  %4626 = vmatpush1.msra.mxu0 0.0
  %4627 = vmatprep.subr.mxu0 0.0
  %4628 = vmatpush1.msra.mxu0 0.0
  %4629 = vmatprep.subr.mxu0 0.0
  %4630 = vmatpush1.msra.mxu0 0.0
  %4631 = vmatprep.subr.mxu0 0.0
  %4632 = vmatpush1.msra.mxu0 0.0
  %4633 = vmatprep.subr.mxu0 0.0
  %4634 = vmatpush1.msra.mxu0 0.0
  %4635 = vmatprep.subr.mxu0 0.0
  %4636 = vmatpush1.msra.mxu0 0.0
  %4637 = vmatprep.subr.mxu0 0.0
  %4638 = vmatpush1.msra.mxu0 0.0
  %4639 = vmatprep.subr.mxu0 0.0
  %4640 = vmatpush1.msra.mxu0 0.0
  %4641 = vmatprep.subr.mxu0 0.0
  %4642 = vmatpush1.msra.mxu0 0.0
  %4643 = vmatprep.mubr.f32.mxu0 0.0
  %4644 = vmatmul.mubr.f32.gmra.mrb[0].mxu0 %v4343
  %v4645 = vpop.f32.mrb[0].mxu0
  %v4646 = vadd.f32 %v4561, %v4645
  %v4647 = vpop.f32.mrb[0].mxu0
  %4648 = vmatprep.mubr.f32.mxu0 0.0
  %4649 = vmatmul.mubr.f32.gmra.mrb[0].mxu0 %v4348
  %v4650 = vpop.f32.mrb[0].mxu0
  %v4651 = vadd.f32 %v4566, %v4650
  %v4652 = vpop.f32.mrb[0].mxu0
  %4653 = vmatprep.mubr.f32.mxu0 0.0
  %4654 = vmatmul.mubr.f32.gmra.mrb[0].mxu0 %v4353
  %v4655 = vpop.f32.mrb[0].mxu0
  %v4656 = vadd.f32 %v4571, %v4655
  %v4657 = vpop.f32.mrb[0].mxu0
  %4658 = vmatprep.mubr.f32.mxu0 0.0
  %4659 = vmatmul.mubr.f32.gmra.mrb[0].mxu0 %v4358
  %v4660 = vpop.f32.mrb[0].mxu0
  %v4661 = vadd.f32 %v4576, %v4660
  %v4662 = vpop.f32.mrb[0].mxu0
  %4663 = vdwg.mxu0
  %v4664 = vld [vmem:[%s39 + $0x40] sm:$0xff]
  %v4665 = vld [vmem:[%s39 + $0x48] sm:$0xff]
  %v4666 = vld [vmem:[%s39 + $0x50] sm:$0xff]
  %v4667 = vld [vmem:[%s39 + $0x58] sm:$0xff]
  %v4669 = vsel %vm2634, %v4664, 0
  %v4672 = vsel %vm2634, %v4665, 0
  %v4675 = vsel %vm2634, %v4666, 0
  %v4678 = vsel %vm2634, %v4667, 0
  %4680 = vmatprep.subr.mxu0 0.0
  %4681 = vmatpush1.msra.mxu0 %v4252
  %4682 = vmatprep.subr.mxu0 0.0
  %4683 = vmatpush1.msra.mxu0 %v4253
  %4684 = vmatprep.subr.mxu0 0.0
  %4685 = vmatpush1.msra.mxu0 %v4254
  %4686 = vmatprep.subr.mxu0 0.0
  %4687 = vmatpush1.msra.mxu0 %v4255
  %4688 = vmatprep.subr.mxu0 0.0
  %4689 = vmatpush1.msra.mxu0 %v4256
  %4690 = vmatprep.subr.mxu0 0.0
  %4691 = vmatpush1.msra.mxu0 %v4257
  %4692 = vmatprep.subr.mxu0 0.0
  %4693 = vmatpush1.msra.mxu0 %v4258
  %4694 = vmatprep.subr.mxu0 0.0
  %4695 = vmatpush1.msra.mxu0 %v4259
  %4696 = vmatprep.subr.mxu0 0.0
  %4697 = vmatpush1.msra.mxu0 0.0
  %4698 = vmatprep.subr.mxu0 0.0
  %4699 = vmatpush1.msra.mxu0 0.0
  %4700 = vmatprep.subr.mxu0 0.0
  %4701 = vmatpush1.msra.mxu0 0.0
  %4702 = vmatprep.subr.mxu0 0.0
  %4703 = vmatpush1.msra.mxu0 0.0
  %4704 = vmatprep.subr.mxu0 0.0
  %4705 = vmatpush1.msra.mxu0 0.0
  %4706 = vmatprep.subr.mxu0 0.0
  %4707 = vmatpush1.msra.mxu0 0.0
  %4708 = vmatprep.subr.mxu0 0.0
  %4709 = vmatpush1.msra.mxu0 0.0
  %4710 = vmatprep.subr.mxu0 0.0
  %4711 = vmatpush1.msra.mxu0 0.0
  %4712 = vmatprep.subr.mxu0 0.0
  %4713 = vmatpush1.msra.mxu0 0.0
  %4714 = vmatprep.subr.mxu0 0.0
  %4715 = vmatpush1.msra.mxu0 0.0
  %4716 = vmatprep.subr.mxu0 0.0
  %4717 = vmatpush1.msra.mxu0 0.0
  %4718 = vmatprep.subr.mxu0 0.0
  %4719 = vmatpush1.msra.mxu0 0.0
  %4720 = vmatprep.subr.mxu0 0.0
  %4721 = vmatpush1.msra.mxu0 0.0
  %4722 = vmatprep.subr.mxu0 0.0
  %4723 = vmatpush1.msra.mxu0 0.0
  %4724 = vmatprep.subr.mxu0 0.0
  %4725 = vmatpush1.msra.mxu0 0.0
  %4726 = vmatprep.subr.mxu0 0.0
  %4727 = vmatpush1.msra.mxu0 0.0
  %4728 = vmatprep.subr.mxu0 0.0
  %4729 = vmatpush1.msra.mxu0 0.0
  %4730 = vmatprep.subr.mxu0 0.0
  %4731 = vmatpush1.msra.mxu0 0.0
  %4732 = vmatprep.subr.mxu0 0.0
  %4733 = vmatpush1.msra.mxu0 0.0
  %4734 = vmatprep.subr.mxu0 0.0
  %4735 = vmatpush1.msra.mxu0 0.0
  %4736 = vmatprep.subr.mxu0 0.0
  %4737 = vmatpush1.msra.mxu0 0.0
  %4738 = vmatprep.subr.mxu0 0.0
  %4739 = vmatpush1.msra.mxu0 0.0
  %4740 = vmatprep.subr.mxu0 0.0
  %4741 = vmatpush1.msra.mxu0 0.0
  %4742 = vmatprep.subr.mxu0 0.0
  %4743 = vmatpush1.msra.mxu0 0.0
  %4744 = vmatprep.mubr.f32.mxu0 0.0
  %4745 = vmatmul.mubr.f32.gmra.mrb[0].mxu0 %v4669
  %v4746 = vpop.f32.mrb[0].mxu0
  %v4747 = vadd.f32 0.0, %v4746
  %v4748 = vpop.f32.mrb[0].mxu0
  %4749 = vmatprep.mubr.f32.mxu0 0.0
  %4750 = vmatmul.mubr.f32.gmra.mrb[0].mxu0 %v4672
  %v4751 = vpop.f32.mrb[0].mxu0
  %v4752 = vadd.f32 0.0, %v4751
  %v4753 = vpop.f32.mrb[0].mxu0
  %4754 = vmatprep.mubr.f32.mxu0 0.0
  %4755 = vmatmul.mubr.f32.gmra.mrb[0].mxu0 %v4675
  %v4756 = vpop.f32.mrb[0].mxu0
  %v4757 = vadd.f32 0.0, %v4756
  %v4758 = vpop.f32.mrb[0].mxu0
  %4759 = vmatprep.mubr.f32.mxu0 0.0
  %4760 = vmatmul.mubr.f32.gmra.mrb[0].mxu0 %v4678
  %v4761 = vpop.f32.mrb[0].mxu0
  %v4762 = vadd.f32 0.0, %v4761
  %v4763 = vpop.f32.mrb[0].mxu0
  %4764 = vdwg.mxu0
  %v4765 = vld [vmem:[%s41 + $0x100] sm:$0xff]
  %v4766 = vld [vmem:[%s41 + $0x108] sm:$0xff]
  %v4767 = vld [vmem:[%s41 + $0x110] sm:$0xff]
  %v4768 = vld [vmem:[%s41 + $0x118] sm:$0xff]
  %v4769 = vld [vmem:[%s41 + $0x120] sm:$0xff]
  %v4770 = vld [vmem:[%s41 + $0x128] sm:$0xff]
  %v4771 = vld [vmem:[%s41 + $0x130] sm:$0xff]
  %v4772 = vld [vmem:[%s41 + $0x138] sm:$0xff]
  %v4773 = vld [vmem:[%s41 + $0x140] sm:$0xff]
  %v4774 = vld [vmem:[%s41 + $0x148] sm:$0xff]
  %v4775 = vld [vmem:[%s41 + $0x150] sm:$0xff]
  %v4776 = vld [vmem:[%s41 + $0x158] sm:$0xff]
  %v4777 = vld [vmem:[%s41 + $0x160] sm:$0xff]
  %v4778 = vld [vmem:[%s41 + $0x168] sm:$0xff]
  %v4779 = vld [vmem:[%s41 + $0x170] sm:$0xff]
  %v4780 = vld [vmem:[%s41 + $0x178] sm:$0xff]
  %4781 = vmatprep.subr.mxu0 0.0
  %4782 = vmatpush1.msra.mxu0 %v4765
  %4783 = vmatprep.subr.mxu0 0.0
  %4784 = vmatpush1.msra.mxu0 %v4766
  %4785 = vmatprep.subr.mxu0 0.0
  %4786 = vmatpush1.msra.mxu0 %v4767
  %4787 = vmatprep.subr.mxu0 0.0
  %4788 = vmatpush1.msra.mxu0 %v4768
  %4789 = vmatprep.subr.mxu0 0.0
  %4790 = vmatpush1.msra.mxu0 %v4769
  %4791 = vmatprep.subr.mxu0 0.0
  %4792 = vmatpush1.msra.mxu0 %v4770
  %4793 = vmatprep.subr.mxu0 0.0
  %4794 = vmatpush1.msra.mxu0 %v4771
  %4795 = vmatprep.subr.mxu0 0.0
  %4796 = vmatpush1.msra.mxu0 %v4772
  %4797 = vmatprep.subr.mxu0 0.0
  %4798 = vmatpush1.msra.mxu0 %v4773
  %4799 = vmatprep.subr.mxu0 0.0
  %4800 = vmatpush1.msra.mxu0 %v4774
  %4801 = vmatprep.subr.mxu0 0.0
  %4802 = vmatpush1.msra.mxu0 %v4775
  %4803 = vmatprep.subr.mxu0 0.0
  %4804 = vmatpush1.msra.mxu0 %v4776
  %4805 = vmatprep.subr.mxu0 0.0
  %4806 = vmatpush1.msra.mxu0 %v4777
  %4807 = vmatprep.subr.mxu0 0.0
  %4808 = vmatpush1.msra.mxu0 %v4778
  %4809 = vmatprep.subr.mxu0 0.0
  %4810 = vmatpush1.msra.mxu0 %v4779
  %4811 = vmatprep.subr.mxu0 0.0
  %4812 = vmatpush1.msra.mxu0 %v4780
  %4813 = vmatprep.subr.mxu0 0.0
  %4814 = vmatpush1.msra.mxu0 0.0
  %4815 = vmatprep.subr.mxu0 0.0
  %4816 = vmatpush1.msra.mxu0 0.0
  %4817 = vmatprep.subr.mxu0 0.0
  %4818 = vmatpush1.msra.mxu0 0.0
  %4819 = vmatprep.subr.mxu0 0.0
  %4820 = vmatpush1.msra.mxu0 0.0
  %4821 = vmatprep.subr.mxu0 0.0
  %4822 = vmatpush1.msra.mxu0 0.0
  %4823 = vmatprep.subr.mxu0 0.0
  %4824 = vmatpush1.msra.mxu0 0.0
  %4825 = vmatprep.subr.mxu0 0.0
  %4826 = vmatpush1.msra.mxu0 0.0
  %4827 = vmatprep.subr.mxu0 0.0
  %4828 = vmatpush1.msra.mxu0 0.0
  %4829 = vmatprep.subr.mxu0 0.0
  %4830 = vmatpush1.msra.mxu0 0.0
  %4831 = vmatprep.subr.mxu0 0.0
  %4832 = vmatpush1.msra.mxu0 0.0
  %4833 = vmatprep.subr.mxu0 0.0
  %4834 = vmatpush1.msra.mxu0 0.0
  %4835 = vmatprep.subr.mxu0 0.0
  %4836 = vmatpush1.msra.mxu0 0.0
  %4837 = vmatprep.subr.mxu0 0.0
  %4838 = vmatpush1.msra.mxu0 0.0
  %4839 = vmatprep.subr.mxu0 0.0
  %4840 = vmatpush1.msra.mxu0 0.0
  %4841 = vmatprep.subr.mxu0 0.0
  %4842 = vmatpush1.msra.mxu0 0.0
  %4843 = vmatprep.subr.mxu0 0.0
  %4844 = vmatpush1.msra.mxu0 0.0
  %4845 = vmatprep.mubr.f32.mxu0 0.0
  %4846 = vmatmul.mubr.f32.gmra.mrb[0].mxu0 %v4747
  %v4847 = vpop.f32.mrb[0].mxu0
  %v4848 = vadd.f32 0.0, %v4847
  %v4849 = vpop.f32.mrb[0].mxu0
  %4850 = vmatprep.mubr.f32.mxu0 0.0
  %4851 = vmatmul.mubr.f32.gmra.mrb[0].mxu0 %v4752
  %v4852 = vpop.f32.mrb[0].mxu0
  %v4853 = vadd.f32 0.0, %v4852
  %v4854 = vpop.f32.mrb[0].mxu0
  %4855 = vmatprep.mubr.f32.mxu0 0.0
  %4856 = vmatmul.mubr.f32.gmra.mrb[0].mxu0 %v4757
  %v4857 = vpop.f32.mrb[0].mxu0
  %v4858 = vadd.f32 0.0, %v4857
  %v4859 = vpop.f32.mrb[0].mxu0
  %4860 = vmatprep.mubr.f32.mxu0 0.0
  %4861 = vmatmul.mubr.f32.gmra.mrb[0].mxu0 %v4762
  %v4862 = vpop.f32.mrb[0].mxu0
  %v4863 = vadd.f32 0.0, %v4862
  %v4864 = vpop.f32.mrb[0].mxu0
  %4865 = vdwg.mxu0
  %v4866 = vadd.f32 %v4646, %v4848
  %v4867 = vadd.f32 %v4651, %v4853
  %v4868 = vadd.f32 %v4656, %v4858
  %v4869 = vadd.f32 %v4661, %v4863
  %v4870 = vld [vmem:[%s39 + $0x60] sm:$0xff]
  %v4871 = vld [vmem:[%s39 + $0x68] sm:$0xff]
  %v4872 = vld [vmem:[%s39 + $0x70] sm:$0xff]
  %v4873 = vld [vmem:[%s39 + $0x78] sm:$0xff]
  %v4875 = vsel %vm2634, %v4870, 0
  %v4878 = vsel %vm2634, %v4871, 0
  %v4881 = vsel %vm2634, %v4872, 0
  %v4884 = vsel %vm2634, %v4873, 0
  %4886 = vmatprep.subr.mxu0 0.0
  %4887 = vmatpush1.msra.mxu0 %v4252
  %4888 = vmatprep.subr.mxu0 0.0
  %4889 = vmatpush1.msra.mxu0 %v4253
  %4890 = vmatprep.subr.mxu0 0.0
  %4891 = vmatpush1.msra.mxu0 %v4254
  %4892 = vmatprep.subr.mxu0 0.0
  %4893 = vmatpush1.msra.mxu0 %v4255
  %4894 = vmatprep.subr.mxu0 0.0
  %4895 = vmatpush1.msra.mxu0 %v4256
  %4896 = vmatprep.subr.mxu0 0.0
  %4897 = vmatpush1.msra.mxu0 %v4257
  %4898 = vmatprep.subr.mxu0 0.0
  %4899 = vmatpush1.msra.mxu0 %v4258
  %4900 = vmatprep.subr.mxu0 0.0
  %4901 = vmatpush1.msra.mxu0 %v4259
  %4902 = vmatprep.subr.mxu0 0.0
  %4903 = vmatpush1.msra.mxu0 0.0
  %4904 = vmatprep.subr.mxu0 0.0
  %4905 = vmatpush1.msra.mxu0 0.0
  %4906 = vmatprep.subr.mxu0 0.0
  %4907 = vmatpush1.msra.mxu0 0.0
  %4908 = vmatprep.subr.mxu0 0.0
  %4909 = vmatpush1.msra.mxu0 0.0
  %4910 = vmatprep.subr.mxu0 0.0
  %4911 = vmatpush1.msra.mxu0 0.0
  %4912 = vmatprep.subr.mxu0 0.0
  %4913 = vmatpush1.msra.mxu0 0.0
  %4914 = vmatprep.subr.mxu0 0.0
  %4915 = vmatpush1.msra.mxu0 0.0
  %4916 = vmatprep.subr.mxu0 0.0
  %4917 = vmatpush1.msra.mxu0 0.0
  %4918 = vmatprep.subr.mxu0 0.0
  %4919 = vmatpush1.msra.mxu0 0.0
  %4920 = vmatprep.subr.mxu0 0.0
  %4921 = vmatpush1.msra.mxu0 0.0
  %4922 = vmatprep.subr.mxu0 0.0
  %4923 = vmatpush1.msra.mxu0 0.0
  %4924 = vmatprep.subr.mxu0 0.0
  %4925 = vmatpush1.msra.mxu0 0.0
  %4926 = vmatprep.subr.mxu0 0.0
  %4927 = vmatpush1.msra.mxu0 0.0
  %4928 = vmatprep.subr.mxu0 0.0
  %4929 = vmatpush1.msra.mxu0 0.0
  %4930 = vmatprep.subr.mxu0 0.0
  %4931 = vmatpush1.msra.mxu0 0.0
  %4932 = vmatprep.subr.mxu0 0.0
  %4933 = vmatpush1.msra.mxu0 0.0
  %4934 = vmatprep.subr.mxu0 0.0
  %4935 = vmatpush1.msra.mxu0 0.0
  %4936 = vmatprep.subr.mxu0 0.0
  %4937 = vmatpush1.msra.mxu0 0.0
  %4938 = vmatprep.subr.mxu0 0.0
  %4939 = vmatpush1.msra.mxu0 0.0
  %4940 = vmatprep.subr.mxu0 0.0
  %4941 = vmatpush1.msra.mxu0 0.0
  %4942 = vmatprep.subr.mxu0 0.0
  %4943 = vmatpush1.msra.mxu0 0.0
  %4944 = vmatprep.subr.mxu0 0.0
  %4945 = vmatpush1.msra.mxu0 0.0
  %4946 = vmatprep.subr.mxu0 0.0
  %4947 = vmatpush1.msra.mxu0 0.0
  %4948 = vmatprep.subr.mxu0 0.0
  %4949 = vmatpush1.msra.mxu0 0.0
  %4950 = vmatprep.mubr.f32.mxu0 0.0
  %4951 = vmatmul.mubr.f32.gmra.mrb[0].mxu0 %v4875
  %v4952 = vpop.f32.mrb[0].mxu0
  %v4953 = vadd.f32 0.0, %v4952
  %v4954 = vpop.f32.mrb[0].mxu0
  %4955 = vmatprep.mubr.f32.mxu0 0.0
  %4956 = vmatmul.mubr.f32.gmra.mrb[0].mxu0 %v4878
  %v4957 = vpop.f32.mrb[0].mxu0
  %v4958 = vadd.f32 0.0, %v4957
  %v4959 = vpop.f32.mrb[0].mxu0
  %4960 = vmatprep.mubr.f32.mxu0 0.0
  %4961 = vmatmul.mubr.f32.gmra.mrb[0].mxu0 %v4881
  %v4962 = vpop.f32.mrb[0].mxu0
  %v4963 = vadd.f32 0.0, %v4962
  %v4964 = vpop.f32.mrb[0].mxu0
  %4965 = vmatprep.mubr.f32.mxu0 0.0
  %4966 = vmatmul.mubr.f32.gmra.mrb[0].mxu0 %v4884
  %v4967 = vpop.f32.mrb[0].mxu0
  %v4968 = vadd.f32 0.0, %v4967
  %v4969 = vpop.f32.mrb[0].mxu0
  %4970 = vdwg.mxu0
  %v4971 = vld [vmem:[%s41 + $0x180] sm:$0xff]
  %v4972 = vld [vmem:[%s41 + $0x188] sm:$0xff]
  %v4973 = vld [vmem:[%s41 + $0x190] sm:$0xff]
  %v4974 = vld [vmem:[%s41 + $0x198] sm:$0xff]
  %v4975 = vld [vmem:[%s41 + $0x1a0] sm:$0xff]
  %v4976 = vld [vmem:[%s41 + $0x1a8] sm:$0xff]
  %v4977 = vld [vmem:[%s41 + $0x1b0] sm:$0xff]
  %v4978 = vld [vmem:[%s41 + $0x1b8] sm:$0xff]
  %v4979 = vld [vmem:[%s41 + $0x1c0] sm:$0xff]
  %v4980 = vld [vmem:[%s41 + $0x1c8] sm:$0xff]
  %v4981 = vld [vmem:[%s41 + $0x1d0] sm:$0xff]
  %v4982 = vld [vmem:[%s41 + $0x1d8] sm:$0xff]
  %v4983 = vld [vmem:[%s41 + $0x1e0] sm:$0xff]
  %v4984 = vld [vmem:[%s41 + $0x1e8] sm:$0xff]
  %v4985 = vld [vmem:[%s41 + $0x1f0] sm:$0xff]
  %v4986 = vld [vmem:[%s41 + $0x1f8] sm:$0xff]
  %4987 = vmatprep.subr.mxu0 0.0
  %4988 = vmatpush1.msra.mxu0 %v4971
  %4989 = vmatprep.subr.mxu0 0.0
  %4990 = vmatpush1.msra.mxu0 %v4972
  %4991 = vmatprep.subr.mxu0 0.0
  %4992 = vmatpush1.msra.mxu0 %v4973
  %4993 = vmatprep.subr.mxu0 0.0
  %4994 = vmatpush1.msra.mxu0 %v4974
  %4995 = vmatprep.subr.mxu0 0.0
  %4996 = vmatpush1.msra.mxu0 %v4975
  %4997 = vmatprep.subr.mxu0 0.0
  %4998 = vmatpush1.msra.mxu0 %v4976
  %4999 = vmatprep.subr.mxu0 0.0
  %5000 = vmatpush1.msra.mxu0 %v4977
  %5001 = vmatprep.subr.mxu0 0.0
  %5002 = vmatpush1.msra.mxu0 %v4978
  %5003 = vmatprep.subr.mxu0 0.0
  %5004 = vmatpush1.msra.mxu0 %v4979
  %5005 = vmatprep.subr.mxu0 0.0
  %5006 = vmatpush1.msra.mxu0 %v4980
  %5007 = vmatprep.subr.mxu0 0.0
  %5008 = vmatpush1.msra.mxu0 %v4981
  %5009 = vmatprep.subr.mxu0 0.0
  %5010 = vmatpush1.msra.mxu0 %v4982
  %5011 = vmatprep.subr.mxu0 0.0
  %5012 = vmatpush1.msra.mxu0 %v4983
  %5013 = vmatprep.subr.mxu0 0.0
  %5014 = vmatpush1.msra.mxu0 %v4984
  %5015 = vmatprep.subr.mxu0 0.0
  %5016 = vmatpush1.msra.mxu0 %v4985
  %5017 = vmatprep.subr.mxu0 0.0
  %5018 = vmatpush1.msra.mxu0 %v4986
  %5019 = vmatprep.subr.mxu0 0.0
  %5020 = vmatpush1.msra.mxu0 0.0
  %5021 = vmatprep.subr.mxu0 0.0
  %5022 = vmatpush1.msra.mxu0 0.0
  %5023 = vmatprep.subr.mxu0 0.0
  %5024 = vmatpush1.msra.mxu0 0.0
  %5025 = vmatprep.subr.mxu0 0.0
  %5026 = vmatpush1.msra.mxu0 0.0
  %5027 = vmatprep.subr.mxu0 0.0
  %5028 = vmatpush1.msra.mxu0 0.0
  %5029 = vmatprep.subr.mxu0 0.0
  %5030 = vmatpush1.msra.mxu0 0.0
  %5031 = vmatprep.subr.mxu0 0.0
  %5032 = vmatpush1.msra.mxu0 0.0
  %5033 = vmatprep.subr.mxu0 0.0
  %5034 = vmatpush1.msra.mxu0 0.0
  %5035 = vmatprep.subr.mxu0 0.0
  %5036 = vmatpush1.msra.mxu0 0.0
  %5037 = vmatprep.subr.mxu0 0.0
  %5038 = vmatpush1.msra.mxu0 0.0
  %5039 = vmatprep.subr.mxu0 0.0
  %5040 = vmatpush1.msra.mxu0 0.0
  %5041 = vmatprep.subr.mxu0 0.0
  %5042 = vmatpush1.msra.mxu0 0.0
  %5043 = vmatprep.subr.mxu0 0.0
  %5044 = vmatpush1.msra.mxu0 0.0
  %5045 = vmatprep.subr.mxu0 0.0
  %5046 = vmatpush1.msra.mxu0 0.0
  %5047 = vmatprep.subr.mxu0 0.0
  %5048 = vmatpush1.msra.mxu0 0.0
  %5049 = vmatprep.subr.mxu0 0.0
  %5050 = vmatpush1.msra.mxu0 0.0
  %5051 = vmatprep.mubr.f32.mxu0 0.0
  %5052 = vmatmul.mubr.f32.gmra.mrb[0].mxu0 %v4953
  %v5053 = vpop.f32.mrb[0].mxu0
  %v5054 = vadd.f32 0.0, %v5053
  %v5055 = vpop.f32.mrb[0].mxu0
  %5056 = vmatprep.mubr.f32.mxu0 0.0
  %5057 = vmatmul.mubr.f32.gmra.mrb[0].mxu0 %v4958
  %v5058 = vpop.f32.mrb[0].mxu0
  %v5059 = vadd.f32 0.0, %v5058
  %v5060 = vpop.f32.mrb[0].mxu0
  %5061 = vmatprep.mubr.f32.mxu0 0.0
  %5062 = vmatmul.mubr.f32.gmra.mrb[0].mxu0 %v4963
  %v5063 = vpop.f32.mrb[0].mxu0
  %v5064 = vadd.f32 0.0, %v5063
  %v5065 = vpop.f32.mrb[0].mxu0
  %5066 = vmatprep.mubr.f32.mxu0 0.0
  %5067 = vmatmul.mubr.f32.gmra.mrb[0].mxu0 %v4968
  %v5068 = vpop.f32.mrb[0].mxu0
  %v5069 = vadd.f32 0.0, %v5068
  %v5070 = vpop.f32.mrb[0].mxu0
  %5071 = vdwg.mxu0
  %v5072 = vadd.f32 %v4866, %v5054
  %v5073 = vadd.f32 %v4867, %v5059
  %v5074 = vadd.f32 %v4868, %v5064
  %v5075 = vadd.f32 %v4869, %v5069
  %v5076 = vsel %vm2634, %v5072, 0.0
  %v5077 = vsel %vm2634, %v5073, 0.0
  %v5078 = vadd.f32 %v5076, %v5077
  %v5079 = vsel %vm2634, %v5074, 0.0
  %v5080 = vadd.f32 %v5078, %v5079
  %v5081 = vsel %vm2634, %v5075, 0.0
  %v5082 = vadd.f32 %v5080, %v5081
  %v5083 = vrot.slane %v5082, 4
  %v5084 = vadd.f32 %v5082, %v5083
  %v5085 = vrot.slane %v5084, 2
  %v5086 = vadd.f32 %v5084, %v5085
  %v5087 = vrot.slane %v5086, 1
  %v5088 = vadd.f32 %v5086, %v5087
  %v5089 = vmul.f32 %v5072, %v5072
  %v5090 = vmul.f32 %v5073, %v5073
  %v5091 = vmul.f32 %v5074, %v5074
  %v5092 = vmul.f32 %v5075, %v5075
  %v5093 = vsel %vm2634, %v5089, 0.0
  %v5094 = vsel %vm2634, %v5090, 0.0
  %v5095 = vadd.f32 %v5093, %v5094
  %v5096 = vsel %vm2634, %v5091, 0.0
  %v5097 = vadd.f32 %v5095, %v5096
  %v5098 = vsel %vm2634, %v5092, 0.0
  %v5099 = vadd.f32 %v5097, %v5098
  %v5100 = vrot.slane %v5099, 4
  %v5101 = vadd.f32 %v5099, %v5100
  %v5102 = vrot.slane %v5101, 2
  %v5103 = vadd.f32 %v5101, %v5102
  %v5104 = vrot.slane %v5103, 1
  %v5105 = vadd.f32 %v5103, %v5104
  %v5106 = vld [vmem:[%s43] sm:$0xff]
  %v5107 = vld [vmem:[%s43 + $0x8] sm:$0xff]
  %v5108 = vld [vmem:[%s43 + $0x10] sm:$0xff]
  %v5109 = vld [vmem:[%s43 + $0x18] sm:$0xff]
  %v5110 = vld [vmem:[%s43 + $0x20] sm:$0xff]
  %v5111 = vld [vmem:[%s43 + $0x28] sm:$0xff]
  %v5112 = vld [vmem:[%s43 + $0x30] sm:$0xff]
  %v5113 = vld [vmem:[%s43 + $0x38] sm:$0xff]
  %v5115 = vsel %vm2634, %v5088, 0
  %5117 = vmatprep.subr.mxu0 0.0
  %5118 = vmatpush1.msra.mxu0 %v5106
  %5119 = vmatprep.subr.mxu0 0.0
  %5120 = vmatpush1.msra.mxu0 %v5107
  %5121 = vmatprep.subr.mxu0 0.0
  %5122 = vmatpush1.msra.mxu0 %v5108
  %5123 = vmatprep.subr.mxu0 0.0
  %5124 = vmatpush1.msra.mxu0 %v5109
  %5125 = vmatprep.subr.mxu0 0.0
  %5126 = vmatpush1.msra.mxu0 %v5110
  %5127 = vmatprep.subr.mxu0 0.0
  %5128 = vmatpush1.msra.mxu0 %v5111
  %5129 = vmatprep.subr.mxu0 0.0
  %5130 = vmatpush1.msra.mxu0 %v5112
  %5131 = vmatprep.subr.mxu0 0.0
  %5132 = vmatpush1.msra.mxu0 %v5113
  %5133 = vmatprep.subr.mxu0 0.0
  %5134 = vmatpush1.msra.mxu0 0.0
  %5135 = vmatprep.subr.mxu0 0.0
  %5136 = vmatpush1.msra.mxu0 0.0
  %5137 = vmatprep.subr.mxu0 0.0
  %5138 = vmatpush1.msra.mxu0 0.0
  %5139 = vmatprep.subr.mxu0 0.0
  %5140 = vmatpush1.msra.mxu0 0.0
  %5141 = vmatprep.subr.mxu0 0.0
  %5142 = vmatpush1.msra.mxu0 0.0
  %5143 = vmatprep.subr.mxu0 0.0
  %5144 = vmatpush1.msra.mxu0 0.0
  %5145 = vmatprep.subr.mxu0 0.0
  %5146 = vmatpush1.msra.mxu0 0.0
  %5147 = vmatprep.subr.mxu0 0.0
  %5148 = vmatpush1.msra.mxu0 0.0
  %5149 = vmatprep.subr.mxu0 0.0
  %5150 = vmatpush1.msra.mxu0 0.0
  %5151 = vmatprep.subr.mxu0 0.0
  %5152 = vmatpush1.msra.mxu0 0.0
  %5153 = vmatprep.subr.mxu0 0.0
  %5154 = vmatpush1.msra.mxu0 0.0
  %5155 = vmatprep.subr.mxu0 0.0
  %5156 = vmatpush1.msra.mxu0 0.0
  %5157 = vmatprep.subr.mxu0 0.0
  %5158 = vmatpush1.msra.mxu0 0.0
  %5159 = vmatprep.subr.mxu0 0.0
  %5160 = vmatpush1.msra.mxu0 0.0
  %5161 = vmatprep.subr.mxu0 0.0
  %5162 = vmatpush1.msra.mxu0 0.0
  %5163 = vmatprep.subr.mxu0 0.0
  %5164 = vmatpush1.msra.mxu0 0.0
  %5165 = vmatprep.subr.mxu0 0.0
  %5166 = vmatpush1.msra.mxu0 0.0
  %5167 = vmatprep.subr.mxu0 0.0
  %5168 = vmatpush1.msra.mxu0 0.0
  %5169 = vmatprep.subr.mxu0 0.0
  %5170 = vmatpush1.msra.mxu0 0.0
  %5171 = vmatprep.subr.mxu0 0.0
  %5172 = vmatpush1.msra.mxu0 0.0
  %5173 = vmatprep.subr.mxu0 0.0
  %5174 = vmatpush1.msra.mxu0 0.0
  %5175 = vmatprep.subr.mxu0 0.0
  %5176 = vmatpush1.msra.mxu0 0.0
  %5177 = vmatprep.subr.mxu0 0.0
  %5178 = vmatpush1.msra.mxu0 0.0
  %5179 = vmatprep.subr.mxu0 0.0
  %5180 = vmatpush1.msra.mxu0 0.0
  %5181 = vmatprep.mubr.f32.mxu0 0.0
  %5182 = vmatmul.mubr.f32.gmra.mrb[0].mxu0 %v5115
  %v5183 = vpop.f32.mrb[0].mxu0
  %v5184 = vadd.f32 0.0, %v5183
  %v5185 = vpop.f32.mrb[0].mxu0
  %5186 = vdwg.mxu0
  %v5188 = vsel %vm2634, %v5105, 0
  %5190 = vmatprep.subr.mxu0 0.0
  %5191 = vmatpush1.msra.mxu0 %v5106
  %5192 = vmatprep.subr.mxu0 0.0
  %5193 = vmatpush1.msra.mxu0 %v5107
  %5194 = vmatprep.subr.mxu0 0.0
  %5195 = vmatpush1.msra.mxu0 %v5108
  %5196 = vmatprep.subr.mxu0 0.0
  %5197 = vmatpush1.msra.mxu0 %v5109
  %5198 = vmatprep.subr.mxu0 0.0
  %5199 = vmatpush1.msra.mxu0 %v5110
  %5200 = vmatprep.subr.mxu0 0.0
  %5201 = vmatpush1.msra.mxu0 %v5111
  %5202 = vmatprep.subr.mxu0 0.0
  %5203 = vmatpush1.msra.mxu0 %v5112
  %5204 = vmatprep.subr.mxu0 0.0
  %5205 = vmatpush1.msra.mxu0 %v5113
  %5206 = vmatprep.subr.mxu0 0.0
  %5207 = vmatpush1.msra.mxu0 0.0
  %5208 = vmatprep.subr.mxu0 0.0
  %5209 = vmatpush1.msra.mxu0 0.0
  %5210 = vmatprep.subr.mxu0 0.0
  %5211 = vmatpush1.msra.mxu0 0.0
  %5212 = vmatprep.subr.mxu0 0.0
  %5213 = vmatpush1.msra.mxu0 0.0
  %5214 = vmatprep.subr.mxu0 0.0
  %5215 = vmatpush1.msra.mxu0 0.0
  %5216 = vmatprep.subr.mxu0 0.0
  %5217 = vmatpush1.msra.mxu0 0.0
  %5218 = vmatprep.subr.mxu0 0.0
  %5219 = vmatpush1.msra.mxu0 0.0
  %5220 = vmatprep.subr.mxu0 0.0
  %5221 = vmatpush1.msra.mxu0 0.0
  %5222 = vmatprep.subr.mxu0 0.0
  %5223 = vmatpush1.msra.mxu0 0.0
  %5224 = vmatprep.subr.mxu0 0.0
  %5225 = vmatpush1.msra.mxu0 0.0
  %5226 = vmatprep.subr.mxu0 0.0
  %5227 = vmatpush1.msra.mxu0 0.0
  %5228 = vmatprep.subr.mxu0 0.0
  %5229 = vmatpush1.msra.mxu0 0.0
  %5230 = vmatprep.subr.mxu0 0.0
  %5231 = vmatpush1.msra.mxu0 0.0
  %5232 = vmatprep.subr.mxu0 0.0
  %5233 = vmatpush1.msra.mxu0 0.0
  %5234 = vmatprep.subr.mxu0 0.0
  %5235 = vmatpush1.msra.mxu0 0.0
  %5236 = vmatprep.subr.mxu0 0.0
  %5237 = vmatpush1.msra.mxu0 0.0
  %5238 = vmatprep.subr.mxu0 0.0
  %5239 = vmatpush1.msra.mxu0 0.0
  %5240 = vmatprep.subr.mxu0 0.0
  %5241 = vmatpush1.msra.mxu0 0.0
  %5242 = vmatprep.subr.mxu0 0.0
  %5243 = vmatpush1.msra.mxu0 0.0
  %5244 = vmatprep.subr.mxu0 0.0
  %5245 = vmatpush1.msra.mxu0 0.0
  %5246 = vmatprep.subr.mxu0 0.0
  %5247 = vmatpush1.msra.mxu0 0.0
  %5248 = vmatprep.subr.mxu0 0.0
  %5249 = vmatpush1.msra.mxu0 0.0
  %5250 = vmatprep.subr.mxu0 0.0
  %5251 = vmatpush1.msra.mxu0 0.0
  %5252 = vmatprep.subr.mxu0 0.0
  %5253 = vmatpush1.msra.mxu0 0.0
  %5254 = vmatprep.mubr.f32.mxu0 0.0
  %5255 = vmatmul.mubr.f32.gmra.mrb[0].mxu0 %v5188
  %v5256 = vpop.f32.mrb[0].mxu0
  %v5257 = vadd.f32 0.0, %v5256
  %v5258 = vpop.f32.mrb[0].mxu0
  %5259 = vdwg.mxu0
  %v5260 = vrcp.pop 32.0
  %v5261 = vmul.f32 %v5184, %v5260
  %v5262 = vmul.f32 %v5257, %v5260
  %v5263 = vmul.f32 %v5261, %v5261
  %v5264 = vsub.f32 %v5262, %v5263
  %v5265 = vmax.f32 %v5264, 0.0
  %v5266 = vld [vmem:[%s47] sm:$0x1]
  %v5267 = vadd.f32 %v5265, 1e-05
  %v5268 = vrsqrt.pop %v5267
  %v5269 = vmul.f32 %v5266, %v5268
  %v5270 = vld [vmem:[%s49] sm:$0x1]
  %v5271 = vmul.f32 %v5261, %v5269
  %v5272 = vsub.f32 %v5270, %v5271
  %v5273 = vld [vmem:[%s45] sm:$0xff]
  %v5274 = vld [vmem:[%s45 + $0x8] sm:$0xff]
  %v5276 = vsel %vm4073, %v5269, 0
  %5278 = vmatprep.subr.mxu0 0.0
  %5279 = vmatpush1.msra.mxu0 %v5273
  %5280 = vmatprep.subr.mxu0 0.0
  %5281 = vmatpush1.msra.mxu0 %v5274
  %5282 = vmatprep.subr.mxu0 0.0
  %5283 = vmatpush1.msra.mxu0 0.0
  %5284 = vmatprep.subr.mxu0 0.0
  %5285 = vmatpush1.msra.mxu0 0.0
  %5286 = vmatprep.subr.mxu0 0.0
  %5287 = vmatpush1.msra.mxu0 0.0
  %5288 = vmatprep.subr.mxu0 0.0
  %5289 = vmatpush1.msra.mxu0 0.0
  %5290 = vmatprep.subr.mxu0 0.0
  %5291 = vmatpush1.msra.mxu0 0.0
  %5292 = vmatprep.subr.mxu0 0.0
  %5293 = vmatpush1.msra.mxu0 0.0
  %5294 = vmatprep.subr.mxu0 0.0
  %5295 = vmatpush1.msra.mxu0 0.0
  %5296 = vmatprep.subr.mxu0 0.0
  %5297 = vmatpush1.msra.mxu0 0.0
  %5298 = vmatprep.subr.mxu0 0.0
  %5299 = vmatpush1.msra.mxu0 0.0
  %5300 = vmatprep.subr.mxu0 0.0
  %5301 = vmatpush1.msra.mxu0 0.0
  %5302 = vmatprep.subr.mxu0 0.0
  %5303 = vmatpush1.msra.mxu0 0.0
  %5304 = vmatprep.subr.mxu0 0.0
  %5305 = vmatpush1.msra.mxu0 0.0
  %5306 = vmatprep.subr.mxu0 0.0
  %5307 = vmatpush1.msra.mxu0 0.0
  %5308 = vmatprep.subr.mxu0 0.0
  %5309 = vmatpush1.msra.mxu0 0.0
  %5310 = vmatprep.subr.mxu0 0.0
  %5311 = vmatpush1.msra.mxu0 0.0
  %5312 = vmatprep.subr.mxu0 0.0
  %5313 = vmatpush1.msra.mxu0 0.0
  %5314 = vmatprep.subr.mxu0 0.0
  %5315 = vmatpush1.msra.mxu0 0.0
  %5316 = vmatprep.subr.mxu0 0.0
  %5317 = vmatpush1.msra.mxu0 0.0
  %5318 = vmatprep.subr.mxu0 0.0
  %5319 = vmatpush1.msra.mxu0 0.0
  %5320 = vmatprep.subr.mxu0 0.0
  %5321 = vmatpush1.msra.mxu0 0.0
  %5322 = vmatprep.subr.mxu0 0.0
  %5323 = vmatpush1.msra.mxu0 0.0
  %5324 = vmatprep.subr.mxu0 0.0
  %5325 = vmatpush1.msra.mxu0 0.0
  %5326 = vmatprep.subr.mxu0 0.0
  %5327 = vmatpush1.msra.mxu0 0.0
  %5328 = vmatprep.subr.mxu0 0.0
  %5329 = vmatpush1.msra.mxu0 0.0
  %5330 = vmatprep.subr.mxu0 0.0
  %5331 = vmatpush1.msra.mxu0 0.0
  %5332 = vmatprep.subr.mxu0 0.0
  %5333 = vmatpush1.msra.mxu0 0.0
  %5334 = vmatprep.subr.mxu0 0.0
  %5335 = vmatpush1.msra.mxu0 0.0
  %5336 = vmatprep.subr.mxu0 0.0
  %5337 = vmatpush1.msra.mxu0 0.0
  %5338 = vmatprep.subr.mxu0 0.0
  %5339 = vmatpush1.msra.mxu0 0.0
  %5340 = vmatprep.subr.mxu0 0.0
  %5341 = vmatpush1.msra.mxu0 0.0
  %5342 = vmatprep.mubr.f32.mxu0 0.0
  %5343 = vmatmul.mubr.f32.gmra.mrb[0].mxu0 %v5276
  %v5344 = vpop.f32.mrb[0].mxu0
  %v5345 = vadd.f32 0.0, %v5344
  %v5346 = vpop.f32.mrb[0].mxu0
  %5347 = vdwg.mxu0
  %v5349 = vsel %vm4073, %v5272, 0
  %5351 = vmatprep.subr.mxu0 0.0
  %5352 = vmatpush1.msra.mxu0 %v5273
  %5353 = vmatprep.subr.mxu0 0.0
  %5354 = vmatpush1.msra.mxu0 %v5274
  %5355 = vmatprep.subr.mxu0 0.0
  %5356 = vmatpush1.msra.mxu0 0.0
  %5357 = vmatprep.subr.mxu0 0.0
  %5358 = vmatpush1.msra.mxu0 0.0
  %5359 = vmatprep.subr.mxu0 0.0
  %5360 = vmatpush1.msra.mxu0 0.0
  %5361 = vmatprep.subr.mxu0 0.0
  %5362 = vmatpush1.msra.mxu0 0.0
  %5363 = vmatprep.subr.mxu0 0.0
  %5364 = vmatpush1.msra.mxu0 0.0
  %5365 = vmatprep.subr.mxu0 0.0
  %5366 = vmatpush1.msra.mxu0 0.0
  %5367 = vmatprep.subr.mxu0 0.0
  %5368 = vmatpush1.msra.mxu0 0.0
  %5369 = vmatprep.subr.mxu0 0.0
  %5370 = vmatpush1.msra.mxu0 0.0
  %5371 = vmatprep.subr.mxu0 0.0
  %5372 = vmatpush1.msra.mxu0 0.0
  %5373 = vmatprep.subr.mxu0 0.0
  %5374 = vmatpush1.msra.mxu0 0.0
  %5375 = vmatprep.subr.mxu0 0.0
  %5376 = vmatpush1.msra.mxu0 0.0
  %5377 = vmatprep.subr.mxu0 0.0
  %5378 = vmatpush1.msra.mxu0 0.0
  %5379 = vmatprep.subr.mxu0 0.0
  %5380 = vmatpush1.msra.mxu0 0.0
  %5381 = vmatprep.subr.mxu0 0.0
  %5382 = vmatpush1.msra.mxu0 0.0
  %5383 = vmatprep.subr.mxu0 0.0
  %5384 = vmatpush1.msra.mxu0 0.0
  %5385 = vmatprep.subr.mxu0 0.0
  %5386 = vmatpush1.msra.mxu0 0.0
  %5387 = vmatprep.subr.mxu0 0.0
  %5388 = vmatpush1.msra.mxu0 0.0
  %5389 = vmatprep.subr.mxu0 0.0
  %5390 = vmatpush1.msra.mxu0 0.0
  %5391 = vmatprep.subr.mxu0 0.0
  %5392 = vmatpush1.msra.mxu0 0.0
  %5393 = vmatprep.subr.mxu0 0.0
  %5394 = vmatpush1.msra.mxu0 0.0
  %5395 = vmatprep.subr.mxu0 0.0
  %5396 = vmatpush1.msra.mxu0 0.0
  %5397 = vmatprep.subr.mxu0 0.0
  %5398 = vmatpush1.msra.mxu0 0.0
  %5399 = vmatprep.subr.mxu0 0.0
  %5400 = vmatpush1.msra.mxu0 0.0
  %5401 = vmatprep.subr.mxu0 0.0
  %5402 = vmatpush1.msra.mxu0 0.0
  %5403 = vmatprep.subr.mxu0 0.0
  %5404 = vmatpush1.msra.mxu0 0.0
  %5405 = vmatprep.subr.mxu0 0.0
  %5406 = vmatpush1.msra.mxu0 0.0
  %5407 = vmatprep.subr.mxu0 0.0
  %5408 = vmatpush1.msra.mxu0 0.0
  %5409 = vmatprep.subr.mxu0 0.0
  %5410 = vmatpush1.msra.mxu0 0.0
  %5411 = vmatprep.subr.mxu0 0.0
  %5412 = vmatpush1.msra.mxu0 0.0
  %5413 = vmatprep.subr.mxu0 0.0
  %5414 = vmatpush1.msra.mxu0 0.0
  %5415 = vmatprep.mubr.f32.mxu0 0.0
  %5416 = vmatmul.mubr.f32.gmra.mrb[0].mxu0 %v5349
  %v5417 = vpop.f32.mrb[0].mxu0
  %v5418 = vadd.f32 0.0, %v5417
  %v5419 = vpop.f32.mrb[0].mxu0
  %5420 = vdwg.mxu0
  %v5421 = vlaneseq
  %v5422 = vshrl.u32 %v5421, 7
  %v5423 = vsub.s32 0, %v5422
  %v5424 = vrot.slane %v5345, %v5423
  %v5425 = vmul.f32 %v5072, %v5424
  %v5426 = vmul.f32 %v5073, %v5424
  %v5427 = vmul.f32 %v5074, %v5424
  %v5428 = vmul.f32 %v5075, %v5424
  %v5429 = vlaneseq
  %v5430 = vshrl.u32 %v5429, 7
  %v5431 = vsub.s32 0, %v5430
  %v5432 = vrot.slane %v5418, %v5431
  %v5433 = vadd.f32 %v5425, %v5432
  %v5434 = vadd.f32 %v5426, %v5432
  %v5435 = vadd.f32 %v5427, %v5432
  %v5436 = vadd.f32 %v5428, %v5432
  %v5437 = vmul.f32 %v5433, 0.1
  %v5438 = vmul.f32 %v5434, 0.1
  %v5439 = vmul.f32 %v5435, 0.1
  %v5440 = vmul.f32 %v5436, 0.1
  %v5441 = vmax.f32 %v5433, %v5437
  %v5442 = vmax.f32 %v5434, %v5438
  %v5443 = vmax.f32 %v5435, %v5439
  %v5444 = vmax.f32 %v5436, %v5440
  %v5445 = vld [vmem:[%s51] sm:$0xff]
  %v5446 = vld [vmem:[%s51 + $0x8] sm:$0xff]
  %v5447 = vld [vmem:[%s51 + $0x10] sm:$0xff]
  %v5448 = vld [vmem:[%s51 + $0x18] sm:$0xff]
  %v5449 = vld [vmem:[%s51 + $0x20] sm:$0xff]
  %v5450 = vld [vmem:[%s51 + $0x28] sm:$0xff]
  %v5451 = vld [vmem:[%s51 + $0x30] sm:$0xff]
  %v5452 = vld [vmem:[%s51 + $0x38] sm:$0xff]
  %v5453 = vld [vmem:[%s51 + $0x40] sm:$0xff]
  %v5454 = vld [vmem:[%s51 + $0x48] sm:$0xff]
  %v5455 = vld [vmem:[%s51 + $0x50] sm:$0xff]
  %v5456 = vld [vmem:[%s51 + $0x58] sm:$0xff]
  %v5457 = vld [vmem:[%s51 + $0x60] sm:$0xff]
  %v5458 = vld [vmem:[%s51 + $0x68] sm:$0xff]
  %v5459 = vld [vmem:[%s51 + $0x70] sm:$0xff]
  %v5460 = vld [vmem:[%s51 + $0x78] sm:$0xff]
  %v5462 = vsel %vm2634, %v5442, 0
  %5464 = vmatprep.subr.mxu0 0.0
  %5465 = vmatpush1.msra.mxu0 %v5453
  %5466 = vmatprep.subr.mxu0 0.0
  %5467 = vmatpush1.msra.mxu0 %v5454
  %5468 = vmatprep.subr.mxu0 0.0
  %5469 = vmatpush1.msra.mxu0 %v5455
  %5470 = vmatprep.subr.mxu0 0.0
  %5471 = vmatpush1.msra.mxu0 %v5456
  %5472 = vmatprep.subr.mxu0 0.0
  %5473 = vmatpush1.msra.mxu0 %v5457
  %5474 = vmatprep.subr.mxu0 0.0
  %5475 = vmatpush1.msra.mxu0 %v5458
  %5476 = vmatprep.subr.mxu0 0.0
  %5477 = vmatpush1.msra.mxu0 %v5459
  %5478 = vmatprep.subr.mxu0 0.0
  %5479 = vmatpush1.msra.mxu0 %v5460
  %5480 = vmatprep.subr.mxu0 0.0
  %5481 = vmatpush1.msra.mxu0 0.0
  %5482 = vmatprep.subr.mxu0 0.0
  %5483 = vmatpush1.msra.mxu0 0.0
  %5484 = vmatprep.subr.mxu0 0.0
  %5485 = vmatpush1.msra.mxu0 0.0
  %5486 = vmatprep.subr.mxu0 0.0
  %5487 = vmatpush1.msra.mxu0 0.0
  %5488 = vmatprep.subr.mxu0 0.0
  %5489 = vmatpush1.msra.mxu0 0.0
  %5490 = vmatprep.subr.mxu0 0.0
  %5491 = vmatpush1.msra.mxu0 0.0
  %5492 = vmatprep.subr.mxu0 0.0
  %5493 = vmatpush1.msra.mxu0 0.0
  %5494 = vmatprep.subr.mxu0 0.0
  %5495 = vmatpush1.msra.mxu0 0.0
  %5496 = vmatprep.subr.mxu0 0.0
  %5497 = vmatpush1.msra.mxu0 0.0
  %5498 = vmatprep.subr.mxu0 0.0
  %5499 = vmatpush1.msra.mxu0 0.0
  %5500 = vmatprep.subr.mxu0 0.0
  %5501 = vmatpush1.msra.mxu0 0.0
  %5502 = vmatprep.subr.mxu0 0.0
  %5503 = vmatpush1.msra.mxu0 0.0
  %5504 = vmatprep.subr.mxu0 0.0
  %5505 = vmatpush1.msra.mxu0 0.0
  %5506 = vmatprep.subr.mxu0 0.0
  %5507 = vmatpush1.msra.mxu0 0.0
  %5508 = vmatprep.subr.mxu0 0.0
  %5509 = vmatpush1.msra.mxu0 0.0
  %5510 = vmatprep.subr.mxu0 0.0
  %5511 = vmatpush1.msra.mxu0 0.0
  %5512 = vmatprep.subr.mxu0 0.0
  %5513 = vmatpush1.msra.mxu0 0.0
  %5514 = vmatprep.subr.mxu0 0.0
  %5515 = vmatpush1.msra.mxu0 0.0
  %5516 = vmatprep.subr.mxu0 0.0
  %5517 = vmatpush1.msra.mxu0 0.0
  %5518 = vmatprep.subr.mxu0 0.0
  %5519 = vmatpush1.msra.mxu0 0.0
  %5520 = vmatprep.subr.mxu0 0.0
  %5521 = vmatpush1.msra.mxu0 0.0
  %5522 = vmatprep.subr.mxu0 0.0
  %5523 = vmatpush1.msra.mxu0 0.0
  %5524 = vmatprep.subr.mxu0 0.0
  %5525 = vmatpush1.msra.mxu0 0.0
  %5526 = vmatprep.subr.mxu0 0.0
  %5527 = vmatpush1.msra.mxu0 0.0
  %5528 = vmatprep.mubr.f32.mxu0 0.0
  %5529 = vmatmul.mubr.f32.gmra.mrb[0].mxu0 %v5462
  %v5530 = vpop.f32.mrb[0].mxu0
  %v5531 = vadd.f32 0.0, %v5530
  %v5532 = vpop.f32.mrb[0].mxu0
  %5533 = vdwg.mxu0
  %v5535 = vsel %vm2634, %v5441, 0
  %5537 = vmatprep.subr.mxu0 0.0
  %5538 = vmatpush1.msra.mxu0 %v5445
  %5539 = vmatprep.subr.mxu0 0.0
  %5540 = vmatpush1.msra.mxu0 %v5446
  %5541 = vmatprep.subr.mxu0 0.0
  %5542 = vmatpush1.msra.mxu0 %v5447
  %5543 = vmatprep.subr.mxu0 0.0
  %5544 = vmatpush1.msra.mxu0 %v5448
  %5545 = vmatprep.subr.mxu0 0.0
  %5546 = vmatpush1.msra.mxu0 %v5449
  %5547 = vmatprep.subr.mxu0 0.0
  %5548 = vmatpush1.msra.mxu0 %v5450
  %5549 = vmatprep.subr.mxu0 0.0
  %5550 = vmatpush1.msra.mxu0 %v5451
  %5551 = vmatprep.subr.mxu0 0.0
  %5552 = vmatpush1.msra.mxu0 %v5452
  %5553 = vmatprep.subr.mxu0 0.0
  %5554 = vmatpush1.msra.mxu0 0.0
  %5555 = vmatprep.subr.mxu0 0.0
  %5556 = vmatpush1.msra.mxu0 0.0
  %5557 = vmatprep.subr.mxu0 0.0
  %5558 = vmatpush1.msra.mxu0 0.0
  %5559 = vmatprep.subr.mxu0 0.0
  %5560 = vmatpush1.msra.mxu0 0.0
  %5561 = vmatprep.subr.mxu0 0.0
  %5562 = vmatpush1.msra.mxu0 0.0
  %5563 = vmatprep.subr.mxu0 0.0
  %5564 = vmatpush1.msra.mxu0 0.0
  %5565 = vmatprep.subr.mxu0 0.0
  %5566 = vmatpush1.msra.mxu0 0.0
  %5567 = vmatprep.subr.mxu0 0.0
  %5568 = vmatpush1.msra.mxu0 0.0
  %5569 = vmatprep.subr.mxu0 0.0
  %5570 = vmatpush1.msra.mxu0 0.0
  %5571 = vmatprep.subr.mxu0 0.0
  %5572 = vmatpush1.msra.mxu0 0.0
  %5573 = vmatprep.subr.mxu0 0.0
  %5574 = vmatpush1.msra.mxu0 0.0
  %5575 = vmatprep.subr.mxu0 0.0
  %5576 = vmatpush1.msra.mxu0 0.0
  %5577 = vmatprep.subr.mxu0 0.0
  %5578 = vmatpush1.msra.mxu0 0.0
  %5579 = vmatprep.subr.mxu0 0.0
  %5580 = vmatpush1.msra.mxu0 0.0
  %5581 = vmatprep.subr.mxu0 0.0
  %5582 = vmatpush1.msra.mxu0 0.0
  %5583 = vmatprep.subr.mxu0 0.0
  %5584 = vmatpush1.msra.mxu0 0.0
  %5585 = vmatprep.subr.mxu0 0.0
  %5586 = vmatpush1.msra.mxu0 0.0
  %5587 = vmatprep.subr.mxu0 0.0
  %5588 = vmatpush1.msra.mxu0 0.0
  %5589 = vmatprep.subr.mxu0 0.0
  %5590 = vmatpush1.msra.mxu0 0.0
  %5591 = vmatprep.subr.mxu0 0.0
  %5592 = vmatpush1.msra.mxu0 0.0
  %5593 = vmatprep.subr.mxu0 0.0
  %5594 = vmatpush1.msra.mxu0 0.0
  %5595 = vmatprep.subr.mxu0 0.0
  %5596 = vmatpush1.msra.mxu0 0.0
  %5597 = vmatprep.subr.mxu0 0.0
  %5598 = vmatpush1.msra.mxu0 0.0
  %5599 = vmatprep.subr.mxu0 0.0
  %5600 = vmatpush1.msra.mxu0 0.0
  %5601 = vmatprep.mubr.f32.mxu0 0.0
  %5602 = vmatmul.mubr.f32.gmra.mrb[0].mxu0 %v5535
  %v5603 = vpop.f32.mrb[0].mxu0
  %v5604 = vadd.f32 %v5531, %v5603
  %v5605 = vpop.f32.mrb[0].mxu0
  %5606 = vdwg.mxu0
  %v5607 = vld [vmem:[%s51 + $0x80] sm:$0xff]
  %v5608 = vld [vmem:[%s51 + $0x88] sm:$0xff]
  %v5609 = vld [vmem:[%s51 + $0x90] sm:$0xff]
  %v5610 = vld [vmem:[%s51 + $0x98] sm:$0xff]
  %v5611 = vld [vmem:[%s51 + $0xa0] sm:$0xff]
  %v5612 = vld [vmem:[%s51 + $0xa8] sm:$0xff]
  %v5613 = vld [vmem:[%s51 + $0xb0] sm:$0xff]
  %v5614 = vld [vmem:[%s51 + $0xb8] sm:$0xff]
  %v5616 = vsel %vm2634, %v5443, 0
  %5618 = vmatprep.subr.mxu0 0.0
  %5619 = vmatpush1.msra.mxu0 %v5607
  %5620 = vmatprep.subr.mxu0 0.0
  %5621 = vmatpush1.msra.mxu0 %v5608
  %5622 = vmatprep.subr.mxu0 0.0
  %5623 = vmatpush1.msra.mxu0 %v5609
  %5624 = vmatprep.subr.mxu0 0.0
  %5625 = vmatpush1.msra.mxu0 %v5610
  %5626 = vmatprep.subr.mxu0 0.0
  %5627 = vmatpush1.msra.mxu0 %v5611
  %5628 = vmatprep.subr.mxu0 0.0
  %5629 = vmatpush1.msra.mxu0 %v5612
  %5630 = vmatprep.subr.mxu0 0.0
  %5631 = vmatpush1.msra.mxu0 %v5613
  %5632 = vmatprep.subr.mxu0 0.0
  %5633 = vmatpush1.msra.mxu0 %v5614
  %5634 = vmatprep.subr.mxu0 0.0
  %5635 = vmatpush1.msra.mxu0 0.0
  %5636 = vmatprep.subr.mxu0 0.0
  %5637 = vmatpush1.msra.mxu0 0.0
  %5638 = vmatprep.subr.mxu0 0.0
  %5639 = vmatpush1.msra.mxu0 0.0
  %5640 = vmatprep.subr.mxu0 0.0
  %5641 = vmatpush1.msra.mxu0 0.0
  %5642 = vmatprep.subr.mxu0 0.0
  %5643 = vmatpush1.msra.mxu0 0.0
  %5644 = vmatprep.subr.mxu0 0.0
  %5645 = vmatpush1.msra.mxu0 0.0
  %5646 = vmatprep.subr.mxu0 0.0
  %5647 = vmatpush1.msra.mxu0 0.0
  %5648 = vmatprep.subr.mxu0 0.0
  %5649 = vmatpush1.msra.mxu0 0.0
  %5650 = vmatprep.subr.mxu0 0.0
  %5651 = vmatpush1.msra.mxu0 0.0
  %5652 = vmatprep.subr.mxu0 0.0
  %5653 = vmatpush1.msra.mxu0 0.0
  %5654 = vmatprep.subr.mxu0 0.0
  %5655 = vmatpush1.msra.mxu0 0.0
  %5656 = vmatprep.subr.mxu0 0.0
  %5657 = vmatpush1.msra.mxu0 0.0
  %5658 = vmatprep.subr.mxu0 0.0
  %5659 = vmatpush1.msra.mxu0 0.0
  %5660 = vmatprep.subr.mxu0 0.0
  %5661 = vmatpush1.msra.mxu0 0.0
  %5662 = vmatprep.subr.mxu0 0.0
  %5663 = vmatpush1.msra.mxu0 0.0
  %5664 = vmatprep.subr.mxu0 0.0
  %5665 = vmatpush1.msra.mxu0 0.0
  %5666 = vmatprep.subr.mxu0 0.0
  %5667 = vmatpush1.msra.mxu0 0.0
  %5668 = vmatprep.subr.mxu0 0.0
  %5669 = vmatpush1.msra.mxu0 0.0
  %5670 = vmatprep.subr.mxu0 0.0
  %5671 = vmatpush1.msra.mxu0 0.0
  %5672 = vmatprep.subr.mxu0 0.0
  %5673 = vmatpush1.msra.mxu0 0.0
  %5674 = vmatprep.subr.mxu0 0.0
  %5675 = vmatpush1.msra.mxu0 0.0
  %5676 = vmatprep.subr.mxu0 0.0
  %5677 = vmatpush1.msra.mxu0 0.0
  %5678 = vmatprep.subr.mxu0 0.0
  %5679 = vmatpush1.msra.mxu0 0.0
  %5680 = vmatprep.subr.mxu0 0.0
  %5681 = vmatpush1.msra.mxu0 0.0
  %5682 = vmatprep.mubr.f32.mxu0 0.0
  %5683 = vmatmul.mubr.f32.gmra.mrb[0].mxu0 %v5616
  %v5684 = vpop.f32.mrb[0].mxu0
  %v5685 = vadd.f32 0.0, %v5684
  %v5686 = vpop.f32.mrb[0].mxu0
  %5687 = vdwg.mxu0
  %v5688 = vadd.f32 %v5604, %v5685
  %v5689 = vld [vmem:[%s51 + $0xc0] sm:$0xff]
  %v5690 = vld [vmem:[%s51 + $0xc8] sm:$0xff]
  %v5691 = vld [vmem:[%s51 + $0xd0] sm:$0xff]
  %v5692 = vld [vmem:[%s51 + $0xd8] sm:$0xff]
  %v5693 = vld [vmem:[%s51 + $0xe0] sm:$0xff]
  %v5694 = vld [vmem:[%s51 + $0xe8] sm:$0xff]
  %v5695 = vld [vmem:[%s51 + $0xf0] sm:$0xff]
  %v5696 = vld [vmem:[%s51 + $0xf8] sm:$0xff]
  %v5698 = vsel %vm2634, %v5444, 0
  %5700 = vmatprep.subr.mxu0 0.0
  %5701 = vmatpush1.msra.mxu0 %v5689
  %5702 = vmatprep.subr.mxu0 0.0
  %5703 = vmatpush1.msra.mxu0 %v5690
  %5704 = vmatprep.subr.mxu0 0.0
  %5705 = vmatpush1.msra.mxu0 %v5691
  %5706 = vmatprep.subr.mxu0 0.0
  %5707 = vmatpush1.msra.mxu0 %v5692
  %5708 = vmatprep.subr.mxu0 0.0
  %5709 = vmatpush1.msra.mxu0 %v5693
  %5710 = vmatprep.subr.mxu0 0.0
  %5711 = vmatpush1.msra.mxu0 %v5694
  %5712 = vmatprep.subr.mxu0 0.0
  %5713 = vmatpush1.msra.mxu0 %v5695
  %5714 = vmatprep.subr.mxu0 0.0
  %5715 = vmatpush1.msra.mxu0 %v5696
  %5716 = vmatprep.subr.mxu0 0.0
  %5717 = vmatpush1.msra.mxu0 0.0
  %5718 = vmatprep.subr.mxu0 0.0
  %5719 = vmatpush1.msra.mxu0 0.0
  %5720 = vmatprep.subr.mxu0 0.0
  %5721 = vmatpush1.msra.mxu0 0.0
  %5722 = vmatprep.subr.mxu0 0.0
  %5723 = vmatpush1.msra.mxu0 0.0
  %5724 = vmatprep.subr.mxu0 0.0
  %5725 = vmatpush1.msra.mxu0 0.0
  %5726 = vmatprep.subr.mxu0 0.0
  %5727 = vmatpush1.msra.mxu0 0.0
  %5728 = vmatprep.subr.mxu0 0.0
  %5729 = vmatpush1.msra.mxu0 0.0
  %5730 = vmatprep.subr.mxu0 0.0
  %5731 = vmatpush1.msra.mxu0 0.0
  %5732 = vmatprep.subr.mxu0 0.0
  %5733 = vmatpush1.msra.mxu0 0.0
  %5734 = vmatprep.subr.mxu0 0.0
  %5735 = vmatpush1.msra.mxu0 0.0
  %5736 = vmatprep.subr.mxu0 0.0
  %5737 = vmatpush1.msra.mxu0 0.0
  %5738 = vmatprep.subr.mxu0 0.0
  %5739 = vmatpush1.msra.mxu0 0.0
  %5740 = vmatprep.subr.mxu0 0.0
  %5741 = vmatpush1.msra.mxu0 0.0
  %5742 = vmatprep.subr.mxu0 0.0
  %5743 = vmatpush1.msra.mxu0 0.0
  %5744 = vmatprep.subr.mxu0 0.0
  %5745 = vmatpush1.msra.mxu0 0.0
  %5746 = vmatprep.subr.mxu0 0.0
  %5747 = vmatpush1.msra.mxu0 0.0
  %5748 = vmatprep.subr.mxu0 0.0
  %5749 = vmatpush1.msra.mxu0 0.0
  %5750 = vmatprep.subr.mxu0 0.0
  %5751 = vmatpush1.msra.mxu0 0.0
  %5752 = vmatprep.subr.mxu0 0.0
  %5753 = vmatpush1.msra.mxu0 0.0
  %5754 = vmatprep.subr.mxu0 0.0
  %5755 = vmatpush1.msra.mxu0 0.0
  %5756 = vmatprep.subr.mxu0 0.0
  %5757 = vmatpush1.msra.mxu0 0.0
  %5758 = vmatprep.subr.mxu0 0.0
  %5759 = vmatpush1.msra.mxu0 0.0
  %5760 = vmatprep.subr.mxu0 0.0
  %5761 = vmatpush1.msra.mxu0 0.0
  %5762 = vmatprep.subr.mxu0 0.0
  %5763 = vmatpush1.msra.mxu0 0.0
  %5764 = vmatprep.mubr.f32.mxu0 0.0
  %5765 = vmatmul.mubr.f32.gmra.mrb[0].mxu0 %v5698
  %v5766 = vpop.f32.mrb[0].mxu0
  %v5767 = vadd.f32 0.0, %v5766
  %v5768 = vpop.f32.mrb[0].mxu0
  %5769 = vdwg.mxu0
  %v5770 = vadd.f32 %v5688, %v5767
  %v5771 = vld [vmem:[%s53] sm:$0x1]
  %v5773 = vlaneseq
  %v5774 = vshrl.u32 %v5773, 7
  %v5775 = vsub.s32 0, %v5774
  %v5776 = vrot.slane %v5771, %v5775
  %v5778 = vadd.f32 %v5770, %v5776
  %v5779 = vmul.f32 %v5778, 0.1
  %v5780 = vmax.f32 %v5778, %v5779
  %v5781 = vld [vmem:[%s55] sm:$0xff]
  %v5782 = vld [vmem:[%s55 + $0x8] sm:$0xff]
  %v5783 = vld [vmem:[%s55 + $0x10] sm:$0xff]
  %v5784 = vld [vmem:[%s55 + $0x18] sm:$0xff]
  %v5785 = vld [vmem:[%s55 + $0x20] sm:$0xff]
  %v5786 = vld [vmem:[%s55 + $0x28] sm:$0xff]
  %v5787 = vld [vmem:[%s55 + $0x30] sm:$0xff]
  %v5788 = vld [vmem:[%s55 + $0x38] sm:$0xff]
  %v5789 = vld [vmem:[%s55 + $0x40] sm:$0xff]
  %v5790 = vld [vmem:[%s55 + $0x48] sm:$0xff]
  %v5791 = vld [vmem:[%s55 + $0x50] sm:$0xff]
  %v5792 = vld [vmem:[%s55 + $0x58] sm:$0xff]
  %v5793 = vld [vmem:[%s55 + $0x60] sm:$0xf]
  %v5794 = vld [vmem:[%s57] sm:$0x1]
  %v5796 = vlaneseq
  %v5797 = vshrl.u32 %v5796, 7
  %v5798 = vsub.s32 0, %v5797
  %v5799 = vrot.slane %v5794, %v5798
  %vm5801 = vcmask 818176
  %v5803 = vsel %vm5801, %v5780, 0
  %vm5805 = vcmask 1043456
  %v5807 = vsel %vm5805, %v5793, 0
  %5809 = vmatprep.subr.mxu0 0.0
  %5810 = vmatpush1.msra.mxu0 %v5781
  %5811 = vmatprep.subr.mxu0 0.0
  %5812 = vmatpush1.msra.mxu0 %v5782
  %5813 = vmatprep.subr.mxu0 0.0
  %5814 = vmatpush1.msra.mxu0 %v5783
  %5815 = vmatprep.subr.mxu0 0.0
  %5816 = vmatpush1.msra.mxu0 %v5784
  %5817 = vmatprep.subr.mxu0 0.0
  %5818 = vmatpush1.msra.mxu0 %v5785
  %5819 = vmatprep.subr.mxu0 0.0
  %5820 = vmatpush1.msra.mxu0 %v5786
  %5821 = vmatprep.subr.mxu0 0.0
  %5822 = vmatpush1.msra.mxu0 %v5787
  %5823 = vmatprep.subr.mxu0 0.0
  %5824 = vmatpush1.msra.mxu0 %v5788
  %5825 = vmatprep.subr.mxu0 0.0
  %5826 = vmatpush1.msra.mxu0 %v5789
  %5827 = vmatprep.subr.mxu0 0.0
  %5828 = vmatpush1.msra.mxu0 %v5790
  %5829 = vmatprep.subr.mxu0 0.0
  %5830 = vmatpush1.msra.mxu0 %v5791
  %5831 = vmatprep.subr.mxu0 0.0
  %5832 = vmatpush1.msra.mxu0 %v5792
  %5833 = vmatprep.subr.mxu0 0.0
  %5834 = vmatpush1.msra.mxu0 %v5807
  %5835 = vmatprep.subr.mxu0 0.0
  %5836 = vmatpush1.msra.mxu0 0.0
  %5837 = vmatprep.subr.mxu0 0.0
  %5838 = vmatpush1.msra.mxu0 0.0
  %5839 = vmatprep.subr.mxu0 0.0
  %5840 = vmatpush1.msra.mxu0 0.0
  %5841 = vmatprep.subr.mxu0 0.0
  %5842 = vmatpush1.msra.mxu0 0.0
  %5843 = vmatprep.subr.mxu0 0.0
  %5844 = vmatpush1.msra.mxu0 0.0
  %5845 = vmatprep.subr.mxu0 0.0
  %5846 = vmatpush1.msra.mxu0 0.0
  %5847 = vmatprep.subr.mxu0 0.0
  %5848 = vmatpush1.msra.mxu0 0.0
  %5849 = vmatprep.subr.mxu0 0.0
  %5850 = vmatpush1.msra.mxu0 0.0
  %5851 = vmatprep.subr.mxu0 0.0
  %5852 = vmatpush1.msra.mxu0 0.0
  %5853 = vmatprep.subr.mxu0 0.0
  %5854 = vmatpush1.msra.mxu0 0.0
  %5855 = vmatprep.subr.mxu0 0.0
  %5856 = vmatpush1.msra.mxu0 0.0
  %5857 = vmatprep.subr.mxu0 0.0
  %5858 = vmatpush1.msra.mxu0 0.0
  %5859 = vmatprep.subr.mxu0 0.0
  %5860 = vmatpush1.msra.mxu0 0.0
  %5861 = vmatprep.subr.mxu0 0.0
  %5862 = vmatpush1.msra.mxu0 0.0
  %5863 = vmatprep.subr.mxu0 0.0
  %5864 = vmatpush1.msra.mxu0 0.0
  %5865 = vmatprep.subr.mxu0 0.0
  %5866 = vmatpush1.msra.mxu0 0.0
  %5867 = vmatprep.subr.mxu0 0.0
  %5868 = vmatpush1.msra.mxu0 0.0
  %5869 = vmatprep.subr.mxu0 0.0
  %5870 = vmatpush1.msra.mxu0 0.0
  %5871 = vmatprep.subr.mxu0 0.0
  %5872 = vmatpush1.msra.mxu0 0.0
  %5873 = vmatprep.mubr.f32.mxu0 0.0
  %5874 = vmatmul.mubr.f32.gmra.mrb[0].mxu0 %v5803
  %v5875 = vpop.f32.mrb[0].mxu0
  %v5876 = vadd.f32 %v5799, %v5875
  %v5877 = vpop.f32.mrb[0].mxu0
  %5878 = vdwg.mxu0
  %5879 = vst [vmem:[%s59] sm:$0xff] %v5876
  // Predicated region
  $region118: #{discriminator_forward.1} parent=0 // pred_check
    _
  $region119: #{discriminator_forward.1} parent=0 // pred_check_branch
    %5881 = sbr.rel (0) target = $region121
  $region120: #{discriminator_forward.1} parent=0 // pred_region
    _
  $region121: #{discriminator_forward.1} parent=0 // pred_fallthru
    _
  // Predicated region
  $region122: #{discriminator_forward.1} parent=0 // pred_check
    _
  $region123: #{discriminator_forward.1} parent=0 // pred_check_branch
    %5883 = sbr.rel (0) target = $region125
  $region124: #{discriminator_forward.1} parent=0 // pred_region
    _
  $region125: #{discriminator_forward.1} parent=0 // pred_fallthru
    _

</llo_original>
